<compile_context>
chip_gen: v7x
topology: tpu7x:2x2x1
jax: 0.10.0
libtpu: 0.0.40
codegen_flags: <defaults>
</compile_context>

<pallas_src>
import functools

import numpy as np
import jax
import jax.numpy as jnp
from jax.experimental import pallas as pl
from jax.experimental.pallas import tpu as pltpu

_C_PAD = 16   # pad input channels 7 -> 16 (bf16 packs 2 rows/sublane)
_NC_PAD = 8   # pad logits 2 -> 8 so the output store is a full-sublane block
_L_IN = 66    # Linear(160, .) with 16 channels and 3 pools implies L = 66


def _round_up(a, m):
    return ((a + m - 1) // m) * m


def _default_group_size():
    """Output positions per banded-conv matmul, sized to the MXU height."""
    try:
        kind = jax.devices()[0].device_kind.lower()
    except Exception:
        kind = ""
    if "v6" in kind or "v7" in kind:
        return 14                       # 256x256 MXU: M=224, K=256
    return 8                            # 128x128 MXU: M=128, K=160


def _group_starts(L, G):
    """Static group starts covering [0, L); last group clamped to L-G so no
    read/write ever goes past position L+1 of the padded buffer."""
    starts = list(range(0, L - G + 1, G))
    if not starts:
        starts = [0]
    if starts[-1] + G < L:
        starts.append(L - G)
    return starts


def _band_weight(w, G, cin_pad):
    """Block-banded conv weight: rows = G output positions x Cout,
    cols = (G+2) padded input positions x Cin_pad.  Built once on host."""
    w = np.asarray(w, dtype=np.float32)
    cout, cin, k = w.shape              # k == 3
    ws = np.zeros((cout, k, cin_pad), np.float32)
    ws[:, :, :cin] = np.transpose(w, (0, 2, 1))          # [co, tap, ci]
    ws = ws.reshape(cout, k * cin_pad)                   # col = tap*Cin + ci
    wb = np.zeros((G * cout, (G + 2) * cin_pad), np.float32)
    for go in range(G):
        wb[go * cout:(go + 1) * cout,
           go * cin_pad:(go + 3) * cin_pad] = ws
    return jnp.asarray(wb)


def _cnn1d_kernel(x_ref,
                  w1, b1, w2, b2, w3, b3, w4, b4, w5, b5, w6, b6,
                  fw1, fb1, fw2, fb2, fw3, fb3,
                  out_ref, bufa, bufb, *, G, act_dtype):
    bt = bufa.shape[2]

    def conv_relu(src, dst, L, w_ref, b_ref):
        """Conv1d(k=3, s=1, p=1) + bias + ReLU via banded matmuls."""
        cin = src.shape[1]
        cout = dst.shape[1]
        w = w_ref[...]                                    # (G*Cout, (G+2)*Cin)
        b = b_ref[...]                                    # (G*Cout, 1) f32
        for g0 in _group_starts(L, G):
            # (G+2) padded positions -> ((G+2)*Cin, Bt): tile-preserving merge.
            slab = src[g0:g0 + G + 2, :, :].reshape((G + 2) * cin, bt)
            y = jnp.dot(w, slab, preferred_element_type=jnp.float32)
            y = jnp.maximum(y + b, 0.0)                   # bias + ReLU in f32
            dst[1 + g0:1 + g0 + G, :, :] = (
                y.astype(act_dtype).reshape(G, cout, bt))
        # Re-establish the zero halo read by the next conv / pool.
        zp = jnp.zeros((1, cout, bt), act_dtype)
        dst[0:1, :, :] = zp
        dst[L + 1:L + 2, :, :] = zp

    def maxpool2(src, dst, L_in):
        """MaxPool1d(k=2, s=2, p=1).  Zero pads stand in for -inf: inputs are
        post-ReLU (>= 0), so max with 0 is exact."""
        L_out = L_in // 2 + 1
        c = src.shape[1]
        hp = src[0:2 * L_out, :, :].reshape(L_out, 2, c, bt)
        dst[1:1 + L_out, :, :] = jnp.maximum(hp[:, 0, :, :], hp[:, 1, :, :])
        zp = jnp.zeros((1, c, bt), act_dtype)
        dst[0:1, :, :] = zp
        dst[L_out + 1:L_out + 2, :, :] = zp

    # conv/conv/pool x3, ping-ponging the two padded scratch buffers.
    conv_relu(x_ref, bufa, 66, w1, b1)
    conv_relu(bufa, bufb, 66, w2, b2)
    maxpool2(bufb, bufa, 66)            # 66 -> 34
    conv_relu(bufa, bufb, 34, w3, b3)
    conv_relu(bufb, bufa, 34, w4, b4)
    maxpool2(bufa, bufb, 34)            # 34 -> 18
    conv_relu(bufb, bufa, 18, w5, b5)
    conv_relu(bufa, bufb, 18, w6, b6)
    maxpool2(bufb, bufa, 18)            # 18 -> 10

    # Flatten (contiguous slab, reshape only) + MLP head.  fw1 is pre-permuted
    # in the wrapper so row index l*16 + c matches torch's flatten c*10 + l.
    hf = bufa[1:11, :, :].reshape(160, bt)                # (160, Bt)
    z = jnp.dot(fw1[...], hf, preferred_element_type=jnp.float32)
    z = jnp.maximum(z + fb1[...], 0.0)                    # (128, Bt)
    z = jnp.dot(fw2[...], z.astype(act_dtype), preferred_element_type=jnp.float32)
    z = jnp.maximum(z + fb2[...], 0.0)                    # (64, Bt)
    z = jnp.dot(fw3[...], z.astype(act_dtype), preferred_element_type=jnp.float32)
    out_ref[...] = z + fb3[...]                           # (8, Bt) f32


def cnn1d_forward(x, params, *, block_batch=512, use_bf16=True, group_size=None):
    """x: (B, L=66, C_in=7) -> logits (B, num_classes)."""
    B, L, Cin = x.shape
    assert (L, Cin) == (_L_IN, 7), "Linear(160, .) implies L=66, C_in=7"
    cdt = jnp.bfloat16 if use_bf16 else jnp.float32
    G = min(group_size if group_size is not None else _default_group_size(), 18)
    NC = params["linears"][-1][0].shape[0]

    # Batch on the 128-wide lane axis.
    Bt = min(_round_up(block_batch, 128), _round_up(B, 128))
    B_pad = _round_up(B, Bt)

    # (B, L, C) -> (L+2, 16, B_pad): position outer with a zero halo, channels
    # on sublanes, batch on lanes.  Cast to the MXU input dtype here so the
    # kernel never re-casts the largest tensor and HBM traffic is halved (bf16).
    x_t = jnp.transpose(x, (1, 2, 0)).astype(cdt)
    x_t = jnp.pad(x_t, ((1, 1), (0, _C_PAD - Cin), (0, B_pad - B)))

    kernel_args = [x_t]
    for w, b in params["convs"]:
        wb = _band_weight(w, G, _C_PAD).astype(cdt)
        bb = jnp.tile(jnp.asarray(b, jnp.float32), G)[:, None]
        kernel_args += [wb, bb]

    (W1, c1), (W2, c2), (W3, c3) = params["linears"]
    # torch flatten index = c*10 + l ; kernel flatten index = l*16 + c.
    W1p = jnp.transpose(W1.reshape(-1, 16, 10), (0, 2, 1)).reshape(-1, 160)
    W3p = jnp.zeros((_NC_PAD, W3.shape[1]), jnp.float32).at[:NC].set(W3)
    c3p = jnp.zeros((_NC_PAD, 1), jnp.float32).at[:NC, 0].set(c3)
    kernel_args += [W1p.astype(cdt), c1[:, None].astype(jnp.float32),
                    W2.astype(cdt), c2[:, None].astype(jnp.float32),
                    W3p.astype(cdt), c3p]

    def const_spec(a):
        nd = a.ndim
        return pl.BlockSpec(a.shape, lambda i, _nd=nd: (0,) * _nd)

    in_specs = [pl.BlockSpec((L + 2, _C_PAD, Bt), lambda i: (0, 0, i))]
    in_specs += [const_spec(a) for a in kernel_args[1:]]

    # Raise the scoped VMEM limit only if the estimate needs it (item 3).
    elt = 2 if use_bf16 else 4
    vmem_est = 4 * (L + 2) * _C_PAD * Bt * elt + (1 << 20)
    vmem_limit = None
    if vmem_est > 12 * 1024 * 1024:
        vmem_limit = min(2 * vmem_est, 96 * 1024 * 1024)

    out = pl.pallas_call(
        functools.partial(_cnn1d_kernel, G=G, act_dtype=cdt),
        out_shape=jax.ShapeDtypeStruct((_NC_PAD, B_pad), jnp.float32),
        grid_spec=pltpu.PrefetchScalarGridSpec(
            num_scalar_prefetch=0,
            grid=(B_pad // Bt,),
            in_specs=in_specs,
            out_specs=pl.BlockSpec((_NC_PAD, Bt), lambda i: (0, i)),
            scratch_shapes=[pltpu.VMEM((L + 2, _C_PAD, Bt), cdt),
                            pltpu.VMEM((L + 2, _C_PAD, Bt), cdt)]),
        compiler_params=pltpu.CompilerParams(
            dimension_semantics=("parallel",),   # independent batch tiles
            vmem_limit_bytes=vmem_limit),
    )(*kernel_args)
    return jnp.transpose(out[:NC, :B])


def _init_params(key, input_channels=7, num_classes=2):
    """Deterministic PyTorch-style (uniform fan-in) init for all layers."""
    conv_cfg = [(input_channels, 16)] + [(16, 16)] * 5
    lin_cfg = [(160, 128), (128, 64), (64, num_classes)]
    params = {"convs": [], "linears": []}
    for cin, cout in conv_cfg:
        key, k1, k2 = jax.random.split(key, 3)
        bound = 1.0 / np.sqrt(cin * 3)
        w = jax.random.uniform(k1, (cout, cin, 3), jnp.float32, -bound, bound)
        b = jax.random.uniform(k2, (cout,), jnp.float32, -bound, bound)
        params["convs"].append((w, b))
    for fin, fout in lin_cfg:
        key, k1, k2 = jax.random.split(key, 3)
        bound = 1.0 / np.sqrt(fin)
        W = jax.random.uniform(k1, (fout, fin), jnp.float32, -bound, bound)
        c = jax.random.uniform(k2, (fout,), jnp.float32, -bound, bound)
        params["linears"].append((W, c))
    return params


def cnn1d_reference(x, params):
    """Pure-JAX reference mirroring the PyTorch module."""
    h = jnp.transpose(x, (0, 2, 1))  # (B, C, L)

    def conv(h, w, b):
        y = jax.lax.conv_general_dilated(
            h, w, window_strides=(1,), padding=[(1, 1)],
            dimension_numbers=("NCH", "OIH", "NCH"),
            precision=jax.lax.Precision.HIGHEST)
        return jax.nn.relu(y + b[None, :, None])

    def pool(h):
        return jax.lax.reduce_window(
            h, -jnp.inf, jax.lax.max,
            (1, 1, 2), (1, 1, 2), ((0, 0), (0, 0), (1, 1)))

    convs = params["convs"]
    for i in range(0, 6, 2):
        h = conv(h, *convs[i])
        h = conv(h, *convs[i + 1])
        h = pool(h)
    h = h.reshape(h.shape[0], -1)  # (B, 160), channel-major
    (W1, c1), (W2, c2), (W3, c3) = params["linears"]
    h = jax.nn.relu(h @ W1.T + c1)
    h = jax.nn.relu(h @ W2.T + c2)
    return h @ W3.T + c3


if __name__ == "__main__":
    key = jax.random.PRNGKey(0)
    pkey, xkey = jax.random.split(key)
    params = _init_params(pkey)
    # batch=2, seq=66 (required by Linear(160, .)), channels=7
    x = jax.random.normal(xkey, (2, _L_IN, 7), dtype=jnp.float32)

    ref = jax.block_until_ready(cnn1d_reference(x, params))

    out_f32 = jax.block_until_ready(cnn1d_forward(x, params, use_bf16=False))
    np.testing.assert_allclose(np.asarray(out_f32), np.asarray(ref),
                               rtol=5e-3, atol=5e-3)

    # bf16 MXU-input fast path (default); elementwise math stays f32.
    out_bf16 = jax.block_until_ready(cnn1d_forward(x, params, use_bf16=True))
    np.testing.assert_allclose(np.asarray(out_bf16), np.asarray(ref),
                               rtol=5e-2, atol=5e-2)

    print("KERNEL_OK")
</pallas_src>

<mosaic_0001>
module attributes {stable_mosaic.version = 11 : i64} {
  func.func @_cnn1d_kernel(%arg0: i32, %arg1: memref<68x16x128xf32, #tpu.memory_space<vmem>>, %arg2: memref<128x160xf32, #tpu.memory_space<vmem>>, %arg3: memref<128x1xf32, #tpu.memory_space<vmem>>, %arg4: memref<128x160xf32, #tpu.memory_space<vmem>>, %arg5: memref<128x1xf32, #tpu.memory_space<vmem>>, %arg6: memref<128x160xf32, #tpu.memory_space<vmem>>, %arg7: memref<128x1xf32, #tpu.memory_space<vmem>>, %arg8: memref<128x160xf32, #tpu.memory_space<vmem>>, %arg9: memref<128x1xf32, #tpu.memory_space<vmem>>, %arg10: memref<128x160xf32, #tpu.memory_space<vmem>>, %arg11: memref<128x1xf32, #tpu.memory_space<vmem>>, %arg12: memref<128x160xf32, #tpu.memory_space<vmem>>, %arg13: memref<128x1xf32, #tpu.memory_space<vmem>>, %arg14: memref<128x160xf32, #tpu.memory_space<vmem>>, %arg15: memref<128x1xf32, #tpu.memory_space<vmem>>, %arg16: memref<64x128xf32, #tpu.memory_space<vmem>>, %arg17: memref<64x1xf32, #tpu.memory_space<vmem>>, %arg18: memref<8x64xf32, #tpu.memory_space<vmem>>, %arg19: memref<8x1xf32, #tpu.memory_space<vmem>>, %arg20: memref<8x128xf32, #tpu.memory_space<vmem>>, %arg21: memref<68x16x128xf32, #tpu.memory_space<vmem>>, %arg22: memref<68x16x128xf32, #tpu.memory_space<vmem>>) attributes {dimension_semantics = [#tpu.dimension_semantics<parallel>], iteration_bounds = array<i64: 1>, scalar_prefetch = 0 : i64, scratch_operands = 2 : i64, tpu.core_type = #tpu.core_type<tc>, window_params = [{transform_indices = @transform_0, window_bounds = array<i64: 68, 16, 128>}, {pipeline_mode = #tpu.pipeline_mode<synchronous>, transform_indices = @transform_1, window_bounds = array<i64: 128, 160>}, {pipeline_mode = #tpu.pipeline_mode<synchronous>, transform_indices = @transform_2, window_bounds = array<i64: 128, 1>}, {pipeline_mode = #tpu.pipeline_mode<synchronous>, transform_indices = @transform_3, window_bounds = array<i64: 128, 160>}, {pipeline_mode = #tpu.pipeline_mode<synchronous>, transform_indices = @transform_4, window_bounds = array<i64: 128, 1>}, {pipeline_mode = #tpu.pipeline_mode<synchronous>, transform_indices = @transform_5, window_bounds = array<i64: 128, 160>}, {pipeline_mode = #tpu.pipeline_mode<synchronous>, transform_indices = @transform_6, window_bounds = array<i64: 128, 1>}, {pipeline_mode = #tpu.pipeline_mode<synchronous>, transform_indices = @transform_7, window_bounds = array<i64: 128, 160>}, {pipeline_mode = #tpu.pipeline_mode<synchronous>, transform_indices = @transform_8, window_bounds = array<i64: 128, 1>}, {pipeline_mode = #tpu.pipeline_mode<synchronous>, transform_indices = @transform_9, window_bounds = array<i64: 128, 160>}, {pipeline_mode = #tpu.pipeline_mode<synchronous>, transform_indices = @transform_10, window_bounds = array<i64: 128, 1>}, {pipeline_mode = #tpu.pipeline_mode<synchronous>, transform_indices = @transform_11, window_bounds = array<i64: 128, 160>}, {pipeline_mode = #tpu.pipeline_mode<synchronous>, transform_indices = @transform_12, window_bounds = array<i64: 128, 1>}, {pipeline_mode = #tpu.pipeline_mode<synchronous>, transform_indices = @transform_13, window_bounds = array<i64: 128, 160>}, {pipeline_mode = #tpu.pipeline_mode<synchronous>, transform_indices = @transform_14, window_bounds = array<i64: 128, 1>}, {pipeline_mode = #tpu.pipeline_mode<synchronous>, transform_indices = @transform_15, window_bounds = array<i64: 64, 128>}, {pipeline_mode = #tpu.pipeline_mode<synchronous>, transform_indices = @transform_16, window_bounds = array<i64: 64, 1>}, {pipeline_mode = #tpu.pipeline_mode<synchronous>, transform_indices = @transform_17, window_bounds = array<i64: 8, 64>}, {pipeline_mode = #tpu.pipeline_mode<synchronous>, transform_indices = @transform_18, window_bounds = array<i64: 8, 1>}, {transform_indices = @transform_19, window_bounds = array<i64: 8, 128>}]} {
    %c0 = arith.constant 0 : index
    %c0_0 = arith.constant 0 : index
    %0 = vector.load %arg2[%c0, %c0_0] : memref<128x160xf32, #tpu.memory_space<vmem>>, vector<128x160xf32>
    %c0_1 = arith.constant 0 : index
    %c0_2 = arith.constant 0 : index
    %1 = vector.load %arg3[%c0_1, %c0_2] : memref<128x1xf32, #tpu.memory_space<vmem>>, vector<128x1xf32>
    %c0_3 = arith.constant 0 : index
    %c0_4 = arith.constant 0 : index
    %c0_5 = arith.constant 0 : index
    %2 = vector.load %arg1[%c0_3, %c0_4, %c0_5] : memref<68x16x128xf32, #tpu.memory_space<vmem>>, vector<10x16x128xf32>
    %3 = vector.shape_cast %2 : vector<10x16x128xf32> to vector<160x128xf32>
    %cst = arith.constant dense<0.000000e+00> : vector<128x128xf32>
    %4 = tpu.matmul %0, %3, %cst {dimension_numbers = #tpu.dot_dimension_numbers<[1], [0], [0], [1], [0, 0, 1, 1], [], []>} : vector<128x160xf32>, vector<160x128xf32>, vector<128x128xf32> -> vector<128x128xf32>
    %5 = vector.broadcast %1 : vector<128x1xf32> to vector<128x128xf32>
    %6 = arith.addf %4, %5 : vector<128x128xf32>
    %cst_6 = arith.constant 0.000000e+00 : f32
    %7 = vector.broadcast %cst_6 : f32 to vector<128x128xf32>
    %8 = arith.maximumf %6, %7 : vector<128x128xf32>
    %9 = vector.shape_cast %8 : vector<128x128xf32> to vector<8x16x128xf32>
    %c1 = arith.constant 1 : index
    %c0_7 = arith.constant 0 : index
    %c0_8 = arith.constant 0 : index
    %10 = vector.load %arg21[%c1, %c0_7, %c0_8] : memref<68x16x128xf32, #tpu.memory_space<vmem>>, vector<8x16x128xf32>
    tpu.vector_store %arg21[%c1, %c0_7, %c0_8], %9 {strides = array<i32>} : memref<68x16x128xf32, #tpu.memory_space<vmem>>, vector<8x16x128xf32>,
    %c8 = arith.constant 8 : index
    %c0_9 = arith.constant 0 : index
    %c0_10 = arith.constant 0 : index
    %11 = vector.load %arg1[%c8, %c0_9, %c0_10] : memref<68x16x128xf32, #tpu.memory_space<vmem>>, vector<10x16x128xf32>
    %12 = vector.shape_cast %11 : vector<10x16x128xf32> to vector<160x128xf32>
    %cst_11 = arith.constant dense<0.000000e+00> : vector<128x128xf32>
    %13 = tpu.matmul %0, %12, %cst_11 {dimension_numbers = #tpu.dot_dimension_numbers<[1], [0], [0], [1], [0, 0, 1, 1], [], []>} : vector<128x160xf32>, vector<160x128xf32>, vector<128x128xf32> -> vector<128x128xf32>
    %14 = vector.broadcast %1 : vector<128x1xf32> to vector<128x128xf32>
    %15 = arith.addf %13, %14 : vector<128x128xf32>
    %cst_12 = arith.constant 0.000000e+00 : f32
    %16 = vector.broadcast %cst_12 : f32 to vector<128x128xf32>
    %17 = arith.maximumf %15, %16 : vector<128x128xf32>
    %18 = vector.shape_cast %17 : vector<128x128xf32> to vector<8x16x128xf32>
    %c9 = arith.constant 9 : index
    %c0_13 = arith.constant 0 : index
    %c0_14 = arith.constant 0 : index
    %19 = vector.load %arg21[%c9, %c0_13, %c0_14] : memref<68x16x128xf32, #tpu.memory_space<vmem>>, vector<8x16x128xf32>
    tpu.vector_store %arg21[%c9, %c0_13, %c0_14], %18 {strides = array<i32>} : memref<68x16x128xf32, #tpu.memory_space<vmem>>, vector<8x16x128xf32>,
    %c16 = arith.constant 16 : index
    %c0_15 = arith.constant 0 : index
    %c0_16 = arith.constant 0 : index
    %20 = vector.load %arg1[%c16, %c0_15, %c0_16] : memref<68x16x128xf32, #tpu.memory_space<vmem>>, vector<10x16x128xf32>
    %21 = vector.shape_cast %20 : vector<10x16x128xf32> to vector<160x128xf32>
    %cst_17 = arith.constant dense<0.000000e+00> : vector<128x128xf32>
    %22 = tpu.matmul %0, %21, %cst_17 {dimension_numbers = #tpu.dot_dimension_numbers<[1], [0], [0], [1], [0, 0, 1, 1], [], []>} : vector<128x160xf32>, vector<160x128xf32>, vector<128x128xf32> -> vector<128x128xf32>
    %23 = vector.broadcast %1 : vector<128x1xf32> to vector<128x128xf32>
    %24 = arith.addf %22, %23 : vector<128x128xf32>
    %cst_18 = arith.constant 0.000000e+00 : f32
    %25 = vector.broadcast %cst_18 : f32 to vector<128x128xf32>
    %26 = arith.maximumf %24, %25 : vector<128x128xf32>
    %27 = vector.shape_cast %26 : vector<128x128xf32> to vector<8x16x128xf32>
    %c17 = arith.constant 17 : index
    %c0_19 = arith.constant 0 : index
    %c0_20 = arith.constant 0 : index
    %28 = vector.load %arg21[%c17, %c0_19, %c0_20] : memref<68x16x128xf32, #tpu.memory_space<vmem>>, vector<8x16x128xf32>
    tpu.vector_store %arg21[%c17, %c0_19, %c0_20], %27 {strides = array<i32>} : memref<68x16x128xf32, #tpu.memory_space<vmem>>, vector<8x16x128xf32>,
    %c24 = arith.constant 24 : index
    %c0_21 = arith.constant 0 : index
    %c0_22 = arith.constant 0 : index
    %29 = vector.load %arg1[%c24, %c0_21, %c0_22] : memref<68x16x128xf32, #tpu.memory_space<vmem>>, vector<10x16x128xf32>
    %30 = vector.shape_cast %29 : vector<10x16x128xf32> to vector<160x128xf32>
    %cst_23 = arith.constant dense<0.000000e+00> : vector<128x128xf32>
    %31 = tpu.matmul %0, %30, %cst_23 {dimension_numbers = #tpu.dot_dimension_numbers<[1], [0], [0], [1], [0, 0, 1, 1], [], []>} : vector<128x160xf32>, vector<160x128xf32>, vector<128x128xf32> -> vector<128x128xf32>
    %32 = vector.broadcast %1 : vector<128x1xf32> to vector<128x128xf32>
    %33 = arith.addf %31, %32 : vector<128x128xf32>
    %cst_24 = arith.constant 0.000000e+00 : f32
    %34 = vector.broadcast %cst_24 : f32 to vector<128x128xf32>
    %35 = arith.maximumf %33, %34 : vector<128x128xf32>
    %36 = vector.shape_cast %35 : vector<128x128xf32> to vector<8x16x128xf32>
    %c25 = arith.constant 25 : index
    %c0_25 = arith.constant 0 : index
    %c0_26 = arith.constant 0 : index
    %37 = vector.load %arg21[%c25, %c0_25, %c0_26] : memref<68x16x128xf32, #tpu.memory_space<vmem>>, vector<8x16x128xf32>
    tpu.vector_store %arg21[%c25, %c0_25, %c0_26], %36 {strides = array<i32>} : memref<68x16x128xf32, #tpu.memory_space<vmem>>, vector<8x16x128xf32>,
    %c32 = arith.constant 32 : index
    %c0_27 = arith.constant 0 : index
    %c0_28 = arith.constant 0 : index
    %38 = vector.load %arg1[%c32, %c0_27, %c0_28] : memref<68x16x128xf32, #tpu.memory_space<vmem>>, vector<10x16x128xf32>
    %39 = vector.shape_cast %38 : vector<10x16x128xf32> to vector<160x128xf32>
    %cst_29 = arith.constant dense<0.000000e+00> : vector<128x128xf32>
    %40 = tpu.matmul %0, %39, %cst_29 {dimension_numbers = #tpu.dot_dimension_numbers<[1], [0], [0], [1], [0, 0, 1, 1], [], []>} : vector<128x160xf32>, vector<160x128xf32>, vector<128x128xf32> -> vector<128x128xf32>
    %41 = vector.broadcast %1 : vector<128x1xf32> to vector<128x128xf32>
    %42 = arith.addf %40, %41 : vector<128x128xf32>
    %cst_30 = arith.constant 0.000000e+00 : f32
    %43 = vector.broadcast %cst_30 : f32 to vector<128x128xf32>
    %44 = arith.maximumf %42, %43 : vector<128x128xf32>
    %45 = vector.shape_cast %44 : vector<128x128xf32> to vector<8x16x128xf32>
    %c33 = arith.constant 33 : index
    %c0_31 = arith.constant 0 : index
    %c0_32 = arith.constant 0 : index
    %46 = vector.load %arg21[%c33, %c0_31, %c0_32] : memref<68x16x128xf32, #tpu.memory_space<vmem>>, vector<8x16x128xf32>
    tpu.vector_store %arg21[%c33, %c0_31, %c0_32], %45 {strides = array<i32>} : memref<68x16x128xf32, #tpu.memory_space<vmem>>, vector<8x16x128xf32>,
    %c40 = arith.constant 40 : index
    %c0_33 = arith.constant 0 : index
    %c0_34 = arith.constant 0 : index
    %47 = vector.load %arg1[%c40, %c0_33, %c0_34] : memref<68x16x128xf32, #tpu.memory_space<vmem>>, vector<10x16x128xf32>
    %48 = vector.shape_cast %47 : vector<10x16x128xf32> to vector<160x128xf32>
    %cst_35 = arith.constant dense<0.000000e+00> : vector<128x128xf32>
    %49 = tpu.matmul %0, %48, %cst_35 {dimension_numbers = #tpu.dot_dimension_numbers<[1], [0], [0], [1], [0, 0, 1, 1], [], []>} : vector<128x160xf32>, vector<160x128xf32>, vector<128x128xf32> -> vector<128x128xf32>
    %50 = vector.broadcast %1 : vector<128x1xf32> to vector<128x128xf32>
    %51 = arith.addf %49, %50 : vector<128x128xf32>
    %cst_36 = arith.constant 0.000000e+00 : f32
    %52 = vector.broadcast %cst_36 : f32 to vector<128x128xf32>
    %53 = arith.maximumf %51, %52 : vector<128x128xf32>
    %54 = vector.shape_cast %53 : vector<128x128xf32> to vector<8x16x128xf32>
    %c41 = arith.constant 41 : index
    %c0_37 = arith.constant 0 : index
    %c0_38 = arith.constant 0 : index
    %55 = vector.load %arg21[%c41, %c0_37, %c0_38] : memref<68x16x128xf32, #tpu.memory_space<vmem>>, vector<8x16x128xf32>
    tpu.vector_store %arg21[%c41, %c0_37, %c0_38], %54 {strides = array<i32>} : memref<68x16x128xf32, #tpu.memory_space<vmem>>, vector<8x16x128xf32>,
    %c48 = arith.constant 48 : index
    %c0_39 = arith.constant 0 : index
    %c0_40 = arith.constant 0 : index
    %56 = vector.load %arg1[%c48, %c0_39, %c0_40] : memref<68x16x128xf32, #tpu.memory_space<vmem>>, vector<10x16x128xf32>
    %57 = vector.shape_cast %56 : vector<10x16x128xf32> to vector<160x128xf32>
    %cst_41 = arith.constant dense<0.000000e+00> : vector<128x128xf32>
    %58 = tpu.matmul %0, %57, %cst_41 {dimension_numbers = #tpu.dot_dimension_numbers<[1], [0], [0], [1], [0, 0, 1, 1], [], []>} : vector<128x160xf32>, vector<160x128xf32>, vector<128x128xf32> -> vector<128x128xf32>
    %59 = vector.broadcast %1 : vector<128x1xf32> to vector<128x128xf32>
    %60 = arith.addf %58, %59 : vector<128x128xf32>
    %cst_42 = arith.constant 0.000000e+00 : f32
    %61 = vector.broadcast %cst_42 : f32 to vector<128x128xf32>
    %62 = arith.maximumf %60, %61 : vector<128x128xf32>
    %63 = vector.shape_cast %62 : vector<128x128xf32> to vector<8x16x128xf32>
    %c49 = arith.constant 49 : index
    %c0_43 = arith.constant 0 : index
    %c0_44 = arith.constant 0 : index
    %64 = vector.load %arg21[%c49, %c0_43, %c0_44] : memref<68x16x128xf32, #tpu.memory_space<vmem>>, vector<8x16x128xf32>
    tpu.vector_store %arg21[%c49, %c0_43, %c0_44], %63 {strides = array<i32>} : memref<68x16x128xf32, #tpu.memory_space<vmem>>, vector<8x16x128xf32>,
    %c56 = arith.constant 56 : index
    %c0_45 = arith.constant 0 : index
    %c0_46 = arith.constant 0 : index
    %65 = vector.load %arg1[%c56, %c0_45, %c0_46] : memref<68x16x128xf32, #tpu.memory_space<vmem>>, vector<10x16x128xf32>
    %66 = vector.shape_cast %65 : vector<10x16x128xf32> to vector<160x128xf32>
    %cst_47 = arith.constant dense<0.000000e+00> : vector<128x128xf32>
    %67 = tpu.matmul %0, %66, %cst_47 {dimension_numbers = #tpu.dot_dimension_numbers<[1], [0], [0], [1], [0, 0, 1, 1], [], []>} : vector<128x160xf32>, vector<160x128xf32>, vector<128x128xf32> -> vector<128x128xf32>
    %68 = vector.broadcast %1 : vector<128x1xf32> to vector<128x128xf32>
    %69 = arith.addf %67, %68 : vector<128x128xf32>
    %cst_48 = arith.constant 0.000000e+00 : f32
    %70 = vector.broadcast %cst_48 : f32 to vector<128x128xf32>
    %71 = arith.maximumf %69, %70 : vector<128x128xf32>
    %72 = vector.shape_cast %71 : vector<128x128xf32> to vector<8x16x128xf32>
    %c57 = arith.constant 57 : index
    %c0_49 = arith.constant 0 : index
    %c0_50 = arith.constant 0 : index
    %73 = vector.load %arg21[%c57, %c0_49, %c0_50] : memref<68x16x128xf32, #tpu.memory_space<vmem>>, vector<8x16x128xf32>
    tpu.vector_store %arg21[%c57, %c0_49, %c0_50], %72 {strides = array<i32>} : memref<68x16x128xf32, #tpu.memory_space<vmem>>, vector<8x16x128xf32>,
    %c58 = arith.constant 58 : index
    %c0_51 = arith.constant 0 : index
    %c0_52 = arith.constant 0 : index
    %74 = vector.load %arg1[%c58, %c0_51, %c0_52] : memref<68x16x128xf32, #tpu.memory_space<vmem>>, vector<10x16x128xf32>
    %75 = vector.shape_cast %74 : vector<10x16x128xf32> to vector<160x128xf32>
    %cst_53 = arith.constant dense<0.000000e+00> : vector<128x128xf32>
    %76 = tpu.matmul %0, %75, %cst_53 {dimension_numbers = #tpu.dot_dimension_numbers<[1], [0], [0], [1], [0, 0, 1, 1], [], []>} : vector<128x160xf32>, vector<160x128xf32>, vector<128x128xf32> -> vector<128x128xf32>
    %77 = vector.broadcast %1 : vector<128x1xf32> to vector<128x128xf32>
    %78 = arith.addf %76, %77 : vector<128x128xf32>
    %cst_54 = arith.constant 0.000000e+00 : f32
    %79 = vector.broadcast %cst_54 : f32 to vector<128x128xf32>
    %80 = arith.maximumf %78, %79 : vector<128x128xf32>
    %81 = vector.shape_cast %80 : vector<128x128xf32> to vector<8x16x128xf32>
    %c59 = arith.constant 59 : index
    %c0_55 = arith.constant 0 : index
    %c0_56 = arith.constant 0 : index
    %82 = vector.load %arg21[%c59, %c0_55, %c0_56] : memref<68x16x128xf32, #tpu.memory_space<vmem>>, vector<8x16x128xf32>
    tpu.vector_store %arg21[%c59, %c0_55, %c0_56], %81 {strides = array<i32>} : memref<68x16x128xf32, #tpu.memory_space<vmem>>, vector<8x16x128xf32>,
    %cst_57 = arith.constant 0.000000e+00 : f32
    %83 = vector.broadcast %cst_57 : f32 to vector<1x16x128xf32>
    %c0_58 = arith.constant 0 : index
    %c0_59 = arith.constant 0 : index
    %c0_60 = arith.constant 0 : index
    %84 = vector.load %arg21[%c0_58, %c0_59, %c0_60] : memref<68x16x128xf32, #tpu.memory_space<vmem>>, vector<1x16x128xf32>
    tpu.vector_store %arg21[%c0_58, %c0_59, %c0_60], %83 {strides = array<i32>} : memref<68x16x128xf32, #tpu.memory_space<vmem>>, vector<1x16x128xf32>,
    %c67 = arith.constant 67 : index
    %c0_61 = arith.constant 0 : index
    %c0_62 = arith.constant 0 : index
    %85 = vector.load %arg21[%c67, %c0_61, %c0_62] : memref<68x16x128xf32, #tpu.memory_space<vmem>>, vector<1x16x128xf32>
    tpu.vector_store %arg21[%c67, %c0_61, %c0_62], %83 {strides = array<i32>} : memref<68x16x128xf32, #tpu.memory_space<vmem>>, vector<1x16x128xf32>,
    %c0_63 = arith.constant 0 : index
    %c0_64 = arith.constant 0 : index
    %86 = vector.load %arg4[%c0_63, %c0_64] : memref<128x160xf32, #tpu.memory_space<vmem>>, vector<128x160xf32>
    %c0_65 = arith.constant 0 : index
    %c0_66 = arith.constant 0 : index
    %87 = vector.load %arg5[%c0_65, %c0_66] : memref<128x1xf32, #tpu.memory_space<vmem>>, vector<128x1xf32>
    %c0_67 = arith.constant 0 : index
    %c0_68 = arith.constant 0 : index
    %c0_69 = arith.constant 0 : index
    %88 = vector.load %arg21[%c0_67, %c0_68, %c0_69] : memref<68x16x128xf32, #tpu.memory_space<vmem>>, vector<10x16x128xf32>
    %89 = vector.shape_cast %88 : vector<10x16x128xf32> to vector<160x128xf32>
    %cst_70 = arith.constant dense<0.000000e+00> : vector<128x128xf32>
    %90 = tpu.matmul %86, %89, %cst_70 {dimension_numbers = #tpu.dot_dimension_numbers<[1], [0], [0], [1], [0, 0, 1, 1], [], []>} : vector<128x160xf32>, vector<160x128xf32>, vector<128x128xf32> -> vector<128x128xf32>
    %91 = vector.broadcast %87 : vector<128x1xf32> to vector<128x128xf32>
    %92 = arith.addf %90, %91 : vector<128x128xf32>
    %cst_71 = arith.constant 0.000000e+00 : f32
    %93 = vector.broadcast %cst_71 : f32 to vector<128x128xf32>
    %94 = arith.maximumf %92, %93 : vector<128x128xf32>
    %95 = vector.shape_cast %94 : vector<128x128xf32> to vector<8x16x128xf32>
    %c1_72 = arith.constant 1 : index
    %c0_73 = arith.constant 0 : index
    %c0_74 = arith.constant 0 : index
    %96 = vector.load %arg22[%c1_72, %c0_73, %c0_74] : memref<68x16x128xf32, #tpu.memory_space<vmem>>, vector<8x16x128xf32>
    tpu.vector_store %arg22[%c1_72, %c0_73, %c0_74], %95 {strides = array<i32>} : memref<68x16x128xf32, #tpu.memory_space<vmem>>, vector<8x16x128xf32>,
    %c8_75 = arith.constant 8 : index
    %c0_76 = arith.constant 0 : index
    %c0_77 = arith.constant 0 : index
    %97 = vector.load %arg21[%c8_75, %c0_76, %c0_77] : memref<68x16x128xf32, #tpu.memory_space<vmem>>, vector<10x16x128xf32>
    %98 = vector.shape_cast %97 : vector<10x16x128xf32> to vector<160x128xf32>
    %cst_78 = arith.constant dense<0.000000e+00> : vector<128x128xf32>
    %99 = tpu.matmul %86, %98, %cst_78 {dimension_numbers = #tpu.dot_dimension_numbers<[1], [0], [0], [1], [0, 0, 1, 1], [], []>} : vector<128x160xf32>, vector<160x128xf32>, vector<128x128xf32> -> vector<128x128xf32>
    %100 = vector.broadcast %87 : vector<128x1xf32> to vector<128x128xf32>
    %101 = arith.addf %99, %100 : vector<128x128xf32>
    %cst_79 = arith.constant 0.000000e+00 : f32
    %102 = vector.broadcast %cst_79 : f32 to vector<128x128xf32>
    %103 = arith.maximumf %101, %102 : vector<128x128xf32>
    %104 = vector.shape_cast %103 : vector<128x128xf32> to vector<8x16x128xf32>
    %c9_80 = arith.constant 9 : index
    %c0_81 = arith.constant 0 : index
    %c0_82 = arith.constant 0 : index
    %105 = vector.load %arg22[%c9_80, %c0_81, %c0_82] : memref<68x16x128xf32, #tpu.memory_space<vmem>>, vector<8x16x128xf32>
    tpu.vector_store %arg22[%c9_80, %c0_81, %c0_82], %104 {strides = array<i32>} : memref<68x16x128xf32, #tpu.memory_space<vmem>>, vector<8x16x128xf32>,
    %c16_83 = arith.constant 16 : index
    %c0_84 = arith.constant 0 : index
    %c0_85 = arith.constant 0 : index
    %106 = vector.load %arg21[%c16_83, %c0_84, %c0_85] : memref<68x16x128xf32, #tpu.memory_space<vmem>>, vector<10x16x128xf32>
    %107 = vector.shape_cast %106 : vector<10x16x128xf32> to vector<160x128xf32>
    %cst_86 = arith.constant dense<0.000000e+00> : vector<128x128xf32>
    %108 = tpu.matmul %86, %107, %cst_86 {dimension_numbers = #tpu.dot_dimension_numbers<[1], [0], [0], [1], [0, 0, 1, 1], [], []>} : vector<128x160xf32>, vector<160x128xf32>, vector<128x128xf32> -> vector<128x128xf32>
    %109 = vector.broadcast %87 : vector<128x1xf32> to vector<128x128xf32>
    %110 = arith.addf %108, %109 : vector<128x128xf32>
    %cst_87 = arith.constant 0.000000e+00 : f32
    %111 = vector.broadcast %cst_87 : f32 to vector<128x128xf32>
    %112 = arith.maximumf %110, %111 : vector<128x128xf32>
    %113 = vector.shape_cast %112 : vector<128x128xf32> to vector<8x16x128xf32>
    %c17_88 = arith.constant 17 : index
    %c0_89 = arith.constant 0 : index
    %c0_90 = arith.constant 0 : index
    %114 = vector.load %arg22[%c17_88, %c0_89, %c0_90] : memref<68x16x128xf32, #tpu.memory_space<vmem>>, vector<8x16x128xf32>
    tpu.vector_store %arg22[%c17_88, %c0_89, %c0_90], %113 {strides = array<i32>} : memref<68x16x128xf32, #tpu.memory_space<vmem>>, vector<8x16x128xf32>,
    %c24_91 = arith.constant 24 : index
    %c0_92 = arith.constant 0 : index
    %c0_93 = arith.constant 0 : index
    %115 = vector.load %arg21[%c24_91, %c0_92, %c0_93] : memref<68x16x128xf32, #tpu.memory_space<vmem>>, vector<10x16x128xf32>
    %116 = vector.shape_cast %115 : vector<10x16x128xf32> to vector<160x128xf32>
    %cst_94 = arith.constant dense<0.000000e+00> : vector<128x128xf32>
    %117 = tpu.matmul %86, %116, %cst_94 {dimension_numbers = #tpu.dot_dimension_numbers<[1], [0], [0], [1], [0, 0, 1, 1], [], []>} : vector<128x160xf32>, vector<160x128xf32>, vector<128x128xf32> -> vector<128x128xf32>
    %118 = vector.broadcast %87 : vector<128x1xf32> to vector<128x128xf32>
    %119 = arith.addf %117, %118 : vector<128x128xf32>
    %cst_95 = arith.constant 0.000000e+00 : f32
    %120 = vector.broadcast %cst_95 : f32 to vector<128x128xf32>
    %121 = arith.maximumf %119, %120 : vector<128x128xf32>
    %122 = vector.shape_cast %121 : vector<128x128xf32> to vector<8x16x128xf32>
    %c25_96 = arith.constant 25 : index
    %c0_97 = arith.constant 0 : index
    %c0_98 = arith.constant 0 : index
    %123 = vector.load %arg22[%c25_96, %c0_97, %c0_98] : memref<68x16x128xf32, #tpu.memory_space<vmem>>, vector<8x16x128xf32>
    tpu.vector_store %arg22[%c25_96, %c0_97, %c0_98], %122 {strides = array<i32>} : memref<68x16x128xf32, #tpu.memory_space<vmem>>, vector<8x16x128xf32>,
    %c32_99 = arith.constant 32 : index
    %c0_100 = arith.constant 0 : index
    %c0_101 = arith.constant 0 : index
    %124 = vector.load %arg21[%c32_99, %c0_100, %c0_101] : memref<68x16x128xf32, #tpu.memory_space<vmem>>, vector<10x16x128xf32>
    %125 = vector.shape_cast %124 : vector<10x16x128xf32> to vector<160x128xf32>
    %cst_102 = arith.constant dense<0.000000e+00> : vector<128x128xf32>
    %126 = tpu.matmul %86, %125, %cst_102 {dimension_numbers = #tpu.dot_dimension_numbers<[1], [0], [0], [1], [0, 0, 1, 1], [], []>} : vector<128x160xf32>, vector<160x128xf32>, vector<128x128xf32> -> vector<128x128xf32>
    %127 = vector.broadcast %87 : vector<128x1xf32> to vector<128x128xf32>
    %128 = arith.addf %126, %127 : vector<128x128xf32>
    %cst_103 = arith.constant 0.000000e+00 : f32
    %129 = vector.broadcast %cst_103 : f32 to vector<128x128xf32>
    %130 = arith.maximumf %128, %129 : vector<128x128xf32>
    %131 = vector.shape_cast %130 : vector<128x128xf32> to vector<8x16x128xf32>
    %c33_104 = arith.constant 33 : index
    %c0_105 = arith.constant 0 : index
    %c0_106 = arith.constant 0 : index
    %132 = vector.load %arg22[%c33_104, %c0_105, %c0_106] : memref<68x16x128xf32, #tpu.memory_space<vmem>>, vector<8x16x128xf32>
    tpu.vector_store %arg22[%c33_104, %c0_105, %c0_106], %131 {strides = array<i32>} : memref<68x16x128xf32, #tpu.memory_space<vmem>>, vector<8x16x128xf32>,
    %c40_107 = arith.constant 40 : index
    %c0_108 = arith.constant 0 : index
    %c0_109 = arith.constant 0 : index
    %133 = vector.load %arg21[%c40_107, %c0_108, %c0_109] : memref<68x16x128xf32, #tpu.memory_space<vmem>>, vector<10x16x128xf32>
    %134 = vector.shape_cast %133 : vector<10x16x128xf32> to vector<160x128xf32>
    %cst_110 = arith.constant dense<0.000000e+00> : vector<128x128xf32>
    %135 = tpu.matmul %86, %134, %cst_110 {dimension_numbers = #tpu.dot_dimension_numbers<[1], [0], [0], [1], [0, 0, 1, 1], [], []>} : vector<128x160xf32>, vector<160x128xf32>, vector<128x128xf32> -> vector<128x128xf32>
    %136 = vector.broadcast %87 : vector<128x1xf32> to vector<128x128xf32>
    %137 = arith.addf %135, %136 : vector<128x128xf32>
    %cst_111 = arith.constant 0.000000e+00 : f32
    %138 = vector.broadcast %cst_111 : f32 to vector<128x128xf32>
    %139 = arith.maximumf %137, %138 : vector<128x128xf32>
    %140 = vector.shape_cast %139 : vector<128x128xf32> to vector<8x16x128xf32>
    %c41_112 = arith.constant 41 : index
    %c0_113 = arith.constant 0 : index
    %c0_114 = arith.constant 0 : index
    %141 = vector.load %arg22[%c41_112, %c0_113, %c0_114] : memref<68x16x128xf32, #tpu.memory_space<vmem>>, vector<8x16x128xf32>
    tpu.vector_store %arg22[%c41_112, %c0_113, %c0_114], %140 {strides = array<i32>} : memref<68x16x128xf32, #tpu.memory_space<vmem>>, vector<8x16x128xf32>,
    %c48_115 = arith.constant 48 : index
    %c0_116 = arith.constant 0 : index
    %c0_117 = arith.constant 0 : index
    %142 = vector.load %arg21[%c48_115, %c0_116, %c0_117] : memref<68x16x128xf32, #tpu.memory_space<vmem>>, vector<10x16x128xf32>
    %143 = vector.shape_cast %142 : vector<10x16x128xf32> to vector<160x128xf32>
    %cst_118 = arith.constant dense<0.000000e+00> : vector<128x128xf32>
    %144 = tpu.matmul %86, %143, %cst_118 {dimension_numbers = #tpu.dot_dimension_numbers<[1], [0], [0], [1], [0, 0, 1, 1], [], []>} : vector<128x160xf32>, vector<160x128xf32>, vector<128x128xf32> -> vector<128x128xf32>
    %145 = vector.broadcast %87 : vector<128x1xf32> to vector<128x128xf32>
    %146 = arith.addf %144, %145 : vector<128x128xf32>
    %cst_119 = arith.constant 0.000000e+00 : f32
    %147 = vector.broadcast %cst_119 : f32 to vector<128x128xf32>
    %148 = arith.maximumf %146, %147 : vector<128x128xf32>
    %149 = vector.shape_cast %148 : vector<128x128xf32> to vector<8x16x128xf32>
    %c49_120 = arith.constant 49 : index
    %c0_121 = arith.constant 0 : index
    %c0_122 = arith.constant 0 : index
    %150 = vector.load %arg22[%c49_120, %c0_121, %c0_122] : memref<68x16x128xf32, #tpu.memory_space<vmem>>, vector<8x16x128xf32>
    tpu.vector_store %arg22[%c49_120, %c0_121, %c0_122], %149 {strides = array<i32>} : memref<68x16x128xf32, #tpu.memory_space<vmem>>, vector<8x16x128xf32>,
    %c56_123 = arith.constant 56 : index
    %c0_124 = arith.constant 0 : index
    %c0_125 = arith.constant 0 : index
    %151 = vector.load %arg21[%c56_123, %c0_124, %c0_125] : memref<68x16x128xf32, #tpu.memory_space<vmem>>, vector<10x16x128xf32>
    %152 = vector.shape_cast %151 : vector<10x16x128xf32> to vector<160x128xf32>
    %cst_126 = arith.constant dense<0.000000e+00> : vector<128x128xf32>
    %153 = tpu.matmul %86, %152, %cst_126 {dimension_numbers = #tpu.dot_dimension_numbers<[1], [0], [0], [1], [0, 0, 1, 1], [], []>} : vector<128x160xf32>, vector<160x128xf32>, vector<128x128xf32> -> vector<128x128xf32>
    %154 = vector.broadcast %87 : vector<128x1xf32> to vector<128x128xf32>
    %155 = arith.addf %153, %154 : vector<128x128xf32>
    %cst_127 = arith.constant 0.000000e+00 : f32
    %156 = vector.broadcast %cst_127 : f32 to vector<128x128xf32>
    %157 = arith.maximumf %155, %156 : vector<128x128xf32>
    %158 = vector.shape_cast %157 : vector<128x128xf32> to vector<8x16x128xf32>
    %c57_128 = arith.constant 57 : index
    %c0_129 = arith.constant 0 : index
    %c0_130 = arith.constant 0 : index
    %159 = vector.load %arg22[%c57_128, %c0_129, %c0_130] : memref<68x16x128xf32, #tpu.memory_space<vmem>>, vector<8x16x128xf32>
    tpu.vector_store %arg22[%c57_128, %c0_129, %c0_130], %158 {strides = array<i32>} : memref<68x16x128xf32, #tpu.memory_space<vmem>>, vector<8x16x128xf32>,
    %c58_131 = arith.constant 58 : index
    %c0_132 = arith.constant 0 : index
    %c0_133 = arith.constant 0 : index
    %160 = vector.load %arg21[%c58_131, %c0_132, %c0_133] : memref<68x16x128xf32, #tpu.memory_space<vmem>>, vector<10x16x128xf32>
    %161 = vector.shape_cast %160 : vector<10x16x128xf32> to vector<160x128xf32>
    %cst_134 = arith.constant dense<0.000000e+00> : vector<128x128xf32>
    %162 = tpu.matmul %86, %161, %cst_134 {dimension_numbers = #tpu.dot_dimension_numbers<[1], [0], [0], [1], [0, 0, 1, 1], [], []>} : vector<128x160xf32>, vector<160x128xf32>, vector<128x128xf32> -> vector<128x128xf32>
    %163 = vector.broadcast %87 : vector<128x1xf32> to vector<128x128xf32>
    %164 = arith.addf %162, %163 : vector<128x128xf32>
    %cst_135 = arith.constant 0.000000e+00 : f32
    %165 = vector.broadcast %cst_135 : f32 to vector<128x128xf32>
    %166 = arith.maximumf %164, %165 : vector<128x128xf32>
    %167 = vector.shape_cast %166 : vector<128x128xf32> to vector<8x16x128xf32>
    %c59_136 = arith.constant 59 : index
    %c0_137 = arith.constant 0 : index
    %c0_138 = arith.constant 0 : index
    %168 = vector.load %arg22[%c59_136, %c0_137, %c0_138] : memref<68x16x128xf32, #tpu.memory_space<vmem>>, vector<8x16x128xf32>
    tpu.vector_store %arg22[%c59_136, %c0_137, %c0_138], %167 {strides = array<i32>} : memref<68x16x128xf32, #tpu.memory_space<vmem>>, vector<8x16x128xf32>,
    %cst_139 = arith.constant 0.000000e+00 : f32
    %169 = vector.broadcast %cst_139 : f32 to vector<1x16x128xf32>
    %c0_140 = arith.constant 0 : index
    %c0_141 = arith.constant 0 : index
    %c0_142 = arith.constant 0 : index
    %170 = vector.load %arg22[%c0_140, %c0_141, %c0_142] : memref<68x16x128xf32, #tpu.memory_space<vmem>>, vector<1x16x128xf32>
    tpu.vector_store %arg22[%c0_140, %c0_141, %c0_142], %169 {strides = array<i32>} : memref<68x16x128xf32, #tpu.memory_space<vmem>>, vector<1x16x128xf32>,
    %c67_143 = arith.constant 67 : index
    %c0_144 = arith.constant 0 : index
    %c0_145 = arith.constant 0 : index
    %171 = vector.load %arg22[%c67_143, %c0_144, %c0_145] : memref<68x16x128xf32, #tpu.memory_space<vmem>>, vector<1x16x128xf32>
    tpu.vector_store %arg22[%c67_143, %c0_144, %c0_145], %169 {strides = array<i32>} : memref<68x16x128xf32, #tpu.memory_space<vmem>>, vector<1x16x128xf32>,
    %c0_146 = arith.constant 0 : index
    %c0_147 = arith.constant 0 : index
    %c0_148 = arith.constant 0 : index
    %172 = vector.load %arg22[%c0_146, %c0_147, %c0_148] : memref<68x16x128xf32, #tpu.memory_space<vmem>>, vector<68x16x128xf32>
    %173 = vector.shape_cast %172 : vector<68x16x128xf32> to vector<34x2x16x128xf32>
    %174 = vector.extract_strided_slice %173 {offsets = [0, 0, 0, 0], sizes = [34, 1, 16, 128], strides = [1, 1, 1, 1]} : vector<34x2x16x128xf32> to vector<34x1x16x128xf32>
    %175 = vector.shape_cast %174 : vector<34x1x16x128xf32> to vector<34x16x128xf32>
    %176 = vector.extract_strided_slice %173 {offsets = [0, 1, 0, 0], sizes = [34, 1, 16, 128], strides = [1, 1, 1, 1]} : vector<34x2x16x128xf32> to vector<34x1x16x128xf32>
    %177 = vector.shape_cast %176 : vector<34x1x16x128xf32> to vector<34x16x128xf32>
    %178 = arith.maximumf %175, %177 : vector<34x16x128xf32>
    %c1_149 = arith.constant 1 : index
    %c0_150 = arith.constant 0 : index
    %c0_151 = arith.constant 0 : index
    %179 = vector.load %arg21[%c1_149, %c0_150, %c0_151] : memref<68x16x128xf32, #tpu.memory_space<vmem>>, vector<34x16x128xf32>
    tpu.vector_store %arg21[%c1_149, %c0_150, %c0_151], %178 {strides = array<i32>} : memref<68x16x128xf32, #tpu.memory_space<vmem>>, vector<34x16x128xf32>,
    %cst_152 = arith.constant 0.000000e+00 : f32
    %180 = vector.broadcast %cst_152 : f32 to vector<1x16x128xf32>
    %c0_153 = arith.constant 0 : index
    %c0_154 = arith.constant 0 : index
    %c0_155 = arith.constant 0 : index
    %181 = vector.load %arg21[%c0_153, %c0_154, %c0_155] : memref<68x16x128xf32, #tpu.memory_space<vmem>>, vector<1x16x128xf32>
    tpu.vector_store %arg21[%c0_153, %c0_154, %c0_155], %180 {strides = array<i32>} : memref<68x16x128xf32, #tpu.memory_space<vmem>>, vector<1x16x128xf32>,
    %c35 = arith.constant 35 : index
    %c0_156 = arith.constant 0 : index
    %c0_157 = arith.constant 0 : index
    %182 = vector.load %arg21[%c35, %c0_156, %c0_157] : memref<68x16x128xf32, #tpu.memory_space<vmem>>, vector<1x16x128xf32>
    tpu.vector_store %arg21[%c35, %c0_156, %c0_157], %180 {strides = array<i32>} : memref<68x16x128xf32, #tpu.memory_space<vmem>>, vector<1x16x128xf32>,
    %c0_158 = arith.constant 0 : index
    %c0_159 = arith.constant 0 : index
    %183 = vector.load %arg6[%c0_158, %c0_159] : memref<128x160xf32, #tpu.memory_space<vmem>>, vector<128x160xf32>
    %c0_160 = arith.constant 0 : index
    %c0_161 = arith.constant 0 : index
    %184 = vector.load %arg7[%c0_160, %c0_161] : memref<128x1xf32, #tpu.memory_space<vmem>>, vector<128x1xf32>
    %c0_162 = arith.constant 0 : index
    %c0_163 = arith.constant 0 : index
    %c0_164 = arith.constant 0 : index
    %185 = vector.load %arg21[%c0_162, %c0_163, %c0_164] : memref<68x16x128xf32, #tpu.memory_space<vmem>>, vector<10x16x128xf32>
    %186 = vector.shape_cast %185 : vector<10x16x128xf32> to vector<160x128xf32>
    %cst_165 = arith.constant dense<0.000000e+00> : vector<128x128xf32>
    %187 = tpu.matmul %183, %186, %cst_165 {dimension_numbers = #tpu.dot_dimension_numbers<[1], [0], [0], [1], [0, 0, 1, 1], [], []>} : vector<128x160xf32>, vector<160x128xf32>, vector<128x128xf32> -> vector<128x128xf32>
    %188 = vector.broadcast %184 : vector<128x1xf32> to vector<128x128xf32>
    %189 = arith.addf %187, %188 : vector<128x128xf32>
    %cst_166 = arith.constant 0.000000e+00 : f32
    %190 = vector.broadcast %cst_166 : f32 to vector<128x128xf32>
    %191 = arith.maximumf %189, %190 : vector<128x128xf32>
    %192 = vector.shape_cast %191 : vector<128x128xf32> to vector<8x16x128xf32>
    %c1_167 = arith.constant 1 : index
    %c0_168 = arith.constant 0 : index
    %c0_169 = arith.constant 0 : index
    %193 = vector.load %arg22[%c1_167, %c0_168, %c0_169] : memref<68x16x128xf32, #tpu.memory_space<vmem>>, vector<8x16x128xf32>
    tpu.vector_store %arg22[%c1_167, %c0_168, %c0_169], %192 {strides = array<i32>} : memref<68x16x128xf32, #tpu.memory_space<vmem>>, vector<8x16x128xf32>,
    %c8_170 = arith.constant 8 : index
    %c0_171 = arith.constant 0 : index
    %c0_172 = arith.constant 0 : index
    %194 = vector.load %arg21[%c8_170, %c0_171, %c0_172] : memref<68x16x128xf32, #tpu.memory_space<vmem>>, vector<10x16x128xf32>
    %195 = vector.shape_cast %194 : vector<10x16x128xf32> to vector<160x128xf32>
    %cst_173 = arith.constant dense<0.000000e+00> : vector<128x128xf32>
    %196 = tpu.matmul %183, %195, %cst_173 {dimension_numbers = #tpu.dot_dimension_numbers<[1], [0], [0], [1], [0, 0, 1, 1], [], []>} : vector<128x160xf32>, vector<160x128xf32>, vector<128x128xf32> -> vector<128x128xf32>
    %197 = vector.broadcast %184 : vector<128x1xf32> to vector<128x128xf32>
    %198 = arith.addf %196, %197 : vector<128x128xf32>
    %cst_174 = arith.constant 0.000000e+00 : f32
    %199 = vector.broadcast %cst_174 : f32 to vector<128x128xf32>
    %200 = arith.maximumf %198, %199 : vector<128x128xf32>
    %201 = vector.shape_cast %200 : vector<128x128xf32> to vector<8x16x128xf32>
    %c9_175 = arith.constant 9 : index
    %c0_176 = arith.constant 0 : index
    %c0_177 = arith.constant 0 : index
    %202 = vector.load %arg22[%c9_175, %c0_176, %c0_177] : memref<68x16x128xf32, #tpu.memory_space<vmem>>, vector<8x16x128xf32>
    tpu.vector_store %arg22[%c9_175, %c0_176, %c0_177], %201 {strides = array<i32>} : memref<68x16x128xf32, #tpu.memory_space<vmem>>, vector<8x16x128xf32>,
    %c16_178 = arith.constant 16 : index
    %c0_179 = arith.constant 0 : index
    %c0_180 = arith.constant 0 : index
    %203 = vector.load %arg21[%c16_178, %c0_179, %c0_180] : memref<68x16x128xf32, #tpu.memory_space<vmem>>, vector<10x16x128xf32>
    %204 = vector.shape_cast %203 : vector<10x16x128xf32> to vector<160x128xf32>
    %cst_181 = arith.constant dense<0.000000e+00> : vector<128x128xf32>
    %205 = tpu.matmul %183, %204, %cst_181 {dimension_numbers = #tpu.dot_dimension_numbers<[1], [0], [0], [1], [0, 0, 1, 1], [], []>} : vector<128x160xf32>, vector<160x128xf32>, vector<128x128xf32> -> vector<128x128xf32>
    %206 = vector.broadcast %184 : vector<128x1xf32> to vector<128x128xf32>
    %207 = arith.addf %205, %206 : vector<128x128xf32>
    %cst_182 = arith.constant 0.000000e+00 : f32
    %208 = vector.broadcast %cst_182 : f32 to vector<128x128xf32>
    %209 = arith.maximumf %207, %208 : vector<128x128xf32>
    %210 = vector.shape_cast %209 : vector<128x128xf32> to vector<8x16x128xf32>
    %c17_183 = arith.constant 17 : index
    %c0_184 = arith.constant 0 : index
    %c0_185 = arith.constant 0 : index
    %211 = vector.load %arg22[%c17_183, %c0_184, %c0_185] : memref<68x16x128xf32, #tpu.memory_space<vmem>>, vector<8x16x128xf32>
    tpu.vector_store %arg22[%c17_183, %c0_184, %c0_185], %210 {strides = array<i32>} : memref<68x16x128xf32, #tpu.memory_space<vmem>>, vector<8x16x128xf32>,
    %c24_186 = arith.constant 24 : index
    %c0_187 = arith.constant 0 : index
    %c0_188 = arith.constant 0 : index
    %212 = vector.load %arg21[%c24_186, %c0_187, %c0_188] : memref<68x16x128xf32, #tpu.memory_space<vmem>>, vector<10x16x128xf32>
    %213 = vector.shape_cast %212 : vector<10x16x128xf32> to vector<160x128xf32>
    %cst_189 = arith.constant dense<0.000000e+00> : vector<128x128xf32>
    %214 = tpu.matmul %183, %213, %cst_189 {dimension_numbers = #tpu.dot_dimension_numbers<[1], [0], [0], [1], [0, 0, 1, 1], [], []>} : vector<128x160xf32>, vector<160x128xf32>, vector<128x128xf32> -> vector<128x128xf32>
    %215 = vector.broadcast %184 : vector<128x1xf32> to vector<128x128xf32>
    %216 = arith.addf %214, %215 : vector<128x128xf32>
    %cst_190 = arith.constant 0.000000e+00 : f32
    %217 = vector.broadcast %cst_190 : f32 to vector<128x128xf32>
    %218 = arith.maximumf %216, %217 : vector<128x128xf32>
    %219 = vector.shape_cast %218 : vector<128x128xf32> to vector<8x16x128xf32>
    %c25_191 = arith.constant 25 : index
    %c0_192 = arith.constant 0 : index
    %c0_193 = arith.constant 0 : index
    %220 = vector.load %arg22[%c25_191, %c0_192, %c0_193] : memref<68x16x128xf32, #tpu.memory_space<vmem>>, vector<8x16x128xf32>
    tpu.vector_store %arg22[%c25_191, %c0_192, %c0_193], %219 {strides = array<i32>} : memref<68x16x128xf32, #tpu.memory_space<vmem>>, vector<8x16x128xf32>,
    %c26 = arith.constant 26 : index
    %c0_194 = arith.constant 0 : index
    %c0_195 = arith.constant 0 : index
    %221 = vector.load %arg21[%c26, %c0_194, %c0_195] : memref<68x16x128xf32, #tpu.memory_space<vmem>>, vector<10x16x128xf32>
    %222 = vector.shape_cast %221 : vector<10x16x128xf32> to vector<160x128xf32>
    %cst_196 = arith.constant dense<0.000000e+00> : vector<128x128xf32>
    %223 = tpu.matmul %183, %222, %cst_196 {dimension_numbers = #tpu.dot_dimension_numbers<[1], [0], [0], [1], [0, 0, 1, 1], [], []>} : vector<128x160xf32>, vector<160x128xf32>, vector<128x128xf32> -> vector<128x128xf32>
    %224 = vector.broadcast %184 : vector<128x1xf32> to vector<128x128xf32>
    %225 = arith.addf %223, %224 : vector<128x128xf32>
    %cst_197 = arith.constant 0.000000e+00 : f32
    %226 = vector.broadcast %cst_197 : f32 to vector<128x128xf32>
    %227 = arith.maximumf %225, %226 : vector<128x128xf32>
    %228 = vector.shape_cast %227 : vector<128x128xf32> to vector<8x16x128xf32>
    %c27 = arith.constant 27 : index
    %c0_198 = arith.constant 0 : index
    %c0_199 = arith.constant 0 : index
    %229 = vector.load %arg22[%c27, %c0_198, %c0_199] : memref<68x16x128xf32, #tpu.memory_space<vmem>>, vector<8x16x128xf32>
    tpu.vector_store %arg22[%c27, %c0_198, %c0_199], %228 {strides = array<i32>} : memref<68x16x128xf32, #tpu.memory_space<vmem>>, vector<8x16x128xf32>,
    %cst_200 = arith.constant 0.000000e+00 : f32
    %230 = vector.broadcast %cst_200 : f32 to vector<1x16x128xf32>
    %c0_201 = arith.constant 0 : index
    %c0_202 = arith.constant 0 : index
    %c0_203 = arith.constant 0 : index
    %231 = vector.load %arg22[%c0_201, %c0_202, %c0_203] : memref<68x16x128xf32, #tpu.memory_space<vmem>>, vector<1x16x128xf32>
    tpu.vector_store %arg22[%c0_201, %c0_202, %c0_203], %230 {strides = array<i32>} : memref<68x16x128xf32, #tpu.memory_space<vmem>>, vector<1x16x128xf32>,
    %c35_204 = arith.constant 35 : index
    %c0_205 = arith.constant 0 : index
    %c0_206 = arith.constant 0 : index
    %232 = vector.load %arg22[%c35_204, %c0_205, %c0_206] : memref<68x16x128xf32, #tpu.memory_space<vmem>>, vector<1x16x128xf32>
    tpu.vector_store %arg22[%c35_204, %c0_205, %c0_206], %230 {strides = array<i32>} : memref<68x16x128xf32, #tpu.memory_space<vmem>>, vector<1x16x128xf32>,
    %c0_207 = arith.constant 0 : index
    %c0_208 = arith.constant 0 : index
    %233 = vector.load %arg8[%c0_207, %c0_208] : memref<128x160xf32, #tpu.memory_space<vmem>>, vector<128x160xf32>
    %c0_209 = arith.constant 0 : index
    %c0_210 = arith.constant 0 : index
    %234 = vector.load %arg9[%c0_209, %c0_210] : memref<128x1xf32, #tpu.memory_space<vmem>>, vector<128x1xf32>
    %c0_211 = arith.constant 0 : index
    %c0_212 = arith.constant 0 : index
    %c0_213 = arith.constant 0 : index
    %235 = vector.load %arg22[%c0_211, %c0_212, %c0_213] : memref<68x16x128xf32, #tpu.memory_space<vmem>>, vector<10x16x128xf32>
    %236 = vector.shape_cast %235 : vector<10x16x128xf32> to vector<160x128xf32>
    %cst_214 = arith.constant dense<0.000000e+00> : vector<128x128xf32>
    %237 = tpu.matmul %233, %236, %cst_214 {dimension_numbers = #tpu.dot_dimension_numbers<[1], [0], [0], [1], [0, 0, 1, 1], [], []>} : vector<128x160xf32>, vector<160x128xf32>, vector<128x128xf32> -> vector<128x128xf32>
    %238 = vector.broadcast %234 : vector<128x1xf32> to vector<128x128xf32>
    %239 = arith.addf %237, %238 : vector<128x128xf32>
    %cst_215 = arith.constant 0.000000e+00 : f32
    %240 = vector.broadcast %cst_215 : f32 to vector<128x128xf32>
    %241 = arith.maximumf %239, %240 : vector<128x128xf32>
    %242 = vector.shape_cast %241 : vector<128x128xf32> to vector<8x16x128xf32>
    %c1_216 = arith.constant 1 : index
    %c0_217 = arith.constant 0 : index
    %c0_218 = arith.constant 0 : index
    %243 = vector.load %arg21[%c1_216, %c0_217, %c0_218] : memref<68x16x128xf32, #tpu.memory_space<vmem>>, vector<8x16x128xf32>
    tpu.vector_store %arg21[%c1_216, %c0_217, %c0_218], %242 {strides = array<i32>} : memref<68x16x128xf32, #tpu.memory_space<vmem>>, vector<8x16x128xf32>,
    %c8_219 = arith.constant 8 : index
    %c0_220 = arith.constant 0 : index
    %c0_221 = arith.constant 0 : index
    %244 = vector.load %arg22[%c8_219, %c0_220, %c0_221] : memref<68x16x128xf32, #tpu.memory_space<vmem>>, vector<10x16x128xf32>
    %245 = vector.shape_cast %244 : vector<10x16x128xf32> to vector<160x128xf32>
    %cst_222 = arith.constant dense<0.000000e+00> : vector<128x128xf32>
    %246 = tpu.matmul %233, %245, %cst_222 {dimension_numbers = #tpu.dot_dimension_numbers<[1], [0], [0], [1], [0, 0, 1, 1], [], []>} : vector<128x160xf32>, vector<160x128xf32>, vector<128x128xf32> -> vector<128x128xf32>
    %247 = vector.broadcast %234 : vector<128x1xf32> to vector<128x128xf32>
    %248 = arith.addf %246, %247 : vector<128x128xf32>
    %cst_223 = arith.constant 0.000000e+00 : f32
    %249 = vector.broadcast %cst_223 : f32 to vector<128x128xf32>
    %250 = arith.maximumf %248, %249 : vector<128x128xf32>
    %251 = vector.shape_cast %250 : vector<128x128xf32> to vector<8x16x128xf32>
    %c9_224 = arith.constant 9 : index
    %c0_225 = arith.constant 0 : index
    %c0_226 = arith.constant 0 : index
    %252 = vector.load %arg21[%c9_224, %c0_225, %c0_226] : memref<68x16x128xf32, #tpu.memory_space<vmem>>, vector<8x16x128xf32>
    tpu.vector_store %arg21[%c9_224, %c0_225, %c0_226], %251 {strides = array<i32>} : memref<68x16x128xf32, #tpu.memory_space<vmem>>, vector<8x16x128xf32>,
    %c16_227 = arith.constant 16 : index
    %c0_228 = arith.constant 0 : index
    %c0_229 = arith.constant 0 : index
    %253 = vector.load %arg22[%c16_227, %c0_228, %c0_229] : memref<68x16x128xf32, #tpu.memory_space<vmem>>, vector<10x16x128xf32>
    %254 = vector.shape_cast %253 : vector<10x16x128xf32> to vector<160x128xf32>
    %cst_230 = arith.constant dense<0.000000e+00> : vector<128x128xf32>
    %255 = tpu.matmul %233, %254, %cst_230 {dimension_numbers = #tpu.dot_dimension_numbers<[1], [0], [0], [1], [0, 0, 1, 1], [], []>} : vector<128x160xf32>, vector<160x128xf32>, vector<128x128xf32> -> vector<128x128xf32>
    %256 = vector.broadcast %234 : vector<128x1xf32> to vector<128x128xf32>
    %257 = arith.addf %255, %256 : vector<128x128xf32>
    %cst_231 = arith.constant 0.000000e+00 : f32
    %258 = vector.broadcast %cst_231 : f32 to vector<128x128xf32>
    %259 = arith.maximumf %257, %258 : vector<128x128xf32>
    %260 = vector.shape_cast %259 : vector<128x128xf32> to vector<8x16x128xf32>
    %c17_232 = arith.constant 17 : index
    %c0_233 = arith.constant 0 : index
    %c0_234 = arith.constant 0 : index
    %261 = vector.load %arg21[%c17_232, %c0_233, %c0_234] : memref<68x16x128xf32, #tpu.memory_space<vmem>>, vector<8x16x128xf32>
    tpu.vector_store %arg21[%c17_232, %c0_233, %c0_234], %260 {strides = array<i32>} : memref<68x16x128xf32, #tpu.memory_space<vmem>>, vector<8x16x128xf32>,
    %c24_235 = arith.constant 24 : index
    %c0_236 = arith.constant 0 : index
    %c0_237 = arith.constant 0 : index
    %262 = vector.load %arg22[%c24_235, %c0_236, %c0_237] : memref<68x16x128xf32, #tpu.memory_space<vmem>>, vector<10x16x128xf32>
    %263 = vector.shape_cast %262 : vector<10x16x128xf32> to vector<160x128xf32>
    %cst_238 = arith.constant dense<0.000000e+00> : vector<128x128xf32>
    %264 = tpu.matmul %233, %263, %cst_238 {dimension_numbers = #tpu.dot_dimension_numbers<[1], [0], [0], [1], [0, 0, 1, 1], [], []>} : vector<128x160xf32>, vector<160x128xf32>, vector<128x128xf32> -> vector<128x128xf32>
    %265 = vector.broadcast %234 : vector<128x1xf32> to vector<128x128xf32>
    %266 = arith.addf %264, %265 : vector<128x128xf32>
    %cst_239 = arith.constant 0.000000e+00 : f32
    %267 = vector.broadcast %cst_239 : f32 to vector<128x128xf32>
    %268 = arith.maximumf %266, %267 : vector<128x128xf32>
    %269 = vector.shape_cast %268 : vector<128x128xf32> to vector<8x16x128xf32>
    %c25_240 = arith.constant 25 : index
    %c0_241 = arith.constant 0 : index
    %c0_242 = arith.constant 0 : index
    %270 = vector.load %arg21[%c25_240, %c0_241, %c0_242] : memref<68x16x128xf32, #tpu.memory_space<vmem>>, vector<8x16x128xf32>
    tpu.vector_store %arg21[%c25_240, %c0_241, %c0_242], %269 {strides = array<i32>} : memref<68x16x128xf32, #tpu.memory_space<vmem>>, vector<8x16x128xf32>,
    %c26_243 = arith.constant 26 : index
    %c0_244 = arith.constant 0 : index
    %c0_245 = arith.constant 0 : index
    %271 = vector.load %arg22[%c26_243, %c0_244, %c0_245] : memref<68x16x128xf32, #tpu.memory_space<vmem>>, vector<10x16x128xf32>
    %272 = vector.shape_cast %271 : vector<10x16x128xf32> to vector<160x128xf32>
    %cst_246 = arith.constant dense<0.000000e+00> : vector<128x128xf32>
    %273 = tpu.matmul %233, %272, %cst_246 {dimension_numbers = #tpu.dot_dimension_numbers<[1], [0], [0], [1], [0, 0, 1, 1], [], []>} : vector<128x160xf32>, vector<160x128xf32>, vector<128x128xf32> -> vector<128x128xf32>
    %274 = vector.broadcast %234 : vector<128x1xf32> to vector<128x128xf32>
    %275 = arith.addf %273, %274 : vector<128x128xf32>
    %cst_247 = arith.constant 0.000000e+00 : f32
    %276 = vector.broadcast %cst_247 : f32 to vector<128x128xf32>
    %277 = arith.maximumf %275, %276 : vector<128x128xf32>
    %278 = vector.shape_cast %277 : vector<128x128xf32> to vector<8x16x128xf32>
    %c27_248 = arith.constant 27 : index
    %c0_249 = arith.constant 0 : index
    %c0_250 = arith.constant 0 : index
    %279 = vector.load %arg21[%c27_248, %c0_249, %c0_250] : memref<68x16x128xf32, #tpu.memory_space<vmem>>, vector<8x16x128xf32>
    tpu.vector_store %arg21[%c27_248, %c0_249, %c0_250], %278 {strides = array<i32>} : memref<68x16x128xf32, #tpu.memory_space<vmem>>, vector<8x16x128xf32>,
    %cst_251 = arith.constant 0.000000e+00 : f32
    %280 = vector.broadcast %cst_251 : f32 to vector<1x16x128xf32>
    %c0_252 = arith.constant 0 : index
    %c0_253 = arith.constant 0 : index
    %c0_254 = arith.constant 0 : index
    %281 = vector.load %arg21[%c0_252, %c0_253, %c0_254] : memref<68x16x128xf32, #tpu.memory_space<vmem>>, vector<1x16x128xf32>
    tpu.vector_store %arg21[%c0_252, %c0_253, %c0_254], %280 {strides = array<i32>} : memref<68x16x128xf32, #tpu.memory_space<vmem>>, vector<1x16x128xf32>,
    %c35_255 = arith.constant 35 : index
    %c0_256 = arith.constant 0 : index
    %c0_257 = arith.constant 0 : index
    %282 = vector.load %arg21[%c35_255, %c0_256, %c0_257] : memref<68x16x128xf32, #tpu.memory_space<vmem>>, vector<1x16x128xf32>
    tpu.vector_store %arg21[%c35_255, %c0_256, %c0_257], %280 {strides = array<i32>} : memref<68x16x128xf32, #tpu.memory_space<vmem>>, vector<1x16x128xf32>,
    %c0_258 = arith.constant 0 : index
    %c0_259 = arith.constant 0 : index
    %c0_260 = arith.constant 0 : index
    %283 = vector.load %arg21[%c0_258, %c0_259, %c0_260] : memref<68x16x128xf32, #tpu.memory_space<vmem>>, vector<36x16x128xf32>
    %284 = vector.shape_cast %283 : vector<36x16x128xf32> to vector<18x2x16x128xf32>
    %285 = vector.extract_strided_slice %284 {offsets = [0, 0, 0, 0], sizes = [18, 1, 16, 128], strides = [1, 1, 1, 1]} : vector<18x2x16x128xf32> to vector<18x1x16x128xf32>
    %286 = vector.shape_cast %285 : vector<18x1x16x128xf32> to vector<18x16x128xf32>
    %287 = vector.extract_strided_slice %284 {offsets = [0, 1, 0, 0], sizes = [18, 1, 16, 128], strides = [1, 1, 1, 1]} : vector<18x2x16x128xf32> to vector<18x1x16x128xf32>
    %288 = vector.shape_cast %287 : vector<18x1x16x128xf32> to vector<18x16x128xf32>
    %289 = arith.maximumf %286, %288 : vector<18x16x128xf32>
    %c1_261 = arith.constant 1 : index
    %c0_262 = arith.constant 0 : index
    %c0_263 = arith.constant 0 : index
    %290 = vector.load %arg22[%c1_261, %c0_262, %c0_263] : memref<68x16x128xf32, #tpu.memory_space<vmem>>, vector<18x16x128xf32>
    tpu.vector_store %arg22[%c1_261, %c0_262, %c0_263], %289 {strides = array<i32>} : memref<68x16x128xf32, #tpu.memory_space<vmem>>, vector<18x16x128xf32>,
    %cst_264 = arith.constant 0.000000e+00 : f32
    %291 = vector.broadcast %cst_264 : f32 to vector<1x16x128xf32>
    %c0_265 = arith.constant 0 : index
    %c0_266 = arith.constant 0 : index
    %c0_267 = arith.constant 0 : index
    %292 = vector.load %arg22[%c0_265, %c0_266, %c0_267] : memref<68x16x128xf32, #tpu.memory_space<vmem>>, vector<1x16x128xf32>
    tpu.vector_store %arg22[%c0_265, %c0_266, %c0_267], %291 {strides = array<i32>} : memref<68x16x128xf32, #tpu.memory_space<vmem>>, vector<1x16x128xf32>,
    %c19 = arith.constant 19 : index
    %c0_268 = arith.constant 0 : index
    %c0_269 = arith.constant 0 : index
    %293 = vector.load %arg22[%c19, %c0_268, %c0_269] : memref<68x16x128xf32, #tpu.memory_space<vmem>>, vector<1x16x128xf32>
    tpu.vector_store %arg22[%c19, %c0_268, %c0_269], %291 {strides = array<i32>} : memref<68x16x128xf32, #tpu.memory_space<vmem>>, vector<1x16x128xf32>,
    %c0_270 = arith.constant 0 : index
    %c0_271 = arith.constant 0 : index
    %294 = vector.load %arg10[%c0_270, %c0_271] : memref<128x160xf32, #tpu.memory_space<vmem>>, vector<128x160xf32>
    %c0_272 = arith.constant 0 : index
    %c0_273 = arith.constant 0 : index
    %295 = vector.load %arg11[%c0_272, %c0_273] : memref<128x1xf32, #tpu.memory_space<vmem>>, vector<128x1xf32>
    %c0_274 = arith.constant 0 : index
    %c0_275 = arith.constant 0 : index
    %c0_276 = arith.constant 0 : index
    %296 = vector.load %arg22[%c0_274, %c0_275, %c0_276] : memref<68x16x128xf32, #tpu.memory_space<vmem>>, vector<10x16x128xf32>
    %297 = vector.shape_cast %296 : vector<10x16x128xf32> to vector<160x128xf32>
    %cst_277 = arith.constant dense<0.000000e+00> : vector<128x128xf32>
    %298 = tpu.matmul %294, %297, %cst_277 {dimension_numbers = #tpu.dot_dimension_numbers<[1], [0], [0], [1], [0, 0, 1, 1], [], []>} : vector<128x160xf32>, vector<160x128xf32>, vector<128x128xf32> -> vector<128x128xf32>
    %299 = vector.broadcast %295 : vector<128x1xf32> to vector<128x128xf32>
    %300 = arith.addf %298, %299 : vector<128x128xf32>
    %cst_278 = arith.constant 0.000000e+00 : f32
    %301 = vector.broadcast %cst_278 : f32 to vector<128x128xf32>
    %302 = arith.maximumf %300, %301 : vector<128x128xf32>
    %303 = vector.shape_cast %302 : vector<128x128xf32> to vector<8x16x128xf32>
    %c1_279 = arith.constant 1 : index
    %c0_280 = arith.constant 0 : index
    %c0_281 = arith.constant 0 : index
    %304 = vector.load %arg21[%c1_279, %c0_280, %c0_281] : memref<68x16x128xf32, #tpu.memory_space<vmem>>, vector<8x16x128xf32>
    tpu.vector_store %arg21[%c1_279, %c0_280, %c0_281], %303 {strides = array<i32>} : memref<68x16x128xf32, #tpu.memory_space<vmem>>, vector<8x16x128xf32>,
    %c8_282 = arith.constant 8 : index
    %c0_283 = arith.constant 0 : index
    %c0_284 = arith.constant 0 : index
    %305 = vector.load %arg22[%c8_282, %c0_283, %c0_284] : memref<68x16x128xf32, #tpu.memory_space<vmem>>, vector<10x16x128xf32>
    %306 = vector.shape_cast %305 : vector<10x16x128xf32> to vector<160x128xf32>
    %cst_285 = arith.constant dense<0.000000e+00> : vector<128x128xf32>
    %307 = tpu.matmul %294, %306, %cst_285 {dimension_numbers = #tpu.dot_dimension_numbers<[1], [0], [0], [1], [0, 0, 1, 1], [], []>} : vector<128x160xf32>, vector<160x128xf32>, vector<128x128xf32> -> vector<128x128xf32>
    %308 = vector.broadcast %295 : vector<128x1xf32> to vector<128x128xf32>
    %309 = arith.addf %307, %308 : vector<128x128xf32>
    %cst_286 = arith.constant 0.000000e+00 : f32
    %310 = vector.broadcast %cst_286 : f32 to vector<128x128xf32>
    %311 = arith.maximumf %309, %310 : vector<128x128xf32>
    %312 = vector.shape_cast %311 : vector<128x128xf32> to vector<8x16x128xf32>
    %c9_287 = arith.constant 9 : index
    %c0_288 = arith.constant 0 : index
    %c0_289 = arith.constant 0 : index
    %313 = vector.load %arg21[%c9_287, %c0_288, %c0_289] : memref<68x16x128xf32, #tpu.memory_space<vmem>>, vector<8x16x128xf32>
    tpu.vector_store %arg21[%c9_287, %c0_288, %c0_289], %312 {strides = array<i32>} : memref<68x16x128xf32, #tpu.memory_space<vmem>>, vector<8x16x128xf32>,
    %c10 = arith.constant 10 : index
    %c0_290 = arith.constant 0 : index
    %c0_291 = arith.constant 0 : index
    %314 = vector.load %arg22[%c10, %c0_290, %c0_291] : memref<68x16x128xf32, #tpu.memory_space<vmem>>, vector<10x16x128xf32>
    %315 = vector.shape_cast %314 : vector<10x16x128xf32> to vector<160x128xf32>
    %cst_292 = arith.constant dense<0.000000e+00> : vector<128x128xf32>
    %316 = tpu.matmul %294, %315, %cst_292 {dimension_numbers = #tpu.dot_dimension_numbers<[1], [0], [0], [1], [0, 0, 1, 1], [], []>} : vector<128x160xf32>, vector<160x128xf32>, vector<128x128xf32> -> vector<128x128xf32>
    %317 = vector.broadcast %295 : vector<128x1xf32> to vector<128x128xf32>
    %318 = arith.addf %316, %317 : vector<128x128xf32>
    %cst_293 = arith.constant 0.000000e+00 : f32
    %319 = vector.broadcast %cst_293 : f32 to vector<128x128xf32>
    %320 = arith.maximumf %318, %319 : vector<128x128xf32>
    %321 = vector.shape_cast %320 : vector<128x128xf32> to vector<8x16x128xf32>
    %c11 = arith.constant 11 : index
    %c0_294 = arith.constant 0 : index
    %c0_295 = arith.constant 0 : index
    %322 = vector.load %arg21[%c11, %c0_294, %c0_295] : memref<68x16x128xf32, #tpu.memory_space<vmem>>, vector<8x16x128xf32>
    tpu.vector_store %arg21[%c11, %c0_294, %c0_295], %321 {strides = array<i32>} : memref<68x16x128xf32, #tpu.memory_space<vmem>>, vector<8x16x128xf32>,
    %cst_296 = arith.constant 0.000000e+00 : f32
    %323 = vector.broadcast %cst_296 : f32 to vector<1x16x128xf32>
    %c0_297 = arith.constant 0 : index
    %c0_298 = arith.constant 0 : index
    %c0_299 = arith.constant 0 : index
    %324 = vector.load %arg21[%c0_297, %c0_298, %c0_299] : memref<68x16x128xf32, #tpu.memory_space<vmem>>, vector<1x16x128xf32>
    tpu.vector_store %arg21[%c0_297, %c0_298, %c0_299], %323 {strides = array<i32>} : memref<68x16x128xf32, #tpu.memory_space<vmem>>, vector<1x16x128xf32>,
    %c19_300 = arith.constant 19 : index
    %c0_301 = arith.constant 0 : index
    %c0_302 = arith.constant 0 : index
    %325 = vector.load %arg21[%c19_300, %c0_301, %c0_302] : memref<68x16x128xf32, #tpu.memory_space<vmem>>, vector<1x16x128xf32>
    tpu.vector_store %arg21[%c19_300, %c0_301, %c0_302], %323 {strides = array<i32>} : memref<68x16x128xf32, #tpu.memory_space<vmem>>, vector<1x16x128xf32>,
    %c0_303 = arith.constant 0 : index
    %c0_304 = arith.constant 0 : index
    %326 = vector.load %arg12[%c0_303, %c0_304] : memref<128x160xf32, #tpu.memory_space<vmem>>, vector<128x160xf32>
    %c0_305 = arith.constant 0 : index
    %c0_306 = arith.constant 0 : index
    %327 = vector.load %arg13[%c0_305, %c0_306] : memref<128x1xf32, #tpu.memory_space<vmem>>, vector<128x1xf32>
    %c0_307 = arith.constant 0 : index
    %c0_308 = arith.constant 0 : index
    %c0_309 = arith.constant 0 : index
    %328 = vector.load %arg21[%c0_307, %c0_308, %c0_309] : memref<68x16x128xf32, #tpu.memory_space<vmem>>, vector<10x16x128xf32>
    %329 = vector.shape_cast %328 : vector<10x16x128xf32> to vector<160x128xf32>
    %cst_310 = arith.constant dense<0.000000e+00> : vector<128x128xf32>
    %330 = tpu.matmul %326, %329, %cst_310 {dimension_numbers = #tpu.dot_dimension_numbers<[1], [0], [0], [1], [0, 0, 1, 1], [], []>} : vector<128x160xf32>, vector<160x128xf32>, vector<128x128xf32> -> vector<128x128xf32>
    %331 = vector.broadcast %327 : vector<128x1xf32> to vector<128x128xf32>
    %332 = arith.addf %330, %331 : vector<128x128xf32>
    %cst_311 = arith.constant 0.000000e+00 : f32
    %333 = vector.broadcast %cst_311 : f32 to vector<128x128xf32>
    %334 = arith.maximumf %332, %333 : vector<128x128xf32>
    %335 = vector.shape_cast %334 : vector<128x128xf32> to vector<8x16x128xf32>
    %c1_312 = arith.constant 1 : index
    %c0_313 = arith.constant 0 : index
    %c0_314 = arith.constant 0 : index
    %336 = vector.load %arg22[%c1_312, %c0_313, %c0_314] : memref<68x16x128xf32, #tpu.memory_space<vmem>>, vector<8x16x128xf32>
    tpu.vector_store %arg22[%c1_312, %c0_313, %c0_314], %335 {strides = array<i32>} : memref<68x16x128xf32, #tpu.memory_space<vmem>>, vector<8x16x128xf32>,
    %c8_315 = arith.constant 8 : index
    %c0_316 = arith.constant 0 : index
    %c0_317 = arith.constant 0 : index
    %337 = vector.load %arg21[%c8_315, %c0_316, %c0_317] : memref<68x16x128xf32, #tpu.memory_space<vmem>>, vector<10x16x128xf32>
    %338 = vector.shape_cast %337 : vector<10x16x128xf32> to vector<160x128xf32>
    %cst_318 = arith.constant dense<0.000000e+00> : vector<128x128xf32>
    %339 = tpu.matmul %326, %338, %cst_318 {dimension_numbers = #tpu.dot_dimension_numbers<[1], [0], [0], [1], [0, 0, 1, 1], [], []>} : vector<128x160xf32>, vector<160x128xf32>, vector<128x128xf32> -> vector<128x128xf32>
    %340 = vector.broadcast %327 : vector<128x1xf32> to vector<128x128xf32>
    %341 = arith.addf %339, %340 : vector<128x128xf32>
    %cst_319 = arith.constant 0.000000e+00 : f32
    %342 = vector.broadcast %cst_319 : f32 to vector<128x128xf32>
    %343 = arith.maximumf %341, %342 : vector<128x128xf32>
    %344 = vector.shape_cast %343 : vector<128x128xf32> to vector<8x16x128xf32>
    %c9_320 = arith.constant 9 : index
    %c0_321 = arith.constant 0 : index
    %c0_322 = arith.constant 0 : index
    %345 = vector.load %arg22[%c9_320, %c0_321, %c0_322] : memref<68x16x128xf32, #tpu.memory_space<vmem>>, vector<8x16x128xf32>
    tpu.vector_store %arg22[%c9_320, %c0_321, %c0_322], %344 {strides = array<i32>} : memref<68x16x128xf32, #tpu.memory_space<vmem>>, vector<8x16x128xf32>,
    %c10_323 = arith.constant 10 : index
    %c0_324 = arith.constant 0 : index
    %c0_325 = arith.constant 0 : index
    %346 = vector.load %arg21[%c10_323, %c0_324, %c0_325] : memref<68x16x128xf32, #tpu.memory_space<vmem>>, vector<10x16x128xf32>
    %347 = vector.shape_cast %346 : vector<10x16x128xf32> to vector<160x128xf32>
    %cst_326 = arith.constant dense<0.000000e+00> : vector<128x128xf32>
    %348 = tpu.matmul %326, %347, %cst_326 {dimension_numbers = #tpu.dot_dimension_numbers<[1], [0], [0], [1], [0, 0, 1, 1], [], []>} : vector<128x160xf32>, vector<160x128xf32>, vector<128x128xf32> -> vector<128x128xf32>
    %349 = vector.broadcast %327 : vector<128x1xf32> to vector<128x128xf32>
    %350 = arith.addf %348, %349 : vector<128x128xf32>
    %cst_327 = arith.constant 0.000000e+00 : f32
    %351 = vector.broadcast %cst_327 : f32 to vector<128x128xf32>
    %352 = arith.maximumf %350, %351 : vector<128x128xf32>
    %353 = vector.shape_cast %352 : vector<128x128xf32> to vector<8x16x128xf32>
    %c11_328 = arith.constant 11 : index
    %c0_329 = arith.constant 0 : index
    %c0_330 = arith.constant 0 : index
    %354 = vector.load %arg22[%c11_328, %c0_329, %c0_330] : memref<68x16x128xf32, #tpu.memory_space<vmem>>, vector<8x16x128xf32>
    tpu.vector_store %arg22[%c11_328, %c0_329, %c0_330], %353 {strides = array<i32>} : memref<68x16x128xf32, #tpu.memory_space<vmem>>, vector<8x16x128xf32>,
    %cst_331 = arith.constant 0.000000e+00 : f32
    %355 = vector.broadcast %cst_331 : f32 to vector<1x16x128xf32>
    %c0_332 = arith.constant 0 : index
    %c0_333 = arith.constant 0 : index
    %c0_334 = arith.constant 0 : index
    %356 = vector.load %arg22[%c0_332, %c0_333, %c0_334] : memref<68x16x128xf32, #tpu.memory_space<vmem>>, vector<1x16x128xf32>
    tpu.vector_store %arg22[%c0_332, %c0_333, %c0_334], %355 {strides = array<i32>} : memref<68x16x128xf32, #tpu.memory_space<vmem>>, vector<1x16x128xf32>,
    %c19_335 = arith.constant 19 : index
    %c0_336 = arith.constant 0 : index
    %c0_337 = arith.constant 0 : index
    %357 = vector.load %arg22[%c19_335, %c0_336, %c0_337] : memref<68x16x128xf32, #tpu.memory_space<vmem>>, vector<1x16x128xf32>
    tpu.vector_store %arg22[%c19_335, %c0_336, %c0_337], %355 {strides = array<i32>} : memref<68x16x128xf32, #tpu.memory_space<vmem>>, vector<1x16x128xf32>,
    %c0_338 = arith.constant 0 : index
    %c0_339 = arith.constant 0 : index
    %c0_340 = arith.constant 0 : index
    %358 = vector.load %arg22[%c0_338, %c0_339, %c0_340] : memref<68x16x128xf32, #tpu.memory_space<vmem>>, vector<20x16x128xf32>
    %359 = vector.shape_cast %358 : vector<20x16x128xf32> to vector<10x2x16x128xf32>
    %360 = vector.extract_strided_slice %359 {offsets = [0, 0, 0, 0], sizes = [10, 1, 16, 128], strides = [1, 1, 1, 1]} : vector<10x2x16x128xf32> to vector<10x1x16x128xf32>
    %361 = vector.shape_cast %360 : vector<10x1x16x128xf32> to vector<10x16x128xf32>
    %362 = vector.extract_strided_slice %359 {offsets = [0, 1, 0, 0], sizes = [10, 1, 16, 128], strides = [1, 1, 1, 1]} : vector<10x2x16x128xf32> to vector<10x1x16x128xf32>
    %363 = vector.shape_cast %362 : vector<10x1x16x128xf32> to vector<10x16x128xf32>
    %364 = arith.maximumf %361, %363 : vector<10x16x128xf32>
    %c1_341 = arith.constant 1 : index
    %c0_342 = arith.constant 0 : index
    %c0_343 = arith.constant 0 : index
    %365 = vector.load %arg21[%c1_341, %c0_342, %c0_343] : memref<68x16x128xf32, #tpu.memory_space<vmem>>, vector<10x16x128xf32>
    tpu.vector_store %arg21[%c1_341, %c0_342, %c0_343], %364 {strides = array<i32>} : memref<68x16x128xf32, #tpu.memory_space<vmem>>, vector<10x16x128xf32>,
    %cst_344 = arith.constant 0.000000e+00 : f32
    %366 = vector.broadcast %cst_344 : f32 to vector<1x16x128xf32>
    %c0_345 = arith.constant 0 : index
    %c0_346 = arith.constant 0 : index
    %c0_347 = arith.constant 0 : index
    %367 = vector.load %arg21[%c0_345, %c0_346, %c0_347] : memref<68x16x128xf32, #tpu.memory_space<vmem>>, vector<1x16x128xf32>
    tpu.vector_store %arg21[%c0_345, %c0_346, %c0_347], %366 {strides = array<i32>} : memref<68x16x128xf32, #tpu.memory_space<vmem>>, vector<1x16x128xf32>,
    %c11_348 = arith.constant 11 : index
    %c0_349 = arith.constant 0 : index
    %c0_350 = arith.constant 0 : index
    %368 = vector.load %arg21[%c11_348, %c0_349, %c0_350] : memref<68x16x128xf32, #tpu.memory_space<vmem>>, vector<1x16x128xf32>
    tpu.vector_store %arg21[%c11_348, %c0_349, %c0_350], %366 {strides = array<i32>} : memref<68x16x128xf32, #tpu.memory_space<vmem>>, vector<1x16x128xf32>,
    %c1_351 = arith.constant 1 : index
    %c0_352 = arith.constant 0 : index
    %c0_353 = arith.constant 0 : index
    %369 = vector.load %arg21[%c1_351, %c0_352, %c0_353] : memref<68x16x128xf32, #tpu.memory_space<vmem>>, vector<10x16x128xf32>
    %370 = vector.shape_cast %369 : vector<10x16x128xf32> to vector<160x128xf32>
    %c0_354 = arith.constant 0 : index
    %c0_355 = arith.constant 0 : index
    %371 = vector.load %arg14[%c0_354, %c0_355] : memref<128x160xf32, #tpu.memory_space<vmem>>, vector<128x160xf32>
    %cst_356 = arith.constant dense<0.000000e+00> : vector<128x128xf32>
    %372 = tpu.matmul %371, %370, %cst_356 {dimension_numbers = #tpu.dot_dimension_numbers<[1], [0], [0], [1], [0, 0, 1, 1], [], []>} : vector<128x160xf32>, vector<160x128xf32>, vector<128x128xf32> -> vector<128x128xf32>
    %c0_357 = arith.constant 0 : index
    %c0_358 = arith.constant 0 : index
    %373 = vector.load %arg15[%c0_357, %c0_358] : memref<128x1xf32, #tpu.memory_space<vmem>>, vector<128x1xf32>
    %374 = vector.broadcast %373 : vector<128x1xf32> to vector<128x128xf32>
    %375 = arith.addf %372, %374 : vector<128x128xf32>
    %cst_359 = arith.constant 0.000000e+00 : f32
    %376 = vector.broadcast %cst_359 : f32 to vector<128x128xf32>
    %377 = arith.maximumf %375, %376 : vector<128x128xf32>
    %c0_360 = arith.constant 0 : index
    %c0_361 = arith.constant 0 : index
    %378 = vector.load %arg16[%c0_360, %c0_361] : memref<64x128xf32, #tpu.memory_space<vmem>>, vector<64x128xf32>
    %cst_362 = arith.constant dense<0.000000e+00> : vector<64x128xf32>
    %379 = tpu.matmul %378, %377, %cst_362 {dimension_numbers = #tpu.dot_dimension_numbers<[1], [0], [0], [1], [0, 0, 1, 1], [], []>} : vector<64x128xf32>, vector<128x128xf32>, vector<64x128xf32> -> vector<64x128xf32>
    %c0_363 = arith.constant 0 : index
    %c0_364 = arith.constant 0 : index
    %380 = vector.load %arg17[%c0_363, %c0_364] : memref<64x1xf32, #tpu.memory_space<vmem>>, vector<64x1xf32>
    %381 = vector.broadcast %380 : vector<64x1xf32> to vector<64x128xf32>
    %382 = arith.addf %379, %381 : vector<64x128xf32>
    %cst_365 = arith.constant 0.000000e+00 : f32
    %383 = vector.broadcast %cst_365 : f32 to vector<64x128xf32>
    %384 = arith.maximumf %382, %383 : vector<64x128xf32>
    %c0_366 = arith.constant 0 : index
    %c0_367 = arith.constant 0 : index
    %385 = vector.load %arg18[%c0_366, %c0_367] : memref<8x64xf32, #tpu.memory_space<vmem>>, vector<8x64xf32>
    %cst_368 = arith.constant dense<0.000000e+00> : vector<8x128xf32>
    %386 = tpu.matmul %385, %384, %cst_368 {dimension_numbers = #tpu.dot_dimension_numbers<[1], [0], [0], [1], [0, 0, 1, 1], [], []>} : vector<8x64xf32>, vector<64x128xf32>, vector<8x128xf32> -> vector<8x128xf32>
    %c0_369 = arith.constant 0 : index
    %c0_370 = arith.constant 0 : index
    %387 = vector.load %arg19[%c0_369, %c0_370] : memref<8x1xf32, #tpu.memory_space<vmem>>, vector<8x1xf32>
    %388 = vector.broadcast %387 : vector<8x1xf32> to vector<8x128xf32>
    %389 = arith.addf %386, %388 : vector<8x128xf32>
    %c0_371 = arith.constant 0 : index
    %c0_372 = arith.constant 0 : index
    %390 = vector.load %arg20[%c0_371, %c0_372] : memref<8x128xf32, #tpu.memory_space<vmem>>, vector<8x128xf32>
    tpu.vector_store %arg20[%c0_371, %c0_372], %389 {strides = array<i32>} : memref<8x128xf32, #tpu.memory_space<vmem>>, vector<8x128xf32>,
    return
  }
  func.func @transform_0(%arg0: i32) -> (i32, i32, i32) {
    %c0_i32 = arith.constant 0 : i32
    %c0_i32_0 = arith.constant 0 : i32
    %c0_i32_1 = arith.constant 0 : i32
    return %c0_i32, %c0_i32_0, %arg0 : i32, i32, i32
  }
  func.func @transform_1(%arg0: i32) -> (i32, i32) {
    %c0_i32 = arith.constant 0 : i32
    %c0_i32_0 = arith.constant 0 : i32
    %c0_i32_1 = arith.constant 0 : i32
    return %c0_i32, %c0_i32_0 : i32, i32
  }
  func.func @transform_2(%arg0: i32) -> (i32, i32) {
    %c0_i32 = arith.constant 0 : i32
    %c0_i32_0 = arith.constant 0 : i32
    %c0_i32_1 = arith.constant 0 : i32
    return %c0_i32, %c0_i32_0 : i32, i32
  }
  func.func @transform_3(%arg0: i32) -> (i32, i32) {
    %c0_i32 = arith.constant 0 : i32
    %c0_i32_0 = arith.constant 0 : i32
    %c0_i32_1 = arith.constant 0 : i32
    return %c0_i32, %c0_i32_0 : i32, i32
  }
  func.func @transform_4(%arg0: i32) -> (i32, i32) {
    %c0_i32 = arith.constant 0 : i32
    %c0_i32_0 = arith.constant 0 : i32
    %c0_i32_1 = arith.constant 0 : i32
    return %c0_i32, %c0_i32_0 : i32, i32
  }
  func.func @transform_5(%arg0: i32) -> (i32, i32) {
    %c0_i32 = arith.constant 0 : i32
    %c0_i32_0 = arith.constant 0 : i32
    %c0_i32_1 = arith.constant 0 : i32
    return %c0_i32, %c0_i32_0 : i32, i32
  }
  func.func @transform_6(%arg0: i32) -> (i32, i32) {
    %c0_i32 = arith.constant 0 : i32
    %c0_i32_0 = arith.constant 0 : i32
    %c0_i32_1 = arith.constant 0 : i32
    return %c0_i32, %c0_i32_0 : i32, i32
  }
  func.func @transform_7(%arg0: i32) -> (i32, i32) {
    %c0_i32 = arith.constant 0 : i32
    %c0_i32_0 = arith.constant 0 : i32
    %c0_i32_1 = arith.constant 0 : i32
    return %c0_i32, %c0_i32_0 : i32, i32
  }
  func.func @transform_8(%arg0: i32) -> (i32, i32) {
    %c0_i32 = arith.constant 0 : i32
    %c0_i32_0 = arith.constant 0 : i32
    %c0_i32_1 = arith.constant 0 : i32
    return %c0_i32, %c0_i32_0 : i32, i32
  }
  func.func @transform_9(%arg0: i32) -> (i32, i32) {
    %c0_i32 = arith.constant 0 : i32
    %c0_i32_0 = arith.constant 0 : i32
    %c0_i32_1 = arith.constant 0 : i32
    return %c0_i32, %c0_i32_0 : i32, i32
  }
  func.func @transform_10(%arg0: i32) -> (i32, i32) {
    %c0_i32 = arith.constant 0 : i32
    %c0_i32_0 = arith.constant 0 : i32
    %c0_i32_1 = arith.constant 0 : i32
    return %c0_i32, %c0_i32_0 : i32, i32
  }
  func.func @transform_11(%arg0: i32) -> (i32, i32) {
    %c0_i32 = arith.constant 0 : i32
    %c0_i32_0 = arith.constant 0 : i32
    %c0_i32_1 = arith.constant 0 : i32
    return %c0_i32, %c0_i32_0 : i32, i32
  }
  func.func @transform_12(%arg0: i32) -> (i32, i32) {
    %c0_i32 = arith.constant 0 : i32
    %c0_i32_0 = arith.constant 0 : i32
    %c0_i32_1 = arith.constant 0 : i32
    return %c0_i32, %c0_i32_0 : i32, i32
  }
  func.func @transform_13(%arg0: i32) -> (i32, i32) {
    %c0_i32 = arith.constant 0 : i32
    %c0_i32_0 = arith.constant 0 : i32
    %c0_i32_1 = arith.constant 0 : i32
    return %c0_i32, %c0_i32_0 : i32, i32
  }
  func.func @transform_14(%arg0: i32) -> (i32, i32) {
    %c0_i32 = arith.constant 0 : i32
    %c0_i32_0 = arith.constant 0 : i32
    %c0_i32_1 = arith.constant 0 : i32
    return %c0_i32, %c0_i32_0 : i32, i32
  }
  func.func @transform_15(%arg0: i32) -> (i32, i32) {
    %c0_i32 = arith.constant 0 : i32
    %c0_i32_0 = arith.constant 0 : i32
    %c0_i32_1 = arith.constant 0 : i32
    return %c0_i32, %c0_i32_0 : i32, i32
  }
  func.func @transform_16(%arg0: i32) -> (i32, i32) {
    %c0_i32 = arith.constant 0 : i32
    %c0_i32_0 = arith.constant 0 : i32
    %c0_i32_1 = arith.constant 0 : i32
    return %c0_i32, %c0_i32_0 : i32, i32
  }
  func.func @transform_17(%arg0: i32) -> (i32, i32) {
    %c0_i32 = arith.constant 0 : i32
    %c0_i32_0 = arith.constant 0 : i32
    %c0_i32_1 = arith.constant 0 : i32
    return %c0_i32, %c0_i32_0 : i32, i32
  }
  func.func @transform_18(%arg0: i32) -> (i32, i32) {
    %c0_i32 = arith.constant 0 : i32
    %c0_i32_0 = arith.constant 0 : i32
    %c0_i32_1 = arith.constant 0 : i32
    return %c0_i32, %c0_i32_0 : i32, i32
  }
  func.func @transform_19(%arg0: i32) -> (i32, i32) {
    %c0_i32 = arith.constant 0 : i32
    %c0_i32_0 = arith.constant 0 : i32
    return %c0_i32, %arg0 : i32, i32
  }
}

</mosaic_0001>

<llo_original>
// kernel: tpu_custom_call.1
$region0: #{tpu_custom_call.1}
  #allocation0 [shape = 'u32[]', space=smem, size = 0x4, offset = 0x4, fixed_abs, tag = 'smem constant byte address 0x4 - core index']
  #allocation1 [shape = 'u32[144,128]{1,0:T(1,128)}', space=vmem, size = 0x12000, scoped, tag = 'internal scratch']
  #allocation2 [shape = 'f32[68,16,128]{2,1,0:T(8,128)}', space=vmem, size = 0x88000, scoped, tag = 'scratch operand']
  #allocation3 [shape = 'f32[68,16,128]{2,1,0:T(8,128)}', space=vmem, size = 0x88000, scoped, tag = 'scratch operand']
  %s0 = inlined_call_operand.vmem [shape: f32[68,16,128], index: 0, kind: input, shape index: {}]
  %s1 = inlined_call_operand.vmem [shape: f32[128,160], index: 1, kind: input, shape index: {}]
  %s2 = inlined_call_operand.vmem [shape: f32[128,1], index: 2, kind: input, shape index: {}]
  %s3 = inlined_call_operand.vmem [shape: f32[128,160], index: 3, kind: input, shape index: {}]
  %s4 = inlined_call_operand.vmem [shape: f32[128,1], index: 4, kind: input, shape index: {}]
  %s5 = inlined_call_operand.vmem [shape: f32[128,160], index: 5, kind: input, shape index: {}]
  %s6 = inlined_call_operand.vmem [shape: f32[128,1], index: 6, kind: input, shape index: {}]
  %s7 = inlined_call_operand.vmem [shape: f32[128,160], index: 7, kind: input, shape index: {}]
  %s8 = inlined_call_operand.vmem [shape: f32[128,1], index: 8, kind: input, shape index: {}]
  %s9 = inlined_call_operand.vmem [shape: f32[128,160], index: 9, kind: input, shape index: {}]
  %s10 = inlined_call_operand.vmem [shape: f32[128,1], index: 10, kind: input, shape index: {}]
  %s11 = inlined_call_operand.vmem [shape: f32[128,160], index: 11, kind: input, shape index: {}]
  %s12 = inlined_call_operand.vmem [shape: f32[128,1], index: 12, kind: input, shape index: {}]
  %s13 = inlined_call_operand.vmem [shape: f32[128,160], index: 13, kind: input, shape index: {}]
  %s14 = inlined_call_operand.vmem [shape: f32[128,1], index: 14, kind: input, shape index: {}]
  %s15 = inlined_call_operand.vmem [shape: f32[64,128], index: 15, kind: input, shape index: {}]
  %s16 = inlined_call_operand.vmem [shape: f32[64,1], index: 16, kind: input, shape index: {}]
  %s17 = inlined_call_operand.vmem [shape: f32[8,64], index: 17, kind: input, shape index: {}]
  %s18 = inlined_call_operand.vmem [shape: f32[8,1], index: 18, kind: input, shape index: {}]
  %s19 = inlined_call_operand.hbm [shape: f32[8,128], index: 19, kind: output, shape index: {}]
  %s20 = sld [smem:[#allocation0]]
  $region86: #{tpu_custom_call.1} parent=0
    _
  %s22 = ssub.s32 1, %s20
  %s23 = scalar_select 0, %s22, %s20
  $region1: #{tpu_custom_call.1} parent=0
    #allocation4 [shape = 'u8[4096]{0}', space=vmem, size = 0x1000, scoped, tag = 'output window, operand 0, single buffered']
    #allocation5 [shape = 's32[1]{0}', space=sflag, size = 0x4, scoped, tag = 'scoped memory for tpu_custom_call.1']
    %24 = vsyncpa [#allocation5], 0
    // Predicated region
    $region2: #{tpu_custom_call.1} parent=1 // pred_check
      _
    $region3: #{tpu_custom_call.1} parent=1 // pred_check_branch
      %26 = sbr.rel (0) target = $region5
    $region4: #{tpu_custom_call.1} parent=1 // pred_region
      _
    $region5: #{tpu_custom_call.1} parent=1 // pred_fallthru
      _
    // Predicated region
    $region6: #{tpu_custom_call.1} parent=1 // pred_check
      _
    $region7: #{tpu_custom_call.1} parent=1 // pred_check_branch
      %28 = sbr.rel (0) target = $region9
    $region8: #{tpu_custom_call.1} parent=1 // pred_region
      _
    $region9: #{tpu_custom_call.1} parent=1 // pred_fallthru
      _
    // Predicated region
    $region10: #{tpu_custom_call.1} parent=1 // pred_check
      _
    $region11: #{tpu_custom_call.1} parent=1 // pred_check_branch
      %30 = sbr.rel (0) target = $region13
    $region12: #{tpu_custom_call.1} parent=1 // pred_region
      _
    $region13: #{tpu_custom_call.1} parent=1 // pred_fallthru
      _
    // Predicated region
    $region14: #{tpu_custom_call.1} parent=1 // pred_check
      _
    $region15: #{tpu_custom_call.1} parent=1 // pred_check_branch
      %32 = sbr.rel (0) target = $region17
    $region16: #{tpu_custom_call.1} parent=1 // pred_region
      _
    $region17: #{tpu_custom_call.1} parent=1 // pred_fallthru
      _
    // Predicated region
    $region18: #{tpu_custom_call.1} parent=1 // pred_check
      _
    $region19: #{tpu_custom_call.1} parent=1 // pred_check_branch
      %34 = sbr.rel (0) target = $region21
    $region20: #{tpu_custom_call.1} parent=1 // pred_region
      _
    $region21: #{tpu_custom_call.1} parent=1 // pred_fallthru
      _
    // Predicated region
    $region22: #{tpu_custom_call.1} parent=1 // pred_check
      _
    $region23: #{tpu_custom_call.1} parent=1 // pred_check_branch
      %36 = sbr.rel (0) target = $region25
    $region24: #{tpu_custom_call.1} parent=1 // pred_region
      _
    $region25: #{tpu_custom_call.1} parent=1 // pred_fallthru
      _
    // Predicated region
    $region26: #{tpu_custom_call.1} parent=1 // pred_check
      _
    $region27: #{tpu_custom_call.1} parent=1 // pred_check_branch
      %38 = sbr.rel (0) target = $region29
    $region28: #{tpu_custom_call.1} parent=1 // pred_region
      _
    $region29: #{tpu_custom_call.1} parent=1 // pred_fallthru
      _
    // Predicated region
    $region30: #{tpu_custom_call.1} parent=1 // pred_check
      _
    $region31: #{tpu_custom_call.1} parent=1 // pred_check_branch
      %40 = sbr.rel (0) target = $region33
    $region32: #{tpu_custom_call.1} parent=1 // pred_region
      _
    $region33: #{tpu_custom_call.1} parent=1 // pred_fallthru
      _
    // Predicated region
    $region34: #{tpu_custom_call.1} parent=1 // pred_check
      _
    $region35: #{tpu_custom_call.1} parent=1 // pred_check_branch
      %42 = sbr.rel (0) target = $region37
    $region36: #{tpu_custom_call.1} parent=1 // pred_region
      _
    $region37: #{tpu_custom_call.1} parent=1 // pred_fallthru
      _
    // Predicated region
    $region38: #{tpu_custom_call.1} parent=1 // pred_check
      _
    $region39: #{tpu_custom_call.1} parent=1 // pred_check_branch
      %44 = sbr.rel (0) target = $region41
    $region40: #{tpu_custom_call.1} parent=1 // pred_region
      _
    $region41: #{tpu_custom_call.1} parent=1 // pred_fallthru
      _
    // Predicated region
    $region42: #{tpu_custom_call.1} parent=1 // pred_check
      _
    $region43: #{tpu_custom_call.1} parent=1 // pred_check_branch
      %46 = sbr.rel (0) target = $region45
    $region44: #{tpu_custom_call.1} parent=1 // pred_region
      _
    $region45: #{tpu_custom_call.1} parent=1 // pred_fallthru
      _
    // Predicated region
    $region46: #{tpu_custom_call.1} parent=1 // pred_check
      _
    $region47: #{tpu_custom_call.1} parent=1 // pred_check_branch
      %48 = sbr.rel (0) target = $region49
    $region48: #{tpu_custom_call.1} parent=1 // pred_region
      _
    $region49: #{tpu_custom_call.1} parent=1 // pred_fallthru
      _
    // Predicated region
    $region50: #{tpu_custom_call.1} parent=1 // pred_check
      _
    $region51: #{tpu_custom_call.1} parent=1 // pred_check_branch
      %50 = sbr.rel (0) target = $region53
    $region52: #{tpu_custom_call.1} parent=1 // pred_region
      _
    $region53: #{tpu_custom_call.1} parent=1 // pred_fallthru
      _
    // Predicated region
    $region54: #{tpu_custom_call.1} parent=1 // pred_check
      _
    $region55: #{tpu_custom_call.1} parent=1 // pred_check_branch
      %52 = sbr.rel (0) target = $region57
    $region56: #{tpu_custom_call.1} parent=1 // pred_region
      _
    $region57: #{tpu_custom_call.1} parent=1 // pred_fallthru
      _
    // Predicated region
    $region58: #{tpu_custom_call.1} parent=1 // pred_check
      _
    $region59: #{tpu_custom_call.1} parent=1 // pred_check_branch
      %54 = sbr.rel (0) target = $region61
    $region60: #{tpu_custom_call.1} parent=1 // pred_region
      _
    $region61: #{tpu_custom_call.1} parent=1 // pred_fallthru
      _
    // Predicated region
    $region62: #{tpu_custom_call.1} parent=1 // pred_check
      _
    $region63: #{tpu_custom_call.1} parent=1 // pred_check_branch
      %56 = sbr.rel (0) target = $region65
    $region64: #{tpu_custom_call.1} parent=1 // pred_region
      _
    $region65: #{tpu_custom_call.1} parent=1 // pred_fallthru
      _
    // Predicated region
    $region66: #{tpu_custom_call.1} parent=1 // pred_check
      _
    $region67: #{tpu_custom_call.1} parent=1 // pred_check_branch
      %58 = sbr.rel (0) target = $region69
    $region68: #{tpu_custom_call.1} parent=1 // pred_region
      _
    $region69: #{tpu_custom_call.1} parent=1 // pred_fallthru
      _
    // Predicated region
    $region70: #{tpu_custom_call.1} parent=1 // pred_check
      _
    $region71: #{tpu_custom_call.1} parent=1 // pred_check_branch
      %60 = sbr.rel (0) target = $region73
    $region72: #{tpu_custom_call.1} parent=1 // pred_region
      _
    $region73: #{tpu_custom_call.1} parent=1 // pred_fallthru
      _
    // Predicated region
    $region74: #{tpu_custom_call.1} parent=1 // pred_check
      _
    $region75: #{tpu_custom_call.1} parent=1 // pred_check_branch
      %62 = sbr.rel (0) target = $region77
    $region76: #{tpu_custom_call.1} parent=1 // pred_region
      _
    $region77: #{tpu_custom_call.1} parent=1 // pred_fallthru
      _
    %v63 = vld [vmem:[%s1] sm:$0xff]
    %v64 = vld [vmem:[%s1 + $0x8] sm:$0xff]
    %v65 = vld [vmem:[%s1 + $0x10] sm:$0xff]
    %v66 = vld [vmem:[%s1 + $0x18] sm:$0xff]
    %v67 = vld [vmem:[%s1 + $0x20] sm:$0xff]
    %v68 = vld [vmem:[%s1 + $0x28] sm:$0xff]
    %v69 = vld [vmem:[%s1 + $0x30] sm:$0xff]
    %v70 = vld [vmem:[%s1 + $0x38] sm:$0xff]
    %v71 = vld [vmem:[%s1 + $0x40] sm:$0xff]
    %v72 = vld [vmem:[%s1 + $0x48] sm:$0xff]
    %v73 = vld [vmem:[%s1 + $0x50] sm:$0xff]
    %v74 = vld [vmem:[%s1 + $0x58] sm:$0xff]
    %v75 = vld [vmem:[%s1 + $0x60] sm:$0xff]
    %v76 = vld [vmem:[%s1 + $0x68] sm:$0xff]
    %v77 = vld [vmem:[%s1 + $0x70] sm:$0xff]
    %v78 = vld [vmem:[%s1 + $0x78] sm:$0xff]
    %v79 = vld [vmem:[%s1 + $0x80] sm:$0xff]
    %v80 = vld [vmem:[%s1 + $0x88] sm:$0xff]
    %v81 = vld [vmem:[%s1 + $0x90] sm:$0xff]
    %v82 = vld [vmem:[%s1 + $0x98] sm:$0xff]
    %v83 = vld [vmem:[%s1 + $0xa0] sm:$0xff]
    %v84 = vld [vmem:[%s1 + $0xa8] sm:$0xff]
    %v85 = vld [vmem:[%s1 + $0xb0] sm:$0xff]
    %v86 = vld [vmem:[%s1 + $0xb8] sm:$0xff]
    %v87 = vld [vmem:[%s1 + $0xc0] sm:$0xff]
    %v88 = vld [vmem:[%s1 + $0xc8] sm:$0xff]
    %v89 = vld [vmem:[%s1 + $0xd0] sm:$0xff]
    %v90 = vld [vmem:[%s1 + $0xd8] sm:$0xff]
    %v91 = vld [vmem:[%s1 + $0xe0] sm:$0xff]
    %v92 = vld [vmem:[%s1 + $0xe8] sm:$0xff]
    %v93 = vld [vmem:[%s1 + $0xf0] sm:$0xff]
    %v94 = vld [vmem:[%s1 + $0xf8] sm:$0xff]
    %v95 = vld [vmem:[%s2] sm:$0xff]
    %v96 = vld [vmem:[%s2 + $0x8] sm:$0xff]
    %v97 = vld [vmem:[%s2 + $0x10] sm:$0xff]
    %v98 = vld [vmem:[%s2 + $0x18] sm:$0xff]
    %v99 = vld [vmem:[%s2 + $0x20] sm:$0xff]
    %v100 = vld [vmem:[%s2 + $0x28] sm:$0xff]
    %v101 = vld [vmem:[%s2 + $0x30] sm:$0xff]
    %v102 = vld [vmem:[%s2 + $0x38] sm:$0xff]
    %v103 = vld [vmem:[%s2 + $0x40] sm:$0xff]
    %v104 = vld [vmem:[%s2 + $0x48] sm:$0xff]
    %v105 = vld [vmem:[%s2 + $0x50] sm:$0xff]
    %v106 = vld [vmem:[%s2 + $0x58] sm:$0xff]
    %v107 = vld [vmem:[%s2 + $0x60] sm:$0xff]
    %v108 = vld [vmem:[%s2 + $0x68] sm:$0xff]
    %v109 = vld [vmem:[%s2 + $0x70] sm:$0xff]
    %v110 = vld [vmem:[%s2 + $0x78] sm:$0xff]
    %v111 = vld [vmem:[%s0] sm:$0xff]
    %v112 = vld [vmem:[%s0 + $0x8] sm:$0xff]
    %v113 = vld [vmem:[%s0 + $0x10] sm:$0xff]
    %v114 = vld [vmem:[%s0 + $0x18] sm:$0xff]
    %v115 = vld [vmem:[%s0 + $0x20] sm:$0xff]
    %v116 = vld [vmem:[%s0 + $0x28] sm:$0xff]
    %v117 = vld [vmem:[%s0 + $0x30] sm:$0xff]
    %v118 = vld [vmem:[%s0 + $0x38] sm:$0xff]
    %v119 = vld [vmem:[%s0 + $0x40] sm:$0xff]
    %v120 = vld [vmem:[%s0 + $0x48] sm:$0xff]
    %v121 = vld [vmem:[%s0 + $0x50] sm:$0xff]
    %v122 = vld [vmem:[%s0 + $0x58] sm:$0xff]
    %v123 = vld [vmem:[%s0 + $0x60] sm:$0xff]
    %v124 = vld [vmem:[%s0 + $0x68] sm:$0xff]
    %v125 = vld [vmem:[%s0 + $0x70] sm:$0xff]
    %v126 = vld [vmem:[%s0 + $0x78] sm:$0xff]
    %v127 = vld [vmem:[%s0 + $0x80] sm:$0xff]
    %v128 = vld [vmem:[%s0 + $0x88] sm:$0xff]
    %v129 = vld [vmem:[%s0 + $0x90] sm:$0xff]
    %v130 = vld [vmem:[%s0 + $0x98] sm:$0xff]
    %132 = vset.pattern.permute.xlu0 0
    %133 = vperm.xlu0 %132, %v95
    %v134 = vpop.permute.xlu0 %133
    %137 = vset.pattern.permute.xlu0 0
    %138 = vperm.xlu0 %137, %v96
    %v139 = vpop.permute.xlu0 %138
    %142 = vset.pattern.permute.xlu0 0
    %143 = vperm.xlu0 %142, %v97
    %v144 = vpop.permute.xlu0 %143
    %147 = vset.pattern.permute.xlu0 0
    %148 = vperm.xlu0 %147, %v98
    %v149 = vpop.permute.xlu0 %148
    %152 = vset.pattern.permute.xlu0 0
    %153 = vperm.xlu0 %152, %v99
    %v154 = vpop.permute.xlu0 %153
    %157 = vset.pattern.permute.xlu0 0
    %158 = vperm.xlu0 %157, %v100
    %v159 = vpop.permute.xlu0 %158
    %162 = vset.pattern.permute.xlu0 0
    %163 = vperm.xlu0 %162, %v101
    %v164 = vpop.permute.xlu0 %163
    %167 = vset.pattern.permute.xlu0 0
    %168 = vperm.xlu0 %167, %v102
    %v169 = vpop.permute.xlu0 %168
    %172 = vset.pattern.permute.xlu0 0
    %173 = vperm.xlu0 %172, %v103
    %v174 = vpop.permute.xlu0 %173
    %177 = vset.pattern.permute.xlu0 0
    %178 = vperm.xlu0 %177, %v104
    %v179 = vpop.permute.xlu0 %178
    %182 = vset.pattern.permute.xlu0 0
    %183 = vperm.xlu0 %182, %v105
    %v184 = vpop.permute.xlu0 %183
    %187 = vset.pattern.permute.xlu0 0
    %188 = vperm.xlu0 %187, %v106
    %v189 = vpop.permute.xlu0 %188
    %192 = vset.pattern.permute.xlu0 0
    %193 = vperm.xlu0 %192, %v107
    %v194 = vpop.permute.xlu0 %193
    %197 = vset.pattern.permute.xlu0 0
    %198 = vperm.xlu0 %197, %v108
    %v199 = vpop.permute.xlu0 %198
    %202 = vset.pattern.permute.xlu0 0
    %203 = vperm.xlu0 %202, %v109
    %v204 = vpop.permute.xlu0 %203
    %207 = vset.pattern.permute.xlu0 0
    %208 = vperm.xlu0 %207, %v110
    %v209 = vpop.permute.xlu0 %208
    %vm211 = vcmask 261120
    %v213 = vsel %vm211, %v64, 0
    %v216 = vsel %vm211, %v66, 0
    %v219 = vsel %vm211, %v68, 0
    %v222 = vsel %vm211, %v70, 0
    %v225 = vsel %vm211, %v72, 0
    %v228 = vsel %vm211, %v74, 0
    %v231 = vsel %vm211, %v76, 0
    %v234 = vsel %vm211, %v78, 0
    %v237 = vsel %vm211, %v80, 0
    %v240 = vsel %vm211, %v82, 0
    %v243 = vsel %vm211, %v84, 0
    %v246 = vsel %vm211, %v86, 0
    %v249 = vsel %vm211, %v88, 0
    %v252 = vsel %vm211, %v90, 0
    %v255 = vsel %vm211, %v92, 0
    %v258 = vsel %vm211, %v94, 0
    %260 = vmatprep.subr.mxu0 0.0
    %261 = vmatpush1.msra.mxu0 %v111
    %262 = vmatprep.subr.mxu0 0.0
    %263 = vmatpush1.msra.mxu0 %v112
    %264 = vmatprep.subr.mxu0 0.0
    %265 = vmatpush1.msra.mxu0 %v113
    %266 = vmatprep.subr.mxu0 0.0
    %267 = vmatpush1.msra.mxu0 %v114
    %268 = vmatprep.subr.mxu0 0.0
    %269 = vmatpush1.msra.mxu0 %v115
    %270 = vmatprep.subr.mxu0 0.0
    %271 = vmatpush1.msra.mxu0 %v116
    %272 = vmatprep.subr.mxu0 0.0
    %273 = vmatpush1.msra.mxu0 %v117
    %274 = vmatprep.subr.mxu0 0.0
    %275 = vmatpush1.msra.mxu0 %v118
    %276 = vmatprep.subr.mxu0 0.0
    %277 = vmatpush1.msra.mxu0 %v119
    %278 = vmatprep.subr.mxu0 0.0
    %279 = vmatpush1.msra.mxu0 %v120
    %280 = vmatprep.subr.mxu0 0.0
    %281 = vmatpush1.msra.mxu0 %v121
    %282 = vmatprep.subr.mxu0 0.0
    %283 = vmatpush1.msra.mxu0 %v122
    %284 = vmatprep.subr.mxu0 0.0
    %285 = vmatpush1.msra.mxu0 %v123
    %286 = vmatprep.subr.mxu0 0.0
    %287 = vmatpush1.msra.mxu0 %v124
    %288 = vmatprep.subr.mxu0 0.0
    %289 = vmatpush1.msra.mxu0 %v125
    %290 = vmatprep.subr.mxu0 0.0
    %291 = vmatpush1.msra.mxu0 %v126
    %292 = vmatprep.subr.mxu0 0.0
    %293 = vmatpush1.msra.mxu0 %v127
    %294 = vmatprep.subr.mxu0 0.0
    %295 = vmatpush1.msra.mxu0 %v128
    %296 = vmatprep.subr.mxu0 0.0
    %297 = vmatpush1.msra.mxu0 %v129
    %298 = vmatprep.subr.mxu0 0.0
    %299 = vmatpush1.msra.mxu0 %v130
    %300 = vmatprep.subr.mxu0 0.0
    %301 = vmatpush1.msra.mxu0 0.0
    %302 = vmatprep.subr.mxu0 0.0
    %303 = vmatpush1.msra.mxu0 0.0
    %304 = vmatprep.subr.mxu0 0.0
    %305 = vmatpush1.msra.mxu0 0.0
    %306 = vmatprep.subr.mxu0 0.0
    %307 = vmatpush1.msra.mxu0 0.0
    %308 = vmatprep.subr.mxu0 0.0
    %309 = vmatpush1.msra.mxu0 0.0
    %310 = vmatprep.subr.mxu0 0.0
    %311 = vmatpush1.msra.mxu0 0.0
    %312 = vmatprep.subr.mxu0 0.0
    %313 = vmatpush1.msra.mxu0 0.0
    %314 = vmatprep.subr.mxu0 0.0
    %315 = vmatpush1.msra.mxu0 0.0
    %316 = vmatprep.subr.mxu0 0.0
    %317 = vmatpush1.msra.mxu0 0.0
    %318 = vmatprep.subr.mxu0 0.0
    %319 = vmatpush1.msra.mxu0 0.0
    %320 = vmatprep.subr.mxu0 0.0
    %321 = vmatpush1.msra.mxu0 0.0
    %322 = vmatprep.subr.mxu0 0.0
    %323 = vmatpush1.msra.mxu0 0.0
    %324 = vmatprep.mubr.f32.mxu0 %v213
    %325 = vmatmul.mubr.f32.gmra.mrb[0].mxu0 %v63
    %v326 = vpop.f32.mrb[0].mxu0
    %v327 = vadd.f32 %v134, %v326
    %v328 = vpop.f32.mrb[0].mxu0
    %329 = vmatprep.mubr.f32.mxu0 %v216
    %330 = vmatmul.mubr.f32.gmra.mrb[0].mxu0 %v65
    %v331 = vpop.f32.mrb[0].mxu0
    %v332 = vadd.f32 %v139, %v331
    %v333 = vpop.f32.mrb[0].mxu0
    %334 = vmatprep.mubr.f32.mxu0 %v219
    %335 = vmatmul.mubr.f32.gmra.mrb[0].mxu0 %v67
    %v336 = vpop.f32.mrb[0].mxu0
    %v337 = vadd.f32 %v144, %v336
    %v338 = vpop.f32.mrb[0].mxu0
    %339 = vmatprep.mubr.f32.mxu0 %v222
    %340 = vmatmul.mubr.f32.gmra.mrb[0].mxu0 %v69
    %v341 = vpop.f32.mrb[0].mxu0
    %v342 = vadd.f32 %v149, %v341
    %v343 = vpop.f32.mrb[0].mxu0
    %344 = vmatprep.mubr.f32.mxu0 %v225
    %345 = vmatmul.mubr.f32.gmra.mrb[0].mxu0 %v71
    %v346 = vpop.f32.mrb[0].mxu0
    %v347 = vadd.f32 %v154, %v346
    %v348 = vpop.f32.mrb[0].mxu0
    %349 = vmatprep.mubr.f32.mxu0 %v228
    %350 = vmatmul.mubr.f32.gmra.mrb[0].mxu0 %v73
    %v351 = vpop.f32.mrb[0].mxu0
    %v352 = vadd.f32 %v159, %v351
    %v353 = vpop.f32.mrb[0].mxu0
    %354 = vmatprep.mubr.f32.mxu0 %v231
    %355 = vmatmul.mubr.f32.gmra.mrb[0].mxu0 %v75
    %v356 = vpop.f32.mrb[0].mxu0
    %v357 = vadd.f32 %v164, %v356
    %v358 = vpop.f32.mrb[0].mxu0
    %359 = vmatprep.mubr.f32.mxu0 %v234
    %360 = vmatmul.mubr.f32.gmra.mrb[0].mxu0 %v77
    %v361 = vpop.f32.mrb[0].mxu0
    %v362 = vadd.f32 %v169, %v361
    %v363 = vpop.f32.mrb[0].mxu0
    %364 = vmatprep.mubr.f32.mxu0 %v237
    %365 = vmatmul.mubr.f32.gmra.mrb[0].mxu0 %v79
    %v366 = vpop.f32.mrb[0].mxu0
    %v367 = vadd.f32 %v174, %v366
    %v368 = vpop.f32.mrb[0].mxu0
    %369 = vmatprep.mubr.f32.mxu0 %v240
    %370 = vmatmul.mubr.f32.gmra.mrb[0].mxu0 %v81
    %v371 = vpop.f32.mrb[0].mxu0
    %v372 = vadd.f32 %v179, %v371
    %v373 = vpop.f32.mrb[0].mxu0
    %374 = vmatprep.mubr.f32.mxu0 %v243
    %375 = vmatmul.mubr.f32.gmra.mrb[0].mxu0 %v83
    %v376 = vpop.f32.mrb[0].mxu0
    %v377 = vadd.f32 %v184, %v376
    %v378 = vpop.f32.mrb[0].mxu0
    %379 = vmatprep.mubr.f32.mxu0 %v246
    %380 = vmatmul.mubr.f32.gmra.mrb[0].mxu0 %v85
    %v381 = vpop.f32.mrb[0].mxu0
    %v382 = vadd.f32 %v189, %v381
    %v383 = vpop.f32.mrb[0].mxu0
    %384 = vmatprep.mubr.f32.mxu0 %v249
    %385 = vmatmul.mubr.f32.gmra.mrb[0].mxu0 %v87
    %v386 = vpop.f32.mrb[0].mxu0
    %v387 = vadd.f32 %v194, %v386
    %v388 = vpop.f32.mrb[0].mxu0
    %389 = vmatprep.mubr.f32.mxu0 %v252
    %390 = vmatmul.mubr.f32.gmra.mrb[0].mxu0 %v89
    %v391 = vpop.f32.mrb[0].mxu0
    %v392 = vadd.f32 %v199, %v391
    %v393 = vpop.f32.mrb[0].mxu0
    %394 = vmatprep.mubr.f32.mxu0 %v255
    %395 = vmatmul.mubr.f32.gmra.mrb[0].mxu0 %v91
    %v396 = vpop.f32.mrb[0].mxu0
    %v397 = vadd.f32 %v204, %v396
    %v398 = vpop.f32.mrb[0].mxu0
    %399 = vmatprep.mubr.f32.mxu0 %v258
    %400 = vmatmul.mubr.f32.gmra.mrb[0].mxu0 %v93
    %v401 = vpop.f32.mrb[0].mxu0
    %v402 = vadd.f32 %v209, %v401
    %v403 = vpop.f32.mrb[0].mxu0
    %404 = vdwg.mxu0
    %v405 = vmax.f32 %v327, 0.0
    %v406 = vmax.f32 %v332, 0.0
    %v407 = vmax.f32 %v337, 0.0
    %v408 = vmax.f32 %v342, 0.0
    %v409 = vmax.f32 %v347, 0.0
    %v410 = vmax.f32 %v352, 0.0
    %v411 = vmax.f32 %v357, 0.0
    %v412 = vmax.f32 %v362, 0.0
    %v413 = vmax.f32 %v367, 0.0
    %v414 = vmax.f32 %v372, 0.0
    %v415 = vmax.f32 %v377, 0.0
    %v416 = vmax.f32 %v382, 0.0
    %v417 = vmax.f32 %v387, 0.0
    %v418 = vmax.f32 %v392, 0.0
    %v419 = vmax.f32 %v397, 0.0
    %v420 = vmax.f32 %v402, 0.0
    %s421 = scalar_lea.vmem [#allocation2], 16
    %422 = vst [vmem:[%s421] sm:$0xff] %v405
    %423 = vst [vmem:[%s421 + $0x8] sm:$0xff] %v406
    %424 = vst [vmem:[%s421 + $0x10] sm:$0xff] %v407
    %425 = vst [vmem:[%s421 + $0x18] sm:$0xff] %v408
    %426 = vst [vmem:[%s421 + $0x20] sm:$0xff] %v409
    %427 = vst [vmem:[%s421 + $0x28] sm:$0xff] %v410
    %428 = vst [vmem:[%s421 + $0x30] sm:$0xff] %v411
    %429 = vst [vmem:[%s421 + $0x38] sm:$0xff] %v412
    %430 = vst [vmem:[%s421 + $0x40] sm:$0xff] %v413
    %431 = vst [vmem:[%s421 + $0x48] sm:$0xff] %v414
    %432 = vst [vmem:[%s421 + $0x50] sm:$0xff] %v415
    %433 = vst [vmem:[%s421 + $0x58] sm:$0xff] %v416
    %434 = vst [vmem:[%s421 + $0x60] sm:$0xff] %v417
    %435 = vst [vmem:[%s421 + $0x68] sm:$0xff] %v418
    %436 = vst [vmem:[%s421 + $0x70] sm:$0xff] %v419
    %437 = vst [vmem:[%s421 + $0x78] sm:$0xff] %v420
    %s438 = scalar_lea.vmem %s0, 128
    %v439 = vld [vmem:[%s438] sm:$0xff]
    %v440 = vld [vmem:[%s438 + $0x8] sm:$0xff]
    %v441 = vld [vmem:[%s438 + $0x10] sm:$0xff]
    %v442 = vld [vmem:[%s438 + $0x18] sm:$0xff]
    %v443 = vld [vmem:[%s438 + $0x20] sm:$0xff]
    %v444 = vld [vmem:[%s438 + $0x28] sm:$0xff]
    %v445 = vld [vmem:[%s438 + $0x30] sm:$0xff]
    %v446 = vld [vmem:[%s438 + $0x38] sm:$0xff]
    %v447 = vld [vmem:[%s438 + $0x40] sm:$0xff]
    %v448 = vld [vmem:[%s438 + $0x48] sm:$0xff]
    %v449 = vld [vmem:[%s438 + $0x50] sm:$0xff]
    %v450 = vld [vmem:[%s438 + $0x58] sm:$0xff]
    %v451 = vld [vmem:[%s438 + $0x60] sm:$0xff]
    %v452 = vld [vmem:[%s438 + $0x68] sm:$0xff]
    %v453 = vld [vmem:[%s438 + $0x70] sm:$0xff]
    %v454 = vld [vmem:[%s438 + $0x78] sm:$0xff]
    %v455 = vld [vmem:[%s438 + $0x80] sm:$0xff]
    %v456 = vld [vmem:[%s438 + $0x88] sm:$0xff]
    %v457 = vld [vmem:[%s438 + $0x90] sm:$0xff]
    %v458 = vld [vmem:[%s438 + $0x98] sm:$0xff]
    %459 = vmatprep.subr.mxu0 0.0
    %460 = vmatpush1.msra.mxu0 %v439
    %461 = vmatprep.subr.mxu0 0.0
    %462 = vmatpush1.msra.mxu0 %v440
    %463 = vmatprep.subr.mxu0 0.0
    %464 = vmatpush1.msra.mxu0 %v441
    %465 = vmatprep.subr.mxu0 0.0
    %466 = vmatpush1.msra.mxu0 %v442
    %467 = vmatprep.subr.mxu0 0.0
    %468 = vmatpush1.msra.mxu0 %v443
    %469 = vmatprep.subr.mxu0 0.0
    %470 = vmatpush1.msra.mxu0 %v444
    %471 = vmatprep.subr.mxu0 0.0
    %472 = vmatpush1.msra.mxu0 %v445
    %473 = vmatprep.subr.mxu0 0.0
    %474 = vmatpush1.msra.mxu0 %v446
    %475 = vmatprep.subr.mxu0 0.0
    %476 = vmatpush1.msra.mxu0 %v447
    %477 = vmatprep.subr.mxu0 0.0
    %478 = vmatpush1.msra.mxu0 %v448
    %479 = vmatprep.subr.mxu0 0.0
    %480 = vmatpush1.msra.mxu0 %v449
    %481 = vmatprep.subr.mxu0 0.0
    %482 = vmatpush1.msra.mxu0 %v450
    %483 = vmatprep.subr.mxu0 0.0
    %484 = vmatpush1.msra.mxu0 %v451
    %485 = vmatprep.subr.mxu0 0.0
    %486 = vmatpush1.msra.mxu0 %v452
    %487 = vmatprep.subr.mxu0 0.0
    %488 = vmatpush1.msra.mxu0 %v453
    %489 = vmatprep.subr.mxu0 0.0
    %490 = vmatpush1.msra.mxu0 %v454
    %491 = vmatprep.subr.mxu0 0.0
    %492 = vmatpush1.msra.mxu0 %v455
    %493 = vmatprep.subr.mxu0 0.0
    %494 = vmatpush1.msra.mxu0 %v456
    %495 = vmatprep.subr.mxu0 0.0
    %496 = vmatpush1.msra.mxu0 %v457
    %497 = vmatprep.subr.mxu0 0.0
    %498 = vmatpush1.msra.mxu0 %v458
    %499 = vmatprep.subr.mxu0 0.0
    %500 = vmatpush1.msra.mxu0 0.0
    %501 = vmatprep.subr.mxu0 0.0
    %502 = vmatpush1.msra.mxu0 0.0
    %503 = vmatprep.subr.mxu0 0.0
    %504 = vmatpush1.msra.mxu0 0.0
    %505 = vmatprep.subr.mxu0 0.0
    %506 = vmatpush1.msra.mxu0 0.0
    %507 = vmatprep.subr.mxu0 0.0
    %508 = vmatpush1.msra.mxu0 0.0
    %509 = vmatprep.subr.mxu0 0.0
    %510 = vmatpush1.msra.mxu0 0.0
    %511 = vmatprep.subr.mxu0 0.0
    %512 = vmatpush1.msra.mxu0 0.0
    %513 = vmatprep.subr.mxu0 0.0
    %514 = vmatpush1.msra.mxu0 0.0
    %515 = vmatprep.subr.mxu0 0.0
    %516 = vmatpush1.msra.mxu0 0.0
    %517 = vmatprep.subr.mxu0 0.0
    %518 = vmatpush1.msra.mxu0 0.0
    %519 = vmatprep.subr.mxu0 0.0
    %520 = vmatpush1.msra.mxu0 0.0
    %521 = vmatprep.subr.mxu0 0.0
    %522 = vmatpush1.msra.mxu0 0.0
    %523 = vmatprep.mubr.f32.mxu0 %v213
    %524 = vmatmul.mubr.f32.gmra.mrb[0].mxu0 %v63
    %v525 = vpop.f32.mrb[0].mxu0
    %v526 = vadd.f32 %v134, %v525
    %v527 = vpop.f32.mrb[0].mxu0
    %528 = vmatprep.mubr.f32.mxu0 %v216
    %529 = vmatmul.mubr.f32.gmra.mrb[0].mxu0 %v65
    %v530 = vpop.f32.mrb[0].mxu0
    %v531 = vadd.f32 %v139, %v530
    %v532 = vpop.f32.mrb[0].mxu0
    %533 = vmatprep.mubr.f32.mxu0 %v219
    %534 = vmatmul.mubr.f32.gmra.mrb[0].mxu0 %v67
    %v535 = vpop.f32.mrb[0].mxu0
    %v536 = vadd.f32 %v144, %v535
    %v537 = vpop.f32.mrb[0].mxu0
    %538 = vmatprep.mubr.f32.mxu0 %v222
    %539 = vmatmul.mubr.f32.gmra.mrb[0].mxu0 %v69
    %v540 = vpop.f32.mrb[0].mxu0
    %v541 = vadd.f32 %v149, %v540
    %v542 = vpop.f32.mrb[0].mxu0
    %543 = vmatprep.mubr.f32.mxu0 %v225
    %544 = vmatmul.mubr.f32.gmra.mrb[0].mxu0 %v71
    %v545 = vpop.f32.mrb[0].mxu0
    %v546 = vadd.f32 %v154, %v545
    %v547 = vpop.f32.mrb[0].mxu0
    %548 = vmatprep.mubr.f32.mxu0 %v228
    %549 = vmatmul.mubr.f32.gmra.mrb[0].mxu0 %v73
    %v550 = vpop.f32.mrb[0].mxu0
    %v551 = vadd.f32 %v159, %v550
    %v552 = vpop.f32.mrb[0].mxu0
    %553 = vmatprep.mubr.f32.mxu0 %v231
    %554 = vmatmul.mubr.f32.gmra.mrb[0].mxu0 %v75
    %v555 = vpop.f32.mrb[0].mxu0
    %v556 = vadd.f32 %v164, %v555
    %v557 = vpop.f32.mrb[0].mxu0
    %558 = vmatprep.mubr.f32.mxu0 %v234
    %559 = vmatmul.mubr.f32.gmra.mrb[0].mxu0 %v77
    %v560 = vpop.f32.mrb[0].mxu0
    %v561 = vadd.f32 %v169, %v560
    %v562 = vpop.f32.mrb[0].mxu0
    %563 = vmatprep.mubr.f32.mxu0 %v237
    %564 = vmatmul.mubr.f32.gmra.mrb[0].mxu0 %v79
    %v565 = vpop.f32.mrb[0].mxu0
    %v566 = vadd.f32 %v174, %v565
    %v567 = vpop.f32.mrb[0].mxu0
    %568 = vmatprep.mubr.f32.mxu0 %v240
    %569 = vmatmul.mubr.f32.gmra.mrb[0].mxu0 %v81
    %v570 = vpop.f32.mrb[0].mxu0
    %v571 = vadd.f32 %v179, %v570
    %v572 = vpop.f32.mrb[0].mxu0
    %573 = vmatprep.mubr.f32.mxu0 %v243
    %574 = vmatmul.mubr.f32.gmra.mrb[0].mxu0 %v83
    %v575 = vpop.f32.mrb[0].mxu0
    %v576 = vadd.f32 %v184, %v575
    %v577 = vpop.f32.mrb[0].mxu0
    %578 = vmatprep.mubr.f32.mxu0 %v246
    %579 = vmatmul.mubr.f32.gmra.mrb[0].mxu0 %v85
    %v580 = vpop.f32.mrb[0].mxu0
    %v581 = vadd.f32 %v189, %v580
    %v582 = vpop.f32.mrb[0].mxu0
    %583 = vmatprep.mubr.f32.mxu0 %v249
    %584 = vmatmul.mubr.f32.gmra.mrb[0].mxu0 %v87
    %v585 = vpop.f32.mrb[0].mxu0
    %v586 = vadd.f32 %v194, %v585
    %v587 = vpop.f32.mrb[0].mxu0
    %588 = vmatprep.mubr.f32.mxu0 %v252
    %589 = vmatmul.mubr.f32.gmra.mrb[0].mxu0 %v89
    %v590 = vpop.f32.mrb[0].mxu0
    %v591 = vadd.f32 %v199, %v590
    %v592 = vpop.f32.mrb[0].mxu0
    %593 = vmatprep.mubr.f32.mxu0 %v255
    %594 = vmatmul.mubr.f32.gmra.mrb[0].mxu0 %v91
    %v595 = vpop.f32.mrb[0].mxu0
    %v596 = vadd.f32 %v204, %v595
    %v597 = vpop.f32.mrb[0].mxu0
    %598 = vmatprep.mubr.f32.mxu0 %v258
    %599 = vmatmul.mubr.f32.gmra.mrb[0].mxu0 %v93
    %v600 = vpop.f32.mrb[0].mxu0
    %v601 = vadd.f32 %v209, %v600
    %v602 = vpop.f32.mrb[0].mxu0
    %603 = vdwg.mxu0
    %v604 = vmax.f32 %v526, 0.0
    %v605 = vmax.f32 %v531, 0.0
    %v606 = vmax.f32 %v536, 0.0
    %v607 = vmax.f32 %v541, 0.0
    %v608 = vmax.f32 %v546, 0.0
    %v609 = vmax.f32 %v551, 0.0
    %v610 = vmax.f32 %v556, 0.0
    %v611 = vmax.f32 %v561, 0.0
    %v612 = vmax.f32 %v566, 0.0
    %v613 = vmax.f32 %v571, 0.0
    %v614 = vmax.f32 %v576, 0.0
    %v615 = vmax.f32 %v581, 0.0
    %v616 = vmax.f32 %v586, 0.0
    %v617 = vmax.f32 %v591, 0.0
    %v618 = vmax.f32 %v596, 0.0
    %v619 = vmax.f32 %v601, 0.0
    %s620 = scalar_lea.vmem [#allocation2], 144
    %621 = vst [vmem:[%s620] sm:$0xff] %v604
    %622 = vst [vmem:[%s620 + $0x8] sm:$0xff] %v605
    %623 = vst [vmem:[%s620 + $0x10] sm:$0xff] %v606
    %624 = vst [vmem:[%s620 + $0x18] sm:$0xff] %v607
    %625 = vst [vmem:[%s620 + $0x20] sm:$0xff] %v608
    %626 = vst [vmem:[%s620 + $0x28] sm:$0xff] %v609
    %627 = vst [vmem:[%s620 + $0x30] sm:$0xff] %v610
    %628 = vst [vmem:[%s620 + $0x38] sm:$0xff] %v611
    %629 = vst [vmem:[%s620 + $0x40] sm:$0xff] %v612
    %630 = vst [vmem:[%s620 + $0x48] sm:$0xff] %v613
    %631 = vst [vmem:[%s620 + $0x50] sm:$0xff] %v614
    %632 = vst [vmem:[%s620 + $0x58] sm:$0xff] %v615
    %633 = vst [vmem:[%s620 + $0x60] sm:$0xff] %v616
    %634 = vst [vmem:[%s620 + $0x68] sm:$0xff] %v617
    %635 = vst [vmem:[%s620 + $0x70] sm:$0xff] %v618
    %636 = vst [vmem:[%s620 + $0x78] sm:$0xff] %v619
    %s637 = scalar_lea.vmem %s0, 256
    %v638 = vld [vmem:[%s637] sm:$0xff]
    %v639 = vld [vmem:[%s637 + $0x8] sm:$0xff]
    %v640 = vld [vmem:[%s637 + $0x10] sm:$0xff]
    %v641 = vld [vmem:[%s637 + $0x18] sm:$0xff]
    %v642 = vld [vmem:[%s637 + $0x20] sm:$0xff]
    %v643 = vld [vmem:[%s637 + $0x28] sm:$0xff]
    %v644 = vld [vmem:[%s637 + $0x30] sm:$0xff]
    %v645 = vld [vmem:[%s637 + $0x38] sm:$0xff]
    %v646 = vld [vmem:[%s637 + $0x40] sm:$0xff]
    %v647 = vld [vmem:[%s637 + $0x48] sm:$0xff]
    %v648 = vld [vmem:[%s637 + $0x50] sm:$0xff]
    %v649 = vld [vmem:[%s637 + $0x58] sm:$0xff]
    %v650 = vld [vmem:[%s637 + $0x60] sm:$0xff]
    %v651 = vld [vmem:[%s637 + $0x68] sm:$0xff]
    %v652 = vld [vmem:[%s637 + $0x70] sm:$0xff]
    %v653 = vld [vmem:[%s637 + $0x78] sm:$0xff]
    %v654 = vld [vmem:[%s637 + $0x80] sm:$0xff]
    %v655 = vld [vmem:[%s637 + $0x88] sm:$0xff]
    %v656 = vld [vmem:[%s637 + $0x90] sm:$0xff]
    %v657 = vld [vmem:[%s637 + $0x98] sm:$0xff]
    %658 = vmatprep.subr.mxu0 0.0
    %659 = vmatpush1.msra.mxu0 %v638
    %660 = vmatprep.subr.mxu0 0.0
    %661 = vmatpush1.msra.mxu0 %v639
    %662 = vmatprep.subr.mxu0 0.0
    %663 = vmatpush1.msra.mxu0 %v640
    %664 = vmatprep.subr.mxu0 0.0
    %665 = vmatpush1.msra.mxu0 %v641
    %666 = vmatprep.subr.mxu0 0.0
    %667 = vmatpush1.msra.mxu0 %v642
    %668 = vmatprep.subr.mxu0 0.0
    %669 = vmatpush1.msra.mxu0 %v643
    %670 = vmatprep.subr.mxu0 0.0
    %671 = vmatpush1.msra.mxu0 %v644
    %672 = vmatprep.subr.mxu0 0.0
    %673 = vmatpush1.msra.mxu0 %v645
    %674 = vmatprep.subr.mxu0 0.0
    %675 = vmatpush1.msra.mxu0 %v646
    %676 = vmatprep.subr.mxu0 0.0
    %677 = vmatpush1.msra.mxu0 %v647
    %678 = vmatprep.subr.mxu0 0.0
    %679 = vmatpush1.msra.mxu0 %v648
    %680 = vmatprep.subr.mxu0 0.0
    %681 = vmatpush1.msra.mxu0 %v649
    %682 = vmatprep.subr.mxu0 0.0
    %683 = vmatpush1.msra.mxu0 %v650
    %684 = vmatprep.subr.mxu0 0.0
    %685 = vmatpush1.msra.mxu0 %v651
    %686 = vmatprep.subr.mxu0 0.0
    %687 = vmatpush1.msra.mxu0 %v652
    %688 = vmatprep.subr.mxu0 0.0
    %689 = vmatpush1.msra.mxu0 %v653
    %690 = vmatprep.subr.mxu0 0.0
    %691 = vmatpush1.msra.mxu0 %v654
    %692 = vmatprep.subr.mxu0 0.0
    %693 = vmatpush1.msra.mxu0 %v655
    %694 = vmatprep.subr.mxu0 0.0
    %695 = vmatpush1.msra.mxu0 %v656
    %696 = vmatprep.subr.mxu0 0.0
    %697 = vmatpush1.msra.mxu0 %v657
    %698 = vmatprep.subr.mxu0 0.0
    %699 = vmatpush1.msra.mxu0 0.0
    %700 = vmatprep.subr.mxu0 0.0
    %701 = vmatpush1.msra.mxu0 0.0
    %702 = vmatprep.subr.mxu0 0.0
    %703 = vmatpush1.msra.mxu0 0.0
    %704 = vmatprep.subr.mxu0 0.0
    %705 = vmatpush1.msra.mxu0 0.0
    %706 = vmatprep.subr.mxu0 0.0
    %707 = vmatpush1.msra.mxu0 0.0
    %708 = vmatprep.subr.mxu0 0.0
    %709 = vmatpush1.msra.mxu0 0.0
    %710 = vmatprep.subr.mxu0 0.0
    %711 = vmatpush1.msra.mxu0 0.0
    %712 = vmatprep.subr.mxu0 0.0
    %713 = vmatpush1.msra.mxu0 0.0
    %714 = vmatprep.subr.mxu0 0.0
    %715 = vmatpush1.msra.mxu0 0.0
    %716 = vmatprep.subr.mxu0 0.0
    %717 = vmatpush1.msra.mxu0 0.0
    %718 = vmatprep.subr.mxu0 0.0
    %719 = vmatpush1.msra.mxu0 0.0
    %720 = vmatprep.subr.mxu0 0.0
    %721 = vmatpush1.msra.mxu0 0.0
    %722 = vmatprep.mubr.f32.mxu0 %v213
    %723 = vmatmul.mubr.f32.gmra.mrb[0].mxu0 %v63
    %v724 = vpop.f32.mrb[0].mxu0
    %v725 = vadd.f32 %v134, %v724
    %v726 = vpop.f32.mrb[0].mxu0
    %727 = vmatprep.mubr.f32.mxu0 %v216
    %728 = vmatmul.mubr.f32.gmra.mrb[0].mxu0 %v65
    %v729 = vpop.f32.mrb[0].mxu0
    %v730 = vadd.f32 %v139, %v729
    %v731 = vpop.f32.mrb[0].mxu0
    %732 = vmatprep.mubr.f32.mxu0 %v219
    %733 = vmatmul.mubr.f32.gmra.mrb[0].mxu0 %v67
    %v734 = vpop.f32.mrb[0].mxu0
    %v735 = vadd.f32 %v144, %v734
    %v736 = vpop.f32.mrb[0].mxu0
    %737 = vmatprep.mubr.f32.mxu0 %v222
    %738 = vmatmul.mubr.f32.gmra.mrb[0].mxu0 %v69
    %v739 = vpop.f32.mrb[0].mxu0
    %v740 = vadd.f32 %v149, %v739
    %v741 = vpop.f32.mrb[0].mxu0
    %742 = vmatprep.mubr.f32.mxu0 %v225
    %743 = vmatmul.mubr.f32.gmra.mrb[0].mxu0 %v71
    %v744 = vpop.f32.mrb[0].mxu0
    %v745 = vadd.f32 %v154, %v744
    %v746 = vpop.f32.mrb[0].mxu0
    %747 = vmatprep.mubr.f32.mxu0 %v228
    %748 = vmatmul.mubr.f32.gmra.mrb[0].mxu0 %v73
    %v749 = vpop.f32.mrb[0].mxu0
    %v750 = vadd.f32 %v159, %v749
    %v751 = vpop.f32.mrb[0].mxu0
    %752 = vmatprep.mubr.f32.mxu0 %v231
    %753 = vmatmul.mubr.f32.gmra.mrb[0].mxu0 %v75
    %v754 = vpop.f32.mrb[0].mxu0
    %v755 = vadd.f32 %v164, %v754
    %v756 = vpop.f32.mrb[0].mxu0
    %757 = vmatprep.mubr.f32.mxu0 %v234
    %758 = vmatmul.mubr.f32.gmra.mrb[0].mxu0 %v77
    %v759 = vpop.f32.mrb[0].mxu0
    %v760 = vadd.f32 %v169, %v759
    %v761 = vpop.f32.mrb[0].mxu0
    %762 = vmatprep.mubr.f32.mxu0 %v237
    %763 = vmatmul.mubr.f32.gmra.mrb[0].mxu0 %v79
    %v764 = vpop.f32.mrb[0].mxu0
    %v765 = vadd.f32 %v174, %v764
    %v766 = vpop.f32.mrb[0].mxu0
    %767 = vmatprep.mubr.f32.mxu0 %v240
    %768 = vmatmul.mubr.f32.gmra.mrb[0].mxu0 %v81
    %v769 = vpop.f32.mrb[0].mxu0
    %v770 = vadd.f32 %v179, %v769
    %v771 = vpop.f32.mrb[0].mxu0
    %772 = vmatprep.mubr.f32.mxu0 %v243
    %773 = vmatmul.mubr.f32.gmra.mrb[0].mxu0 %v83
    %v774 = vpop.f32.mrb[0].mxu0
    %v775 = vadd.f32 %v184, %v774
    %v776 = vpop.f32.mrb[0].mxu0
    %777 = vmatprep.mubr.f32.mxu0 %v246
    %778 = vmatmul.mubr.f32.gmra.mrb[0].mxu0 %v85
    %v779 = vpop.f32.mrb[0].mxu0
    %v780 = vadd.f32 %v189, %v779
    %v781 = vpop.f32.mrb[0].mxu0
    %782 = vmatprep.mubr.f32.mxu0 %v249
    %783 = vmatmul.mubr.f32.gmra.mrb[0].mxu0 %v87
    %v784 = vpop.f32.mrb[0].mxu0
    %v785 = vadd.f32 %v194, %v784
    %v786 = vpop.f32.mrb[0].mxu0
    %787 = vmatprep.mubr.f32.mxu0 %v252
    %788 = vmatmul.mubr.f32.gmra.mrb[0].mxu0 %v89
    %v789 = vpop.f32.mrb[0].mxu0
    %v790 = vadd.f32 %v199, %v789
    %v791 = vpop.f32.mrb[0].mxu0
    %792 = vmatprep.mubr.f32.mxu0 %v255
    %793 = vmatmul.mubr.f32.gmra.mrb[0].mxu0 %v91
    %v794 = vpop.f32.mrb[0].mxu0
    %v795 = vadd.f32 %v204, %v794
    %v796 = vpop.f32.mrb[0].mxu0
    %797 = vmatprep.mubr.f32.mxu0 %v258
    %798 = vmatmul.mubr.f32.gmra.mrb[0].mxu0 %v93
    %v799 = vpop.f32.mrb[0].mxu0
    %v800 = vadd.f32 %v209, %v799
    %v801 = vpop.f32.mrb[0].mxu0
    %802 = vdwg.mxu0
    %v803 = vmax.f32 %v725, 0.0
    %v804 = vmax.f32 %v730, 0.0
    %v805 = vmax.f32 %v735, 0.0
    %v806 = vmax.f32 %v740, 0.0
    %v807 = vmax.f32 %v745, 0.0
    %v808 = vmax.f32 %v750, 0.0
    %v809 = vmax.f32 %v755, 0.0
    %v810 = vmax.f32 %v760, 0.0
    %v811 = vmax.f32 %v765, 0.0
    %v812 = vmax.f32 %v770, 0.0
    %v813 = vmax.f32 %v775, 0.0
    %v814 = vmax.f32 %v780, 0.0
    %v815 = vmax.f32 %v785, 0.0
    %v816 = vmax.f32 %v790, 0.0
    %v817 = vmax.f32 %v795, 0.0
    %v818 = vmax.f32 %v800, 0.0
    %s819 = scalar_lea.vmem [#allocation2], 272
    %820 = vst [vmem:[%s819] sm:$0xff] %v803
    %821 = vst [vmem:[%s819 + $0x8] sm:$0xff] %v804
    %822 = vst [vmem:[%s819 + $0x10] sm:$0xff] %v805
    %823 = vst [vmem:[%s819 + $0x18] sm:$0xff] %v806
    %824 = vst [vmem:[%s819 + $0x20] sm:$0xff] %v807
    %825 = vst [vmem:[%s819 + $0x28] sm:$0xff] %v808
    %826 = vst [vmem:[%s819 + $0x30] sm:$0xff] %v809
    %827 = vst [vmem:[%s819 + $0x38] sm:$0xff] %v810
    %828 = vst [vmem:[%s819 + $0x40] sm:$0xff] %v811
    %829 = vst [vmem:[%s819 + $0x48] sm:$0xff] %v812
    %830 = vst [vmem:[%s819 + $0x50] sm:$0xff] %v813
    %831 = vst [vmem:[%s819 + $0x58] sm:$0xff] %v814
    %832 = vst [vmem:[%s819 + $0x60] sm:$0xff] %v815
    %833 = vst [vmem:[%s819 + $0x68] sm:$0xff] %v816
    %834 = vst [vmem:[%s819 + $0x70] sm:$0xff] %v817
    %835 = vst [vmem:[%s819 + $0x78] sm:$0xff] %v818
    %s836 = scalar_lea.vmem %s0, 384
    %v837 = vld [vmem:[%s836] sm:$0xff]
    %v838 = vld [vmem:[%s836 + $0x8] sm:$0xff]
    %v839 = vld [vmem:[%s836 + $0x10] sm:$0xff]
    %v840 = vld [vmem:[%s836 + $0x18] sm:$0xff]
    %v841 = vld [vmem:[%s836 + $0x20] sm:$0xff]
    %v842 = vld [vmem:[%s836 + $0x28] sm:$0xff]
    %v843 = vld [vmem:[%s836 + $0x30] sm:$0xff]
    %v844 = vld [vmem:[%s836 + $0x38] sm:$0xff]
    %v845 = vld [vmem:[%s836 + $0x40] sm:$0xff]
    %v846 = vld [vmem:[%s836 + $0x48] sm:$0xff]
    %v847 = vld [vmem:[%s836 + $0x50] sm:$0xff]
    %v848 = vld [vmem:[%s836 + $0x58] sm:$0xff]
    %v849 = vld [vmem:[%s836 + $0x60] sm:$0xff]
    %v850 = vld [vmem:[%s836 + $0x68] sm:$0xff]
    %v851 = vld [vmem:[%s836 + $0x70] sm:$0xff]
    %v852 = vld [vmem:[%s836 + $0x78] sm:$0xff]
    %v853 = vld [vmem:[%s836 + $0x80] sm:$0xff]
    %v854 = vld [vmem:[%s836 + $0x88] sm:$0xff]
    %v855 = vld [vmem:[%s836 + $0x90] sm:$0xff]
    %v856 = vld [vmem:[%s836 + $0x98] sm:$0xff]
    %857 = vmatprep.subr.mxu0 0.0
    %858 = vmatpush1.msra.mxu0 %v837
    %859 = vmatprep.subr.mxu0 0.0
    %860 = vmatpush1.msra.mxu0 %v838
    %861 = vmatprep.subr.mxu0 0.0
    %862 = vmatpush1.msra.mxu0 %v839
    %863 = vmatprep.subr.mxu0 0.0
    %864 = vmatpush1.msra.mxu0 %v840
    %865 = vmatprep.subr.mxu0 0.0
    %866 = vmatpush1.msra.mxu0 %v841
    %867 = vmatprep.subr.mxu0 0.0
    %868 = vmatpush1.msra.mxu0 %v842
    %869 = vmatprep.subr.mxu0 0.0
    %870 = vmatpush1.msra.mxu0 %v843
    %871 = vmatprep.subr.mxu0 0.0
    %872 = vmatpush1.msra.mxu0 %v844
    %873 = vmatprep.subr.mxu0 0.0
    %874 = vmatpush1.msra.mxu0 %v845
    %875 = vmatprep.subr.mxu0 0.0
    %876 = vmatpush1.msra.mxu0 %v846
    %877 = vmatprep.subr.mxu0 0.0
    %878 = vmatpush1.msra.mxu0 %v847
    %879 = vmatprep.subr.mxu0 0.0
    %880 = vmatpush1.msra.mxu0 %v848
    %881 = vmatprep.subr.mxu0 0.0
    %882 = vmatpush1.msra.mxu0 %v849
    %883 = vmatprep.subr.mxu0 0.0
    %884 = vmatpush1.msra.mxu0 %v850
    %885 = vmatprep.subr.mxu0 0.0
    %886 = vmatpush1.msra.mxu0 %v851
    %887 = vmatprep.subr.mxu0 0.0
    %888 = vmatpush1.msra.mxu0 %v852
    %889 = vmatprep.subr.mxu0 0.0
    %890 = vmatpush1.msra.mxu0 %v853
    %891 = vmatprep.subr.mxu0 0.0
    %892 = vmatpush1.msra.mxu0 %v854
    %893 = vmatprep.subr.mxu0 0.0
    %894 = vmatpush1.msra.mxu0 %v855
    %895 = vmatprep.subr.mxu0 0.0
    %896 = vmatpush1.msra.mxu0 %v856
    %897 = vmatprep.subr.mxu0 0.0
    %898 = vmatpush1.msra.mxu0 0.0
    %899 = vmatprep.subr.mxu0 0.0
    %900 = vmatpush1.msra.mxu0 0.0
    %901 = vmatprep.subr.mxu0 0.0
    %902 = vmatpush1.msra.mxu0 0.0
    %903 = vmatprep.subr.mxu0 0.0
    %904 = vmatpush1.msra.mxu0 0.0
    %905 = vmatprep.subr.mxu0 0.0
    %906 = vmatpush1.msra.mxu0 0.0
    %907 = vmatprep.subr.mxu0 0.0
    %908 = vmatpush1.msra.mxu0 0.0
    %909 = vmatprep.subr.mxu0 0.0
    %910 = vmatpush1.msra.mxu0 0.0
    %911 = vmatprep.subr.mxu0 0.0
    %912 = vmatpush1.msra.mxu0 0.0
    %913 = vmatprep.subr.mxu0 0.0
    %914 = vmatpush1.msra.mxu0 0.0
    %915 = vmatprep.subr.mxu0 0.0
    %916 = vmatpush1.msra.mxu0 0.0
    %917 = vmatprep.subr.mxu0 0.0
    %918 = vmatpush1.msra.mxu0 0.0
    %919 = vmatprep.subr.mxu0 0.0
    %920 = vmatpush1.msra.mxu0 0.0
    %921 = vmatprep.mubr.f32.mxu0 %v213
    %922 = vmatmul.mubr.f32.gmra.mrb[0].mxu0 %v63
    %v923 = vpop.f32.mrb[0].mxu0
    %v924 = vadd.f32 %v134, %v923
    %v925 = vpop.f32.mrb[0].mxu0
    %926 = vmatprep.mubr.f32.mxu0 %v216
    %927 = vmatmul.mubr.f32.gmra.mrb[0].mxu0 %v65
    %v928 = vpop.f32.mrb[0].mxu0
    %v929 = vadd.f32 %v139, %v928
    %v930 = vpop.f32.mrb[0].mxu0
    %931 = vmatprep.mubr.f32.mxu0 %v219
    %932 = vmatmul.mubr.f32.gmra.mrb[0].mxu0 %v67
    %v933 = vpop.f32.mrb[0].mxu0
    %v934 = vadd.f32 %v144, %v933
    %v935 = vpop.f32.mrb[0].mxu0
    %936 = vmatprep.mubr.f32.mxu0 %v222
    %937 = vmatmul.mubr.f32.gmra.mrb[0].mxu0 %v69
    %v938 = vpop.f32.mrb[0].mxu0
    %v939 = vadd.f32 %v149, %v938
    %v940 = vpop.f32.mrb[0].mxu0
    %941 = vmatprep.mubr.f32.mxu0 %v225
    %942 = vmatmul.mubr.f32.gmra.mrb[0].mxu0 %v71
    %v943 = vpop.f32.mrb[0].mxu0
    %v944 = vadd.f32 %v154, %v943
    %v945 = vpop.f32.mrb[0].mxu0
    %946 = vmatprep.mubr.f32.mxu0 %v228
    %947 = vmatmul.mubr.f32.gmra.mrb[0].mxu0 %v73
    %v948 = vpop.f32.mrb[0].mxu0
    %v949 = vadd.f32 %v159, %v948
    %v950 = vpop.f32.mrb[0].mxu0
    %951 = vmatprep.mubr.f32.mxu0 %v231
    %952 = vmatmul.mubr.f32.gmra.mrb[0].mxu0 %v75
    %v953 = vpop.f32.mrb[0].mxu0
    %v954 = vadd.f32 %v164, %v953
    %v955 = vpop.f32.mrb[0].mxu0
    %956 = vmatprep.mubr.f32.mxu0 %v234
    %957 = vmatmul.mubr.f32.gmra.mrb[0].mxu0 %v77
    %v958 = vpop.f32.mrb[0].mxu0
    %v959 = vadd.f32 %v169, %v958
    %v960 = vpop.f32.mrb[0].mxu0
    %961 = vmatprep.mubr.f32.mxu0 %v237
    %962 = vmatmul.mubr.f32.gmra.mrb[0].mxu0 %v79
    %v963 = vpop.f32.mrb[0].mxu0
    %v964 = vadd.f32 %v174, %v963
    %v965 = vpop.f32.mrb[0].mxu0
    %966 = vmatprep.mubr.f32.mxu0 %v240
    %967 = vmatmul.mubr.f32.gmra.mrb[0].mxu0 %v81
    %v968 = vpop.f32.mrb[0].mxu0
    %v969 = vadd.f32 %v179, %v968
    %v970 = vpop.f32.mrb[0].mxu0
    %971 = vmatprep.mubr.f32.mxu0 %v243
    %972 = vmatmul.mubr.f32.gmra.mrb[0].mxu0 %v83
    %v973 = vpop.f32.mrb[0].mxu0
    %v974 = vadd.f32 %v184, %v973
    %v975 = vpop.f32.mrb[0].mxu0
    %976 = vmatprep.mubr.f32.mxu0 %v246
    %977 = vmatmul.mubr.f32.gmra.mrb[0].mxu0 %v85
    %v978 = vpop.f32.mrb[0].mxu0
    %v979 = vadd.f32 %v189, %v978
    %v980 = vpop.f32.mrb[0].mxu0
    %981 = vmatprep.mubr.f32.mxu0 %v249
    %982 = vmatmul.mubr.f32.gmra.mrb[0].mxu0 %v87
    %v983 = vpop.f32.mrb[0].mxu0
    %v984 = vadd.f32 %v194, %v983
    %v985 = vpop.f32.mrb[0].mxu0
    %986 = vmatprep.mubr.f32.mxu0 %v252
    %987 = vmatmul.mubr.f32.gmra.mrb[0].mxu0 %v89
    %v988 = vpop.f32.mrb[0].mxu0
    %v989 = vadd.f32 %v199, %v988
    %v990 = vpop.f32.mrb[0].mxu0
    %991 = vmatprep.mubr.f32.mxu0 %v255
    %992 = vmatmul.mubr.f32.gmra.mrb[0].mxu0 %v91
    %v993 = vpop.f32.mrb[0].mxu0
    %v994 = vadd.f32 %v204, %v993
    %v995 = vpop.f32.mrb[0].mxu0
    %996 = vmatprep.mubr.f32.mxu0 %v258
    %997 = vmatmul.mubr.f32.gmra.mrb[0].mxu0 %v93
    %v998 = vpop.f32.mrb[0].mxu0
    %v999 = vadd.f32 %v209, %v998
    %v1000 = vpop.f32.mrb[0].mxu0
    %1001 = vdwg.mxu0
    %v1002 = vmax.f32 %v924, 0.0
    %v1003 = vmax.f32 %v929, 0.0
    %v1004 = vmax.f32 %v934, 0.0
    %v1005 = vmax.f32 %v939, 0.0
    %v1006 = vmax.f32 %v944, 0.0
    %v1007 = vmax.f32 %v949, 0.0
    %v1008 = vmax.f32 %v954, 0.0
    %v1009 = vmax.f32 %v959, 0.0
    %v1010 = vmax.f32 %v964, 0.0
    %v1011 = vmax.f32 %v969, 0.0
    %v1012 = vmax.f32 %v974, 0.0
    %v1013 = vmax.f32 %v979, 0.0
    %v1014 = vmax.f32 %v984, 0.0
    %v1015 = vmax.f32 %v989, 0.0
    %v1016 = vmax.f32 %v994, 0.0
    %v1017 = vmax.f32 %v999, 0.0
    %s1018 = scalar_lea.vmem [#allocation2], 400
    %1019 = vst [vmem:[%s1018] sm:$0xff] %v1002
    %1020 = vst [vmem:[%s1018 + $0x8] sm:$0xff] %v1003
    %1021 = vst [vmem:[%s1018 + $0x10] sm:$0xff] %v1004
    %1022 = vst [vmem:[%s1018 + $0x18] sm:$0xff] %v1005
    %1023 = vst [vmem:[%s1018 + $0x20] sm:$0xff] %v1006
    %1024 = vst [vmem:[%s1018 + $0x28] sm:$0xff] %v1007
    %1025 = vst [vmem:[%s1018 + $0x30] sm:$0xff] %v1008
    %1026 = vst [vmem:[%s1018 + $0x38] sm:$0xff] %v1009
    %1027 = vst [vmem:[%s1018 + $0x40] sm:$0xff] %v1010
    %1028 = vst [vmem:[%s1018 + $0x48] sm:$0xff] %v1011
    %1029 = vst [vmem:[%s1018 + $0x50] sm:$0xff] %v1012
    %1030 = vst [vmem:[%s1018 + $0x58] sm:$0xff] %v1013
    %1031 = vst [vmem:[%s1018 + $0x60] sm:$0xff] %v1014
    %1032 = vst [vmem:[%s1018 + $0x68] sm:$0xff] %v1015
    %1033 = vst [vmem:[%s1018 + $0x70] sm:$0xff] %v1016
    %1034 = vst [vmem:[%s1018 + $0x78] sm:$0xff] %v1017
    %s1035 = scalar_lea.vmem %s0, 512
    %v1036 = vld [vmem:[%s1035] sm:$0xff]
    %v1037 = vld [vmem:[%s1035 + $0x8] sm:$0xff]
    %v1038 = vld [vmem:[%s1035 + $0x10] sm:$0xff]
    %v1039 = vld [vmem:[%s1035 + $0x18] sm:$0xff]
    %v1040 = vld [vmem:[%s1035 + $0x20] sm:$0xff]
    %v1041 = vld [vmem:[%s1035 + $0x28] sm:$0xff]
    %v1042 = vld [vmem:[%s1035 + $0x30] sm:$0xff]
    %v1043 = vld [vmem:[%s1035 + $0x38] sm:$0xff]
    %v1044 = vld [vmem:[%s1035 + $0x40] sm:$0xff]
    %v1045 = vld [vmem:[%s1035 + $0x48] sm:$0xff]
    %v1046 = vld [vmem:[%s1035 + $0x50] sm:$0xff]
    %v1047 = vld [vmem:[%s1035 + $0x58] sm:$0xff]
    %v1048 = vld [vmem:[%s1035 + $0x60] sm:$0xff]
    %v1049 = vld [vmem:[%s1035 + $0x68] sm:$0xff]
    %v1050 = vld [vmem:[%s1035 + $0x70] sm:$0xff]
    %v1051 = vld [vmem:[%s1035 + $0x78] sm:$0xff]
    %v1052 = vld [vmem:[%s1035 + $0x80] sm:$0xff]
    %v1053 = vld [vmem:[%s1035 + $0x88] sm:$0xff]
    %v1054 = vld [vmem:[%s1035 + $0x90] sm:$0xff]
    %v1055 = vld [vmem:[%s1035 + $0x98] sm:$0xff]
    %1056 = vmatprep.subr.mxu0 0.0
    %1057 = vmatpush1.msra.mxu0 %v1036
    %1058 = vmatprep.subr.mxu0 0.0
    %1059 = vmatpush1.msra.mxu0 %v1037
    %1060 = vmatprep.subr.mxu0 0.0
    %1061 = vmatpush1.msra.mxu0 %v1038
    %1062 = vmatprep.subr.mxu0 0.0
    %1063 = vmatpush1.msra.mxu0 %v1039
    %1064 = vmatprep.subr.mxu0 0.0
    %1065 = vmatpush1.msra.mxu0 %v1040
    %1066 = vmatprep.subr.mxu0 0.0
    %1067 = vmatpush1.msra.mxu0 %v1041
    %1068 = vmatprep.subr.mxu0 0.0
    %1069 = vmatpush1.msra.mxu0 %v1042
    %1070 = vmatprep.subr.mxu0 0.0
    %1071 = vmatpush1.msra.mxu0 %v1043
    %1072 = vmatprep.subr.mxu0 0.0
    %1073 = vmatpush1.msra.mxu0 %v1044
    %1074 = vmatprep.subr.mxu0 0.0
    %1075 = vmatpush1.msra.mxu0 %v1045
    %1076 = vmatprep.subr.mxu0 0.0
    %1077 = vmatpush1.msra.mxu0 %v1046
    %1078 = vmatprep.subr.mxu0 0.0
    %1079 = vmatpush1.msra.mxu0 %v1047
    %1080 = vmatprep.subr.mxu0 0.0
    %1081 = vmatpush1.msra.mxu0 %v1048
    %1082 = vmatprep.subr.mxu0 0.0
    %1083 = vmatpush1.msra.mxu0 %v1049
    %1084 = vmatprep.subr.mxu0 0.0
    %1085 = vmatpush1.msra.mxu0 %v1050
    %1086 = vmatprep.subr.mxu0 0.0
    %1087 = vmatpush1.msra.mxu0 %v1051
    %1088 = vmatprep.subr.mxu0 0.0
    %1089 = vmatpush1.msra.mxu0 %v1052
    %1090 = vmatprep.subr.mxu0 0.0
    %1091 = vmatpush1.msra.mxu0 %v1053
    %1092 = vmatprep.subr.mxu0 0.0
    %1093 = vmatpush1.msra.mxu0 %v1054
    %1094 = vmatprep.subr.mxu0 0.0
    %1095 = vmatpush1.msra.mxu0 %v1055
    %1096 = vmatprep.subr.mxu0 0.0
    %1097 = vmatpush1.msra.mxu0 0.0
    %1098 = vmatprep.subr.mxu0 0.0
    %1099 = vmatpush1.msra.mxu0 0.0
    %1100 = vmatprep.subr.mxu0 0.0
    %1101 = vmatpush1.msra.mxu0 0.0
    %1102 = vmatprep.subr.mxu0 0.0
    %1103 = vmatpush1.msra.mxu0 0.0
    %1104 = vmatprep.subr.mxu0 0.0
    %1105 = vmatpush1.msra.mxu0 0.0
    %1106 = vmatprep.subr.mxu0 0.0
    %1107 = vmatpush1.msra.mxu0 0.0
    %1108 = vmatprep.subr.mxu0 0.0
    %1109 = vmatpush1.msra.mxu0 0.0
    %1110 = vmatprep.subr.mxu0 0.0
    %1111 = vmatpush1.msra.mxu0 0.0
    %1112 = vmatprep.subr.mxu0 0.0
    %1113 = vmatpush1.msra.mxu0 0.0
    %1114 = vmatprep.subr.mxu0 0.0
    %1115 = vmatpush1.msra.mxu0 0.0
    %1116 = vmatprep.subr.mxu0 0.0
    %1117 = vmatpush1.msra.mxu0 0.0
    %1118 = vmatprep.subr.mxu0 0.0
    %1119 = vmatpush1.msra.mxu0 0.0
    %1120 = vmatprep.mubr.f32.mxu0 %v213
    %1121 = vmatmul.mubr.f32.gmra.mrb[0].mxu0 %v63
    %v1122 = vpop.f32.mrb[0].mxu0
    %v1123 = vadd.f32 %v134, %v1122
    %v1124 = vpop.f32.mrb[0].mxu0
    %1125 = vmatprep.mubr.f32.mxu0 %v216
    %1126 = vmatmul.mubr.f32.gmra.mrb[0].mxu0 %v65
    %v1127 = vpop.f32.mrb[0].mxu0
    %v1128 = vadd.f32 %v139, %v1127
    %v1129 = vpop.f32.mrb[0].mxu0
    %1130 = vmatprep.mubr.f32.mxu0 %v219
    %1131 = vmatmul.mubr.f32.gmra.mrb[0].mxu0 %v67
    %v1132 = vpop.f32.mrb[0].mxu0
    %v1133 = vadd.f32 %v144, %v1132
    %v1134 = vpop.f32.mrb[0].mxu0
    %1135 = vmatprep.mubr.f32.mxu0 %v222
    %1136 = vmatmul.mubr.f32.gmra.mrb[0].mxu0 %v69
    %v1137 = vpop.f32.mrb[0].mxu0
    %v1138 = vadd.f32 %v149, %v1137
    %v1139 = vpop.f32.mrb[0].mxu0
    %1140 = vmatprep.mubr.f32.mxu0 %v225
    %1141 = vmatmul.mubr.f32.gmra.mrb[0].mxu0 %v71
    %v1142 = vpop.f32.mrb[0].mxu0
    %v1143 = vadd.f32 %v154, %v1142
    %v1144 = vpop.f32.mrb[0].mxu0
    %1145 = vmatprep.mubr.f32.mxu0 %v228
    %1146 = vmatmul.mubr.f32.gmra.mrb[0].mxu0 %v73
    %v1147 = vpop.f32.mrb[0].mxu0
    %v1148 = vadd.f32 %v159, %v1147
    %v1149 = vpop.f32.mrb[0].mxu0
    %1150 = vmatprep.mubr.f32.mxu0 %v231
    %1151 = vmatmul.mubr.f32.gmra.mrb[0].mxu0 %v75
    %v1152 = vpop.f32.mrb[0].mxu0
    %v1153 = vadd.f32 %v164, %v1152
    %v1154 = vpop.f32.mrb[0].mxu0
    %1155 = vmatprep.mubr.f32.mxu0 %v234
    %1156 = vmatmul.mubr.f32.gmra.mrb[0].mxu0 %v77
    %v1157 = vpop.f32.mrb[0].mxu0
    %v1158 = vadd.f32 %v169, %v1157
    %v1159 = vpop.f32.mrb[0].mxu0
    %1160 = vmatprep.mubr.f32.mxu0 %v237
    %1161 = vmatmul.mubr.f32.gmra.mrb[0].mxu0 %v79
    %v1162 = vpop.f32.mrb[0].mxu0
    %v1163 = vadd.f32 %v174, %v1162
    %v1164 = vpop.f32.mrb[0].mxu0
    %1165 = vmatprep.mubr.f32.mxu0 %v240
    %1166 = vmatmul.mubr.f32.gmra.mrb[0].mxu0 %v81
    %v1167 = vpop.f32.mrb[0].mxu0
    %v1168 = vadd.f32 %v179, %v1167
    %v1169 = vpop.f32.mrb[0].mxu0
    %1170 = vmatprep.mubr.f32.mxu0 %v243
    %1171 = vmatmul.mubr.f32.gmra.mrb[0].mxu0 %v83
    %v1172 = vpop.f32.mrb[0].mxu0
    %v1173 = vadd.f32 %v184, %v1172
    %v1174 = vpop.f32.mrb[0].mxu0
    %1175 = vmatprep.mubr.f32.mxu0 %v246
    %1176 = vmatmul.mubr.f32.gmra.mrb[0].mxu0 %v85
    %v1177 = vpop.f32.mrb[0].mxu0
    %v1178 = vadd.f32 %v189, %v1177
    %v1179 = vpop.f32.mrb[0].mxu0
    %1180 = vmatprep.mubr.f32.mxu0 %v249
    %1181 = vmatmul.mubr.f32.gmra.mrb[0].mxu0 %v87
    %v1182 = vpop.f32.mrb[0].mxu0
    %v1183 = vadd.f32 %v194, %v1182
    %v1184 = vpop.f32.mrb[0].mxu0
    %1185 = vmatprep.mubr.f32.mxu0 %v252
    %1186 = vmatmul.mubr.f32.gmra.mrb[0].mxu0 %v89
    %v1187 = vpop.f32.mrb[0].mxu0
    %v1188 = vadd.f32 %v199, %v1187
    %v1189 = vpop.f32.mrb[0].mxu0
    %1190 = vmatprep.mubr.f32.mxu0 %v255
    %1191 = vmatmul.mubr.f32.gmra.mrb[0].mxu0 %v91
    %v1192 = vpop.f32.mrb[0].mxu0
    %v1193 = vadd.f32 %v204, %v1192
    %v1194 = vpop.f32.mrb[0].mxu0
    %1195 = vmatprep.mubr.f32.mxu0 %v258
    %1196 = vmatmul.mubr.f32.gmra.mrb[0].mxu0 %v93
    %v1197 = vpop.f32.mrb[0].mxu0
    %v1198 = vadd.f32 %v209, %v1197
    %v1199 = vpop.f32.mrb[0].mxu0
    %1200 = vdwg.mxu0
    %v1201 = vmax.f32 %v1123, 0.0
    %v1202 = vmax.f32 %v1128, 0.0
    %v1203 = vmax.f32 %v1133, 0.0
    %v1204 = vmax.f32 %v1138, 0.0
    %v1205 = vmax.f32 %v1143, 0.0
    %v1206 = vmax.f32 %v1148, 0.0
    %v1207 = vmax.f32 %v1153, 0.0
    %v1208 = vmax.f32 %v1158, 0.0
    %v1209 = vmax.f32 %v1163, 0.0
    %v1210 = vmax.f32 %v1168, 0.0
    %v1211 = vmax.f32 %v1173, 0.0
    %v1212 = vmax.f32 %v1178, 0.0
    %v1213 = vmax.f32 %v1183, 0.0
    %v1214 = vmax.f32 %v1188, 0.0
    %v1215 = vmax.f32 %v1193, 0.0
    %v1216 = vmax.f32 %v1198, 0.0
    %s1217 = scalar_lea.vmem [#allocation2], 528
    %1218 = vst [vmem:[%s1217] sm:$0xff] %v1201
    %1219 = vst [vmem:[%s1217 + $0x8] sm:$0xff] %v1202
    %1220 = vst [vmem:[%s1217 + $0x10] sm:$0xff] %v1203
    %1221 = vst [vmem:[%s1217 + $0x18] sm:$0xff] %v1204
    %1222 = vst [vmem:[%s1217 + $0x20] sm:$0xff] %v1205
    %1223 = vst [vmem:[%s1217 + $0x28] sm:$0xff] %v1206
    %1224 = vst [vmem:[%s1217 + $0x30] sm:$0xff] %v1207
    %1225 = vst [vmem:[%s1217 + $0x38] sm:$0xff] %v1208
    %1226 = vst [vmem:[%s1217 + $0x40] sm:$0xff] %v1209
    %1227 = vst [vmem:[%s1217 + $0x48] sm:$0xff] %v1210
    %1228 = vst [vmem:[%s1217 + $0x50] sm:$0xff] %v1211
    %1229 = vst [vmem:[%s1217 + $0x58] sm:$0xff] %v1212
    %1230 = vst [vmem:[%s1217 + $0x60] sm:$0xff] %v1213
    %1231 = vst [vmem:[%s1217 + $0x68] sm:$0xff] %v1214
    %1232 = vst [vmem:[%s1217 + $0x70] sm:$0xff] %v1215
    %1233 = vst [vmem:[%s1217 + $0x78] sm:$0xff] %v1216
    %s1234 = scalar_lea.vmem %s0, 640
    %v1235 = vld [vmem:[%s1234] sm:$0xff]
    %v1236 = vld [vmem:[%s1234 + $0x8] sm:$0xff]
    %v1237 = vld [vmem:[%s1234 + $0x10] sm:$0xff]
    %v1238 = vld [vmem:[%s1234 + $0x18] sm:$0xff]
    %v1239 = vld [vmem:[%s1234 + $0x20] sm:$0xff]
    %v1240 = vld [vmem:[%s1234 + $0x28] sm:$0xff]
    %v1241 = vld [vmem:[%s1234 + $0x30] sm:$0xff]
    %v1242 = vld [vmem:[%s1234 + $0x38] sm:$0xff]
    %v1243 = vld [vmem:[%s1234 + $0x40] sm:$0xff]
    %v1244 = vld [vmem:[%s1234 + $0x48] sm:$0xff]
    %v1245 = vld [vmem:[%s1234 + $0x50] sm:$0xff]
    %v1246 = vld [vmem:[%s1234 + $0x58] sm:$0xff]
    %v1247 = vld [vmem:[%s1234 + $0x60] sm:$0xff]
    %v1248 = vld [vmem:[%s1234 + $0x68] sm:$0xff]
    %v1249 = vld [vmem:[%s1234 + $0x70] sm:$0xff]
    %v1250 = vld [vmem:[%s1234 + $0x78] sm:$0xff]
    %v1251 = vld [vmem:[%s1234 + $0x80] sm:$0xff]
    %v1252 = vld [vmem:[%s1234 + $0x88] sm:$0xff]
    %v1253 = vld [vmem:[%s1234 + $0x90] sm:$0xff]
    %v1254 = vld [vmem:[%s1234 + $0x98] sm:$0xff]
    %1255 = vmatprep.subr.mxu0 0.0
    %1256 = vmatpush1.msra.mxu0 %v1235
    %1257 = vmatprep.subr.mxu0 0.0
    %1258 = vmatpush1.msra.mxu0 %v1236
    %1259 = vmatprep.subr.mxu0 0.0
    %1260 = vmatpush1.msra.mxu0 %v1237
    %1261 = vmatprep.subr.mxu0 0.0
    %1262 = vmatpush1.msra.mxu0 %v1238
    %1263 = vmatprep.subr.mxu0 0.0
    %1264 = vmatpush1.msra.mxu0 %v1239
    %1265 = vmatprep.subr.mxu0 0.0
    %1266 = vmatpush1.msra.mxu0 %v1240
    %1267 = vmatprep.subr.mxu0 0.0
    %1268 = vmatpush1.msra.mxu0 %v1241
    %1269 = vmatprep.subr.mxu0 0.0
    %1270 = vmatpush1.msra.mxu0 %v1242
    %1271 = vmatprep.subr.mxu0 0.0
    %1272 = vmatpush1.msra.mxu0 %v1243
    %1273 = vmatprep.subr.mxu0 0.0
    %1274 = vmatpush1.msra.mxu0 %v1244
    %1275 = vmatprep.subr.mxu0 0.0
    %1276 = vmatpush1.msra.mxu0 %v1245
    %1277 = vmatprep.subr.mxu0 0.0
    %1278 = vmatpush1.msra.mxu0 %v1246
    %1279 = vmatprep.subr.mxu0 0.0
    %1280 = vmatpush1.msra.mxu0 %v1247
    %1281 = vmatprep.subr.mxu0 0.0
    %1282 = vmatpush1.msra.mxu0 %v1248
    %1283 = vmatprep.subr.mxu0 0.0
    %1284 = vmatpush1.msra.mxu0 %v1249
    %1285 = vmatprep.subr.mxu0 0.0
    %1286 = vmatpush1.msra.mxu0 %v1250
    %1287 = vmatprep.subr.mxu0 0.0
    %1288 = vmatpush1.msra.mxu0 %v1251
    %1289 = vmatprep.subr.mxu0 0.0
    %1290 = vmatpush1.msra.mxu0 %v1252
    %1291 = vmatprep.subr.mxu0 0.0
    %1292 = vmatpush1.msra.mxu0 %v1253
    %1293 = vmatprep.subr.mxu0 0.0
    %1294 = vmatpush1.msra.mxu0 %v1254
    %1295 = vmatprep.subr.mxu0 0.0
    %1296 = vmatpush1.msra.mxu0 0.0
    %1297 = vmatprep.subr.mxu0 0.0
    %1298 = vmatpush1.msra.mxu0 0.0
    %1299 = vmatprep.subr.mxu0 0.0
    %1300 = vmatpush1.msra.mxu0 0.0
    %1301 = vmatprep.subr.mxu0 0.0
    %1302 = vmatpush1.msra.mxu0 0.0
    %1303 = vmatprep.subr.mxu0 0.0
    %1304 = vmatpush1.msra.mxu0 0.0
    %1305 = vmatprep.subr.mxu0 0.0
    %1306 = vmatpush1.msra.mxu0 0.0
    %1307 = vmatprep.subr.mxu0 0.0
    %1308 = vmatpush1.msra.mxu0 0.0
    %1309 = vmatprep.subr.mxu0 0.0
    %1310 = vmatpush1.msra.mxu0 0.0
    %1311 = vmatprep.subr.mxu0 0.0
    %1312 = vmatpush1.msra.mxu0 0.0
    %1313 = vmatprep.subr.mxu0 0.0
    %1314 = vmatpush1.msra.mxu0 0.0
    %1315 = vmatprep.subr.mxu0 0.0
    %1316 = vmatpush1.msra.mxu0 0.0
    %1317 = vmatprep.subr.mxu0 0.0
    %1318 = vmatpush1.msra.mxu0 0.0
    %1319 = vmatprep.mubr.f32.mxu0 %v213
    %1320 = vmatmul.mubr.f32.gmra.mrb[0].mxu0 %v63
    %v1321 = vpop.f32.mrb[0].mxu0
    %v1322 = vadd.f32 %v134, %v1321
    %v1323 = vpop.f32.mrb[0].mxu0
    %1324 = vmatprep.mubr.f32.mxu0 %v216
    %1325 = vmatmul.mubr.f32.gmra.mrb[0].mxu0 %v65
    %v1326 = vpop.f32.mrb[0].mxu0
    %v1327 = vadd.f32 %v139, %v1326
    %v1328 = vpop.f32.mrb[0].mxu0
    %1329 = vmatprep.mubr.f32.mxu0 %v219
    %1330 = vmatmul.mubr.f32.gmra.mrb[0].mxu0 %v67
    %v1331 = vpop.f32.mrb[0].mxu0
    %v1332 = vadd.f32 %v144, %v1331
    %v1333 = vpop.f32.mrb[0].mxu0
    %1334 = vmatprep.mubr.f32.mxu0 %v222
    %1335 = vmatmul.mubr.f32.gmra.mrb[0].mxu0 %v69
    %v1336 = vpop.f32.mrb[0].mxu0
    %v1337 = vadd.f32 %v149, %v1336
    %v1338 = vpop.f32.mrb[0].mxu0
    %1339 = vmatprep.mubr.f32.mxu0 %v225
    %1340 = vmatmul.mubr.f32.gmra.mrb[0].mxu0 %v71
    %v1341 = vpop.f32.mrb[0].mxu0
    %v1342 = vadd.f32 %v154, %v1341
    %v1343 = vpop.f32.mrb[0].mxu0
    %1344 = vmatprep.mubr.f32.mxu0 %v228
    %1345 = vmatmul.mubr.f32.gmra.mrb[0].mxu0 %v73
    %v1346 = vpop.f32.mrb[0].mxu0
    %v1347 = vadd.f32 %v159, %v1346
    %v1348 = vpop.f32.mrb[0].mxu0
    %1349 = vmatprep.mubr.f32.mxu0 %v231
    %1350 = vmatmul.mubr.f32.gmra.mrb[0].mxu0 %v75
    %v1351 = vpop.f32.mrb[0].mxu0
    %v1352 = vadd.f32 %v164, %v1351
    %v1353 = vpop.f32.mrb[0].mxu0
    %1354 = vmatprep.mubr.f32.mxu0 %v234
    %1355 = vmatmul.mubr.f32.gmra.mrb[0].mxu0 %v77
    %v1356 = vpop.f32.mrb[0].mxu0
    %v1357 = vadd.f32 %v169, %v1356
    %v1358 = vpop.f32.mrb[0].mxu0
    %1359 = vmatprep.mubr.f32.mxu0 %v237
    %1360 = vmatmul.mubr.f32.gmra.mrb[0].mxu0 %v79
    %v1361 = vpop.f32.mrb[0].mxu0
    %v1362 = vadd.f32 %v174, %v1361
    %v1363 = vpop.f32.mrb[0].mxu0
    %1364 = vmatprep.mubr.f32.mxu0 %v240
    %1365 = vmatmul.mubr.f32.gmra.mrb[0].mxu0 %v81
    %v1366 = vpop.f32.mrb[0].mxu0
    %v1367 = vadd.f32 %v179, %v1366
    %v1368 = vpop.f32.mrb[0].mxu0
    %1369 = vmatprep.mubr.f32.mxu0 %v243
    %1370 = vmatmul.mubr.f32.gmra.mrb[0].mxu0 %v83
    %v1371 = vpop.f32.mrb[0].mxu0
    %v1372 = vadd.f32 %v184, %v1371
    %v1373 = vpop.f32.mrb[0].mxu0
    %1374 = vmatprep.mubr.f32.mxu0 %v246
    %1375 = vmatmul.mubr.f32.gmra.mrb[0].mxu0 %v85
    %v1376 = vpop.f32.mrb[0].mxu0
    %v1377 = vadd.f32 %v189, %v1376
    %v1378 = vpop.f32.mrb[0].mxu0
    %1379 = vmatprep.mubr.f32.mxu0 %v249
    %1380 = vmatmul.mubr.f32.gmra.mrb[0].mxu0 %v87
    %v1381 = vpop.f32.mrb[0].mxu0
    %v1382 = vadd.f32 %v194, %v1381
    %v1383 = vpop.f32.mrb[0].mxu0
    %1384 = vmatprep.mubr.f32.mxu0 %v252
    %1385 = vmatmul.mubr.f32.gmra.mrb[0].mxu0 %v89
    %v1386 = vpop.f32.mrb[0].mxu0
    %v1387 = vadd.f32 %v199, %v1386
    %v1388 = vpop.f32.mrb[0].mxu0
    %1389 = vmatprep.mubr.f32.mxu0 %v255
    %1390 = vmatmul.mubr.f32.gmra.mrb[0].mxu0 %v91
    %v1391 = vpop.f32.mrb[0].mxu0
    %v1392 = vadd.f32 %v204, %v1391
    %v1393 = vpop.f32.mrb[0].mxu0
    %1394 = vmatprep.mubr.f32.mxu0 %v258
    %1395 = vmatmul.mubr.f32.gmra.mrb[0].mxu0 %v93
    %v1396 = vpop.f32.mrb[0].mxu0
    %v1397 = vadd.f32 %v209, %v1396
    %v1398 = vpop.f32.mrb[0].mxu0
    %1399 = vdwg.mxu0
    %v1400 = vmax.f32 %v1322, 0.0
    %v1401 = vmax.f32 %v1327, 0.0
    %v1402 = vmax.f32 %v1332, 0.0
    %v1403 = vmax.f32 %v1337, 0.0
    %v1404 = vmax.f32 %v1342, 0.0
    %v1405 = vmax.f32 %v1347, 0.0
    %v1406 = vmax.f32 %v1352, 0.0
    %v1407 = vmax.f32 %v1357, 0.0
    %v1408 = vmax.f32 %v1362, 0.0
    %v1409 = vmax.f32 %v1367, 0.0
    %v1410 = vmax.f32 %v1372, 0.0
    %v1411 = vmax.f32 %v1377, 0.0
    %v1412 = vmax.f32 %v1382, 0.0
    %v1413 = vmax.f32 %v1387, 0.0
    %v1414 = vmax.f32 %v1392, 0.0
    %v1415 = vmax.f32 %v1397, 0.0
    %s1416 = scalar_lea.vmem [#allocation2], 656
    %1417 = vst [vmem:[%s1416] sm:$0xff] %v1400
    %1418 = vst [vmem:[%s1416 + $0x8] sm:$0xff] %v1401
    %1419 = vst [vmem:[%s1416 + $0x10] sm:$0xff] %v1402
    %1420 = vst [vmem:[%s1416 + $0x18] sm:$0xff] %v1403
    %1421 = vst [vmem:[%s1416 + $0x20] sm:$0xff] %v1404
    %1422 = vst [vmem:[%s1416 + $0x28] sm:$0xff] %v1405
    %1423 = vst [vmem:[%s1416 + $0x30] sm:$0xff] %v1406
    %1424 = vst [vmem:[%s1416 + $0x38] sm:$0xff] %v1407
    %1425 = vst [vmem:[%s1416 + $0x40] sm:$0xff] %v1408
    %1426 = vst [vmem:[%s1416 + $0x48] sm:$0xff] %v1409
    %1427 = vst [vmem:[%s1416 + $0x50] sm:$0xff] %v1410
    %1428 = vst [vmem:[%s1416 + $0x58] sm:$0xff] %v1411
    %1429 = vst [vmem:[%s1416 + $0x60] sm:$0xff] %v1412
    %1430 = vst [vmem:[%s1416 + $0x68] sm:$0xff] %v1413
    %1431 = vst [vmem:[%s1416 + $0x70] sm:$0xff] %v1414
    %1432 = vst [vmem:[%s1416 + $0x78] sm:$0xff] %v1415
    %s1433 = scalar_lea.vmem %s0, 768
    %v1434 = vld [vmem:[%s1433] sm:$0xff]
    %v1435 = vld [vmem:[%s1433 + $0x8] sm:$0xff]
    %v1436 = vld [vmem:[%s1433 + $0x10] sm:$0xff]
    %v1437 = vld [vmem:[%s1433 + $0x18] sm:$0xff]
    %v1438 = vld [vmem:[%s1433 + $0x20] sm:$0xff]
    %v1439 = vld [vmem:[%s1433 + $0x28] sm:$0xff]
    %v1440 = vld [vmem:[%s1433 + $0x30] sm:$0xff]
    %v1441 = vld [vmem:[%s1433 + $0x38] sm:$0xff]
    %v1442 = vld [vmem:[%s1433 + $0x40] sm:$0xff]
    %v1443 = vld [vmem:[%s1433 + $0x48] sm:$0xff]
    %v1444 = vld [vmem:[%s1433 + $0x50] sm:$0xff]
    %v1445 = vld [vmem:[%s1433 + $0x58] sm:$0xff]
    %v1446 = vld [vmem:[%s1433 + $0x60] sm:$0xff]
    %v1447 = vld [vmem:[%s1433 + $0x68] sm:$0xff]
    %v1448 = vld [vmem:[%s1433 + $0x70] sm:$0xff]
    %v1449 = vld [vmem:[%s1433 + $0x78] sm:$0xff]
    %v1450 = vld [vmem:[%s1433 + $0x80] sm:$0xff]
    %v1451 = vld [vmem:[%s1433 + $0x88] sm:$0xff]
    %v1452 = vld [vmem:[%s1433 + $0x90] sm:$0xff]
    %v1453 = vld [vmem:[%s1433 + $0x98] sm:$0xff]
    %1454 = vmatprep.subr.mxu0 0.0
    %1455 = vmatpush1.msra.mxu0 %v1434
    %1456 = vmatprep.subr.mxu0 0.0
    %1457 = vmatpush1.msra.mxu0 %v1435
    %1458 = vmatprep.subr.mxu0 0.0
    %1459 = vmatpush1.msra.mxu0 %v1436
    %1460 = vmatprep.subr.mxu0 0.0
    %1461 = vmatpush1.msra.mxu0 %v1437
    %1462 = vmatprep.subr.mxu0 0.0
    %1463 = vmatpush1.msra.mxu0 %v1438
    %1464 = vmatprep.subr.mxu0 0.0
    %1465 = vmatpush1.msra.mxu0 %v1439
    %1466 = vmatprep.subr.mxu0 0.0
    %1467 = vmatpush1.msra.mxu0 %v1440
    %1468 = vmatprep.subr.mxu0 0.0
    %1469 = vmatpush1.msra.mxu0 %v1441
    %1470 = vmatprep.subr.mxu0 0.0
    %1471 = vmatpush1.msra.mxu0 %v1442
    %1472 = vmatprep.subr.mxu0 0.0
    %1473 = vmatpush1.msra.mxu0 %v1443
    %1474 = vmatprep.subr.mxu0 0.0
    %1475 = vmatpush1.msra.mxu0 %v1444
    %1476 = vmatprep.subr.mxu0 0.0
    %1477 = vmatpush1.msra.mxu0 %v1445
    %1478 = vmatprep.subr.mxu0 0.0
    %1479 = vmatpush1.msra.mxu0 %v1446
    %1480 = vmatprep.subr.mxu0 0.0
    %1481 = vmatpush1.msra.mxu0 %v1447
    %1482 = vmatprep.subr.mxu0 0.0
    %1483 = vmatpush1.msra.mxu0 %v1448
    %1484 = vmatprep.subr.mxu0 0.0
    %1485 = vmatpush1.msra.mxu0 %v1449
    %1486 = vmatprep.subr.mxu0 0.0
    %1487 = vmatpush1.msra.mxu0 %v1450
    %1488 = vmatprep.subr.mxu0 0.0
    %1489 = vmatpush1.msra.mxu0 %v1451
    %1490 = vmatprep.subr.mxu0 0.0
    %1491 = vmatpush1.msra.mxu0 %v1452
    %1492 = vmatprep.subr.mxu0 0.0
    %1493 = vmatpush1.msra.mxu0 %v1453
    %1494 = vmatprep.subr.mxu0 0.0
    %1495 = vmatpush1.msra.mxu0 0.0
    %1496 = vmatprep.subr.mxu0 0.0
    %1497 = vmatpush1.msra.mxu0 0.0
    %1498 = vmatprep.subr.mxu0 0.0
    %1499 = vmatpush1.msra.mxu0 0.0
    %1500 = vmatprep.subr.mxu0 0.0
    %1501 = vmatpush1.msra.mxu0 0.0
    %1502 = vmatprep.subr.mxu0 0.0
    %1503 = vmatpush1.msra.mxu0 0.0
    %1504 = vmatprep.subr.mxu0 0.0
    %1505 = vmatpush1.msra.mxu0 0.0
    %1506 = vmatprep.subr.mxu0 0.0
    %1507 = vmatpush1.msra.mxu0 0.0
    %1508 = vmatprep.subr.mxu0 0.0
    %1509 = vmatpush1.msra.mxu0 0.0
    %1510 = vmatprep.subr.mxu0 0.0
    %1511 = vmatpush1.msra.mxu0 0.0
    %1512 = vmatprep.subr.mxu0 0.0
    %1513 = vmatpush1.msra.mxu0 0.0
    %1514 = vmatprep.subr.mxu0 0.0
    %1515 = vmatpush1.msra.mxu0 0.0
    %1516 = vmatprep.subr.mxu0 0.0
    %1517 = vmatpush1.msra.mxu0 0.0
    %1518 = vmatprep.mubr.f32.mxu0 %v213
    %1519 = vmatmul.mubr.f32.gmra.mrb[0].mxu0 %v63
    %v1520 = vpop.f32.mrb[0].mxu0
    %v1521 = vadd.f32 %v134, %v1520
    %v1522 = vpop.f32.mrb[0].mxu0
    %1523 = vmatprep.mubr.f32.mxu0 %v216
    %1524 = vmatmul.mubr.f32.gmra.mrb[0].mxu0 %v65
    %v1525 = vpop.f32.mrb[0].mxu0
    %v1526 = vadd.f32 %v139, %v1525
    %v1527 = vpop.f32.mrb[0].mxu0
    %1528 = vmatprep.mubr.f32.mxu0 %v219
    %1529 = vmatmul.mubr.f32.gmra.mrb[0].mxu0 %v67
    %v1530 = vpop.f32.mrb[0].mxu0
    %v1531 = vadd.f32 %v144, %v1530
    %v1532 = vpop.f32.mrb[0].mxu0
    %1533 = vmatprep.mubr.f32.mxu0 %v222
    %1534 = vmatmul.mubr.f32.gmra.mrb[0].mxu0 %v69
    %v1535 = vpop.f32.mrb[0].mxu0
    %v1536 = vadd.f32 %v149, %v1535
    %v1537 = vpop.f32.mrb[0].mxu0
    %1538 = vmatprep.mubr.f32.mxu0 %v225
    %1539 = vmatmul.mubr.f32.gmra.mrb[0].mxu0 %v71
    %v1540 = vpop.f32.mrb[0].mxu0
    %v1541 = vadd.f32 %v154, %v1540
    %v1542 = vpop.f32.mrb[0].mxu0
    %1543 = vmatprep.mubr.f32.mxu0 %v228
    %1544 = vmatmul.mubr.f32.gmra.mrb[0].mxu0 %v73
    %v1545 = vpop.f32.mrb[0].mxu0
    %v1546 = vadd.f32 %v159, %v1545
    %v1547 = vpop.f32.mrb[0].mxu0
    %1548 = vmatprep.mubr.f32.mxu0 %v231
    %1549 = vmatmul.mubr.f32.gmra.mrb[0].mxu0 %v75
    %v1550 = vpop.f32.mrb[0].mxu0
    %v1551 = vadd.f32 %v164, %v1550
    %v1552 = vpop.f32.mrb[0].mxu0
    %1553 = vmatprep.mubr.f32.mxu0 %v234
    %1554 = vmatmul.mubr.f32.gmra.mrb[0].mxu0 %v77
    %v1555 = vpop.f32.mrb[0].mxu0
    %v1556 = vadd.f32 %v169, %v1555
    %v1557 = vpop.f32.mrb[0].mxu0
    %1558 = vmatprep.mubr.f32.mxu0 %v237
    %1559 = vmatmul.mubr.f32.gmra.mrb[0].mxu0 %v79
    %v1560 = vpop.f32.mrb[0].mxu0
    %v1561 = vadd.f32 %v174, %v1560
    %v1562 = vpop.f32.mrb[0].mxu0
    %1563 = vmatprep.mubr.f32.mxu0 %v240
    %1564 = vmatmul.mubr.f32.gmra.mrb[0].mxu0 %v81
    %v1565 = vpop.f32.mrb[0].mxu0
    %v1566 = vadd.f32 %v179, %v1565
    %v1567 = vpop.f32.mrb[0].mxu0
    %1568 = vmatprep.mubr.f32.mxu0 %v243
    %1569 = vmatmul.mubr.f32.gmra.mrb[0].mxu0 %v83
    %v1570 = vpop.f32.mrb[0].mxu0
    %v1571 = vadd.f32 %v184, %v1570
    %v1572 = vpop.f32.mrb[0].mxu0
    %1573 = vmatprep.mubr.f32.mxu0 %v246
    %1574 = vmatmul.mubr.f32.gmra.mrb[0].mxu0 %v85
    %v1575 = vpop.f32.mrb[0].mxu0
    %v1576 = vadd.f32 %v189, %v1575
    %v1577 = vpop.f32.mrb[0].mxu0
    %1578 = vmatprep.mubr.f32.mxu0 %v249
    %1579 = vmatmul.mubr.f32.gmra.mrb[0].mxu0 %v87
    %v1580 = vpop.f32.mrb[0].mxu0
    %v1581 = vadd.f32 %v194, %v1580
    %v1582 = vpop.f32.mrb[0].mxu0
    %1583 = vmatprep.mubr.f32.mxu0 %v252
    %1584 = vmatmul.mubr.f32.gmra.mrb[0].mxu0 %v89
    %v1585 = vpop.f32.mrb[0].mxu0
    %v1586 = vadd.f32 %v199, %v1585
    %v1587 = vpop.f32.mrb[0].mxu0
    %1588 = vmatprep.mubr.f32.mxu0 %v255
    %1589 = vmatmul.mubr.f32.gmra.mrb[0].mxu0 %v91
    %v1590 = vpop.f32.mrb[0].mxu0
    %v1591 = vadd.f32 %v204, %v1590
    %v1592 = vpop.f32.mrb[0].mxu0
    %1593 = vmatprep.mubr.f32.mxu0 %v258
    %1594 = vmatmul.mubr.f32.gmra.mrb[0].mxu0 %v93
    %v1595 = vpop.f32.mrb[0].mxu0
    %v1596 = vadd.f32 %v209, %v1595
    %v1597 = vpop.f32.mrb[0].mxu0
    %1598 = vdwg.mxu0
    %v1599 = vmax.f32 %v1521, 0.0
    %v1600 = vmax.f32 %v1526, 0.0
    %v1601 = vmax.f32 %v1531, 0.0
    %v1602 = vmax.f32 %v1536, 0.0
    %v1603 = vmax.f32 %v1541, 0.0
    %v1604 = vmax.f32 %v1546, 0.0
    %v1605 = vmax.f32 %v1551, 0.0
    %v1606 = vmax.f32 %v1556, 0.0
    %v1607 = vmax.f32 %v1561, 0.0
    %v1608 = vmax.f32 %v1566, 0.0
    %v1609 = vmax.f32 %v1571, 0.0
    %v1610 = vmax.f32 %v1576, 0.0
    %v1611 = vmax.f32 %v1581, 0.0
    %v1612 = vmax.f32 %v1586, 0.0
    %v1613 = vmax.f32 %v1591, 0.0
    %v1614 = vmax.f32 %v1596, 0.0
    %s1615 = scalar_lea.vmem [#allocation2], 784
    %1616 = vst [vmem:[%s1615] sm:$0xff] %v1599
    %1617 = vst [vmem:[%s1615 + $0x8] sm:$0xff] %v1600
    %1618 = vst [vmem:[%s1615 + $0x10] sm:$0xff] %v1601
    %1619 = vst [vmem:[%s1615 + $0x18] sm:$0xff] %v1602
    %1620 = vst [vmem:[%s1615 + $0x20] sm:$0xff] %v1603
    %1621 = vst [vmem:[%s1615 + $0x28] sm:$0xff] %v1604
    %1622 = vst [vmem:[%s1615 + $0x30] sm:$0xff] %v1605
    %1623 = vst [vmem:[%s1615 + $0x38] sm:$0xff] %v1606
    %1624 = vst [vmem:[%s1615 + $0x40] sm:$0xff] %v1607
    %1625 = vst [vmem:[%s1615 + $0x48] sm:$0xff] %v1608
    %1626 = vst [vmem:[%s1615 + $0x50] sm:$0xff] %v1609
    %1627 = vst [vmem:[%s1615 + $0x58] sm:$0xff] %v1610
    %1628 = vst [vmem:[%s1615 + $0x60] sm:$0xff] %v1611
    %1629 = vst [vmem:[%s1615 + $0x68] sm:$0xff] %v1612
    %1630 = vst [vmem:[%s1615 + $0x70] sm:$0xff] %v1613
    %1631 = vst [vmem:[%s1615 + $0x78] sm:$0xff] %v1614
    %s1632 = scalar_lea.vmem %s0, 896
    %v1633 = vld [vmem:[%s1632] sm:$0xff]
    %v1634 = vld [vmem:[%s1632 + $0x8] sm:$0xff]
    %v1635 = vld [vmem:[%s1632 + $0x10] sm:$0xff]
    %v1636 = vld [vmem:[%s1632 + $0x18] sm:$0xff]
    %v1637 = vld [vmem:[%s1632 + $0x20] sm:$0xff]
    %v1638 = vld [vmem:[%s1632 + $0x28] sm:$0xff]
    %v1639 = vld [vmem:[%s1632 + $0x30] sm:$0xff]
    %v1640 = vld [vmem:[%s1632 + $0x38] sm:$0xff]
    %v1641 = vld [vmem:[%s1632 + $0x40] sm:$0xff]
    %v1642 = vld [vmem:[%s1632 + $0x48] sm:$0xff]
    %v1643 = vld [vmem:[%s1632 + $0x50] sm:$0xff]
    %v1644 = vld [vmem:[%s1632 + $0x58] sm:$0xff]
    %v1645 = vld [vmem:[%s1632 + $0x60] sm:$0xff]
    %v1646 = vld [vmem:[%s1632 + $0x68] sm:$0xff]
    %v1647 = vld [vmem:[%s1632 + $0x70] sm:$0xff]
    %v1648 = vld [vmem:[%s1632 + $0x78] sm:$0xff]
    %v1649 = vld [vmem:[%s1632 + $0x80] sm:$0xff]
    %v1650 = vld [vmem:[%s1632 + $0x88] sm:$0xff]
    %v1651 = vld [vmem:[%s1632 + $0x90] sm:$0xff]
    %v1652 = vld [vmem:[%s1632 + $0x98] sm:$0xff]
    %1653 = vmatprep.subr.mxu0 0.0
    %1654 = vmatpush1.msra.mxu0 %v1633
    %1655 = vmatprep.subr.mxu0 0.0
    %1656 = vmatpush1.msra.mxu0 %v1634
    %1657 = vmatprep.subr.mxu0 0.0
    %1658 = vmatpush1.msra.mxu0 %v1635
    %1659 = vmatprep.subr.mxu0 0.0
    %1660 = vmatpush1.msra.mxu0 %v1636
    %1661 = vmatprep.subr.mxu0 0.0
    %1662 = vmatpush1.msra.mxu0 %v1637
    %1663 = vmatprep.subr.mxu0 0.0
    %1664 = vmatpush1.msra.mxu0 %v1638
    %1665 = vmatprep.subr.mxu0 0.0
    %1666 = vmatpush1.msra.mxu0 %v1639
    %1667 = vmatprep.subr.mxu0 0.0
    %1668 = vmatpush1.msra.mxu0 %v1640
    %1669 = vmatprep.subr.mxu0 0.0
    %1670 = vmatpush1.msra.mxu0 %v1641
    %1671 = vmatprep.subr.mxu0 0.0
    %1672 = vmatpush1.msra.mxu0 %v1642
    %1673 = vmatprep.subr.mxu0 0.0
    %1674 = vmatpush1.msra.mxu0 %v1643
    %1675 = vmatprep.subr.mxu0 0.0
    %1676 = vmatpush1.msra.mxu0 %v1644
    %1677 = vmatprep.subr.mxu0 0.0
    %1678 = vmatpush1.msra.mxu0 %v1645
    %1679 = vmatprep.subr.mxu0 0.0
    %1680 = vmatpush1.msra.mxu0 %v1646
    %1681 = vmatprep.subr.mxu0 0.0
    %1682 = vmatpush1.msra.mxu0 %v1647
    %1683 = vmatprep.subr.mxu0 0.0
    %1684 = vmatpush1.msra.mxu0 %v1648
    %1685 = vmatprep.subr.mxu0 0.0
    %1686 = vmatpush1.msra.mxu0 %v1649
    %1687 = vmatprep.subr.mxu0 0.0
    %1688 = vmatpush1.msra.mxu0 %v1650
    %1689 = vmatprep.subr.mxu0 0.0
    %1690 = vmatpush1.msra.mxu0 %v1651
    %1691 = vmatprep.subr.mxu0 0.0
    %1692 = vmatpush1.msra.mxu0 %v1652
    %1693 = vmatprep.subr.mxu0 0.0
    %1694 = vmatpush1.msra.mxu0 0.0
    %1695 = vmatprep.subr.mxu0 0.0
    %1696 = vmatpush1.msra.mxu0 0.0
    %1697 = vmatprep.subr.mxu0 0.0
    %1698 = vmatpush1.msra.mxu0 0.0
    %1699 = vmatprep.subr.mxu0 0.0
    %1700 = vmatpush1.msra.mxu0 0.0
    %1701 = vmatprep.subr.mxu0 0.0
    %1702 = vmatpush1.msra.mxu0 0.0
    %1703 = vmatprep.subr.mxu0 0.0
    %1704 = vmatpush1.msra.mxu0 0.0
    %1705 = vmatprep.subr.mxu0 0.0
    %1706 = vmatpush1.msra.mxu0 0.0
    %1707 = vmatprep.subr.mxu0 0.0
    %1708 = vmatpush1.msra.mxu0 0.0
    %1709 = vmatprep.subr.mxu0 0.0
    %1710 = vmatpush1.msra.mxu0 0.0
    %1711 = vmatprep.subr.mxu0 0.0
    %1712 = vmatpush1.msra.mxu0 0.0
    %1713 = vmatprep.subr.mxu0 0.0
    %1714 = vmatpush1.msra.mxu0 0.0
    %1715 = vmatprep.subr.mxu0 0.0
    %1716 = vmatpush1.msra.mxu0 0.0
    %1717 = vmatprep.mubr.f32.mxu0 %v213
    %1718 = vmatmul.mubr.f32.gmra.mrb[0].mxu0 %v63
    %v1719 = vpop.f32.mrb[0].mxu0
    %v1720 = vadd.f32 %v134, %v1719
    %v1721 = vpop.f32.mrb[0].mxu0
    %1722 = vmatprep.mubr.f32.mxu0 %v216
    %1723 = vmatmul.mubr.f32.gmra.mrb[0].mxu0 %v65
    %v1724 = vpop.f32.mrb[0].mxu0
    %v1725 = vadd.f32 %v139, %v1724
    %v1726 = vpop.f32.mrb[0].mxu0
    %1727 = vmatprep.mubr.f32.mxu0 %v219
    %1728 = vmatmul.mubr.f32.gmra.mrb[0].mxu0 %v67
    %v1729 = vpop.f32.mrb[0].mxu0
    %v1730 = vadd.f32 %v144, %v1729
    %v1731 = vpop.f32.mrb[0].mxu0
    %1732 = vmatprep.mubr.f32.mxu0 %v222
    %1733 = vmatmul.mubr.f32.gmra.mrb[0].mxu0 %v69
    %v1734 = vpop.f32.mrb[0].mxu0
    %v1735 = vadd.f32 %v149, %v1734
    %v1736 = vpop.f32.mrb[0].mxu0
    %1737 = vmatprep.mubr.f32.mxu0 %v225
    %1738 = vmatmul.mubr.f32.gmra.mrb[0].mxu0 %v71
    %v1739 = vpop.f32.mrb[0].mxu0
    %v1740 = vadd.f32 %v154, %v1739
    %v1741 = vpop.f32.mrb[0].mxu0
    %1742 = vmatprep.mubr.f32.mxu0 %v228
    %1743 = vmatmul.mubr.f32.gmra.mrb[0].mxu0 %v73
    %v1744 = vpop.f32.mrb[0].mxu0
    %v1745 = vadd.f32 %v159, %v1744
    %v1746 = vpop.f32.mrb[0].mxu0
    %1747 = vmatprep.mubr.f32.mxu0 %v231
    %1748 = vmatmul.mubr.f32.gmra.mrb[0].mxu0 %v75
    %v1749 = vpop.f32.mrb[0].mxu0
    %v1750 = vadd.f32 %v164, %v1749
    %v1751 = vpop.f32.mrb[0].mxu0
    %1752 = vmatprep.mubr.f32.mxu0 %v234
    %1753 = vmatmul.mubr.f32.gmra.mrb[0].mxu0 %v77
    %v1754 = vpop.f32.mrb[0].mxu0
    %v1755 = vadd.f32 %v169, %v1754
    %v1756 = vpop.f32.mrb[0].mxu0
    %1757 = vmatprep.mubr.f32.mxu0 %v237
    %1758 = vmatmul.mubr.f32.gmra.mrb[0].mxu0 %v79
    %v1759 = vpop.f32.mrb[0].mxu0
    %v1760 = vadd.f32 %v174, %v1759
    %v1761 = vpop.f32.mrb[0].mxu0
    %1762 = vmatprep.mubr.f32.mxu0 %v240
    %1763 = vmatmul.mubr.f32.gmra.mrb[0].mxu0 %v81
    %v1764 = vpop.f32.mrb[0].mxu0
    %v1765 = vadd.f32 %v179, %v1764
    %v1766 = vpop.f32.mrb[0].mxu0
    %1767 = vmatprep.mubr.f32.mxu0 %v243
    %1768 = vmatmul.mubr.f32.gmra.mrb[0].mxu0 %v83
    %v1769 = vpop.f32.mrb[0].mxu0
    %v1770 = vadd.f32 %v184, %v1769
    %v1771 = vpop.f32.mrb[0].mxu0
    %1772 = vmatprep.mubr.f32.mxu0 %v246
    %1773 = vmatmul.mubr.f32.gmra.mrb[0].mxu0 %v85
    %v1774 = vpop.f32.mrb[0].mxu0
    %v1775 = vadd.f32 %v189, %v1774
    %v1776 = vpop.f32.mrb[0].mxu0
    %1777 = vmatprep.mubr.f32.mxu0 %v249
    %1778 = vmatmul.mubr.f32.gmra.mrb[0].mxu0 %v87
    %v1779 = vpop.f32.mrb[0].mxu0
    %v1780 = vadd.f32 %v194, %v1779
    %v1781 = vpop.f32.mrb[0].mxu0
    %1782 = vmatprep.mubr.f32.mxu0 %v252
    %1783 = vmatmul.mubr.f32.gmra.mrb[0].mxu0 %v89
    %v1784 = vpop.f32.mrb[0].mxu0
    %v1785 = vadd.f32 %v199, %v1784
    %v1786 = vpop.f32.mrb[0].mxu0
    %1787 = vmatprep.mubr.f32.mxu0 %v255
    %1788 = vmatmul.mubr.f32.gmra.mrb[0].mxu0 %v91
    %v1789 = vpop.f32.mrb[0].mxu0
    %v1790 = vadd.f32 %v204, %v1789
    %v1791 = vpop.f32.mrb[0].mxu0
    %1792 = vmatprep.mubr.f32.mxu0 %v258
    %1793 = vmatmul.mubr.f32.gmra.mrb[0].mxu0 %v93
    %v1794 = vpop.f32.mrb[0].mxu0
    %v1795 = vadd.f32 %v209, %v1794
    %v1796 = vpop.f32.mrb[0].mxu0
    %1797 = vdwg.mxu0
    %v1798 = vmax.f32 %v1720, 0.0
    %v1799 = vmax.f32 %v1725, 0.0
    %v1800 = vmax.f32 %v1730, 0.0
    %v1801 = vmax.f32 %v1735, 0.0
    %v1802 = vmax.f32 %v1740, 0.0
    %v1803 = vmax.f32 %v1745, 0.0
    %v1804 = vmax.f32 %v1750, 0.0
    %v1805 = vmax.f32 %v1755, 0.0
    %v1806 = vmax.f32 %v1760, 0.0
    %v1807 = vmax.f32 %v1765, 0.0
    %v1808 = vmax.f32 %v1770, 0.0
    %v1809 = vmax.f32 %v1775, 0.0
    %v1810 = vmax.f32 %v1780, 0.0
    %v1811 = vmax.f32 %v1785, 0.0
    %v1812 = vmax.f32 %v1790, 0.0
    %v1813 = vmax.f32 %v1795, 0.0
    %s1814 = scalar_lea.vmem [#allocation2], 912
    %1815 = vst [vmem:[%s1814] sm:$0xff] %v1798
    %1816 = vst [vmem:[%s1814 + $0x8] sm:$0xff] %v1799
    %1817 = vst [vmem:[%s1814 + $0x10] sm:$0xff] %v1800
    %1818 = vst [vmem:[%s1814 + $0x18] sm:$0xff] %v1801
    %1819 = vst [vmem:[%s1814 + $0x20] sm:$0xff] %v1802
    %1820 = vst [vmem:[%s1814 + $0x28] sm:$0xff] %v1803
    %1821 = vst [vmem:[%s1814 + $0x30] sm:$0xff] %v1804
    %1822 = vst [vmem:[%s1814 + $0x38] sm:$0xff] %v1805
    %1823 = vst [vmem:[%s1814 + $0x40] sm:$0xff] %v1806
    %1824 = vst [vmem:[%s1814 + $0x48] sm:$0xff] %v1807
    %1825 = vst [vmem:[%s1814 + $0x50] sm:$0xff] %v1808
    %1826 = vst [vmem:[%s1814 + $0x58] sm:$0xff] %v1809
    %1827 = vst [vmem:[%s1814 + $0x60] sm:$0xff] %v1810
    %1828 = vst [vmem:[%s1814 + $0x68] sm:$0xff] %v1811
    %1829 = vst [vmem:[%s1814 + $0x70] sm:$0xff] %v1812
    %1830 = vst [vmem:[%s1814 + $0x78] sm:$0xff] %v1813
    %s1831 = scalar_lea.vmem %s0, 928
    %v1832 = vld [vmem:[%s1831] sm:$0xff]
    %v1833 = vld [vmem:[%s1831 + $0x8] sm:$0xff]
    %v1834 = vld [vmem:[%s1831 + $0x10] sm:$0xff]
    %v1835 = vld [vmem:[%s1831 + $0x18] sm:$0xff]
    %v1836 = vld [vmem:[%s1831 + $0x20] sm:$0xff]
    %v1837 = vld [vmem:[%s1831 + $0x28] sm:$0xff]
    %v1838 = vld [vmem:[%s1831 + $0x30] sm:$0xff]
    %v1839 = vld [vmem:[%s1831 + $0x38] sm:$0xff]
    %v1840 = vld [vmem:[%s1831 + $0x40] sm:$0xff]
    %v1841 = vld [vmem:[%s1831 + $0x48] sm:$0xff]
    %v1842 = vld [vmem:[%s1831 + $0x50] sm:$0xff]
    %v1843 = vld [vmem:[%s1831 + $0x58] sm:$0xff]
    %v1844 = vld [vmem:[%s1831 + $0x60] sm:$0xff]
    %v1845 = vld [vmem:[%s1831 + $0x68] sm:$0xff]
    %v1846 = vld [vmem:[%s1831 + $0x70] sm:$0xff]
    %v1847 = vld [vmem:[%s1831 + $0x78] sm:$0xff]
    %v1848 = vld [vmem:[%s1831 + $0x80] sm:$0xff]
    %v1849 = vld [vmem:[%s1831 + $0x88] sm:$0xff]
    %v1850 = vld [vmem:[%s1831 + $0x90] sm:$0xff]
    %v1851 = vld [vmem:[%s1831 + $0x98] sm:$0xff]
    %1852 = vmatprep.subr.mxu0 0.0
    %1853 = vmatpush1.msra.mxu0 %v1832
    %1854 = vmatprep.subr.mxu0 0.0
    %1855 = vmatpush1.msra.mxu0 %v1833
    %1856 = vmatprep.subr.mxu0 0.0
    %1857 = vmatpush1.msra.mxu0 %v1834
    %1858 = vmatprep.subr.mxu0 0.0
    %1859 = vmatpush1.msra.mxu0 %v1835
    %1860 = vmatprep.subr.mxu0 0.0
    %1861 = vmatpush1.msra.mxu0 %v1836
    %1862 = vmatprep.subr.mxu0 0.0
    %1863 = vmatpush1.msra.mxu0 %v1837
    %1864 = vmatprep.subr.mxu0 0.0
    %1865 = vmatpush1.msra.mxu0 %v1838
    %1866 = vmatprep.subr.mxu0 0.0
    %1867 = vmatpush1.msra.mxu0 %v1839
    %1868 = vmatprep.subr.mxu0 0.0
    %1869 = vmatpush1.msra.mxu0 %v1840
    %1870 = vmatprep.subr.mxu0 0.0
    %1871 = vmatpush1.msra.mxu0 %v1841
    %1872 = vmatprep.subr.mxu0 0.0
    %1873 = vmatpush1.msra.mxu0 %v1842
    %1874 = vmatprep.subr.mxu0 0.0
    %1875 = vmatpush1.msra.mxu0 %v1843
    %1876 = vmatprep.subr.mxu0 0.0
    %1877 = vmatpush1.msra.mxu0 %v1844
    %1878 = vmatprep.subr.mxu0 0.0
    %1879 = vmatpush1.msra.mxu0 %v1845
    %1880 = vmatprep.subr.mxu0 0.0
    %1881 = vmatpush1.msra.mxu0 %v1846
    %1882 = vmatprep.subr.mxu0 0.0
    %1883 = vmatpush1.msra.mxu0 %v1847
    %1884 = vmatprep.subr.mxu0 0.0
    %1885 = vmatpush1.msra.mxu0 %v1848
    %1886 = vmatprep.subr.mxu0 0.0
    %1887 = vmatpush1.msra.mxu0 %v1849
    %1888 = vmatprep.subr.mxu0 0.0
    %1889 = vmatpush1.msra.mxu0 %v1850
    %1890 = vmatprep.subr.mxu0 0.0
    %1891 = vmatpush1.msra.mxu0 %v1851
    %1892 = vmatprep.subr.mxu0 0.0
    %1893 = vmatpush1.msra.mxu0 0.0
    %1894 = vmatprep.subr.mxu0 0.0
    %1895 = vmatpush1.msra.mxu0 0.0
    %1896 = vmatprep.subr.mxu0 0.0
    %1897 = vmatpush1.msra.mxu0 0.0
    %1898 = vmatprep.subr.mxu0 0.0
    %1899 = vmatpush1.msra.mxu0 0.0
    %1900 = vmatprep.subr.mxu0 0.0
    %1901 = vmatpush1.msra.mxu0 0.0
    %1902 = vmatprep.subr.mxu0 0.0
    %1903 = vmatpush1.msra.mxu0 0.0
    %1904 = vmatprep.subr.mxu0 0.0
    %1905 = vmatpush1.msra.mxu0 0.0
    %1906 = vmatprep.subr.mxu0 0.0
    %1907 = vmatpush1.msra.mxu0 0.0
    %1908 = vmatprep.subr.mxu0 0.0
    %1909 = vmatpush1.msra.mxu0 0.0
    %1910 = vmatprep.subr.mxu0 0.0
    %1911 = vmatpush1.msra.mxu0 0.0
    %1912 = vmatprep.subr.mxu0 0.0
    %1913 = vmatpush1.msra.mxu0 0.0
    %1914 = vmatprep.subr.mxu0 0.0
    %1915 = vmatpush1.msra.mxu0 0.0
    %1916 = vmatprep.mubr.f32.mxu0 %v213
    %1917 = vmatmul.mubr.f32.gmra.mrb[0].mxu0 %v63
    %v1918 = vpop.f32.mrb[0].mxu0
    %v1919 = vadd.f32 %v134, %v1918
    %v1920 = vpop.f32.mrb[0].mxu0
    %1921 = vmatprep.mubr.f32.mxu0 %v216
    %1922 = vmatmul.mubr.f32.gmra.mrb[0].mxu0 %v65
    %v1923 = vpop.f32.mrb[0].mxu0
    %v1924 = vadd.f32 %v139, %v1923
    %v1925 = vpop.f32.mrb[0].mxu0
    %1926 = vmatprep.mubr.f32.mxu0 %v219
    %1927 = vmatmul.mubr.f32.gmra.mrb[0].mxu0 %v67
    %v1928 = vpop.f32.mrb[0].mxu0
    %v1929 = vadd.f32 %v144, %v1928
    %v1930 = vpop.f32.mrb[0].mxu0
    %1931 = vmatprep.mubr.f32.mxu0 %v222
    %1932 = vmatmul.mubr.f32.gmra.mrb[0].mxu0 %v69
    %v1933 = vpop.f32.mrb[0].mxu0
    %v1934 = vadd.f32 %v149, %v1933
    %v1935 = vpop.f32.mrb[0].mxu0
    %1936 = vmatprep.mubr.f32.mxu0 %v225
    %1937 = vmatmul.mubr.f32.gmra.mrb[0].mxu0 %v71
    %v1938 = vpop.f32.mrb[0].mxu0
    %v1939 = vadd.f32 %v154, %v1938
    %v1940 = vpop.f32.mrb[0].mxu0
    %1941 = vmatprep.mubr.f32.mxu0 %v228
    %1942 = vmatmul.mubr.f32.gmra.mrb[0].mxu0 %v73
    %v1943 = vpop.f32.mrb[0].mxu0
    %v1944 = vadd.f32 %v159, %v1943
    %v1945 = vpop.f32.mrb[0].mxu0
    %1946 = vmatprep.mubr.f32.mxu0 %v231
    %1947 = vmatmul.mubr.f32.gmra.mrb[0].mxu0 %v75
    %v1948 = vpop.f32.mrb[0].mxu0
    %v1949 = vadd.f32 %v164, %v1948
    %v1950 = vpop.f32.mrb[0].mxu0
    %1951 = vmatprep.mubr.f32.mxu0 %v234
    %1952 = vmatmul.mubr.f32.gmra.mrb[0].mxu0 %v77
    %v1953 = vpop.f32.mrb[0].mxu0
    %v1954 = vadd.f32 %v169, %v1953
    %v1955 = vpop.f32.mrb[0].mxu0
    %1956 = vmatprep.mubr.f32.mxu0 %v237
    %1957 = vmatmul.mubr.f32.gmra.mrb[0].mxu0 %v79
    %v1958 = vpop.f32.mrb[0].mxu0
    %v1959 = vadd.f32 %v174, %v1958
    %v1960 = vpop.f32.mrb[0].mxu0
    %1961 = vmatprep.mubr.f32.mxu0 %v240
    %1962 = vmatmul.mubr.f32.gmra.mrb[0].mxu0 %v81
    %v1963 = vpop.f32.mrb[0].mxu0
    %v1964 = vadd.f32 %v179, %v1963
    %v1965 = vpop.f32.mrb[0].mxu0
    %1966 = vmatprep.mubr.f32.mxu0 %v243
    %1967 = vmatmul.mubr.f32.gmra.mrb[0].mxu0 %v83
    %v1968 = vpop.f32.mrb[0].mxu0
    %v1969 = vadd.f32 %v184, %v1968
    %v1970 = vpop.f32.mrb[0].mxu0
    %1971 = vmatprep.mubr.f32.mxu0 %v246
    %1972 = vmatmul.mubr.f32.gmra.mrb[0].mxu0 %v85
    %v1973 = vpop.f32.mrb[0].mxu0
    %v1974 = vadd.f32 %v189, %v1973
    %v1975 = vpop.f32.mrb[0].mxu0
    %1976 = vmatprep.mubr.f32.mxu0 %v249
    %1977 = vmatmul.mubr.f32.gmra.mrb[0].mxu0 %v87
    %v1978 = vpop.f32.mrb[0].mxu0
    %v1979 = vadd.f32 %v194, %v1978
    %v1980 = vpop.f32.mrb[0].mxu0
    %1981 = vmatprep.mubr.f32.mxu0 %v252
    %1982 = vmatmul.mubr.f32.gmra.mrb[0].mxu0 %v89
    %v1983 = vpop.f32.mrb[0].mxu0
    %v1984 = vadd.f32 %v199, %v1983
    %v1985 = vpop.f32.mrb[0].mxu0
    %1986 = vmatprep.mubr.f32.mxu0 %v255
    %1987 = vmatmul.mubr.f32.gmra.mrb[0].mxu0 %v91
    %v1988 = vpop.f32.mrb[0].mxu0
    %v1989 = vadd.f32 %v204, %v1988
    %v1990 = vpop.f32.mrb[0].mxu0
    %1991 = vmatprep.mubr.f32.mxu0 %v258
    %1992 = vmatmul.mubr.f32.gmra.mrb[0].mxu0 %v93
    %v1993 = vpop.f32.mrb[0].mxu0
    %v1994 = vadd.f32 %v209, %v1993
    %v1995 = vpop.f32.mrb[0].mxu0
    %1996 = vdwg.mxu0
    %v1997 = vmax.f32 %v1919, 0.0
    %v1998 = vmax.f32 %v1924, 0.0
    %v1999 = vmax.f32 %v1929, 0.0
    %v2000 = vmax.f32 %v1934, 0.0
    %v2001 = vmax.f32 %v1939, 0.0
    %v2002 = vmax.f32 %v1944, 0.0
    %v2003 = vmax.f32 %v1949, 0.0
    %v2004 = vmax.f32 %v1954, 0.0
    %v2005 = vmax.f32 %v1959, 0.0
    %v2006 = vmax.f32 %v1964, 0.0
    %v2007 = vmax.f32 %v1969, 0.0
    %v2008 = vmax.f32 %v1974, 0.0
    %v2009 = vmax.f32 %v1979, 0.0
    %v2010 = vmax.f32 %v1984, 0.0
    %v2011 = vmax.f32 %v1989, 0.0
    %v2012 = vmax.f32 %v1994, 0.0
    %s2013 = scalar_lea.vmem [#allocation2], 944
    %2014 = vst [vmem:[%s2013] sm:$0xff] %v1997
    %2015 = vst [vmem:[%s2013 + $0x8] sm:$0xff] %v1998
    %2016 = vst [vmem:[%s2013 + $0x10] sm:$0xff] %v1999
    %2017 = vst [vmem:[%s2013 + $0x18] sm:$0xff] %v2000
    %2018 = vst [vmem:[%s2013 + $0x20] sm:$0xff] %v2001
    %2019 = vst [vmem:[%s2013 + $0x28] sm:$0xff] %v2002
    %2020 = vst [vmem:[%s2013 + $0x30] sm:$0xff] %v2003
    %2021 = vst [vmem:[%s2013 + $0x38] sm:$0xff] %v2004
    %2022 = vst [vmem:[%s2013 + $0x40] sm:$0xff] %v2005
    %2023 = vst [vmem:[%s2013 + $0x48] sm:$0xff] %v2006
    %2024 = vst [vmem:[%s2013 + $0x50] sm:$0xff] %v2007
    %2025 = vst [vmem:[%s2013 + $0x58] sm:$0xff] %v2008
    %2026 = vst [vmem:[%s2013 + $0x60] sm:$0xff] %v2009
    %2027 = vst [vmem:[%s2013 + $0x68] sm:$0xff] %v2010
    %2028 = vst [vmem:[%s2013 + $0x70] sm:$0xff] %v2011
    %2029 = vst [vmem:[%s2013 + $0x78] sm:$0xff] %v2012
    %2030 = vst [vmem:[#allocation2] sm:$0xff] 0.0
    %2031 = vst [vmem:[#allocation2 + $0x8] sm:$0xff] 0.0
    %s2032 = scalar_lea.vmem [#allocation2], 1072
    %2033 = vst [vmem:[%s2032] sm:$0xff] 0.0
    %2034 = vst [vmem:[%s2032 + $0x8] sm:$0xff] 0.0
    %v2035 = vld [vmem:[%s3] sm:$0xff]
    %v2036 = vld [vmem:[%s3 + $0x8] sm:$0xff]
    %v2037 = vld [vmem:[%s3 + $0x10] sm:$0xff]
    %v2038 = vld [vmem:[%s3 + $0x18] sm:$0xff]
    %v2039 = vld [vmem:[%s3 + $0x20] sm:$0xff]
    %v2040 = vld [vmem:[%s3 + $0x28] sm:$0xff]
    %v2041 = vld [vmem:[%s3 + $0x30] sm:$0xff]
    %v2042 = vld [vmem:[%s3 + $0x38] sm:$0xff]
    %v2043 = vld [vmem:[%s3 + $0x40] sm:$0xff]
    %v2044 = vld [vmem:[%s3 + $0x48] sm:$0xff]
    %v2045 = vld [vmem:[%s3 + $0x50] sm:$0xff]
    %v2046 = vld [vmem:[%s3 + $0x58] sm:$0xff]
    %v2047 = vld [vmem:[%s3 + $0x60] sm:$0xff]
    %v2048 = vld [vmem:[%s3 + $0x68] sm:$0xff]
    %v2049 = vld [vmem:[%s3 + $0x70] sm:$0xff]
    %v2050 = vld [vmem:[%s3 + $0x78] sm:$0xff]
    %v2051 = vld [vmem:[%s3 + $0x80] sm:$0xff]
    %v2052 = vld [vmem:[%s3 + $0x88] sm:$0xff]
    %v2053 = vld [vmem:[%s3 + $0x90] sm:$0xff]
    %v2054 = vld [vmem:[%s3 + $0x98] sm:$0xff]
    %v2055 = vld [vmem:[%s3 + $0xa0] sm:$0xff]
    %v2056 = vld [vmem:[%s3 + $0xa8] sm:$0xff]
    %v2057 = vld [vmem:[%s3 + $0xb0] sm:$0xff]
    %v2058 = vld [vmem:[%s3 + $0xb8] sm:$0xff]
    %v2059 = vld [vmem:[%s3 + $0xc0] sm:$0xff]
    %v2060 = vld [vmem:[%s3 + $0xc8] sm:$0xff]
    %v2061 = vld [vmem:[%s3 + $0xd0] sm:$0xff]
    %v2062 = vld [vmem:[%s3 + $0xd8] sm:$0xff]
    %v2063 = vld [vmem:[%s3 + $0xe0] sm:$0xff]
    %v2064 = vld [vmem:[%s3 + $0xe8] sm:$0xff]
    %v2065 = vld [vmem:[%s3 + $0xf0] sm:$0xff]
    %v2066 = vld [vmem:[%s3 + $0xf8] sm:$0xff]
    %v2067 = vld [vmem:[%s4] sm:$0xff]
    %v2068 = vld [vmem:[%s4 + $0x8] sm:$0xff]
    %v2069 = vld [vmem:[%s4 + $0x10] sm:$0xff]
    %v2070 = vld [vmem:[%s4 + $0x18] sm:$0xff]
    %v2071 = vld [vmem:[%s4 + $0x20] sm:$0xff]
    %v2072 = vld [vmem:[%s4 + $0x28] sm:$0xff]
    %v2073 = vld [vmem:[%s4 + $0x30] sm:$0xff]
    %v2074 = vld [vmem:[%s4 + $0x38] sm:$0xff]
    %v2075 = vld [vmem:[%s4 + $0x40] sm:$0xff]
    %v2076 = vld [vmem:[%s4 + $0x48] sm:$0xff]
    %v2077 = vld [vmem:[%s4 + $0x50] sm:$0xff]
    %v2078 = vld [vmem:[%s4 + $0x58] sm:$0xff]
    %v2079 = vld [vmem:[%s4 + $0x60] sm:$0xff]
    %v2080 = vld [vmem:[%s4 + $0x68] sm:$0xff]
    %v2081 = vld [vmem:[%s4 + $0x70] sm:$0xff]
    %v2082 = vld [vmem:[%s4 + $0x78] sm:$0xff]
    %v2083 = vld [vmem:[#allocation2] sm:$0xff]
    %v2084 = vld [vmem:[#allocation2 + $0x8] sm:$0xff]
    %v2085 = vld [vmem:[#allocation2 + $0x10] sm:$0xff]
    %v2086 = vld [vmem:[#allocation2 + $0x18] sm:$0xff]
    %v2087 = vld [vmem:[#allocation2 + $0x20] sm:$0xff]
    %v2088 = vld [vmem:[#allocation2 + $0x28] sm:$0xff]
    %v2089 = vld [vmem:[#allocation2 + $0x30] sm:$0xff]
    %v2090 = vld [vmem:[#allocation2 + $0x38] sm:$0xff]
    %v2091 = vld [vmem:[#allocation2 + $0x40] sm:$0xff]
    %v2092 = vld [vmem:[#allocation2 + $0x48] sm:$0xff]
    %v2093 = vld [vmem:[#allocation2 + $0x50] sm:$0xff]
    %v2094 = vld [vmem:[#allocation2 + $0x58] sm:$0xff]
    %v2095 = vld [vmem:[#allocation2 + $0x60] sm:$0xff]
    %v2096 = vld [vmem:[#allocation2 + $0x68] sm:$0xff]
    %v2097 = vld [vmem:[#allocation2 + $0x70] sm:$0xff]
    %v2098 = vld [vmem:[#allocation2 + $0x78] sm:$0xff]
    %v2099 = vld [vmem:[#allocation2 + $0x80] sm:$0xff]
    %v2100 = vld [vmem:[#allocation2 + $0x88] sm:$0xff]
    %v2101 = vld [vmem:[#allocation2 + $0x90] sm:$0xff]
    %v2102 = vld [vmem:[#allocation2 + $0x98] sm:$0xff]
    %2104 = vset.pattern.permute.xlu0 0
    %2105 = vperm.xlu0 %2104, %v2067
    %v2106 = vpop.permute.xlu0 %2105
    %2109 = vset.pattern.permute.xlu0 0
    %2110 = vperm.xlu0 %2109, %v2068
    %v2111 = vpop.permute.xlu0 %2110
    %2114 = vset.pattern.permute.xlu0 0
    %2115 = vperm.xlu0 %2114, %v2069
    %v2116 = vpop.permute.xlu0 %2115
    %2119 = vset.pattern.permute.xlu0 0
    %2120 = vperm.xlu0 %2119, %v2070
    %v2121 = vpop.permute.xlu0 %2120
    %2124 = vset.pattern.permute.xlu0 0
    %2125 = vperm.xlu0 %2124, %v2071
    %v2126 = vpop.permute.xlu0 %2125
    %2129 = vset.pattern.permute.xlu0 0
    %2130 = vperm.xlu0 %2129, %v2072
    %v2131 = vpop.permute.xlu0 %2130
    %2134 = vset.pattern.permute.xlu0 0
    %2135 = vperm.xlu0 %2134, %v2073
    %v2136 = vpop.permute.xlu0 %2135
    %2139 = vset.pattern.permute.xlu0 0
    %2140 = vperm.xlu0 %2139, %v2074
    %v2141 = vpop.permute.xlu0 %2140
    %2144 = vset.pattern.permute.xlu0 0
    %2145 = vperm.xlu0 %2144, %v2075
    %v2146 = vpop.permute.xlu0 %2145
    %2149 = vset.pattern.permute.xlu0 0
    %2150 = vperm.xlu0 %2149, %v2076
    %v2151 = vpop.permute.xlu0 %2150
    %2154 = vset.pattern.permute.xlu0 0
    %2155 = vperm.xlu0 %2154, %v2077
    %v2156 = vpop.permute.xlu0 %2155
    %2159 = vset.pattern.permute.xlu0 0
    %2160 = vperm.xlu0 %2159, %v2078
    %v2161 = vpop.permute.xlu0 %2160
    %2164 = vset.pattern.permute.xlu0 0
    %2165 = vperm.xlu0 %2164, %v2079
    %v2166 = vpop.permute.xlu0 %2165
    %2169 = vset.pattern.permute.xlu0 0
    %2170 = vperm.xlu0 %2169, %v2080
    %v2171 = vpop.permute.xlu0 %2170
    %2174 = vset.pattern.permute.xlu0 0
    %2175 = vperm.xlu0 %2174, %v2081
    %v2176 = vpop.permute.xlu0 %2175
    %2179 = vset.pattern.permute.xlu0 0
    %2180 = vperm.xlu0 %2179, %v2082
    %v2181 = vpop.permute.xlu0 %2180
    %v2184 = vsel %vm211, %v2036, 0
    %v2187 = vsel %vm211, %v2038, 0
    %v2190 = vsel %vm211, %v2040, 0
    %v2193 = vsel %vm211, %v2042, 0
    %v2196 = vsel %vm211, %v2044, 0
    %v2199 = vsel %vm211, %v2046, 0
    %v2202 = vsel %vm211, %v2048, 0
    %v2205 = vsel %vm211, %v2050, 0
    %v2208 = vsel %vm211, %v2052, 0
    %v2211 = vsel %vm211, %v2054, 0
    %v2214 = vsel %vm211, %v2056, 0
    %v2217 = vsel %vm211, %v2058, 0
    %v2220 = vsel %vm211, %v2060, 0
    %v2223 = vsel %vm211, %v2062, 0
    %v2226 = vsel %vm211, %v2064, 0
    %v2229 = vsel %vm211, %v2066, 0
    %2231 = vmatprep.subr.mxu0 0.0
    %2232 = vmatpush1.msra.mxu0 %v2083
    %2233 = vmatprep.subr.mxu0 0.0
    %2234 = vmatpush1.msra.mxu0 %v2084
    %2235 = vmatprep.subr.mxu0 0.0
    %2236 = vmatpush1.msra.mxu0 %v2085
    %2237 = vmatprep.subr.mxu0 0.0
    %2238 = vmatpush1.msra.mxu0 %v2086
    %2239 = vmatprep.subr.mxu0 0.0
    %2240 = vmatpush1.msra.mxu0 %v2087
    %2241 = vmatprep.subr.mxu0 0.0
    %2242 = vmatpush1.msra.mxu0 %v2088
    %2243 = vmatprep.subr.mxu0 0.0
    %2244 = vmatpush1.msra.mxu0 %v2089
    %2245 = vmatprep.subr.mxu0 0.0
    %2246 = vmatpush1.msra.mxu0 %v2090
    %2247 = vmatprep.subr.mxu0 0.0
    %2248 = vmatpush1.msra.mxu0 %v2091
    %2249 = vmatprep.subr.mxu0 0.0
    %2250 = vmatpush1.msra.mxu0 %v2092
    %2251 = vmatprep.subr.mxu0 0.0
    %2252 = vmatpush1.msra.mxu0 %v2093
    %2253 = vmatprep.subr.mxu0 0.0
    %2254 = vmatpush1.msra.mxu0 %v2094
    %2255 = vmatprep.subr.mxu0 0.0
    %2256 = vmatpush1.msra.mxu0 %v2095
    %2257 = vmatprep.subr.mxu0 0.0
    %2258 = vmatpush1.msra.mxu0 %v2096
    %2259 = vmatprep.subr.mxu0 0.0
    %2260 = vmatpush1.msra.mxu0 %v2097
    %2261 = vmatprep.subr.mxu0 0.0
    %2262 = vmatpush1.msra.mxu0 %v2098
    %2263 = vmatprep.subr.mxu0 0.0
    %2264 = vmatpush1.msra.mxu0 %v2099
    %2265 = vmatprep.subr.mxu0 0.0
    %2266 = vmatpush1.msra.mxu0 %v2100
    %2267 = vmatprep.subr.mxu0 0.0
    %2268 = vmatpush1.msra.mxu0 %v2101
    %2269 = vmatprep.subr.mxu0 0.0
    %2270 = vmatpush1.msra.mxu0 %v2102
    %2271 = vmatprep.subr.mxu0 0.0
    %2272 = vmatpush1.msra.mxu0 0.0
    %2273 = vmatprep.subr.mxu0 0.0
    %2274 = vmatpush1.msra.mxu0 0.0
    %2275 = vmatprep.subr.mxu0 0.0
    %2276 = vmatpush1.msra.mxu0 0.0
    %2277 = vmatprep.subr.mxu0 0.0
    %2278 = vmatpush1.msra.mxu0 0.0
    %2279 = vmatprep.subr.mxu0 0.0
    %2280 = vmatpush1.msra.mxu0 0.0
    %2281 = vmatprep.subr.mxu0 0.0
    %2282 = vmatpush1.msra.mxu0 0.0
    %2283 = vmatprep.subr.mxu0 0.0
    %2284 = vmatpush1.msra.mxu0 0.0
    %2285 = vmatprep.subr.mxu0 0.0
    %2286 = vmatpush1.msra.mxu0 0.0
    %2287 = vmatprep.subr.mxu0 0.0
    %2288 = vmatpush1.msra.mxu0 0.0
    %2289 = vmatprep.subr.mxu0 0.0
    %2290 = vmatpush1.msra.mxu0 0.0
    %2291 = vmatprep.subr.mxu0 0.0
    %2292 = vmatpush1.msra.mxu0 0.0
    %2293 = vmatprep.subr.mxu0 0.0
    %2294 = vmatpush1.msra.mxu0 0.0
    %2295 = vmatprep.mubr.f32.mxu0 %v2184
    %2296 = vmatmul.mubr.f32.gmra.mrb[0].mxu0 %v2035
    %v2297 = vpop.f32.mrb[0].mxu0
    %v2298 = vadd.f32 %v2106, %v2297
    %v2299 = vpop.f32.mrb[0].mxu0
    %2300 = vmatprep.mubr.f32.mxu0 %v2187
    %2301 = vmatmul.mubr.f32.gmra.mrb[0].mxu0 %v2037
    %v2302 = vpop.f32.mrb[0].mxu0
    %v2303 = vadd.f32 %v2111, %v2302
    %v2304 = vpop.f32.mrb[0].mxu0
    %2305 = vmatprep.mubr.f32.mxu0 %v2190
    %2306 = vmatmul.mubr.f32.gmra.mrb[0].mxu0 %v2039
    %v2307 = vpop.f32.mrb[0].mxu0
    %v2308 = vadd.f32 %v2116, %v2307
    %v2309 = vpop.f32.mrb[0].mxu0
    %2310 = vmatprep.mubr.f32.mxu0 %v2193
    %2311 = vmatmul.mubr.f32.gmra.mrb[0].mxu0 %v2041
    %v2312 = vpop.f32.mrb[0].mxu0
    %v2313 = vadd.f32 %v2121, %v2312
    %v2314 = vpop.f32.mrb[0].mxu0
    %2315 = vmatprep.mubr.f32.mxu0 %v2196
    %2316 = vmatmul.mubr.f32.gmra.mrb[0].mxu0 %v2043
    %v2317 = vpop.f32.mrb[0].mxu0
    %v2318 = vadd.f32 %v2126, %v2317
    %v2319 = vpop.f32.mrb[0].mxu0
    %2320 = vmatprep.mubr.f32.mxu0 %v2199
    %2321 = vmatmul.mubr.f32.gmra.mrb[0].mxu0 %v2045
    %v2322 = vpop.f32.mrb[0].mxu0
    %v2323 = vadd.f32 %v2131, %v2322
    %v2324 = vpop.f32.mrb[0].mxu0
    %2325 = vmatprep.mubr.f32.mxu0 %v2202
    %2326 = vmatmul.mubr.f32.gmra.mrb[0].mxu0 %v2047
    %v2327 = vpop.f32.mrb[0].mxu0
    %v2328 = vadd.f32 %v2136, %v2327
    %v2329 = vpop.f32.mrb[0].mxu0
    %2330 = vmatprep.mubr.f32.mxu0 %v2205
    %2331 = vmatmul.mubr.f32.gmra.mrb[0].mxu0 %v2049
    %v2332 = vpop.f32.mrb[0].mxu0
    %v2333 = vadd.f32 %v2141, %v2332
    %v2334 = vpop.f32.mrb[0].mxu0
    %2335 = vmatprep.mubr.f32.mxu0 %v2208
    %2336 = vmatmul.mubr.f32.gmra.mrb[0].mxu0 %v2051
    %v2337 = vpop.f32.mrb[0].mxu0
    %v2338 = vadd.f32 %v2146, %v2337
    %v2339 = vpop.f32.mrb[0].mxu0
    %2340 = vmatprep.mubr.f32.mxu0 %v2211
    %2341 = vmatmul.mubr.f32.gmra.mrb[0].mxu0 %v2053
    %v2342 = vpop.f32.mrb[0].mxu0
    %v2343 = vadd.f32 %v2151, %v2342
    %v2344 = vpop.f32.mrb[0].mxu0
    %2345 = vmatprep.mubr.f32.mxu0 %v2214
    %2346 = vmatmul.mubr.f32.gmra.mrb[0].mxu0 %v2055
    %v2347 = vpop.f32.mrb[0].mxu0
    %v2348 = vadd.f32 %v2156, %v2347
    %v2349 = vpop.f32.mrb[0].mxu0
    %2350 = vmatprep.mubr.f32.mxu0 %v2217
    %2351 = vmatmul.mubr.f32.gmra.mrb[0].mxu0 %v2057
    %v2352 = vpop.f32.mrb[0].mxu0
    %v2353 = vadd.f32 %v2161, %v2352
    %v2354 = vpop.f32.mrb[0].mxu0
    %2355 = vmatprep.mubr.f32.mxu0 %v2220
    %2356 = vmatmul.mubr.f32.gmra.mrb[0].mxu0 %v2059
    %v2357 = vpop.f32.mrb[0].mxu0
    %v2358 = vadd.f32 %v2166, %v2357
    %v2359 = vpop.f32.mrb[0].mxu0
    %2360 = vmatprep.mubr.f32.mxu0 %v2223
    %2361 = vmatmul.mubr.f32.gmra.mrb[0].mxu0 %v2061
    %v2362 = vpop.f32.mrb[0].mxu0
    %v2363 = vadd.f32 %v2171, %v2362
    %v2364 = vpop.f32.mrb[0].mxu0
    %2365 = vmatprep.mubr.f32.mxu0 %v2226
    %2366 = vmatmul.mubr.f32.gmra.mrb[0].mxu0 %v2063
    %v2367 = vpop.f32.mrb[0].mxu0
    %v2368 = vadd.f32 %v2176, %v2367
    %v2369 = vpop.f32.mrb[0].mxu0
    %2370 = vmatprep.mubr.f32.mxu0 %v2229
    %2371 = vmatmul.mubr.f32.gmra.mrb[0].mxu0 %v2065
    %v2372 = vpop.f32.mrb[0].mxu0
    %v2373 = vadd.f32 %v2181, %v2372
    %v2374 = vpop.f32.mrb[0].mxu0
    %2375 = vdwg.mxu0
    %v2376 = vmax.f32 %v2298, 0.0
    %v2377 = vmax.f32 %v2303, 0.0
    %v2378 = vmax.f32 %v2308, 0.0
    %v2379 = vmax.f32 %v2313, 0.0
    %v2380 = vmax.f32 %v2318, 0.0
    %v2381 = vmax.f32 %v2323, 0.0
    %v2382 = vmax.f32 %v2328, 0.0
    %v2383 = vmax.f32 %v2333, 0.0
    %v2384 = vmax.f32 %v2338, 0.0
    %v2385 = vmax.f32 %v2343, 0.0
    %v2386 = vmax.f32 %v2348, 0.0
    %v2387 = vmax.f32 %v2353, 0.0
    %v2388 = vmax.f32 %v2358, 0.0
    %v2389 = vmax.f32 %v2363, 0.0
    %v2390 = vmax.f32 %v2368, 0.0
    %v2391 = vmax.f32 %v2373, 0.0
    %s2392 = scalar_lea.vmem [#allocation3], 16
    %2393 = vst [vmem:[%s2392] sm:$0xff] %v2376
    %2394 = vst [vmem:[%s2392 + $0x8] sm:$0xff] %v2377
    %2395 = vst [vmem:[%s2392 + $0x10] sm:$0xff] %v2378
    %2396 = vst [vmem:[%s2392 + $0x18] sm:$0xff] %v2379
    %2397 = vst [vmem:[%s2392 + $0x20] sm:$0xff] %v2380
    %2398 = vst [vmem:[%s2392 + $0x28] sm:$0xff] %v2381
    %2399 = vst [vmem:[%s2392 + $0x30] sm:$0xff] %v2382
    %2400 = vst [vmem:[%s2392 + $0x38] sm:$0xff] %v2383
    %2401 = vst [vmem:[%s2392 + $0x40] sm:$0xff] %v2384
    %2402 = vst [vmem:[%s2392 + $0x48] sm:$0xff] %v2385
    %2403 = vst [vmem:[%s2392 + $0x50] sm:$0xff] %v2386
    %2404 = vst [vmem:[%s2392 + $0x58] sm:$0xff] %v2387
    %2405 = vst [vmem:[%s2392 + $0x60] sm:$0xff] %v2388
    %2406 = vst [vmem:[%s2392 + $0x68] sm:$0xff] %v2389
    %2407 = vst [vmem:[%s2392 + $0x70] sm:$0xff] %v2390
    %2408 = vst [vmem:[%s2392 + $0x78] sm:$0xff] %v2391
    %s2409 = scalar_lea.vmem [#allocation2], 128
    %v2410 = vld [vmem:[%s2409] sm:$0xff]
    %v2411 = vld [vmem:[%s2409 + $0x8] sm:$0xff]
    %v2412 = vld [vmem:[%s2409 + $0x10] sm:$0xff]
    %v2413 = vld [vmem:[%s2409 + $0x18] sm:$0xff]
    %v2414 = vld [vmem:[%s2409 + $0x20] sm:$0xff]
    %v2415 = vld [vmem:[%s2409 + $0x28] sm:$0xff]
    %v2416 = vld [vmem:[%s2409 + $0x30] sm:$0xff]
    %v2417 = vld [vmem:[%s2409 + $0x38] sm:$0xff]
    %v2418 = vld [vmem:[%s2409 + $0x40] sm:$0xff]
    %v2419 = vld [vmem:[%s2409 + $0x48] sm:$0xff]
    %v2420 = vld [vmem:[%s2409 + $0x50] sm:$0xff]
    %v2421 = vld [vmem:[%s2409 + $0x58] sm:$0xff]
    %v2422 = vld [vmem:[%s2409 + $0x60] sm:$0xff]
    %v2423 = vld [vmem:[%s2409 + $0x68] sm:$0xff]
    %v2424 = vld [vmem:[%s2409 + $0x70] sm:$0xff]
    %v2425 = vld [vmem:[%s2409 + $0x78] sm:$0xff]
    %v2426 = vld [vmem:[%s2409 + $0x80] sm:$0xff]
    %v2427 = vld [vmem:[%s2409 + $0x88] sm:$0xff]
    %v2428 = vld [vmem:[%s2409 + $0x90] sm:$0xff]
    %v2429 = vld [vmem:[%s2409 + $0x98] sm:$0xff]
    %2430 = vmatprep.subr.mxu0 0.0
    %2431 = vmatpush1.msra.mxu0 %v2410
    %2432 = vmatprep.subr.mxu0 0.0
    %2433 = vmatpush1.msra.mxu0 %v2411
    %2434 = vmatprep.subr.mxu0 0.0
    %2435 = vmatpush1.msra.mxu0 %v2412
    %2436 = vmatprep.subr.mxu0 0.0
    %2437 = vmatpush1.msra.mxu0 %v2413
    %2438 = vmatprep.subr.mxu0 0.0
    %2439 = vmatpush1.msra.mxu0 %v2414
    %2440 = vmatprep.subr.mxu0 0.0
    %2441 = vmatpush1.msra.mxu0 %v2415
    %2442 = vmatprep.subr.mxu0 0.0
    %2443 = vmatpush1.msra.mxu0 %v2416
    %2444 = vmatprep.subr.mxu0 0.0
    %2445 = vmatpush1.msra.mxu0 %v2417
    %2446 = vmatprep.subr.mxu0 0.0
    %2447 = vmatpush1.msra.mxu0 %v2418
    %2448 = vmatprep.subr.mxu0 0.0
    %2449 = vmatpush1.msra.mxu0 %v2419
    %2450 = vmatprep.subr.mxu0 0.0
    %2451 = vmatpush1.msra.mxu0 %v2420
    %2452 = vmatprep.subr.mxu0 0.0
    %2453 = vmatpush1.msra.mxu0 %v2421
    %2454 = vmatprep.subr.mxu0 0.0
    %2455 = vmatpush1.msra.mxu0 %v2422
    %2456 = vmatprep.subr.mxu0 0.0
    %2457 = vmatpush1.msra.mxu0 %v2423
    %2458 = vmatprep.subr.mxu0 0.0
    %2459 = vmatpush1.msra.mxu0 %v2424
    %2460 = vmatprep.subr.mxu0 0.0
    %2461 = vmatpush1.msra.mxu0 %v2425
    %2462 = vmatprep.subr.mxu0 0.0
    %2463 = vmatpush1.msra.mxu0 %v2426
    %2464 = vmatprep.subr.mxu0 0.0
    %2465 = vmatpush1.msra.mxu0 %v2427
    %2466 = vmatprep.subr.mxu0 0.0
    %2467 = vmatpush1.msra.mxu0 %v2428
    %2468 = vmatprep.subr.mxu0 0.0
    %2469 = vmatpush1.msra.mxu0 %v2429
    %2470 = vmatprep.subr.mxu0 0.0
    %2471 = vmatpush1.msra.mxu0 0.0
    %2472 = vmatprep.subr.mxu0 0.0
    %2473 = vmatpush1.msra.mxu0 0.0
    %2474 = vmatprep.subr.mxu0 0.0
    %2475 = vmatpush1.msra.mxu0 0.0
    %2476 = vmatprep.subr.mxu0 0.0
    %2477 = vmatpush1.msra.mxu0 0.0
    %2478 = vmatprep.subr.mxu0 0.0
    %2479 = vmatpush1.msra.mxu0 0.0
    %2480 = vmatprep.subr.mxu0 0.0
    %2481 = vmatpush1.msra.mxu0 0.0
    %2482 = vmatprep.subr.mxu0 0.0
    %2483 = vmatpush1.msra.mxu0 0.0
    %2484 = vmatprep.subr.mxu0 0.0
    %2485 = vmatpush1.msra.mxu0 0.0
    %2486 = vmatprep.subr.mxu0 0.0
    %2487 = vmatpush1.msra.mxu0 0.0
    %2488 = vmatprep.subr.mxu0 0.0
    %2489 = vmatpush1.msra.mxu0 0.0
    %2490 = vmatprep.subr.mxu0 0.0
    %2491 = vmatpush1.msra.mxu0 0.0
    %2492 = vmatprep.subr.mxu0 0.0
    %2493 = vmatpush1.msra.mxu0 0.0
    %2494 = vmatprep.mubr.f32.mxu0 %v2184
    %2495 = vmatmul.mubr.f32.gmra.mrb[0].mxu0 %v2035
    %v2496 = vpop.f32.mrb[0].mxu0
    %v2497 = vadd.f32 %v2106, %v2496
    %v2498 = vpop.f32.mrb[0].mxu0
    %2499 = vmatprep.mubr.f32.mxu0 %v2187
    %2500 = vmatmul.mubr.f32.gmra.mrb[0].mxu0 %v2037
    %v2501 = vpop.f32.mrb[0].mxu0
    %v2502 = vadd.f32 %v2111, %v2501
    %v2503 = vpop.f32.mrb[0].mxu0
    %2504 = vmatprep.mubr.f32.mxu0 %v2190
    %2505 = vmatmul.mubr.f32.gmra.mrb[0].mxu0 %v2039
    %v2506 = vpop.f32.mrb[0].mxu0
    %v2507 = vadd.f32 %v2116, %v2506
    %v2508 = vpop.f32.mrb[0].mxu0
    %2509 = vmatprep.mubr.f32.mxu0 %v2193
    %2510 = vmatmul.mubr.f32.gmra.mrb[0].mxu0 %v2041
    %v2511 = vpop.f32.mrb[0].mxu0
    %v2512 = vadd.f32 %v2121, %v2511
    %v2513 = vpop.f32.mrb[0].mxu0
    %2514 = vmatprep.mubr.f32.mxu0 %v2196
    %2515 = vmatmul.mubr.f32.gmra.mrb[0].mxu0 %v2043
    %v2516 = vpop.f32.mrb[0].mxu0
    %v2517 = vadd.f32 %v2126, %v2516
    %v2518 = vpop.f32.mrb[0].mxu0
    %2519 = vmatprep.mubr.f32.mxu0 %v2199
    %2520 = vmatmul.mubr.f32.gmra.mrb[0].mxu0 %v2045
    %v2521 = vpop.f32.mrb[0].mxu0
    %v2522 = vadd.f32 %v2131, %v2521
    %v2523 = vpop.f32.mrb[0].mxu0
    %2524 = vmatprep.mubr.f32.mxu0 %v2202
    %2525 = vmatmul.mubr.f32.gmra.mrb[0].mxu0 %v2047
    %v2526 = vpop.f32.mrb[0].mxu0
    %v2527 = vadd.f32 %v2136, %v2526
    %v2528 = vpop.f32.mrb[0].mxu0
    %2529 = vmatprep.mubr.f32.mxu0 %v2205
    %2530 = vmatmul.mubr.f32.gmra.mrb[0].mxu0 %v2049
    %v2531 = vpop.f32.mrb[0].mxu0
    %v2532 = vadd.f32 %v2141, %v2531
    %v2533 = vpop.f32.mrb[0].mxu0
    %2534 = vmatprep.mubr.f32.mxu0 %v2208
    %2535 = vmatmul.mubr.f32.gmra.mrb[0].mxu0 %v2051
    %v2536 = vpop.f32.mrb[0].mxu0
    %v2537 = vadd.f32 %v2146, %v2536
    %v2538 = vpop.f32.mrb[0].mxu0
    %2539 = vmatprep.mubr.f32.mxu0 %v2211
    %2540 = vmatmul.mubr.f32.gmra.mrb[0].mxu0 %v2053
    %v2541 = vpop.f32.mrb[0].mxu0
    %v2542 = vadd.f32 %v2151, %v2541
    %v2543 = vpop.f32.mrb[0].mxu0
    %2544 = vmatprep.mubr.f32.mxu0 %v2214
    %2545 = vmatmul.mubr.f32.gmra.mrb[0].mxu0 %v2055
    %v2546 = vpop.f32.mrb[0].mxu0
    %v2547 = vadd.f32 %v2156, %v2546
    %v2548 = vpop.f32.mrb[0].mxu0
    %2549 = vmatprep.mubr.f32.mxu0 %v2217
    %2550 = vmatmul.mubr.f32.gmra.mrb[0].mxu0 %v2057
    %v2551 = vpop.f32.mrb[0].mxu0
    %v2552 = vadd.f32 %v2161, %v2551
    %v2553 = vpop.f32.mrb[0].mxu0
    %2554 = vmatprep.mubr.f32.mxu0 %v2220
    %2555 = vmatmul.mubr.f32.gmra.mrb[0].mxu0 %v2059
    %v2556 = vpop.f32.mrb[0].mxu0
    %v2557 = vadd.f32 %v2166, %v2556
    %v2558 = vpop.f32.mrb[0].mxu0
    %2559 = vmatprep.mubr.f32.mxu0 %v2223
    %2560 = vmatmul.mubr.f32.gmra.mrb[0].mxu0 %v2061
    %v2561 = vpop.f32.mrb[0].mxu0
    %v2562 = vadd.f32 %v2171, %v2561
    %v2563 = vpop.f32.mrb[0].mxu0
    %2564 = vmatprep.mubr.f32.mxu0 %v2226
    %2565 = vmatmul.mubr.f32.gmra.mrb[0].mxu0 %v2063
    %v2566 = vpop.f32.mrb[0].mxu0
    %v2567 = vadd.f32 %v2176, %v2566
    %v2568 = vpop.f32.mrb[0].mxu0
    %2569 = vmatprep.mubr.f32.mxu0 %v2229
    %2570 = vmatmul.mubr.f32.gmra.mrb[0].mxu0 %v2065
    %v2571 = vpop.f32.mrb[0].mxu0
    %v2572 = vadd.f32 %v2181, %v2571
    %v2573 = vpop.f32.mrb[0].mxu0
    %2574 = vdwg.mxu0
    %v2575 = vmax.f32 %v2497, 0.0
    %v2576 = vmax.f32 %v2502, 0.0
    %v2577 = vmax.f32 %v2507, 0.0
    %v2578 = vmax.f32 %v2512, 0.0
    %v2579 = vmax.f32 %v2517, 0.0
    %v2580 = vmax.f32 %v2522, 0.0
    %v2581 = vmax.f32 %v2527, 0.0
    %v2582 = vmax.f32 %v2532, 0.0
    %v2583 = vmax.f32 %v2537, 0.0
    %v2584 = vmax.f32 %v2542, 0.0
    %v2585 = vmax.f32 %v2547, 0.0
    %v2586 = vmax.f32 %v2552, 0.0
    %v2587 = vmax.f32 %v2557, 0.0
    %v2588 = vmax.f32 %v2562, 0.0
    %v2589 = vmax.f32 %v2567, 0.0
    %v2590 = vmax.f32 %v2572, 0.0
    %s2591 = scalar_lea.vmem [#allocation3], 144
    %2592 = vst [vmem:[%s2591] sm:$0xff] %v2575
    %2593 = vst [vmem:[%s2591 + $0x8] sm:$0xff] %v2576
    %2594 = vst [vmem:[%s2591 + $0x10] sm:$0xff] %v2577
    %2595 = vst [vmem:[%s2591 + $0x18] sm:$0xff] %v2578
    %2596 = vst [vmem:[%s2591 + $0x20] sm:$0xff] %v2579
    %2597 = vst [vmem:[%s2591 + $0x28] sm:$0xff] %v2580
    %2598 = vst [vmem:[%s2591 + $0x30] sm:$0xff] %v2581
    %2599 = vst [vmem:[%s2591 + $0x38] sm:$0xff] %v2582
    %2600 = vst [vmem:[%s2591 + $0x40] sm:$0xff] %v2583
    %2601 = vst [vmem:[%s2591 + $0x48] sm:$0xff] %v2584
    %2602 = vst [vmem:[%s2591 + $0x50] sm:$0xff] %v2585
    %2603 = vst [vmem:[%s2591 + $0x58] sm:$0xff] %v2586
    %2604 = vst [vmem:[%s2591 + $0x60] sm:$0xff] %v2587
    %2605 = vst [vmem:[%s2591 + $0x68] sm:$0xff] %v2588
    %2606 = vst [vmem:[%s2591 + $0x70] sm:$0xff] %v2589
    %2607 = vst [vmem:[%s2591 + $0x78] sm:$0xff] %v2590
    %s2608 = scalar_lea.vmem [#allocation2], 256
    %v2609 = vld [vmem:[%s2608] sm:$0xff]
    %v2610 = vld [vmem:[%s2608 + $0x8] sm:$0xff]
    %v2611 = vld [vmem:[%s2608 + $0x10] sm:$0xff]
    %v2612 = vld [vmem:[%s2608 + $0x18] sm:$0xff]
    %v2613 = vld [vmem:[%s2608 + $0x20] sm:$0xff]
    %v2614 = vld [vmem:[%s2608 + $0x28] sm:$0xff]
    %v2615 = vld [vmem:[%s2608 + $0x30] sm:$0xff]
    %v2616 = vld [vmem:[%s2608 + $0x38] sm:$0xff]
    %v2617 = vld [vmem:[%s2608 + $0x40] sm:$0xff]
    %v2618 = vld [vmem:[%s2608 + $0x48] sm:$0xff]
    %v2619 = vld [vmem:[%s2608 + $0x50] sm:$0xff]
    %v2620 = vld [vmem:[%s2608 + $0x58] sm:$0xff]
    %v2621 = vld [vmem:[%s2608 + $0x60] sm:$0xff]
    %v2622 = vld [vmem:[%s2608 + $0x68] sm:$0xff]
    %v2623 = vld [vmem:[%s2608 + $0x70] sm:$0xff]
    %v2624 = vld [vmem:[%s2608 + $0x78] sm:$0xff]
    %v2625 = vld [vmem:[%s2608 + $0x80] sm:$0xff]
    %v2626 = vld [vmem:[%s2608 + $0x88] sm:$0xff]
    %v2627 = vld [vmem:[%s2608 + $0x90] sm:$0xff]
    %v2628 = vld [vmem:[%s2608 + $0x98] sm:$0xff]
    %2629 = vmatprep.subr.mxu0 0.0
    %2630 = vmatpush1.msra.mxu0 %v2609
    %2631 = vmatprep.subr.mxu0 0.0
    %2632 = vmatpush1.msra.mxu0 %v2610
    %2633 = vmatprep.subr.mxu0 0.0
    %2634 = vmatpush1.msra.mxu0 %v2611
    %2635 = vmatprep.subr.mxu0 0.0
    %2636 = vmatpush1.msra.mxu0 %v2612
    %2637 = vmatprep.subr.mxu0 0.0
    %2638 = vmatpush1.msra.mxu0 %v2613
    %2639 = vmatprep.subr.mxu0 0.0
    %2640 = vmatpush1.msra.mxu0 %v2614
    %2641 = vmatprep.subr.mxu0 0.0
    %2642 = vmatpush1.msra.mxu0 %v2615
    %2643 = vmatprep.subr.mxu0 0.0
    %2644 = vmatpush1.msra.mxu0 %v2616
    %2645 = vmatprep.subr.mxu0 0.0
    %2646 = vmatpush1.msra.mxu0 %v2617
    %2647 = vmatprep.subr.mxu0 0.0
    %2648 = vmatpush1.msra.mxu0 %v2618
    %2649 = vmatprep.subr.mxu0 0.0
    %2650 = vmatpush1.msra.mxu0 %v2619
    %2651 = vmatprep.subr.mxu0 0.0
    %2652 = vmatpush1.msra.mxu0 %v2620
    %2653 = vmatprep.subr.mxu0 0.0
    %2654 = vmatpush1.msra.mxu0 %v2621
    %2655 = vmatprep.subr.mxu0 0.0
    %2656 = vmatpush1.msra.mxu0 %v2622
    %2657 = vmatprep.subr.mxu0 0.0
    %2658 = vmatpush1.msra.mxu0 %v2623
    %2659 = vmatprep.subr.mxu0 0.0
    %2660 = vmatpush1.msra.mxu0 %v2624
    %2661 = vmatprep.subr.mxu0 0.0
    %2662 = vmatpush1.msra.mxu0 %v2625
    %2663 = vmatprep.subr.mxu0 0.0
    %2664 = vmatpush1.msra.mxu0 %v2626
    %2665 = vmatprep.subr.mxu0 0.0
    %2666 = vmatpush1.msra.mxu0 %v2627
    %2667 = vmatprep.subr.mxu0 0.0
    %2668 = vmatpush1.msra.mxu0 %v2628
    %2669 = vmatprep.subr.mxu0 0.0
    %2670 = vmatpush1.msra.mxu0 0.0
    %2671 = vmatprep.subr.mxu0 0.0
    %2672 = vmatpush1.msra.mxu0 0.0
    %2673 = vmatprep.subr.mxu0 0.0
    %2674 = vmatpush1.msra.mxu0 0.0
    %2675 = vmatprep.subr.mxu0 0.0
    %2676 = vmatpush1.msra.mxu0 0.0
    %2677 = vmatprep.subr.mxu0 0.0
    %2678 = vmatpush1.msra.mxu0 0.0
    %2679 = vmatprep.subr.mxu0 0.0
    %2680 = vmatpush1.msra.mxu0 0.0
    %2681 = vmatprep.subr.mxu0 0.0
    %2682 = vmatpush1.msra.mxu0 0.0
    %2683 = vmatprep.subr.mxu0 0.0
    %2684 = vmatpush1.msra.mxu0 0.0
    %2685 = vmatprep.subr.mxu0 0.0
    %2686 = vmatpush1.msra.mxu0 0.0
    %2687 = vmatprep.subr.mxu0 0.0
    %2688 = vmatpush1.msra.mxu0 0.0
    %2689 = vmatprep.subr.mxu0 0.0
    %2690 = vmatpush1.msra.mxu0 0.0
    %2691 = vmatprep.subr.mxu0 0.0
    %2692 = vmatpush1.msra.mxu0 0.0
    %2693 = vmatprep.mubr.f32.mxu0 %v2184
    %2694 = vmatmul.mubr.f32.gmra.mrb[0].mxu0 %v2035
    %v2695 = vpop.f32.mrb[0].mxu0
    %v2696 = vadd.f32 %v2106, %v2695
    %v2697 = vpop.f32.mrb[0].mxu0
    %2698 = vmatprep.mubr.f32.mxu0 %v2187
    %2699 = vmatmul.mubr.f32.gmra.mrb[0].mxu0 %v2037
    %v2700 = vpop.f32.mrb[0].mxu0
    %v2701 = vadd.f32 %v2111, %v2700
    %v2702 = vpop.f32.mrb[0].mxu0
    %2703 = vmatprep.mubr.f32.mxu0 %v2190
    %2704 = vmatmul.mubr.f32.gmra.mrb[0].mxu0 %v2039
    %v2705 = vpop.f32.mrb[0].mxu0
    %v2706 = vadd.f32 %v2116, %v2705
    %v2707 = vpop.f32.mrb[0].mxu0
    %2708 = vmatprep.mubr.f32.mxu0 %v2193
    %2709 = vmatmul.mubr.f32.gmra.mrb[0].mxu0 %v2041
    %v2710 = vpop.f32.mrb[0].mxu0
    %v2711 = vadd.f32 %v2121, %v2710
    %v2712 = vpop.f32.mrb[0].mxu0
    %2713 = vmatprep.mubr.f32.mxu0 %v2196
    %2714 = vmatmul.mubr.f32.gmra.mrb[0].mxu0 %v2043
    %v2715 = vpop.f32.mrb[0].mxu0
    %v2716 = vadd.f32 %v2126, %v2715
    %v2717 = vpop.f32.mrb[0].mxu0
    %2718 = vmatprep.mubr.f32.mxu0 %v2199
    %2719 = vmatmul.mubr.f32.gmra.mrb[0].mxu0 %v2045
    %v2720 = vpop.f32.mrb[0].mxu0
    %v2721 = vadd.f32 %v2131, %v2720
    %v2722 = vpop.f32.mrb[0].mxu0
    %2723 = vmatprep.mubr.f32.mxu0 %v2202
    %2724 = vmatmul.mubr.f32.gmra.mrb[0].mxu0 %v2047
    %v2725 = vpop.f32.mrb[0].mxu0
    %v2726 = vadd.f32 %v2136, %v2725
    %v2727 = vpop.f32.mrb[0].mxu0
    %2728 = vmatprep.mubr.f32.mxu0 %v2205
    %2729 = vmatmul.mubr.f32.gmra.mrb[0].mxu0 %v2049
    %v2730 = vpop.f32.mrb[0].mxu0
    %v2731 = vadd.f32 %v2141, %v2730
    %v2732 = vpop.f32.mrb[0].mxu0
    %2733 = vmatprep.mubr.f32.mxu0 %v2208
    %2734 = vmatmul.mubr.f32.gmra.mrb[0].mxu0 %v2051
    %v2735 = vpop.f32.mrb[0].mxu0
    %v2736 = vadd.f32 %v2146, %v2735
    %v2737 = vpop.f32.mrb[0].mxu0
    %2738 = vmatprep.mubr.f32.mxu0 %v2211
    %2739 = vmatmul.mubr.f32.gmra.mrb[0].mxu0 %v2053
    %v2740 = vpop.f32.mrb[0].mxu0
    %v2741 = vadd.f32 %v2151, %v2740
    %v2742 = vpop.f32.mrb[0].mxu0
    %2743 = vmatprep.mubr.f32.mxu0 %v2214
    %2744 = vmatmul.mubr.f32.gmra.mrb[0].mxu0 %v2055
    %v2745 = vpop.f32.mrb[0].mxu0
    %v2746 = vadd.f32 %v2156, %v2745
    %v2747 = vpop.f32.mrb[0].mxu0
    %2748 = vmatprep.mubr.f32.mxu0 %v2217
    %2749 = vmatmul.mubr.f32.gmra.mrb[0].mxu0 %v2057
    %v2750 = vpop.f32.mrb[0].mxu0
    %v2751 = vadd.f32 %v2161, %v2750
    %v2752 = vpop.f32.mrb[0].mxu0
    %2753 = vmatprep.mubr.f32.mxu0 %v2220
    %2754 = vmatmul.mubr.f32.gmra.mrb[0].mxu0 %v2059
    %v2755 = vpop.f32.mrb[0].mxu0
    %v2756 = vadd.f32 %v2166, %v2755
    %v2757 = vpop.f32.mrb[0].mxu0
    %2758 = vmatprep.mubr.f32.mxu0 %v2223
    %2759 = vmatmul.mubr.f32.gmra.mrb[0].mxu0 %v2061
    %v2760 = vpop.f32.mrb[0].mxu0
    %v2761 = vadd.f32 %v2171, %v2760
    %v2762 = vpop.f32.mrb[0].mxu0
    %2763 = vmatprep.mubr.f32.mxu0 %v2226
    %2764 = vmatmul.mubr.f32.gmra.mrb[0].mxu0 %v2063
    %v2765 = vpop.f32.mrb[0].mxu0
    %v2766 = vadd.f32 %v2176, %v2765
    %v2767 = vpop.f32.mrb[0].mxu0
    %2768 = vmatprep.mubr.f32.mxu0 %v2229
    %2769 = vmatmul.mubr.f32.gmra.mrb[0].mxu0 %v2065
    %v2770 = vpop.f32.mrb[0].mxu0
    %v2771 = vadd.f32 %v2181, %v2770
    %v2772 = vpop.f32.mrb[0].mxu0
    %2773 = vdwg.mxu0
    %v2774 = vmax.f32 %v2696, 0.0
    %v2775 = vmax.f32 %v2701, 0.0
    %v2776 = vmax.f32 %v2706, 0.0
    %v2777 = vmax.f32 %v2711, 0.0
    %v2778 = vmax.f32 %v2716, 0.0
    %v2779 = vmax.f32 %v2721, 0.0
    %v2780 = vmax.f32 %v2726, 0.0
    %v2781 = vmax.f32 %v2731, 0.0
    %v2782 = vmax.f32 %v2736, 0.0
    %v2783 = vmax.f32 %v2741, 0.0
    %v2784 = vmax.f32 %v2746, 0.0
    %v2785 = vmax.f32 %v2751, 0.0
    %v2786 = vmax.f32 %v2756, 0.0
    %v2787 = vmax.f32 %v2761, 0.0
    %v2788 = vmax.f32 %v2766, 0.0
    %v2789 = vmax.f32 %v2771, 0.0
    %s2790 = scalar_lea.vmem [#allocation3], 272
    %2791 = vst [vmem:[%s2790] sm:$0xff] %v2774
    %2792 = vst [vmem:[%s2790 + $0x8] sm:$0xff] %v2775
    %2793 = vst [vmem:[%s2790 + $0x10] sm:$0xff] %v2776
    %2794 = vst [vmem:[%s2790 + $0x18] sm:$0xff] %v2777
    %2795 = vst [vmem:[%s2790 + $0x20] sm:$0xff] %v2778
    %2796 = vst [vmem:[%s2790 + $0x28] sm:$0xff] %v2779
    %2797 = vst [vmem:[%s2790 + $0x30] sm:$0xff] %v2780
    %2798 = vst [vmem:[%s2790 + $0x38] sm:$0xff] %v2781
    %2799 = vst [vmem:[%s2790 + $0x40] sm:$0xff] %v2782
    %2800 = vst [vmem:[%s2790 + $0x48] sm:$0xff] %v2783
    %2801 = vst [vmem:[%s2790 + $0x50] sm:$0xff] %v2784
    %2802 = vst [vmem:[%s2790 + $0x58] sm:$0xff] %v2785
    %2803 = vst [vmem:[%s2790 + $0x60] sm:$0xff] %v2786
    %2804 = vst [vmem:[%s2790 + $0x68] sm:$0xff] %v2787
    %2805 = vst [vmem:[%s2790 + $0x70] sm:$0xff] %v2788
    %2806 = vst [vmem:[%s2790 + $0x78] sm:$0xff] %v2789
    %s2807 = scalar_lea.vmem [#allocation2], 384
    %v2808 = vld [vmem:[%s2807] sm:$0xff]
    %v2809 = vld [vmem:[%s2807 + $0x8] sm:$0xff]
    %v2810 = vld [vmem:[%s2807 + $0x10] sm:$0xff]
    %v2811 = vld [vmem:[%s2807 + $0x18] sm:$0xff]
    %v2812 = vld [vmem:[%s2807 + $0x20] sm:$0xff]
    %v2813 = vld [vmem:[%s2807 + $0x28] sm:$0xff]
    %v2814 = vld [vmem:[%s2807 + $0x30] sm:$0xff]
    %v2815 = vld [vmem:[%s2807 + $0x38] sm:$0xff]
    %v2816 = vld [vmem:[%s2807 + $0x40] sm:$0xff]
    %v2817 = vld [vmem:[%s2807 + $0x48] sm:$0xff]
    %v2818 = vld [vmem:[%s2807 + $0x50] sm:$0xff]
    %v2819 = vld [vmem:[%s2807 + $0x58] sm:$0xff]
    %v2820 = vld [vmem:[%s2807 + $0x60] sm:$0xff]
    %v2821 = vld [vmem:[%s2807 + $0x68] sm:$0xff]
    %v2822 = vld [vmem:[%s2807 + $0x70] sm:$0xff]
    %v2823 = vld [vmem:[%s2807 + $0x78] sm:$0xff]
    %v2824 = vld [vmem:[%s2807 + $0x80] sm:$0xff]
    %v2825 = vld [vmem:[%s2807 + $0x88] sm:$0xff]
    %v2826 = vld [vmem:[%s2807 + $0x90] sm:$0xff]
    %v2827 = vld [vmem:[%s2807 + $0x98] sm:$0xff]
    %2828 = vmatprep.subr.mxu0 0.0
    %2829 = vmatpush1.msra.mxu0 %v2808
    %2830 = vmatprep.subr.mxu0 0.0
    %2831 = vmatpush1.msra.mxu0 %v2809
    %2832 = vmatprep.subr.mxu0 0.0
    %2833 = vmatpush1.msra.mxu0 %v2810
    %2834 = vmatprep.subr.mxu0 0.0
    %2835 = vmatpush1.msra.mxu0 %v2811
    %2836 = vmatprep.subr.mxu0 0.0
    %2837 = vmatpush1.msra.mxu0 %v2812
    %2838 = vmatprep.subr.mxu0 0.0
    %2839 = vmatpush1.msra.mxu0 %v2813
    %2840 = vmatprep.subr.mxu0 0.0
    %2841 = vmatpush1.msra.mxu0 %v2814
    %2842 = vmatprep.subr.mxu0 0.0
    %2843 = vmatpush1.msra.mxu0 %v2815
    %2844 = vmatprep.subr.mxu0 0.0
    %2845 = vmatpush1.msra.mxu0 %v2816
    %2846 = vmatprep.subr.mxu0 0.0
    %2847 = vmatpush1.msra.mxu0 %v2817
    %2848 = vmatprep.subr.mxu0 0.0
    %2849 = vmatpush1.msra.mxu0 %v2818
    %2850 = vmatprep.subr.mxu0 0.0
    %2851 = vmatpush1.msra.mxu0 %v2819
    %2852 = vmatprep.subr.mxu0 0.0
    %2853 = vmatpush1.msra.mxu0 %v2820
    %2854 = vmatprep.subr.mxu0 0.0
    %2855 = vmatpush1.msra.mxu0 %v2821
    %2856 = vmatprep.subr.mxu0 0.0
    %2857 = vmatpush1.msra.mxu0 %v2822
    %2858 = vmatprep.subr.mxu0 0.0
    %2859 = vmatpush1.msra.mxu0 %v2823
    %2860 = vmatprep.subr.mxu0 0.0
    %2861 = vmatpush1.msra.mxu0 %v2824
    %2862 = vmatprep.subr.mxu0 0.0
    %2863 = vmatpush1.msra.mxu0 %v2825
    %2864 = vmatprep.subr.mxu0 0.0
    %2865 = vmatpush1.msra.mxu0 %v2826
    %2866 = vmatprep.subr.mxu0 0.0
    %2867 = vmatpush1.msra.mxu0 %v2827
    %2868 = vmatprep.subr.mxu0 0.0
    %2869 = vmatpush1.msra.mxu0 0.0
    %2870 = vmatprep.subr.mxu0 0.0
    %2871 = vmatpush1.msra.mxu0 0.0
    %2872 = vmatprep.subr.mxu0 0.0
    %2873 = vmatpush1.msra.mxu0 0.0
    %2874 = vmatprep.subr.mxu0 0.0
    %2875 = vmatpush1.msra.mxu0 0.0
    %2876 = vmatprep.subr.mxu0 0.0
    %2877 = vmatpush1.msra.mxu0 0.0
    %2878 = vmatprep.subr.mxu0 0.0
    %2879 = vmatpush1.msra.mxu0 0.0
    %2880 = vmatprep.subr.mxu0 0.0
    %2881 = vmatpush1.msra.mxu0 0.0
    %2882 = vmatprep.subr.mxu0 0.0
    %2883 = vmatpush1.msra.mxu0 0.0
    %2884 = vmatprep.subr.mxu0 0.0
    %2885 = vmatpush1.msra.mxu0 0.0
    %2886 = vmatprep.subr.mxu0 0.0
    %2887 = vmatpush1.msra.mxu0 0.0
    %2888 = vmatprep.subr.mxu0 0.0
    %2889 = vmatpush1.msra.mxu0 0.0
    %2890 = vmatprep.subr.mxu0 0.0
    %2891 = vmatpush1.msra.mxu0 0.0
    %2892 = vmatprep.mubr.f32.mxu0 %v2184
    %2893 = vmatmul.mubr.f32.gmra.mrb[0].mxu0 %v2035
    %v2894 = vpop.f32.mrb[0].mxu0
    %v2895 = vadd.f32 %v2106, %v2894
    %v2896 = vpop.f32.mrb[0].mxu0
    %2897 = vmatprep.mubr.f32.mxu0 %v2187
    %2898 = vmatmul.mubr.f32.gmra.mrb[0].mxu0 %v2037
    %v2899 = vpop.f32.mrb[0].mxu0
    %v2900 = vadd.f32 %v2111, %v2899
    %v2901 = vpop.f32.mrb[0].mxu0
    %2902 = vmatprep.mubr.f32.mxu0 %v2190
    %2903 = vmatmul.mubr.f32.gmra.mrb[0].mxu0 %v2039
    %v2904 = vpop.f32.mrb[0].mxu0
    %v2905 = vadd.f32 %v2116, %v2904
    %v2906 = vpop.f32.mrb[0].mxu0
    %2907 = vmatprep.mubr.f32.mxu0 %v2193
    %2908 = vmatmul.mubr.f32.gmra.mrb[0].mxu0 %v2041
    %v2909 = vpop.f32.mrb[0].mxu0
    %v2910 = vadd.f32 %v2121, %v2909
    %v2911 = vpop.f32.mrb[0].mxu0
    %2912 = vmatprep.mubr.f32.mxu0 %v2196
    %2913 = vmatmul.mubr.f32.gmra.mrb[0].mxu0 %v2043
    %v2914 = vpop.f32.mrb[0].mxu0
    %v2915 = vadd.f32 %v2126, %v2914
    %v2916 = vpop.f32.mrb[0].mxu0
    %2917 = vmatprep.mubr.f32.mxu0 %v2199
    %2918 = vmatmul.mubr.f32.gmra.mrb[0].mxu0 %v2045
    %v2919 = vpop.f32.mrb[0].mxu0
    %v2920 = vadd.f32 %v2131, %v2919
    %v2921 = vpop.f32.mrb[0].mxu0
    %2922 = vmatprep.mubr.f32.mxu0 %v2202
    %2923 = vmatmul.mubr.f32.gmra.mrb[0].mxu0 %v2047
    %v2924 = vpop.f32.mrb[0].mxu0
    %v2925 = vadd.f32 %v2136, %v2924
    %v2926 = vpop.f32.mrb[0].mxu0
    %2927 = vmatprep.mubr.f32.mxu0 %v2205
    %2928 = vmatmul.mubr.f32.gmra.mrb[0].mxu0 %v2049
    %v2929 = vpop.f32.mrb[0].mxu0
    %v2930 = vadd.f32 %v2141, %v2929
    %v2931 = vpop.f32.mrb[0].mxu0
    %2932 = vmatprep.mubr.f32.mxu0 %v2208
    %2933 = vmatmul.mubr.f32.gmra.mrb[0].mxu0 %v2051
    %v2934 = vpop.f32.mrb[0].mxu0
    %v2935 = vadd.f32 %v2146, %v2934
    %v2936 = vpop.f32.mrb[0].mxu0
    %2937 = vmatprep.mubr.f32.mxu0 %v2211
    %2938 = vmatmul.mubr.f32.gmra.mrb[0].mxu0 %v2053
    %v2939 = vpop.f32.mrb[0].mxu0
    %v2940 = vadd.f32 %v2151, %v2939
    %v2941 = vpop.f32.mrb[0].mxu0
    %2942 = vmatprep.mubr.f32.mxu0 %v2214
    %2943 = vmatmul.mubr.f32.gmra.mrb[0].mxu0 %v2055
    %v2944 = vpop.f32.mrb[0].mxu0
    %v2945 = vadd.f32 %v2156, %v2944
    %v2946 = vpop.f32.mrb[0].mxu0
    %2947 = vmatprep.mubr.f32.mxu0 %v2217
    %2948 = vmatmul.mubr.f32.gmra.mrb[0].mxu0 %v2057
    %v2949 = vpop.f32.mrb[0].mxu0
    %v2950 = vadd.f32 %v2161, %v2949
    %v2951 = vpop.f32.mrb[0].mxu0
    %2952 = vmatprep.mubr.f32.mxu0 %v2220
    %2953 = vmatmul.mubr.f32.gmra.mrb[0].mxu0 %v2059
    %v2954 = vpop.f32.mrb[0].mxu0
    %v2955 = vadd.f32 %v2166, %v2954
    %v2956 = vpop.f32.mrb[0].mxu0
    %2957 = vmatprep.mubr.f32.mxu0 %v2223
    %2958 = vmatmul.mubr.f32.gmra.mrb[0].mxu0 %v2061
    %v2959 = vpop.f32.mrb[0].mxu0
    %v2960 = vadd.f32 %v2171, %v2959
    %v2961 = vpop.f32.mrb[0].mxu0
    %2962 = vmatprep.mubr.f32.mxu0 %v2226
    %2963 = vmatmul.mubr.f32.gmra.mrb[0].mxu0 %v2063
    %v2964 = vpop.f32.mrb[0].mxu0
    %v2965 = vadd.f32 %v2176, %v2964
    %v2966 = vpop.f32.mrb[0].mxu0
    %2967 = vmatprep.mubr.f32.mxu0 %v2229
    %2968 = vmatmul.mubr.f32.gmra.mrb[0].mxu0 %v2065
    %v2969 = vpop.f32.mrb[0].mxu0
    %v2970 = vadd.f32 %v2181, %v2969
    %v2971 = vpop.f32.mrb[0].mxu0
    %2972 = vdwg.mxu0
    %v2973 = vmax.f32 %v2895, 0.0
    %v2974 = vmax.f32 %v2900, 0.0
    %v2975 = vmax.f32 %v2905, 0.0
    %v2976 = vmax.f32 %v2910, 0.0
    %v2977 = vmax.f32 %v2915, 0.0
    %v2978 = vmax.f32 %v2920, 0.0
    %v2979 = vmax.f32 %v2925, 0.0
    %v2980 = vmax.f32 %v2930, 0.0
    %v2981 = vmax.f32 %v2935, 0.0
    %v2982 = vmax.f32 %v2940, 0.0
    %v2983 = vmax.f32 %v2945, 0.0
    %v2984 = vmax.f32 %v2950, 0.0
    %v2985 = vmax.f32 %v2955, 0.0
    %v2986 = vmax.f32 %v2960, 0.0
    %v2987 = vmax.f32 %v2965, 0.0
    %v2988 = vmax.f32 %v2970, 0.0
    %s2989 = scalar_lea.vmem [#allocation3], 400
    %2990 = vst [vmem:[%s2989] sm:$0xff] %v2973
    %2991 = vst [vmem:[%s2989 + $0x8] sm:$0xff] %v2974
    %2992 = vst [vmem:[%s2989 + $0x10] sm:$0xff] %v2975
    %2993 = vst [vmem:[%s2989 + $0x18] sm:$0xff] %v2976
    %2994 = vst [vmem:[%s2989 + $0x20] sm:$0xff] %v2977
    %2995 = vst [vmem:[%s2989 + $0x28] sm:$0xff] %v2978
    %2996 = vst [vmem:[%s2989 + $0x30] sm:$0xff] %v2979
    %2997 = vst [vmem:[%s2989 + $0x38] sm:$0xff] %v2980
    %2998 = vst [vmem:[%s2989 + $0x40] sm:$0xff] %v2981
    %2999 = vst [vmem:[%s2989 + $0x48] sm:$0xff] %v2982
    %3000 = vst [vmem:[%s2989 + $0x50] sm:$0xff] %v2983
    %3001 = vst [vmem:[%s2989 + $0x58] sm:$0xff] %v2984
    %3002 = vst [vmem:[%s2989 + $0x60] sm:$0xff] %v2985
    %3003 = vst [vmem:[%s2989 + $0x68] sm:$0xff] %v2986
    %3004 = vst [vmem:[%s2989 + $0x70] sm:$0xff] %v2987
    %3005 = vst [vmem:[%s2989 + $0x78] sm:$0xff] %v2988
    %s3006 = scalar_lea.vmem [#allocation2], 512
    %v3007 = vld [vmem:[%s3006] sm:$0xff]
    %v3008 = vld [vmem:[%s3006 + $0x8] sm:$0xff]
    %v3009 = vld [vmem:[%s3006 + $0x10] sm:$0xff]
    %v3010 = vld [vmem:[%s3006 + $0x18] sm:$0xff]
    %v3011 = vld [vmem:[%s3006 + $0x20] sm:$0xff]
    %v3012 = vld [vmem:[%s3006 + $0x28] sm:$0xff]
    %v3013 = vld [vmem:[%s3006 + $0x30] sm:$0xff]
    %v3014 = vld [vmem:[%s3006 + $0x38] sm:$0xff]
    %v3015 = vld [vmem:[%s3006 + $0x40] sm:$0xff]
    %v3016 = vld [vmem:[%s3006 + $0x48] sm:$0xff]
    %v3017 = vld [vmem:[%s3006 + $0x50] sm:$0xff]
    %v3018 = vld [vmem:[%s3006 + $0x58] sm:$0xff]
    %v3019 = vld [vmem:[%s3006 + $0x60] sm:$0xff]
    %v3020 = vld [vmem:[%s3006 + $0x68] sm:$0xff]
    %v3021 = vld [vmem:[%s3006 + $0x70] sm:$0xff]
    %v3022 = vld [vmem:[%s3006 + $0x78] sm:$0xff]
    %v3023 = vld [vmem:[%s3006 + $0x80] sm:$0xff]
    %v3024 = vld [vmem:[%s3006 + $0x88] sm:$0xff]
    %v3025 = vld [vmem:[%s3006 + $0x90] sm:$0xff]
    %v3026 = vld [vmem:[%s3006 + $0x98] sm:$0xff]
    %3027 = vmatprep.subr.mxu0 0.0
    %3028 = vmatpush1.msra.mxu0 %v3007
    %3029 = vmatprep.subr.mxu0 0.0
    %3030 = vmatpush1.msra.mxu0 %v3008
    %3031 = vmatprep.subr.mxu0 0.0
    %3032 = vmatpush1.msra.mxu0 %v3009
    %3033 = vmatprep.subr.mxu0 0.0
    %3034 = vmatpush1.msra.mxu0 %v3010
    %3035 = vmatprep.subr.mxu0 0.0
    %3036 = vmatpush1.msra.mxu0 %v3011
    %3037 = vmatprep.subr.mxu0 0.0
    %3038 = vmatpush1.msra.mxu0 %v3012
    %3039 = vmatprep.subr.mxu0 0.0
    %3040 = vmatpush1.msra.mxu0 %v3013
    %3041 = vmatprep.subr.mxu0 0.0
    %3042 = vmatpush1.msra.mxu0 %v3014
    %3043 = vmatprep.subr.mxu0 0.0
    %3044 = vmatpush1.msra.mxu0 %v3015
    %3045 = vmatprep.subr.mxu0 0.0
    %3046 = vmatpush1.msra.mxu0 %v3016
    %3047 = vmatprep.subr.mxu0 0.0
    %3048 = vmatpush1.msra.mxu0 %v3017
    %3049 = vmatprep.subr.mxu0 0.0
    %3050 = vmatpush1.msra.mxu0 %v3018
    %3051 = vmatprep.subr.mxu0 0.0
    %3052 = vmatpush1.msra.mxu0 %v3019
    %3053 = vmatprep.subr.mxu0 0.0
    %3054 = vmatpush1.msra.mxu0 %v3020
    %3055 = vmatprep.subr.mxu0 0.0
    %3056 = vmatpush1.msra.mxu0 %v3021
    %3057 = vmatprep.subr.mxu0 0.0
    %3058 = vmatpush1.msra.mxu0 %v3022
    %3059 = vmatprep.subr.mxu0 0.0
    %3060 = vmatpush1.msra.mxu0 %v3023
    %3061 = vmatprep.subr.mxu0 0.0
    %3062 = vmatpush1.msra.mxu0 %v3024
    %3063 = vmatprep.subr.mxu0 0.0
    %3064 = vmatpush1.msra.mxu0 %v3025
    %3065 = vmatprep.subr.mxu0 0.0
    %3066 = vmatpush1.msra.mxu0 %v3026
    %3067 = vmatprep.subr.mxu0 0.0
    %3068 = vmatpush1.msra.mxu0 0.0
    %3069 = vmatprep.subr.mxu0 0.0
    %3070 = vmatpush1.msra.mxu0 0.0
    %3071 = vmatprep.subr.mxu0 0.0
    %3072 = vmatpush1.msra.mxu0 0.0
    %3073 = vmatprep.subr.mxu0 0.0
    %3074 = vmatpush1.msra.mxu0 0.0
    %3075 = vmatprep.subr.mxu0 0.0
    %3076 = vmatpush1.msra.mxu0 0.0
    %3077 = vmatprep.subr.mxu0 0.0
    %3078 = vmatpush1.msra.mxu0 0.0
    %3079 = vmatprep.subr.mxu0 0.0
    %3080 = vmatpush1.msra.mxu0 0.0
    %3081 = vmatprep.subr.mxu0 0.0
    %3082 = vmatpush1.msra.mxu0 0.0
    %3083 = vmatprep.subr.mxu0 0.0
    %3084 = vmatpush1.msra.mxu0 0.0
    %3085 = vmatprep.subr.mxu0 0.0
    %3086 = vmatpush1.msra.mxu0 0.0
    %3087 = vmatprep.subr.mxu0 0.0
    %3088 = vmatpush1.msra.mxu0 0.0
    %3089 = vmatprep.subr.mxu0 0.0
    %3090 = vmatpush1.msra.mxu0 0.0
    %3091 = vmatprep.mubr.f32.mxu0 %v2184
    %3092 = vmatmul.mubr.f32.gmra.mrb[0].mxu0 %v2035
    %v3093 = vpop.f32.mrb[0].mxu0
    %v3094 = vadd.f32 %v2106, %v3093
    %v3095 = vpop.f32.mrb[0].mxu0
    %3096 = vmatprep.mubr.f32.mxu0 %v2187
    %3097 = vmatmul.mubr.f32.gmra.mrb[0].mxu0 %v2037
    %v3098 = vpop.f32.mrb[0].mxu0
    %v3099 = vadd.f32 %v2111, %v3098
    %v3100 = vpop.f32.mrb[0].mxu0
    %3101 = vmatprep.mubr.f32.mxu0 %v2190
    %3102 = vmatmul.mubr.f32.gmra.mrb[0].mxu0 %v2039
    %v3103 = vpop.f32.mrb[0].mxu0
    %v3104 = vadd.f32 %v2116, %v3103
    %v3105 = vpop.f32.mrb[0].mxu0
    %3106 = vmatprep.mubr.f32.mxu0 %v2193
    %3107 = vmatmul.mubr.f32.gmra.mrb[0].mxu0 %v2041
    %v3108 = vpop.f32.mrb[0].mxu0
    %v3109 = vadd.f32 %v2121, %v3108
    %v3110 = vpop.f32.mrb[0].mxu0
    %3111 = vmatprep.mubr.f32.mxu0 %v2196
    %3112 = vmatmul.mubr.f32.gmra.mrb[0].mxu0 %v2043
    %v3113 = vpop.f32.mrb[0].mxu0
    %v3114 = vadd.f32 %v2126, %v3113
    %v3115 = vpop.f32.mrb[0].mxu0
    %3116 = vmatprep.mubr.f32.mxu0 %v2199
    %3117 = vmatmul.mubr.f32.gmra.mrb[0].mxu0 %v2045
    %v3118 = vpop.f32.mrb[0].mxu0
    %v3119 = vadd.f32 %v2131, %v3118
    %v3120 = vpop.f32.mrb[0].mxu0
    %3121 = vmatprep.mubr.f32.mxu0 %v2202
    %3122 = vmatmul.mubr.f32.gmra.mrb[0].mxu0 %v2047
    %v3123 = vpop.f32.mrb[0].mxu0
    %v3124 = vadd.f32 %v2136, %v3123
    %v3125 = vpop.f32.mrb[0].mxu0
    %3126 = vmatprep.mubr.f32.mxu0 %v2205
    %3127 = vmatmul.mubr.f32.gmra.mrb[0].mxu0 %v2049
    %v3128 = vpop.f32.mrb[0].mxu0
    %v3129 = vadd.f32 %v2141, %v3128
    %v3130 = vpop.f32.mrb[0].mxu0
    %3131 = vmatprep.mubr.f32.mxu0 %v2208
    %3132 = vmatmul.mubr.f32.gmra.mrb[0].mxu0 %v2051
    %v3133 = vpop.f32.mrb[0].mxu0
    %v3134 = vadd.f32 %v2146, %v3133
    %v3135 = vpop.f32.mrb[0].mxu0
    %3136 = vmatprep.mubr.f32.mxu0 %v2211
    %3137 = vmatmul.mubr.f32.gmra.mrb[0].mxu0 %v2053
    %v3138 = vpop.f32.mrb[0].mxu0
    %v3139 = vadd.f32 %v2151, %v3138
    %v3140 = vpop.f32.mrb[0].mxu0
    %3141 = vmatprep.mubr.f32.mxu0 %v2214
    %3142 = vmatmul.mubr.f32.gmra.mrb[0].mxu0 %v2055
    %v3143 = vpop.f32.mrb[0].mxu0
    %v3144 = vadd.f32 %v2156, %v3143
    %v3145 = vpop.f32.mrb[0].mxu0
    %3146 = vmatprep.mubr.f32.mxu0 %v2217
    %3147 = vmatmul.mubr.f32.gmra.mrb[0].mxu0 %v2057
    %v3148 = vpop.f32.mrb[0].mxu0
    %v3149 = vadd.f32 %v2161, %v3148
    %v3150 = vpop.f32.mrb[0].mxu0
    %3151 = vmatprep.mubr.f32.mxu0 %v2220
    %3152 = vmatmul.mubr.f32.gmra.mrb[0].mxu0 %v2059
    %v3153 = vpop.f32.mrb[0].mxu0
    %v3154 = vadd.f32 %v2166, %v3153
    %v3155 = vpop.f32.mrb[0].mxu0
    %3156 = vmatprep.mubr.f32.mxu0 %v2223
    %3157 = vmatmul.mubr.f32.gmra.mrb[0].mxu0 %v2061
    %v3158 = vpop.f32.mrb[0].mxu0
    %v3159 = vadd.f32 %v2171, %v3158
    %v3160 = vpop.f32.mrb[0].mxu0
    %3161 = vmatprep.mubr.f32.mxu0 %v2226
    %3162 = vmatmul.mubr.f32.gmra.mrb[0].mxu0 %v2063
    %v3163 = vpop.f32.mrb[0].mxu0
    %v3164 = vadd.f32 %v2176, %v3163
    %v3165 = vpop.f32.mrb[0].mxu0
    %3166 = vmatprep.mubr.f32.mxu0 %v2229
    %3167 = vmatmul.mubr.f32.gmra.mrb[0].mxu0 %v2065
    %v3168 = vpop.f32.mrb[0].mxu0
    %v3169 = vadd.f32 %v2181, %v3168
    %v3170 = vpop.f32.mrb[0].mxu0
    %3171 = vdwg.mxu0
    %v3172 = vmax.f32 %v3094, 0.0
    %v3173 = vmax.f32 %v3099, 0.0
    %v3174 = vmax.f32 %v3104, 0.0
    %v3175 = vmax.f32 %v3109, 0.0
    %v3176 = vmax.f32 %v3114, 0.0
    %v3177 = vmax.f32 %v3119, 0.0
    %v3178 = vmax.f32 %v3124, 0.0
    %v3179 = vmax.f32 %v3129, 0.0
    %v3180 = vmax.f32 %v3134, 0.0
    %v3181 = vmax.f32 %v3139, 0.0
    %v3182 = vmax.f32 %v3144, 0.0
    %v3183 = vmax.f32 %v3149, 0.0
    %v3184 = vmax.f32 %v3154, 0.0
    %v3185 = vmax.f32 %v3159, 0.0
    %v3186 = vmax.f32 %v3164, 0.0
    %v3187 = vmax.f32 %v3169, 0.0
    %s3188 = scalar_lea.vmem [#allocation3], 528
    %3189 = vst [vmem:[%s3188] sm:$0xff] %v3172
    %3190 = vst [vmem:[%s3188 + $0x8] sm:$0xff] %v3173
    %3191 = vst [vmem:[%s3188 + $0x10] sm:$0xff] %v3174
    %3192 = vst [vmem:[%s3188 + $0x18] sm:$0xff] %v3175
    %3193 = vst [vmem:[%s3188 + $0x20] sm:$0xff] %v3176
    %3194 = vst [vmem:[%s3188 + $0x28] sm:$0xff] %v3177
    %3195 = vst [vmem:[%s3188 + $0x30] sm:$0xff] %v3178
    %3196 = vst [vmem:[%s3188 + $0x38] sm:$0xff] %v3179
    %3197 = vst [vmem:[%s3188 + $0x40] sm:$0xff] %v3180
    %3198 = vst [vmem:[%s3188 + $0x48] sm:$0xff] %v3181
    %3199 = vst [vmem:[%s3188 + $0x50] sm:$0xff] %v3182
    %3200 = vst [vmem:[%s3188 + $0x58] sm:$0xff] %v3183
    %3201 = vst [vmem:[%s3188 + $0x60] sm:$0xff] %v3184
    %3202 = vst [vmem:[%s3188 + $0x68] sm:$0xff] %v3185
    %3203 = vst [vmem:[%s3188 + $0x70] sm:$0xff] %v3186
    %3204 = vst [vmem:[%s3188 + $0x78] sm:$0xff] %v3187
    %s3205 = scalar_lea.vmem [#allocation2], 640
    %v3206 = vld [vmem:[%s3205] sm:$0xff]
    %v3207 = vld [vmem:[%s3205 + $0x8] sm:$0xff]
    %v3208 = vld [vmem:[%s3205 + $0x10] sm:$0xff]
    %v3209 = vld [vmem:[%s3205 + $0x18] sm:$0xff]
    %v3210 = vld [vmem:[%s3205 + $0x20] sm:$0xff]
    %v3211 = vld [vmem:[%s3205 + $0x28] sm:$0xff]
    %v3212 = vld [vmem:[%s3205 + $0x30] sm:$0xff]
    %v3213 = vld [vmem:[%s3205 + $0x38] sm:$0xff]
    %v3214 = vld [vmem:[%s3205 + $0x40] sm:$0xff]
    %v3215 = vld [vmem:[%s3205 + $0x48] sm:$0xff]
    %v3216 = vld [vmem:[%s3205 + $0x50] sm:$0xff]
    %v3217 = vld [vmem:[%s3205 + $0x58] sm:$0xff]
    %v3218 = vld [vmem:[%s3205 + $0x60] sm:$0xff]
    %v3219 = vld [vmem:[%s3205 + $0x68] sm:$0xff]
    %v3220 = vld [vmem:[%s3205 + $0x70] sm:$0xff]
    %v3221 = vld [vmem:[%s3205 + $0x78] sm:$0xff]
    %v3222 = vld [vmem:[%s3205 + $0x80] sm:$0xff]
    %v3223 = vld [vmem:[%s3205 + $0x88] sm:$0xff]
    %v3224 = vld [vmem:[%s3205 + $0x90] sm:$0xff]
    %v3225 = vld [vmem:[%s3205 + $0x98] sm:$0xff]
    %3226 = vmatprep.subr.mxu0 0.0
    %3227 = vmatpush1.msra.mxu0 %v3206
    %3228 = vmatprep.subr.mxu0 0.0
    %3229 = vmatpush1.msra.mxu0 %v3207
    %3230 = vmatprep.subr.mxu0 0.0
    %3231 = vmatpush1.msra.mxu0 %v3208
    %3232 = vmatprep.subr.mxu0 0.0
    %3233 = vmatpush1.msra.mxu0 %v3209
    %3234 = vmatprep.subr.mxu0 0.0
    %3235 = vmatpush1.msra.mxu0 %v3210
    %3236 = vmatprep.subr.mxu0 0.0
    %3237 = vmatpush1.msra.mxu0 %v3211
    %3238 = vmatprep.subr.mxu0 0.0
    %3239 = vmatpush1.msra.mxu0 %v3212
    %3240 = vmatprep.subr.mxu0 0.0
    %3241 = vmatpush1.msra.mxu0 %v3213
    %3242 = vmatprep.subr.mxu0 0.0
    %3243 = vmatpush1.msra.mxu0 %v3214
    %3244 = vmatprep.subr.mxu0 0.0
    %3245 = vmatpush1.msra.mxu0 %v3215
    %3246 = vmatprep.subr.mxu0 0.0
    %3247 = vmatpush1.msra.mxu0 %v3216
    %3248 = vmatprep.subr.mxu0 0.0
    %3249 = vmatpush1.msra.mxu0 %v3217
    %3250 = vmatprep.subr.mxu0 0.0
    %3251 = vmatpush1.msra.mxu0 %v3218
    %3252 = vmatprep.subr.mxu0 0.0
    %3253 = vmatpush1.msra.mxu0 %v3219
    %3254 = vmatprep.subr.mxu0 0.0
    %3255 = vmatpush1.msra.mxu0 %v3220
    %3256 = vmatprep.subr.mxu0 0.0
    %3257 = vmatpush1.msra.mxu0 %v3221
    %3258 = vmatprep.subr.mxu0 0.0
    %3259 = vmatpush1.msra.mxu0 %v3222
    %3260 = vmatprep.subr.mxu0 0.0
    %3261 = vmatpush1.msra.mxu0 %v3223
    %3262 = vmatprep.subr.mxu0 0.0
    %3263 = vmatpush1.msra.mxu0 %v3224
    %3264 = vmatprep.subr.mxu0 0.0
    %3265 = vmatpush1.msra.mxu0 %v3225
    %3266 = vmatprep.subr.mxu0 0.0
    %3267 = vmatpush1.msra.mxu0 0.0
    %3268 = vmatprep.subr.mxu0 0.0
    %3269 = vmatpush1.msra.mxu0 0.0
    %3270 = vmatprep.subr.mxu0 0.0
    %3271 = vmatpush1.msra.mxu0 0.0
    %3272 = vmatprep.subr.mxu0 0.0
    %3273 = vmatpush1.msra.mxu0 0.0
    %3274 = vmatprep.subr.mxu0 0.0
    %3275 = vmatpush1.msra.mxu0 0.0
    %3276 = vmatprep.subr.mxu0 0.0
    %3277 = vmatpush1.msra.mxu0 0.0
    %3278 = vmatprep.subr.mxu0 0.0
    %3279 = vmatpush1.msra.mxu0 0.0
    %3280 = vmatprep.subr.mxu0 0.0
    %3281 = vmatpush1.msra.mxu0 0.0
    %3282 = vmatprep.subr.mxu0 0.0
    %3283 = vmatpush1.msra.mxu0 0.0
    %3284 = vmatprep.subr.mxu0 0.0
    %3285 = vmatpush1.msra.mxu0 0.0
    %3286 = vmatprep.subr.mxu0 0.0
    %3287 = vmatpush1.msra.mxu0 0.0
    %3288 = vmatprep.subr.mxu0 0.0
    %3289 = vmatpush1.msra.mxu0 0.0
    %3290 = vmatprep.mubr.f32.mxu0 %v2184
    %3291 = vmatmul.mubr.f32.gmra.mrb[0].mxu0 %v2035
    %v3292 = vpop.f32.mrb[0].mxu0
    %v3293 = vadd.f32 %v2106, %v3292
    %v3294 = vpop.f32.mrb[0].mxu0
    %3295 = vmatprep.mubr.f32.mxu0 %v2187
    %3296 = vmatmul.mubr.f32.gmra.mrb[0].mxu0 %v2037
    %v3297 = vpop.f32.mrb[0].mxu0
    %v3298 = vadd.f32 %v2111, %v3297
    %v3299 = vpop.f32.mrb[0].mxu0
    %3300 = vmatprep.mubr.f32.mxu0 %v2190
    %3301 = vmatmul.mubr.f32.gmra.mrb[0].mxu0 %v2039
    %v3302 = vpop.f32.mrb[0].mxu0
    %v3303 = vadd.f32 %v2116, %v3302
    %v3304 = vpop.f32.mrb[0].mxu0
    %3305 = vmatprep.mubr.f32.mxu0 %v2193
    %3306 = vmatmul.mubr.f32.gmra.mrb[0].mxu0 %v2041
    %v3307 = vpop.f32.mrb[0].mxu0
    %v3308 = vadd.f32 %v2121, %v3307
    %v3309 = vpop.f32.mrb[0].mxu0
    %3310 = vmatprep.mubr.f32.mxu0 %v2196
    %3311 = vmatmul.mubr.f32.gmra.mrb[0].mxu0 %v2043
    %v3312 = vpop.f32.mrb[0].mxu0
    %v3313 = vadd.f32 %v2126, %v3312
    %v3314 = vpop.f32.mrb[0].mxu0
    %3315 = vmatprep.mubr.f32.mxu0 %v2199
    %3316 = vmatmul.mubr.f32.gmra.mrb[0].mxu0 %v2045
    %v3317 = vpop.f32.mrb[0].mxu0
    %v3318 = vadd.f32 %v2131, %v3317
    %v3319 = vpop.f32.mrb[0].mxu0
    %3320 = vmatprep.mubr.f32.mxu0 %v2202
    %3321 = vmatmul.mubr.f32.gmra.mrb[0].mxu0 %v2047
    %v3322 = vpop.f32.mrb[0].mxu0
    %v3323 = vadd.f32 %v2136, %v3322
    %v3324 = vpop.f32.mrb[0].mxu0
    %3325 = vmatprep.mubr.f32.mxu0 %v2205
    %3326 = vmatmul.mubr.f32.gmra.mrb[0].mxu0 %v2049
    %v3327 = vpop.f32.mrb[0].mxu0
    %v3328 = vadd.f32 %v2141, %v3327
    %v3329 = vpop.f32.mrb[0].mxu0
    %3330 = vmatprep.mubr.f32.mxu0 %v2208
    %3331 = vmatmul.mubr.f32.gmra.mrb[0].mxu0 %v2051
    %v3332 = vpop.f32.mrb[0].mxu0
    %v3333 = vadd.f32 %v2146, %v3332
    %v3334 = vpop.f32.mrb[0].mxu0
    %3335 = vmatprep.mubr.f32.mxu0 %v2211
    %3336 = vmatmul.mubr.f32.gmra.mrb[0].mxu0 %v2053
    %v3337 = vpop.f32.mrb[0].mxu0
    %v3338 = vadd.f32 %v2151, %v3337
    %v3339 = vpop.f32.mrb[0].mxu0
    %3340 = vmatprep.mubr.f32.mxu0 %v2214
    %3341 = vmatmul.mubr.f32.gmra.mrb[0].mxu0 %v2055
    %v3342 = vpop.f32.mrb[0].mxu0
    %v3343 = vadd.f32 %v2156, %v3342
    %v3344 = vpop.f32.mrb[0].mxu0
    %3345 = vmatprep.mubr.f32.mxu0 %v2217
    %3346 = vmatmul.mubr.f32.gmra.mrb[0].mxu0 %v2057
    %v3347 = vpop.f32.mrb[0].mxu0
    %v3348 = vadd.f32 %v2161, %v3347
    %v3349 = vpop.f32.mrb[0].mxu0
    %3350 = vmatprep.mubr.f32.mxu0 %v2220
    %3351 = vmatmul.mubr.f32.gmra.mrb[0].mxu0 %v2059
    %v3352 = vpop.f32.mrb[0].mxu0
    %v3353 = vadd.f32 %v2166, %v3352
    %v3354 = vpop.f32.mrb[0].mxu0
    %3355 = vmatprep.mubr.f32.mxu0 %v2223
    %3356 = vmatmul.mubr.f32.gmra.mrb[0].mxu0 %v2061
    %v3357 = vpop.f32.mrb[0].mxu0
    %v3358 = vadd.f32 %v2171, %v3357
    %v3359 = vpop.f32.mrb[0].mxu0
    %3360 = vmatprep.mubr.f32.mxu0 %v2226
    %3361 = vmatmul.mubr.f32.gmra.mrb[0].mxu0 %v2063
    %v3362 = vpop.f32.mrb[0].mxu0
    %v3363 = vadd.f32 %v2176, %v3362
    %v3364 = vpop.f32.mrb[0].mxu0
    %3365 = vmatprep.mubr.f32.mxu0 %v2229
    %3366 = vmatmul.mubr.f32.gmra.mrb[0].mxu0 %v2065
    %v3367 = vpop.f32.mrb[0].mxu0
    %v3368 = vadd.f32 %v2181, %v3367
    %v3369 = vpop.f32.mrb[0].mxu0
    %3370 = vdwg.mxu0
    %v3371 = vmax.f32 %v3293, 0.0
    %v3372 = vmax.f32 %v3298, 0.0
    %v3373 = vmax.f32 %v3303, 0.0
    %v3374 = vmax.f32 %v3308, 0.0
    %v3375 = vmax.f32 %v3313, 0.0
    %v3376 = vmax.f32 %v3318, 0.0
    %v3377 = vmax.f32 %v3323, 0.0
    %v3378 = vmax.f32 %v3328, 0.0
    %v3379 = vmax.f32 %v3333, 0.0
    %v3380 = vmax.f32 %v3338, 0.0
    %v3381 = vmax.f32 %v3343, 0.0
    %v3382 = vmax.f32 %v3348, 0.0
    %v3383 = vmax.f32 %v3353, 0.0
    %v3384 = vmax.f32 %v3358, 0.0
    %v3385 = vmax.f32 %v3363, 0.0
    %v3386 = vmax.f32 %v3368, 0.0
    %s3387 = scalar_lea.vmem [#allocation3], 656
    %3388 = vst [vmem:[%s3387] sm:$0xff] %v3371
    %3389 = vst [vmem:[%s3387 + $0x8] sm:$0xff] %v3372
    %3390 = vst [vmem:[%s3387 + $0x10] sm:$0xff] %v3373
    %3391 = vst [vmem:[%s3387 + $0x18] sm:$0xff] %v3374
    %3392 = vst [vmem:[%s3387 + $0x20] sm:$0xff] %v3375
    %3393 = vst [vmem:[%s3387 + $0x28] sm:$0xff] %v3376
    %3394 = vst [vmem:[%s3387 + $0x30] sm:$0xff] %v3377
    %3395 = vst [vmem:[%s3387 + $0x38] sm:$0xff] %v3378
    %3396 = vst [vmem:[%s3387 + $0x40] sm:$0xff] %v3379
    %3397 = vst [vmem:[%s3387 + $0x48] sm:$0xff] %v3380
    %3398 = vst [vmem:[%s3387 + $0x50] sm:$0xff] %v3381
    %3399 = vst [vmem:[%s3387 + $0x58] sm:$0xff] %v3382
    %3400 = vst [vmem:[%s3387 + $0x60] sm:$0xff] %v3383
    %3401 = vst [vmem:[%s3387 + $0x68] sm:$0xff] %v3384
    %3402 = vst [vmem:[%s3387 + $0x70] sm:$0xff] %v3385
    %3403 = vst [vmem:[%s3387 + $0x78] sm:$0xff] %v3386
    %s3404 = scalar_lea.vmem [#allocation2], 768
    %v3405 = vld [vmem:[%s3404] sm:$0xff]
    %v3406 = vld [vmem:[%s3404 + $0x8] sm:$0xff]
    %v3407 = vld [vmem:[%s3404 + $0x10] sm:$0xff]
    %v3408 = vld [vmem:[%s3404 + $0x18] sm:$0xff]
    %v3409 = vld [vmem:[%s3404 + $0x20] sm:$0xff]
    %v3410 = vld [vmem:[%s3404 + $0x28] sm:$0xff]
    %v3411 = vld [vmem:[%s3404 + $0x30] sm:$0xff]
    %v3412 = vld [vmem:[%s3404 + $0x38] sm:$0xff]
    %v3413 = vld [vmem:[%s3404 + $0x40] sm:$0xff]
    %v3414 = vld [vmem:[%s3404 + $0x48] sm:$0xff]
    %v3415 = vld [vmem:[%s3404 + $0x50] sm:$0xff]
    %v3416 = vld [vmem:[%s3404 + $0x58] sm:$0xff]
    %v3417 = vld [vmem:[%s3404 + $0x60] sm:$0xff]
    %v3418 = vld [vmem:[%s3404 + $0x68] sm:$0xff]
    %v3419 = vld [vmem:[%s3404 + $0x70] sm:$0xff]
    %v3420 = vld [vmem:[%s3404 + $0x78] sm:$0xff]
    %v3421 = vld [vmem:[%s3404 + $0x80] sm:$0xff]
    %v3422 = vld [vmem:[%s3404 + $0x88] sm:$0xff]
    %v3423 = vld [vmem:[%s3404 + $0x90] sm:$0xff]
    %v3424 = vld [vmem:[%s3404 + $0x98] sm:$0xff]
    %3425 = vmatprep.subr.mxu0 0.0
    %3426 = vmatpush1.msra.mxu0 %v3405
    %3427 = vmatprep.subr.mxu0 0.0
    %3428 = vmatpush1.msra.mxu0 %v3406
    %3429 = vmatprep.subr.mxu0 0.0
    %3430 = vmatpush1.msra.mxu0 %v3407
    %3431 = vmatprep.subr.mxu0 0.0
    %3432 = vmatpush1.msra.mxu0 %v3408
    %3433 = vmatprep.subr.mxu0 0.0
    %3434 = vmatpush1.msra.mxu0 %v3409
    %3435 = vmatprep.subr.mxu0 0.0
    %3436 = vmatpush1.msra.mxu0 %v3410
    %3437 = vmatprep.subr.mxu0 0.0
    %3438 = vmatpush1.msra.mxu0 %v3411
    %3439 = vmatprep.subr.mxu0 0.0
    %3440 = vmatpush1.msra.mxu0 %v3412
    %3441 = vmatprep.subr.mxu0 0.0
    %3442 = vmatpush1.msra.mxu0 %v3413
    %3443 = vmatprep.subr.mxu0 0.0
    %3444 = vmatpush1.msra.mxu0 %v3414
    %3445 = vmatprep.subr.mxu0 0.0
    %3446 = vmatpush1.msra.mxu0 %v3415
    %3447 = vmatprep.subr.mxu0 0.0
    %3448 = vmatpush1.msra.mxu0 %v3416
    %3449 = vmatprep.subr.mxu0 0.0
    %3450 = vmatpush1.msra.mxu0 %v3417
    %3451 = vmatprep.subr.mxu0 0.0
    %3452 = vmatpush1.msra.mxu0 %v3418
    %3453 = vmatprep.subr.mxu0 0.0
    %3454 = vmatpush1.msra.mxu0 %v3419
    %3455 = vmatprep.subr.mxu0 0.0
    %3456 = vmatpush1.msra.mxu0 %v3420
    %3457 = vmatprep.subr.mxu0 0.0
    %3458 = vmatpush1.msra.mxu0 %v3421
    %3459 = vmatprep.subr.mxu0 0.0
    %3460 = vmatpush1.msra.mxu0 %v3422
    %3461 = vmatprep.subr.mxu0 0.0
    %3462 = vmatpush1.msra.mxu0 %v3423
    %3463 = vmatprep.subr.mxu0 0.0
    %3464 = vmatpush1.msra.mxu0 %v3424
    %3465 = vmatprep.subr.mxu0 0.0
    %3466 = vmatpush1.msra.mxu0 0.0
    %3467 = vmatprep.subr.mxu0 0.0
    %3468 = vmatpush1.msra.mxu0 0.0
    %3469 = vmatprep.subr.mxu0 0.0
    %3470 = vmatpush1.msra.mxu0 0.0
    %3471 = vmatprep.subr.mxu0 0.0
    %3472 = vmatpush1.msra.mxu0 0.0
    %3473 = vmatprep.subr.mxu0 0.0
    %3474 = vmatpush1.msra.mxu0 0.0
    %3475 = vmatprep.subr.mxu0 0.0
    %3476 = vmatpush1.msra.mxu0 0.0
    %3477 = vmatprep.subr.mxu0 0.0
    %3478 = vmatpush1.msra.mxu0 0.0
    %3479 = vmatprep.subr.mxu0 0.0
    %3480 = vmatpush1.msra.mxu0 0.0
    %3481 = vmatprep.subr.mxu0 0.0
    %3482 = vmatpush1.msra.mxu0 0.0
    %3483 = vmatprep.subr.mxu0 0.0
    %3484 = vmatpush1.msra.mxu0 0.0
    %3485 = vmatprep.subr.mxu0 0.0
    %3486 = vmatpush1.msra.mxu0 0.0
    %3487 = vmatprep.subr.mxu0 0.0
    %3488 = vmatpush1.msra.mxu0 0.0
    %3489 = vmatprep.mubr.f32.mxu0 %v2184
    %3490 = vmatmul.mubr.f32.gmra.mrb[0].mxu0 %v2035
    %v3491 = vpop.f32.mrb[0].mxu0
    %v3492 = vadd.f32 %v2106, %v3491
    %v3493 = vpop.f32.mrb[0].mxu0
    %3494 = vmatprep.mubr.f32.mxu0 %v2187
    %3495 = vmatmul.mubr.f32.gmra.mrb[0].mxu0 %v2037
    %v3496 = vpop.f32.mrb[0].mxu0
    %v3497 = vadd.f32 %v2111, %v3496
    %v3498 = vpop.f32.mrb[0].mxu0
    %3499 = vmatprep.mubr.f32.mxu0 %v2190
    %3500 = vmatmul.mubr.f32.gmra.mrb[0].mxu0 %v2039
    %v3501 = vpop.f32.mrb[0].mxu0
    %v3502 = vadd.f32 %v2116, %v3501
    %v3503 = vpop.f32.mrb[0].mxu0
    %3504 = vmatprep.mubr.f32.mxu0 %v2193
    %3505 = vmatmul.mubr.f32.gmra.mrb[0].mxu0 %v2041
    %v3506 = vpop.f32.mrb[0].mxu0
    %v3507 = vadd.f32 %v2121, %v3506
    %v3508 = vpop.f32.mrb[0].mxu0
    %3509 = vmatprep.mubr.f32.mxu0 %v2196
    %3510 = vmatmul.mubr.f32.gmra.mrb[0].mxu0 %v2043
    %v3511 = vpop.f32.mrb[0].mxu0
    %v3512 = vadd.f32 %v2126, %v3511
    %v3513 = vpop.f32.mrb[0].mxu0
    %3514 = vmatprep.mubr.f32.mxu0 %v2199
    %3515 = vmatmul.mubr.f32.gmra.mrb[0].mxu0 %v2045
    %v3516 = vpop.f32.mrb[0].mxu0
    %v3517 = vadd.f32 %v2131, %v3516
    %v3518 = vpop.f32.mrb[0].mxu0
    %3519 = vmatprep.mubr.f32.mxu0 %v2202
    %3520 = vmatmul.mubr.f32.gmra.mrb[0].mxu0 %v2047
    %v3521 = vpop.f32.mrb[0].mxu0
    %v3522 = vadd.f32 %v2136, %v3521
    %v3523 = vpop.f32.mrb[0].mxu0
    %3524 = vmatprep.mubr.f32.mxu0 %v2205
    %3525 = vmatmul.mubr.f32.gmra.mrb[0].mxu0 %v2049
    %v3526 = vpop.f32.mrb[0].mxu0
    %v3527 = vadd.f32 %v2141, %v3526
    %v3528 = vpop.f32.mrb[0].mxu0
    %3529 = vmatprep.mubr.f32.mxu0 %v2208
    %3530 = vmatmul.mubr.f32.gmra.mrb[0].mxu0 %v2051
    %v3531 = vpop.f32.mrb[0].mxu0
    %v3532 = vadd.f32 %v2146, %v3531
    %v3533 = vpop.f32.mrb[0].mxu0
    %3534 = vmatprep.mubr.f32.mxu0 %v2211
    %3535 = vmatmul.mubr.f32.gmra.mrb[0].mxu0 %v2053
    %v3536 = vpop.f32.mrb[0].mxu0
    %v3537 = vadd.f32 %v2151, %v3536
    %v3538 = vpop.f32.mrb[0].mxu0
    %3539 = vmatprep.mubr.f32.mxu0 %v2214
    %3540 = vmatmul.mubr.f32.gmra.mrb[0].mxu0 %v2055
    %v3541 = vpop.f32.mrb[0].mxu0
    %v3542 = vadd.f32 %v2156, %v3541
    %v3543 = vpop.f32.mrb[0].mxu0
    %3544 = vmatprep.mubr.f32.mxu0 %v2217
    %3545 = vmatmul.mubr.f32.gmra.mrb[0].mxu0 %v2057
    %v3546 = vpop.f32.mrb[0].mxu0
    %v3547 = vadd.f32 %v2161, %v3546
    %v3548 = vpop.f32.mrb[0].mxu0
    %3549 = vmatprep.mubr.f32.mxu0 %v2220
    %3550 = vmatmul.mubr.f32.gmra.mrb[0].mxu0 %v2059
    %v3551 = vpop.f32.mrb[0].mxu0
    %v3552 = vadd.f32 %v2166, %v3551
    %v3553 = vpop.f32.mrb[0].mxu0
    %3554 = vmatprep.mubr.f32.mxu0 %v2223
    %3555 = vmatmul.mubr.f32.gmra.mrb[0].mxu0 %v2061
    %v3556 = vpop.f32.mrb[0].mxu0
    %v3557 = vadd.f32 %v2171, %v3556
    %v3558 = vpop.f32.mrb[0].mxu0
    %3559 = vmatprep.mubr.f32.mxu0 %v2226
    %3560 = vmatmul.mubr.f32.gmra.mrb[0].mxu0 %v2063
    %v3561 = vpop.f32.mrb[0].mxu0
    %v3562 = vadd.f32 %v2176, %v3561
    %v3563 = vpop.f32.mrb[0].mxu0
    %3564 = vmatprep.mubr.f32.mxu0 %v2229
    %3565 = vmatmul.mubr.f32.gmra.mrb[0].mxu0 %v2065
    %v3566 = vpop.f32.mrb[0].mxu0
    %v3567 = vadd.f32 %v2181, %v3566
    %v3568 = vpop.f32.mrb[0].mxu0
    %3569 = vdwg.mxu0
    %v3570 = vmax.f32 %v3492, 0.0
    %v3571 = vmax.f32 %v3497, 0.0
    %v3572 = vmax.f32 %v3502, 0.0
    %v3573 = vmax.f32 %v3507, 0.0
    %v3574 = vmax.f32 %v3512, 0.0
    %v3575 = vmax.f32 %v3517, 0.0
    %v3576 = vmax.f32 %v3522, 0.0
    %v3577 = vmax.f32 %v3527, 0.0
    %v3578 = vmax.f32 %v3532, 0.0
    %v3579 = vmax.f32 %v3537, 0.0
    %v3580 = vmax.f32 %v3542, 0.0
    %v3581 = vmax.f32 %v3547, 0.0
    %v3582 = vmax.f32 %v3552, 0.0
    %v3583 = vmax.f32 %v3557, 0.0
    %v3584 = vmax.f32 %v3562, 0.0
    %v3585 = vmax.f32 %v3567, 0.0
    %s3586 = scalar_lea.vmem [#allocation3], 784
    %3587 = vst [vmem:[%s3586] sm:$0xff] %v3570
    %3588 = vst [vmem:[%s3586 + $0x8] sm:$0xff] %v3571
    %3589 = vst [vmem:[%s3586 + $0x10] sm:$0xff] %v3572
    %3590 = vst [vmem:[%s3586 + $0x18] sm:$0xff] %v3573
    %3591 = vst [vmem:[%s3586 + $0x20] sm:$0xff] %v3574
    %3592 = vst [vmem:[%s3586 + $0x28] sm:$0xff] %v3575
    %3593 = vst [vmem:[%s3586 + $0x30] sm:$0xff] %v3576
    %3594 = vst [vmem:[%s3586 + $0x38] sm:$0xff] %v3577
    %3595 = vst [vmem:[%s3586 + $0x40] sm:$0xff] %v3578
    %3596 = vst [vmem:[%s3586 + $0x48] sm:$0xff] %v3579
    %3597 = vst [vmem:[%s3586 + $0x50] sm:$0xff] %v3580
    %3598 = vst [vmem:[%s3586 + $0x58] sm:$0xff] %v3581
    %3599 = vst [vmem:[%s3586 + $0x60] sm:$0xff] %v3582
    %3600 = vst [vmem:[%s3586 + $0x68] sm:$0xff] %v3583
    %3601 = vst [vmem:[%s3586 + $0x70] sm:$0xff] %v3584
    %3602 = vst [vmem:[%s3586 + $0x78] sm:$0xff] %v3585
    %s3603 = scalar_lea.vmem [#allocation2], 896
    %v3604 = vld [vmem:[%s3603] sm:$0xff]
    %v3605 = vld [vmem:[%s3603 + $0x8] sm:$0xff]
    %v3606 = vld [vmem:[%s3603 + $0x10] sm:$0xff]
    %v3607 = vld [vmem:[%s3603 + $0x18] sm:$0xff]
    %v3608 = vld [vmem:[%s3603 + $0x20] sm:$0xff]
    %v3609 = vld [vmem:[%s3603 + $0x28] sm:$0xff]
    %v3610 = vld [vmem:[%s3603 + $0x30] sm:$0xff]
    %v3611 = vld [vmem:[%s3603 + $0x38] sm:$0xff]
    %v3612 = vld [vmem:[%s3603 + $0x40] sm:$0xff]
    %v3613 = vld [vmem:[%s3603 + $0x48] sm:$0xff]
    %v3614 = vld [vmem:[%s3603 + $0x50] sm:$0xff]
    %v3615 = vld [vmem:[%s3603 + $0x58] sm:$0xff]
    %v3616 = vld [vmem:[%s3603 + $0x60] sm:$0xff]
    %v3617 = vld [vmem:[%s3603 + $0x68] sm:$0xff]
    %v3618 = vld [vmem:[%s3603 + $0x70] sm:$0xff]
    %v3619 = vld [vmem:[%s3603 + $0x78] sm:$0xff]
    %v3620 = vld [vmem:[%s3603 + $0x80] sm:$0xff]
    %v3621 = vld [vmem:[%s3603 + $0x88] sm:$0xff]
    %v3622 = vld [vmem:[%s3603 + $0x90] sm:$0xff]
    %v3623 = vld [vmem:[%s3603 + $0x98] sm:$0xff]
    %3624 = vmatprep.subr.mxu0 0.0
    %3625 = vmatpush1.msra.mxu0 %v3604
    %3626 = vmatprep.subr.mxu0 0.0
    %3627 = vmatpush1.msra.mxu0 %v3605
    %3628 = vmatprep.subr.mxu0 0.0
    %3629 = vmatpush1.msra.mxu0 %v3606
    %3630 = vmatprep.subr.mxu0 0.0
    %3631 = vmatpush1.msra.mxu0 %v3607
    %3632 = vmatprep.subr.mxu0 0.0
    %3633 = vmatpush1.msra.mxu0 %v3608
    %3634 = vmatprep.subr.mxu0 0.0
    %3635 = vmatpush1.msra.mxu0 %v3609
    %3636 = vmatprep.subr.mxu0 0.0
    %3637 = vmatpush1.msra.mxu0 %v3610
    %3638 = vmatprep.subr.mxu0 0.0
    %3639 = vmatpush1.msra.mxu0 %v3611
    %3640 = vmatprep.subr.mxu0 0.0
    %3641 = vmatpush1.msra.mxu0 %v3612
    %3642 = vmatprep.subr.mxu0 0.0
    %3643 = vmatpush1.msra.mxu0 %v3613
    %3644 = vmatprep.subr.mxu0 0.0
    %3645 = vmatpush1.msra.mxu0 %v3614
    %3646 = vmatprep.subr.mxu0 0.0
    %3647 = vmatpush1.msra.mxu0 %v3615
    %3648 = vmatprep.subr.mxu0 0.0
    %3649 = vmatpush1.msra.mxu0 %v3616
    %3650 = vmatprep.subr.mxu0 0.0
    %3651 = vmatpush1.msra.mxu0 %v3617
    %3652 = vmatprep.subr.mxu0 0.0
    %3653 = vmatpush1.msra.mxu0 %v3618
    %3654 = vmatprep.subr.mxu0 0.0
    %3655 = vmatpush1.msra.mxu0 %v3619
    %3656 = vmatprep.subr.mxu0 0.0
    %3657 = vmatpush1.msra.mxu0 %v3620
    %3658 = vmatprep.subr.mxu0 0.0
    %3659 = vmatpush1.msra.mxu0 %v3621
    %3660 = vmatprep.subr.mxu0 0.0
    %3661 = vmatpush1.msra.mxu0 %v3622
    %3662 = vmatprep.subr.mxu0 0.0
    %3663 = vmatpush1.msra.mxu0 %v3623
    %3664 = vmatprep.subr.mxu0 0.0
    %3665 = vmatpush1.msra.mxu0 0.0
    %3666 = vmatprep.subr.mxu0 0.0
    %3667 = vmatpush1.msra.mxu0 0.0
    %3668 = vmatprep.subr.mxu0 0.0
    %3669 = vmatpush1.msra.mxu0 0.0
    %3670 = vmatprep.subr.mxu0 0.0
    %3671 = vmatpush1.msra.mxu0 0.0
    %3672 = vmatprep.subr.mxu0 0.0
    %3673 = vmatpush1.msra.mxu0 0.0
    %3674 = vmatprep.subr.mxu0 0.0
    %3675 = vmatpush1.msra.mxu0 0.0
    %3676 = vmatprep.subr.mxu0 0.0
    %3677 = vmatpush1.msra.mxu0 0.0
    %3678 = vmatprep.subr.mxu0 0.0
    %3679 = vmatpush1.msra.mxu0 0.0
    %3680 = vmatprep.subr.mxu0 0.0
    %3681 = vmatpush1.msra.mxu0 0.0
    %3682 = vmatprep.subr.mxu0 0.0
    %3683 = vmatpush1.msra.mxu0 0.0
    %3684 = vmatprep.subr.mxu0 0.0
    %3685 = vmatpush1.msra.mxu0 0.0
    %3686 = vmatprep.subr.mxu0 0.0
    %3687 = vmatpush1.msra.mxu0 0.0
    %3688 = vmatprep.mubr.f32.mxu0 %v2184
    %3689 = vmatmul.mubr.f32.gmra.mrb[0].mxu0 %v2035
    %v3690 = vpop.f32.mrb[0].mxu0
    %v3691 = vadd.f32 %v2106, %v3690
    %v3692 = vpop.f32.mrb[0].mxu0
    %3693 = vmatprep.mubr.f32.mxu0 %v2187
    %3694 = vmatmul.mubr.f32.gmra.mrb[0].mxu0 %v2037
    %v3695 = vpop.f32.mrb[0].mxu0
    %v3696 = vadd.f32 %v2111, %v3695
    %v3697 = vpop.f32.mrb[0].mxu0
    %3698 = vmatprep.mubr.f32.mxu0 %v2190
    %3699 = vmatmul.mubr.f32.gmra.mrb[0].mxu0 %v2039
    %v3700 = vpop.f32.mrb[0].mxu0
    %v3701 = vadd.f32 %v2116, %v3700
    %v3702 = vpop.f32.mrb[0].mxu0
    %3703 = vmatprep.mubr.f32.mxu0 %v2193
    %3704 = vmatmul.mubr.f32.gmra.mrb[0].mxu0 %v2041
    %v3705 = vpop.f32.mrb[0].mxu0
    %v3706 = vadd.f32 %v2121, %v3705
    %v3707 = vpop.f32.mrb[0].mxu0
    %3708 = vmatprep.mubr.f32.mxu0 %v2196
    %3709 = vmatmul.mubr.f32.gmra.mrb[0].mxu0 %v2043
    %v3710 = vpop.f32.mrb[0].mxu0
    %v3711 = vadd.f32 %v2126, %v3710
    %v3712 = vpop.f32.mrb[0].mxu0
    %3713 = vmatprep.mubr.f32.mxu0 %v2199
    %3714 = vmatmul.mubr.f32.gmra.mrb[0].mxu0 %v2045
    %v3715 = vpop.f32.mrb[0].mxu0
    %v3716 = vadd.f32 %v2131, %v3715
    %v3717 = vpop.f32.mrb[0].mxu0
    %3718 = vmatprep.mubr.f32.mxu0 %v2202
    %3719 = vmatmul.mubr.f32.gmra.mrb[0].mxu0 %v2047
    %v3720 = vpop.f32.mrb[0].mxu0
    %v3721 = vadd.f32 %v2136, %v3720
    %v3722 = vpop.f32.mrb[0].mxu0
    %3723 = vmatprep.mubr.f32.mxu0 %v2205
    %3724 = vmatmul.mubr.f32.gmra.mrb[0].mxu0 %v2049
    %v3725 = vpop.f32.mrb[0].mxu0
    %v3726 = vadd.f32 %v2141, %v3725
    %v3727 = vpop.f32.mrb[0].mxu0
    %3728 = vmatprep.mubr.f32.mxu0 %v2208
    %3729 = vmatmul.mubr.f32.gmra.mrb[0].mxu0 %v2051
    %v3730 = vpop.f32.mrb[0].mxu0
    %v3731 = vadd.f32 %v2146, %v3730
    %v3732 = vpop.f32.mrb[0].mxu0
    %3733 = vmatprep.mubr.f32.mxu0 %v2211
    %3734 = vmatmul.mubr.f32.gmra.mrb[0].mxu0 %v2053
    %v3735 = vpop.f32.mrb[0].mxu0
    %v3736 = vadd.f32 %v2151, %v3735
    %v3737 = vpop.f32.mrb[0].mxu0
    %3738 = vmatprep.mubr.f32.mxu0 %v2214
    %3739 = vmatmul.mubr.f32.gmra.mrb[0].mxu0 %v2055
    %v3740 = vpop.f32.mrb[0].mxu0
    %v3741 = vadd.f32 %v2156, %v3740
    %v3742 = vpop.f32.mrb[0].mxu0
    %3743 = vmatprep.mubr.f32.mxu0 %v2217
    %3744 = vmatmul.mubr.f32.gmra.mrb[0].mxu0 %v2057
    %v3745 = vpop.f32.mrb[0].mxu0
    %v3746 = vadd.f32 %v2161, %v3745
    %v3747 = vpop.f32.mrb[0].mxu0
    %3748 = vmatprep.mubr.f32.mxu0 %v2220
    %3749 = vmatmul.mubr.f32.gmra.mrb[0].mxu0 %v2059
    %v3750 = vpop.f32.mrb[0].mxu0
    %v3751 = vadd.f32 %v2166, %v3750
    %v3752 = vpop.f32.mrb[0].mxu0
    %3753 = vmatprep.mubr.f32.mxu0 %v2223
    %3754 = vmatmul.mubr.f32.gmra.mrb[0].mxu0 %v2061
    %v3755 = vpop.f32.mrb[0].mxu0
    %v3756 = vadd.f32 %v2171, %v3755
    %v3757 = vpop.f32.mrb[0].mxu0
    %3758 = vmatprep.mubr.f32.mxu0 %v2226
    %3759 = vmatmul.mubr.f32.gmra.mrb[0].mxu0 %v2063
    %v3760 = vpop.f32.mrb[0].mxu0
    %v3761 = vadd.f32 %v2176, %v3760
    %v3762 = vpop.f32.mrb[0].mxu0
    %3763 = vmatprep.mubr.f32.mxu0 %v2229
    %3764 = vmatmul.mubr.f32.gmra.mrb[0].mxu0 %v2065
    %v3765 = vpop.f32.mrb[0].mxu0
    %v3766 = vadd.f32 %v2181, %v3765
    %v3767 = vpop.f32.mrb[0].mxu0
    %3768 = vdwg.mxu0
    %v3769 = vmax.f32 %v3691, 0.0
    %v3770 = vmax.f32 %v3696, 0.0
    %v3771 = vmax.f32 %v3701, 0.0
    %v3772 = vmax.f32 %v3706, 0.0
    %v3773 = vmax.f32 %v3711, 0.0
    %v3774 = vmax.f32 %v3716, 0.0
    %v3775 = vmax.f32 %v3721, 0.0
    %v3776 = vmax.f32 %v3726, 0.0
    %v3777 = vmax.f32 %v3731, 0.0
    %v3778 = vmax.f32 %v3736, 0.0
    %v3779 = vmax.f32 %v3741, 0.0
    %v3780 = vmax.f32 %v3746, 0.0
    %v3781 = vmax.f32 %v3751, 0.0
    %v3782 = vmax.f32 %v3756, 0.0
    %v3783 = vmax.f32 %v3761, 0.0
    %v3784 = vmax.f32 %v3766, 0.0
    %s3785 = scalar_lea.vmem [#allocation3], 912
    %3786 = vst [vmem:[%s3785] sm:$0xff] %v3769
    %3787 = vst [vmem:[%s3785 + $0x8] sm:$0xff] %v3770
    %3788 = vst [vmem:[%s3785 + $0x10] sm:$0xff] %v3771
    %3789 = vst [vmem:[%s3785 + $0x18] sm:$0xff] %v3772
    %3790 = vst [vmem:[%s3785 + $0x20] sm:$0xff] %v3773
    %3791 = vst [vmem:[%s3785 + $0x28] sm:$0xff] %v3774
    %3792 = vst [vmem:[%s3785 + $0x30] sm:$0xff] %v3775
    %3793 = vst [vmem:[%s3785 + $0x38] sm:$0xff] %v3776
    %3794 = vst [vmem:[%s3785 + $0x40] sm:$0xff] %v3777
    %3795 = vst [vmem:[%s3785 + $0x48] sm:$0xff] %v3778
    %3796 = vst [vmem:[%s3785 + $0x50] sm:$0xff] %v3779
    %3797 = vst [vmem:[%s3785 + $0x58] sm:$0xff] %v3780
    %3798 = vst [vmem:[%s3785 + $0x60] sm:$0xff] %v3781
    %3799 = vst [vmem:[%s3785 + $0x68] sm:$0xff] %v3782
    %3800 = vst [vmem:[%s3785 + $0x70] sm:$0xff] %v3783
    %3801 = vst [vmem:[%s3785 + $0x78] sm:$0xff] %v3784
    %s3802 = scalar_lea.vmem [#allocation2], 928
    %v3803 = vld [vmem:[%s3802] sm:$0xff]
    %v3804 = vld [vmem:[%s3802 + $0x8] sm:$0xff]
    %v3805 = vld [vmem:[%s3802 + $0x10] sm:$0xff]
    %v3806 = vld [vmem:[%s3802 + $0x18] sm:$0xff]
    %v3807 = vld [vmem:[%s3802 + $0x20] sm:$0xff]
    %v3808 = vld [vmem:[%s3802 + $0x28] sm:$0xff]
    %v3809 = vld [vmem:[%s3802 + $0x30] sm:$0xff]
    %v3810 = vld [vmem:[%s3802 + $0x38] sm:$0xff]
    %v3811 = vld [vmem:[%s3802 + $0x40] sm:$0xff]
    %v3812 = vld [vmem:[%s3802 + $0x48] sm:$0xff]
    %v3813 = vld [vmem:[%s3802 + $0x50] sm:$0xff]
    %v3814 = vld [vmem:[%s3802 + $0x58] sm:$0xff]
    %v3815 = vld [vmem:[%s3802 + $0x60] sm:$0xff]
    %v3816 = vld [vmem:[%s3802 + $0x68] sm:$0xff]
    %v3817 = vld [vmem:[%s3802 + $0x70] sm:$0xff]
    %v3818 = vld [vmem:[%s3802 + $0x78] sm:$0xff]
    %v3819 = vld [vmem:[%s3802 + $0x80] sm:$0xff]
    %v3820 = vld [vmem:[%s3802 + $0x88] sm:$0xff]
    %v3821 = vld [vmem:[%s3802 + $0x90] sm:$0xff]
    %v3822 = vld [vmem:[%s3802 + $0x98] sm:$0xff]
    %3823 = vmatprep.subr.mxu0 0.0
    %3824 = vmatpush1.msra.mxu0 %v3803
    %3825 = vmatprep.subr.mxu0 0.0
    %3826 = vmatpush1.msra.mxu0 %v3804
    %3827 = vmatprep.subr.mxu0 0.0
    %3828 = vmatpush1.msra.mxu0 %v3805
    %3829 = vmatprep.subr.mxu0 0.0
    %3830 = vmatpush1.msra.mxu0 %v3806
    %3831 = vmatprep.subr.mxu0 0.0
    %3832 = vmatpush1.msra.mxu0 %v3807
    %3833 = vmatprep.subr.mxu0 0.0
    %3834 = vmatpush1.msra.mxu0 %v3808
    %3835 = vmatprep.subr.mxu0 0.0
    %3836 = vmatpush1.msra.mxu0 %v3809
    %3837 = vmatprep.subr.mxu0 0.0
    %3838 = vmatpush1.msra.mxu0 %v3810
    %3839 = vmatprep.subr.mxu0 0.0
    %3840 = vmatpush1.msra.mxu0 %v3811
    %3841 = vmatprep.subr.mxu0 0.0
    %3842 = vmatpush1.msra.mxu0 %v3812
    %3843 = vmatprep.subr.mxu0 0.0
    %3844 = vmatpush1.msra.mxu0 %v3813
    %3845 = vmatprep.subr.mxu0 0.0
    %3846 = vmatpush1.msra.mxu0 %v3814
    %3847 = vmatprep.subr.mxu0 0.0
    %3848 = vmatpush1.msra.mxu0 %v3815
    %3849 = vmatprep.subr.mxu0 0.0
    %3850 = vmatpush1.msra.mxu0 %v3816
    %3851 = vmatprep.subr.mxu0 0.0
    %3852 = vmatpush1.msra.mxu0 %v3817
    %3853 = vmatprep.subr.mxu0 0.0
    %3854 = vmatpush1.msra.mxu0 %v3818
    %3855 = vmatprep.subr.mxu0 0.0
    %3856 = vmatpush1.msra.mxu0 %v3819
    %3857 = vmatprep.subr.mxu0 0.0
    %3858 = vmatpush1.msra.mxu0 %v3820
    %3859 = vmatprep.subr.mxu0 0.0
    %3860 = vmatpush1.msra.mxu0 %v3821
    %3861 = vmatprep.subr.mxu0 0.0
    %3862 = vmatpush1.msra.mxu0 %v3822
    %3863 = vmatprep.subr.mxu0 0.0
    %3864 = vmatpush1.msra.mxu0 0.0
    %3865 = vmatprep.subr.mxu0 0.0
    %3866 = vmatpush1.msra.mxu0 0.0
    %3867 = vmatprep.subr.mxu0 0.0
    %3868 = vmatpush1.msra.mxu0 0.0
    %3869 = vmatprep.subr.mxu0 0.0
    %3870 = vmatpush1.msra.mxu0 0.0
    %3871 = vmatprep.subr.mxu0 0.0
    %3872 = vmatpush1.msra.mxu0 0.0
    %3873 = vmatprep.subr.mxu0 0.0
    %3874 = vmatpush1.msra.mxu0 0.0
    %3875 = vmatprep.subr.mxu0 0.0
    %3876 = vmatpush1.msra.mxu0 0.0
    %3877 = vmatprep.subr.mxu0 0.0
    %3878 = vmatpush1.msra.mxu0 0.0
    %3879 = vmatprep.subr.mxu0 0.0
    %3880 = vmatpush1.msra.mxu0 0.0
    %3881 = vmatprep.subr.mxu0 0.0
    %3882 = vmatpush1.msra.mxu0 0.0
    %3883 = vmatprep.subr.mxu0 0.0
    %3884 = vmatpush1.msra.mxu0 0.0
    %3885 = vmatprep.subr.mxu0 0.0
    %3886 = vmatpush1.msra.mxu0 0.0
    %3887 = vmatprep.mubr.f32.mxu0 %v2184
    %3888 = vmatmul.mubr.f32.gmra.mrb[0].mxu0 %v2035
    %v3889 = vpop.f32.mrb[0].mxu0
    %v3890 = vadd.f32 %v2106, %v3889
    %v3891 = vpop.f32.mrb[0].mxu0
    %3892 = vmatprep.mubr.f32.mxu0 %v2187
    %3893 = vmatmul.mubr.f32.gmra.mrb[0].mxu0 %v2037
    %v3894 = vpop.f32.mrb[0].mxu0
    %v3895 = vadd.f32 %v2111, %v3894
    %v3896 = vpop.f32.mrb[0].mxu0
    %3897 = vmatprep.mubr.f32.mxu0 %v2190
    %3898 = vmatmul.mubr.f32.gmra.mrb[0].mxu0 %v2039
    %v3899 = vpop.f32.mrb[0].mxu0
    %v3900 = vadd.f32 %v2116, %v3899
    %v3901 = vpop.f32.mrb[0].mxu0
    %3902 = vmatprep.mubr.f32.mxu0 %v2193
    %3903 = vmatmul.mubr.f32.gmra.mrb[0].mxu0 %v2041
    %v3904 = vpop.f32.mrb[0].mxu0
    %v3905 = vadd.f32 %v2121, %v3904
    %v3906 = vpop.f32.mrb[0].mxu0
    %3907 = vmatprep.mubr.f32.mxu0 %v2196
    %3908 = vmatmul.mubr.f32.gmra.mrb[0].mxu0 %v2043
    %v3909 = vpop.f32.mrb[0].mxu0
    %v3910 = vadd.f32 %v2126, %v3909
    %v3911 = vpop.f32.mrb[0].mxu0
    %3912 = vmatprep.mubr.f32.mxu0 %v2199
    %3913 = vmatmul.mubr.f32.gmra.mrb[0].mxu0 %v2045
    %v3914 = vpop.f32.mrb[0].mxu0
    %v3915 = vadd.f32 %v2131, %v3914
    %v3916 = vpop.f32.mrb[0].mxu0
    %3917 = vmatprep.mubr.f32.mxu0 %v2202
    %3918 = vmatmul.mubr.f32.gmra.mrb[0].mxu0 %v2047
    %v3919 = vpop.f32.mrb[0].mxu0
    %v3920 = vadd.f32 %v2136, %v3919
    %v3921 = vpop.f32.mrb[0].mxu0
    %3922 = vmatprep.mubr.f32.mxu0 %v2205
    %3923 = vmatmul.mubr.f32.gmra.mrb[0].mxu0 %v2049
    %v3924 = vpop.f32.mrb[0].mxu0
    %v3925 = vadd.f32 %v2141, %v3924
    %v3926 = vpop.f32.mrb[0].mxu0
    %3927 = vmatprep.mubr.f32.mxu0 %v2208
    %3928 = vmatmul.mubr.f32.gmra.mrb[0].mxu0 %v2051
    %v3929 = vpop.f32.mrb[0].mxu0
    %v3930 = vadd.f32 %v2146, %v3929
    %v3931 = vpop.f32.mrb[0].mxu0
    %3932 = vmatprep.mubr.f32.mxu0 %v2211
    %3933 = vmatmul.mubr.f32.gmra.mrb[0].mxu0 %v2053
    %v3934 = vpop.f32.mrb[0].mxu0
    %v3935 = vadd.f32 %v2151, %v3934
    %v3936 = vpop.f32.mrb[0].mxu0
    %3937 = vmatprep.mubr.f32.mxu0 %v2214
    %3938 = vmatmul.mubr.f32.gmra.mrb[0].mxu0 %v2055
    %v3939 = vpop.f32.mrb[0].mxu0
    %v3940 = vadd.f32 %v2156, %v3939
    %v3941 = vpop.f32.mrb[0].mxu0
    %3942 = vmatprep.mubr.f32.mxu0 %v2217
    %3943 = vmatmul.mubr.f32.gmra.mrb[0].mxu0 %v2057
    %v3944 = vpop.f32.mrb[0].mxu0
    %v3945 = vadd.f32 %v2161, %v3944
    %v3946 = vpop.f32.mrb[0].mxu0
    %3947 = vmatprep.mubr.f32.mxu0 %v2220
    %3948 = vmatmul.mubr.f32.gmra.mrb[0].mxu0 %v2059
    %v3949 = vpop.f32.mrb[0].mxu0
    %v3950 = vadd.f32 %v2166, %v3949
    %v3951 = vpop.f32.mrb[0].mxu0
    %3952 = vmatprep.mubr.f32.mxu0 %v2223
    %3953 = vmatmul.mubr.f32.gmra.mrb[0].mxu0 %v2061
    %v3954 = vpop.f32.mrb[0].mxu0
    %v3955 = vadd.f32 %v2171, %v3954
    %v3956 = vpop.f32.mrb[0].mxu0
    %3957 = vmatprep.mubr.f32.mxu0 %v2226
    %3958 = vmatmul.mubr.f32.gmra.mrb[0].mxu0 %v2063
    %v3959 = vpop.f32.mrb[0].mxu0
    %v3960 = vadd.f32 %v2176, %v3959
    %v3961 = vpop.f32.mrb[0].mxu0
    %3962 = vmatprep.mubr.f32.mxu0 %v2229
    %3963 = vmatmul.mubr.f32.gmra.mrb[0].mxu0 %v2065
    %v3964 = vpop.f32.mrb[0].mxu0
    %v3965 = vadd.f32 %v2181, %v3964
    %v3966 = vpop.f32.mrb[0].mxu0
    %3967 = vdwg.mxu0
    %v3968 = vmax.f32 %v3890, 0.0
    %v3969 = vmax.f32 %v3895, 0.0
    %v3970 = vmax.f32 %v3900, 0.0
    %v3971 = vmax.f32 %v3905, 0.0
    %v3972 = vmax.f32 %v3910, 0.0
    %v3973 = vmax.f32 %v3915, 0.0
    %v3974 = vmax.f32 %v3920, 0.0
    %v3975 = vmax.f32 %v3925, 0.0
    %v3976 = vmax.f32 %v3930, 0.0
    %v3977 = vmax.f32 %v3935, 0.0
    %v3978 = vmax.f32 %v3940, 0.0
    %v3979 = vmax.f32 %v3945, 0.0
    %v3980 = vmax.f32 %v3950, 0.0
    %v3981 = vmax.f32 %v3955, 0.0
    %v3982 = vmax.f32 %v3960, 0.0
    %v3983 = vmax.f32 %v3965, 0.0
    %s3984 = scalar_lea.vmem [#allocation3], 944
    %3985 = vst [vmem:[%s3984] sm:$0xff] %v3968
    %3986 = vst [vmem:[%s3984 + $0x8] sm:$0xff] %v3969
    %3987 = vst [vmem:[%s3984 + $0x10] sm:$0xff] %v3970
    %3988 = vst [vmem:[%s3984 + $0x18] sm:$0xff] %v3971
    %3989 = vst [vmem:[%s3984 + $0x20] sm:$0xff] %v3972
    %3990 = vst [vmem:[%s3984 + $0x28] sm:$0xff] %v3973
    %3991 = vst [vmem:[%s3984 + $0x30] sm:$0xff] %v3974
    %3992 = vst [vmem:[%s3984 + $0x38] sm:$0xff] %v3975
    %3993 = vst [vmem:[%s3984 + $0x40] sm:$0xff] %v3976
    %3994 = vst [vmem:[%s3984 + $0x48] sm:$0xff] %v3977
    %3995 = vst [vmem:[%s3984 + $0x50] sm:$0xff] %v3978
    %3996 = vst [vmem:[%s3984 + $0x58] sm:$0xff] %v3979
    %3997 = vst [vmem:[%s3984 + $0x60] sm:$0xff] %v3980
    %3998 = vst [vmem:[%s3984 + $0x68] sm:$0xff] %v3981
    %3999 = vst [vmem:[%s3984 + $0x70] sm:$0xff] %v3982
    %4000 = vst [vmem:[%s3984 + $0x78] sm:$0xff] %v3983
    %4001 = vst [vmem:[#allocation3] sm:$0xff] 0.0
    %4002 = vst [vmem:[#allocation3 + $0x8] sm:$0xff] 0.0
    %s4003 = scalar_lea.vmem [#allocation3], 1072
    %4004 = vst [vmem:[%s4003] sm:$0xff] 0.0
    %4005 = vst [vmem:[%s4003 + $0x8] sm:$0xff] 0.0
    %v4006 = vld [vmem:[#allocation3] sm:$0xff]
    %v4007 = vld [vmem:[#allocation3 + $0x8] sm:$0xff]
    %v4008 = vld [vmem:[#allocation3 + $0x10] sm:$0xff]
    %v4009 = vld [vmem:[#allocation3 + $0x18] sm:$0xff]
    %v4010 = vld [vmem:[#allocation3 + $0x20] sm:$0xff]
    %v4011 = vld [vmem:[#allocation3 + $0x28] sm:$0xff]
    %v4012 = vld [vmem:[#allocation3 + $0x30] sm:$0xff]
    %v4013 = vld [vmem:[#allocation3 + $0x38] sm:$0xff]
    %v4014 = vld [vmem:[#allocation3 + $0x40] sm:$0xff]
    %v4015 = vld [vmem:[#allocation3 + $0x48] sm:$0xff]
    %v4016 = vld [vmem:[#allocation3 + $0x50] sm:$0xff]
    %v4017 = vld [vmem:[#allocation3 + $0x58] sm:$0xff]
    %v4018 = vld [vmem:[#allocation3 + $0x60] sm:$0xff]
    %v4019 = vld [vmem:[#allocation3 + $0x68] sm:$0xff]
    %v4020 = vld [vmem:[#allocation3 + $0x70] sm:$0xff]
    %v4021 = vld [vmem:[#allocation3 + $0x78] sm:$0xff]
    %v4022 = vld [vmem:[#allocation3 + $0x80] sm:$0xff]
    %v4023 = vld [vmem:[#allocation3 + $0x88] sm:$0xff]
    %v4024 = vld [vmem:[#allocation3 + $0x90] sm:$0xff]
    %v4025 = vld [vmem:[#allocation3 + $0x98] sm:$0xff]
    %v4026 = vld [vmem:[#allocation3 + $0xa0] sm:$0xff]
    %v4027 = vld [vmem:[#allocation3 + $0xa8] sm:$0xff]
    %v4028 = vld [vmem:[#allocation3 + $0xb0] sm:$0xff]
    %v4029 = vld [vmem:[#allocation3 + $0xb8] sm:$0xff]
    %v4030 = vld [vmem:[#allocation3 + $0xc0] sm:$0xff]
    %v4031 = vld [vmem:[#allocation3 + $0xc8] sm:$0xff]
    %v4032 = vld [vmem:[#allocation3 + $0xd0] sm:$0xff]
    %v4033 = vld [vmem:[#allocation3 + $0xd8] sm:$0xff]
    %v4034 = vld [vmem:[#allocation3 + $0xe0] sm:$0xff]
    %v4035 = vld [vmem:[#allocation3 + $0xe8] sm:$0xff]
    %v4036 = vld [vmem:[#allocation3 + $0xf0] sm:$0xff]
    %v4037 = vld [vmem:[#allocation3 + $0xf8] sm:$0xff]
    %v4038 = vld [vmem:[#allocation3 + $0x100] sm:$0xff]
    %v4039 = vld [vmem:[#allocation3 + $0x108] sm:$0xff]
    %v4040 = vld [vmem:[#allocation3 + $0x110] sm:$0xff]
    %v4041 = vld [vmem:[#allocation3 + $0x118] sm:$0xff]
    %v4042 = vld [vmem:[#allocation3 + $0x120] sm:$0xff]
    %v4043 = vld [vmem:[#allocation3 + $0x128] sm:$0xff]
    %v4044 = vld [vmem:[#allocation3 + $0x130] sm:$0xff]
    %v4045 = vld [vmem:[#allocation3 + $0x138] sm:$0xff]
    %v4046 = vld [vmem:[#allocation3 + $0x140] sm:$0xff]
    %v4047 = vld [vmem:[#allocation3 + $0x148] sm:$0xff]
    %v4048 = vld [vmem:[#allocation3 + $0x150] sm:$0xff]
    %v4049 = vld [vmem:[#allocation3 + $0x158] sm:$0xff]
    %v4050 = vld [vmem:[#allocation3 + $0x160] sm:$0xff]
    %v4051 = vld [vmem:[#allocation3 + $0x168] sm:$0xff]
    %v4052 = vld [vmem:[#allocation3 + $0x170] sm:$0xff]
    %v4053 = vld [vmem:[#allocation3 + $0x178] sm:$0xff]
    %v4054 = vld [vmem:[#allocation3 + $0x180] sm:$0xff]
    %v4055 = vld [vmem:[#allocation3 + $0x188] sm:$0xff]
    %v4056 = vld [vmem:[#allocation3 + $0x190] sm:$0xff]
    %v4057 = vld [vmem:[#allocation3 + $0x198] sm:$0xff]
    %v4058 = vld [vmem:[#allocation3 + $0x1a0] sm:$0xff]
    %v4059 = vld [vmem:[#allocation3 + $0x1a8] sm:$0xff]
    %v4060 = vld [vmem:[#allocation3 + $0x1b0] sm:$0xff]
    %v4061 = vld [vmem:[#allocation3 + $0x1b8] sm:$0xff]
    %v4062 = vld [vmem:[#allocation3 + $0x1c0] sm:$0xff]
    %v4063 = vld [vmem:[#allocation3 + $0x1c8] sm:$0xff]
    %v4064 = vld [vmem:[#allocation3 + $0x1d0] sm:$0xff]
    %v4065 = vld [vmem:[#allocation3 + $0x1d8] sm:$0xff]
    %v4066 = vld [vmem:[#allocation3 + $0x1e0] sm:$0xff]
    %v4067 = vld [vmem:[#allocation3 + $0x1e8] sm:$0xff]
    %v4068 = vld [vmem:[#allocation3 + $0x1f0] sm:$0xff]
    %v4069 = vld [vmem:[#allocation3 + $0x1f8] sm:$0xff]
    %v4070 = vld [vmem:[#allocation3 + $0x200] sm:$0xff]
    %v4071 = vld [vmem:[#allocation3 + $0x208] sm:$0xff]
    %v4072 = vld [vmem:[#allocation3 + $0x210] sm:$0xff]
    %v4073 = vld [vmem:[#allocation3 + $0x218] sm:$0xff]
    %v4074 = vld [vmem:[#allocation3 + $0x220] sm:$0xff]
    %v4075 = vld [vmem:[#allocation3 + $0x228] sm:$0xff]
    %v4076 = vld [vmem:[#allocation3 + $0x230] sm:$0xff]
    %v4077 = vld [vmem:[#allocation3 + $0x238] sm:$0xff]
    %v4078 = vld [vmem:[#allocation3 + $0x240] sm:$0xff]
    %v4079 = vld [vmem:[#allocation3 + $0x248] sm:$0xff]
    %v4080 = vld [vmem:[#allocation3 + $0x250] sm:$0xff]
    %v4081 = vld [vmem:[#allocation3 + $0x258] sm:$0xff]
    %v4082 = vld [vmem:[#allocation3 + $0x260] sm:$0xff]
    %v4083 = vld [vmem:[#allocation3 + $0x268] sm:$0xff]
    %v4084 = vld [vmem:[#allocation3 + $0x270] sm:$0xff]
    %v4085 = vld [vmem:[#allocation3 + $0x278] sm:$0xff]
    %v4086 = vld [vmem:[#allocation3 + $0x280] sm:$0xff]
    %v4087 = vld [vmem:[#allocation3 + $0x288] sm:$0xff]
    %v4088 = vld [vmem:[#allocation3 + $0x290] sm:$0xff]
    %v4089 = vld [vmem:[#allocation3 + $0x298] sm:$0xff]
    %v4090 = vld [vmem:[#allocation3 + $0x2a0] sm:$0xff]
    %v4091 = vld [vmem:[#allocation3 + $0x2a8] sm:$0xff]
    %v4092 = vld [vmem:[#allocation3 + $0x2b0] sm:$0xff]
    %v4093 = vld [vmem:[#allocation3 + $0x2b8] sm:$0xff]
    %v4094 = vld [vmem:[#allocation3 + $0x2c0] sm:$0xff]
    %v4095 = vld [vmem:[#allocation3 + $0x2c8] sm:$0xff]
    %v4096 = vld [vmem:[#allocation3 + $0x2d0] sm:$0xff]
    %v4097 = vld [vmem:[#allocation3 + $0x2d8] sm:$0xff]
    %v4098 = vld [vmem:[#allocation3 + $0x2e0] sm:$0xff]
    %v4099 = vld [vmem:[#allocation3 + $0x2e8] sm:$0xff]
    %v4100 = vld [vmem:[#allocation3 + $0x2f0] sm:$0xff]
    %v4101 = vld [vmem:[#allocation3 + $0x2f8] sm:$0xff]
    %v4102 = vld [vmem:[#allocation3 + $0x300] sm:$0xff]
    %v4103 = vld [vmem:[#allocation3 + $0x308] sm:$0xff]
    %v4104 = vld [vmem:[#allocation3 + $0x310] sm:$0xff]
    %v4105 = vld [vmem:[#allocation3 + $0x318] sm:$0xff]
    %v4106 = vld [vmem:[#allocation3 + $0x320] sm:$0xff]
    %v4107 = vld [vmem:[#allocation3 + $0x328] sm:$0xff]
    %v4108 = vld [vmem:[#allocation3 + $0x330] sm:$0xff]
    %v4109 = vld [vmem:[#allocation3 + $0x338] sm:$0xff]
    %v4110 = vld [vmem:[#allocation3 + $0x340] sm:$0xff]
    %v4111 = vld [vmem:[#allocation3 + $0x348] sm:$0xff]
    %v4112 = vld [vmem:[#allocation3 + $0x350] sm:$0xff]
    %v4113 = vld [vmem:[#allocation3 + $0x358] sm:$0xff]
    %v4114 = vld [vmem:[#allocation3 + $0x360] sm:$0xff]
    %v4115 = vld [vmem:[#allocation3 + $0x368] sm:$0xff]
    %v4116 = vld [vmem:[#allocation3 + $0x370] sm:$0xff]
    %v4117 = vld [vmem:[#allocation3 + $0x378] sm:$0xff]
    %v4118 = vld [vmem:[#allocation3 + $0x380] sm:$0xff]
    %v4119 = vld [vmem:[#allocation3 + $0x388] sm:$0xff]
    %v4120 = vld [vmem:[#allocation3 + $0x390] sm:$0xff]
    %v4121 = vld [vmem:[#allocation3 + $0x398] sm:$0xff]
    %v4122 = vld [vmem:[#allocation3 + $0x3a0] sm:$0xff]
    %v4123 = vld [vmem:[#allocation3 + $0x3a8] sm:$0xff]
    %v4124 = vld [vmem:[#allocation3 + $0x3b0] sm:$0xff]
    %v4125 = vld [vmem:[#allocation3 + $0x3b8] sm:$0xff]
    %v4126 = vld [vmem:[#allocation3 + $0x3c0] sm:$0xff]
    %v4127 = vld [vmem:[#allocation3 + $0x3c8] sm:$0xff]
    %v4128 = vld [vmem:[#allocation3 + $0x3d0] sm:$0xff]
    %v4129 = vld [vmem:[#allocation3 + $0x3d8] sm:$0xff]
    %v4130 = vld [vmem:[#allocation3 + $0x3e0] sm:$0xff]
    %v4131 = vld [vmem:[#allocation3 + $0x3e8] sm:$0xff]
    %v4132 = vld [vmem:[#allocation3 + $0x3f0] sm:$0xff]
    %v4133 = vld [vmem:[#allocation3 + $0x3f8] sm:$0xff]
    %v4134 = vld [vmem:[#allocation3 + $0x400] sm:$0xff]
    %v4135 = vld [vmem:[#allocation3 + $0x408] sm:$0xff]
    %v4136 = vld [vmem:[#allocation3 + $0x410] sm:$0xff]
    %v4137 = vld [vmem:[#allocation3 + $0x418] sm:$0xff]
    %v4138 = vld [vmem:[#allocation3 + $0x420] sm:$0xff]
    %v4139 = vld [vmem:[#allocation3 + $0x428] sm:$0xff]
    %v4140 = vld [vmem:[#allocation3 + $0x430] sm:$0xff]
    %v4141 = vld [vmem:[#allocation3 + $0x438] sm:$0xff]
    %v4142 = vmax.f32 %v4006, %v4008
    %v4143 = vmax.f32 %v4007, %v4009
    %v4144 = vmax.f32 %v4010, %v4012
    %v4145 = vmax.f32 %v4011, %v4013
    %v4146 = vmax.f32 %v4014, %v4016
    %v4147 = vmax.f32 %v4015, %v4017
    %v4148 = vmax.f32 %v4018, %v4020
    %v4149 = vmax.f32 %v4019, %v4021
    %v4150 = vmax.f32 %v4022, %v4024
    %v4151 = vmax.f32 %v4023, %v4025
    %v4152 = vmax.f32 %v4026, %v4028
    %v4153 = vmax.f32 %v4027, %v4029
    %v4154 = vmax.f32 %v4030, %v4032
    %v4155 = vmax.f32 %v4031, %v4033
    %v4156 = vmax.f32 %v4034, %v4036
    %v4157 = vmax.f32 %v4035, %v4037
    %v4158 = vmax.f32 %v4038, %v4040
    %v4159 = vmax.f32 %v4039, %v4041
    %v4160 = vmax.f32 %v4042, %v4044
    %v4161 = vmax.f32 %v4043, %v4045
    %v4162 = vmax.f32 %v4046, %v4048
    %v4163 = vmax.f32 %v4047, %v4049
    %v4164 = vmax.f32 %v4050, %v4052
    %v4165 = vmax.f32 %v4051, %v4053
    %v4166 = vmax.f32 %v4054, %v4056
    %v4167 = vmax.f32 %v4055, %v4057
    %v4168 = vmax.f32 %v4058, %v4060
    %v4169 = vmax.f32 %v4059, %v4061
    %v4170 = vmax.f32 %v4062, %v4064
    %v4171 = vmax.f32 %v4063, %v4065
    %v4172 = vmax.f32 %v4066, %v4068
    %v4173 = vmax.f32 %v4067, %v4069
    %v4174 = vmax.f32 %v4070, %v4072
    %v4175 = vmax.f32 %v4071, %v4073
    %v4176 = vmax.f32 %v4074, %v4076
    %v4177 = vmax.f32 %v4075, %v4077
    %v4178 = vmax.f32 %v4078, %v4080
    %v4179 = vmax.f32 %v4079, %v4081
    %v4180 = vmax.f32 %v4082, %v4084
    %v4181 = vmax.f32 %v4083, %v4085
    %v4182 = vmax.f32 %v4086, %v4088
    %v4183 = vmax.f32 %v4087, %v4089
    %v4184 = vmax.f32 %v4090, %v4092
    %v4185 = vmax.f32 %v4091, %v4093
    %v4186 = vmax.f32 %v4094, %v4096
    %v4187 = vmax.f32 %v4095, %v4097
    %v4188 = vmax.f32 %v4098, %v4100
    %v4189 = vmax.f32 %v4099, %v4101
    %v4190 = vmax.f32 %v4102, %v4104
    %v4191 = vmax.f32 %v4103, %v4105
    %v4192 = vmax.f32 %v4106, %v4108
    %v4193 = vmax.f32 %v4107, %v4109
    %v4194 = vmax.f32 %v4110, %v4112
    %v4195 = vmax.f32 %v4111, %v4113
    %v4196 = vmax.f32 %v4114, %v4116
    %v4197 = vmax.f32 %v4115, %v4117
    %v4198 = vmax.f32 %v4118, %v4120
    %v4199 = vmax.f32 %v4119, %v4121
    %v4200 = vmax.f32 %v4122, %v4124
    %v4201 = vmax.f32 %v4123, %v4125
    %v4202 = vmax.f32 %v4126, %v4128
    %v4203 = vmax.f32 %v4127, %v4129
    %v4204 = vmax.f32 %v4130, %v4132
    %v4205 = vmax.f32 %v4131, %v4133
    %v4206 = vmax.f32 %v4134, %v4136
    %v4207 = vmax.f32 %v4135, %v4137
    %v4208 = vmax.f32 %v4138, %v4140
    %v4209 = vmax.f32 %v4139, %v4141
    %4210 = vst [vmem:[%s421] sm:$0xff] %v4142
    %4211 = vst [vmem:[%s421 + $0x8] sm:$0xff] %v4143
    %4212 = vst [vmem:[%s421 + $0x10] sm:$0xff] %v4144
    %4213 = vst [vmem:[%s421 + $0x18] sm:$0xff] %v4145
    %4214 = vst [vmem:[%s421 + $0x20] sm:$0xff] %v4146
    %4215 = vst [vmem:[%s421 + $0x28] sm:$0xff] %v4147
    %4216 = vst [vmem:[%s421 + $0x30] sm:$0xff] %v4148
    %4217 = vst [vmem:[%s421 + $0x38] sm:$0xff] %v4149
    %4218 = vst [vmem:[%s421 + $0x40] sm:$0xff] %v4150
    %4219 = vst [vmem:[%s421 + $0x48] sm:$0xff] %v4151
    %4220 = vst [vmem:[%s421 + $0x50] sm:$0xff] %v4152
    %4221 = vst [vmem:[%s421 + $0x58] sm:$0xff] %v4153
    %4222 = vst [vmem:[%s421 + $0x60] sm:$0xff] %v4154
    %4223 = vst [vmem:[%s421 + $0x68] sm:$0xff] %v4155
    %4224 = vst [vmem:[%s421 + $0x70] sm:$0xff] %v4156
    %4225 = vst [vmem:[%s421 + $0x78] sm:$0xff] %v4157
    %4226 = vst [vmem:[%s421 + $0x80] sm:$0xff] %v4158
    %4227 = vst [vmem:[%s421 + $0x88] sm:$0xff] %v4159
    %4228 = vst [vmem:[%s421 + $0x90] sm:$0xff] %v4160
    %4229 = vst [vmem:[%s421 + $0x98] sm:$0xff] %v4161
    %4230 = vst [vmem:[%s421 + $0xa0] sm:$0xff] %v4162
    %4231 = vst [vmem:[%s421 + $0xa8] sm:$0xff] %v4163
    %4232 = vst [vmem:[%s421 + $0xb0] sm:$0xff] %v4164
    %4233 = vst [vmem:[%s421 + $0xb8] sm:$0xff] %v4165
    %4234 = vst [vmem:[%s421 + $0xc0] sm:$0xff] %v4166
    %4235 = vst [vmem:[%s421 + $0xc8] sm:$0xff] %v4167
    %4236 = vst [vmem:[%s421 + $0xd0] sm:$0xff] %v4168
    %4237 = vst [vmem:[%s421 + $0xd8] sm:$0xff] %v4169
    %4238 = vst [vmem:[%s421 + $0xe0] sm:$0xff] %v4170
    %4239 = vst [vmem:[%s421 + $0xe8] sm:$0xff] %v4171
    %4240 = vst [vmem:[%s421 + $0xf0] sm:$0xff] %v4172
    %4241 = vst [vmem:[%s421 + $0xf8] sm:$0xff] %v4173
    %4242 = vst [vmem:[%s421 + $0x100] sm:$0xff] %v4174
    %4243 = vst [vmem:[%s421 + $0x108] sm:$0xff] %v4175
    %4244 = vst [vmem:[%s421 + $0x110] sm:$0xff] %v4176
    %4245 = vst [vmem:[%s421 + $0x118] sm:$0xff] %v4177
    %4246 = vst [vmem:[%s421 + $0x120] sm:$0xff] %v4178
    %4247 = vst [vmem:[%s421 + $0x128] sm:$0xff] %v4179
    %4248 = vst [vmem:[%s421 + $0x130] sm:$0xff] %v4180
    %4249 = vst [vmem:[%s421 + $0x138] sm:$0xff] %v4181
    %4250 = vst [vmem:[%s421 + $0x140] sm:$0xff] %v4182
    %4251 = vst [vmem:[%s421 + $0x148] sm:$0xff] %v4183
    %4252 = vst [vmem:[%s421 + $0x150] sm:$0xff] %v4184
    %4253 = vst [vmem:[%s421 + $0x158] sm:$0xff] %v4185
    %4254 = vst [vmem:[%s421 + $0x160] sm:$0xff] %v4186
    %4255 = vst [vmem:[%s421 + $0x168] sm:$0xff] %v4187
    %4256 = vst [vmem:[%s421 + $0x170] sm:$0xff] %v4188
    %4257 = vst [vmem:[%s421 + $0x178] sm:$0xff] %v4189
    %4258 = vst [vmem:[%s421 + $0x180] sm:$0xff] %v4190
    %4259 = vst [vmem:[%s421 + $0x188] sm:$0xff] %v4191
    %4260 = vst [vmem:[%s421 + $0x190] sm:$0xff] %v4192
    %4261 = vst [vmem:[%s421 + $0x198] sm:$0xff] %v4193
    %4262 = vst [vmem:[%s421 + $0x1a0] sm:$0xff] %v4194
    %4263 = vst [vmem:[%s421 + $0x1a8] sm:$0xff] %v4195
    %4264 = vst [vmem:[%s421 + $0x1b0] sm:$0xff] %v4196
    %4265 = vst [vmem:[%s421 + $0x1b8] sm:$0xff] %v4197
    %4266 = vst [vmem:[%s421 + $0x1c0] sm:$0xff] %v4198
    %4267 = vst [vmem:[%s421 + $0x1c8] sm:$0xff] %v4199
    %4268 = vst [vmem:[%s421 + $0x1d0] sm:$0xff] %v4200
    %4269 = vst [vmem:[%s421 + $0x1d8] sm:$0xff] %v4201
    %4270 = vst [vmem:[%s421 + $0x1e0] sm:$0xff] %v4202
    %4271 = vst [vmem:[%s421 + $0x1e8] sm:$0xff] %v4203
    %4272 = vst [vmem:[%s421 + $0x1f0] sm:$0xff] %v4204
    %4273 = vst [vmem:[%s421 + $0x1f8] sm:$0xff] %v4205
    %4274 = vst [vmem:[%s421 + $0x200] sm:$0xff] %v4206
    %4275 = vst [vmem:[%s421 + $0x208] sm:$0xff] %v4207
    %4276 = vst [vmem:[%s421 + $0x210] sm:$0xff] %v4208
    %4277 = vst [vmem:[%s421 + $0x218] sm:$0xff] %v4209
    %4278 = vst [vmem:[#allocation2] sm:$0xff] 0.0
    %4279 = vst [vmem:[#allocation2 + $0x8] sm:$0xff] 0.0
    %s4280 = scalar_lea.vmem [#allocation2], 560
    %4281 = vst [vmem:[%s4280] sm:$0xff] 0.0
    %4282 = vst [vmem:[%s4280 + $0x8] sm:$0xff] 0.0
    %v4283 = vld [vmem:[%s5] sm:$0xff]
    %v4284 = vld [vmem:[%s5 + $0x8] sm:$0xff]
    %v4285 = vld [vmem:[%s5 + $0x10] sm:$0xff]
    %v4286 = vld [vmem:[%s5 + $0x18] sm:$0xff]
    %v4287 = vld [vmem:[%s5 + $0x20] sm:$0xff]
    %v4288 = vld [vmem:[%s5 + $0x28] sm:$0xff]
    %v4289 = vld [vmem:[%s5 + $0x30] sm:$0xff]
    %v4290 = vld [vmem:[%s5 + $0x38] sm:$0xff]
    %v4291 = vld [vmem:[%s5 + $0x40] sm:$0xff]
    %v4292 = vld [vmem:[%s5 + $0x48] sm:$0xff]
    %v4293 = vld [vmem:[%s5 + $0x50] sm:$0xff]
    %v4294 = vld [vmem:[%s5 + $0x58] sm:$0xff]
    %v4295 = vld [vmem:[%s5 + $0x60] sm:$0xff]
    %v4296 = vld [vmem:[%s5 + $0x68] sm:$0xff]
    %v4297 = vld [vmem:[%s5 + $0x70] sm:$0xff]
    %v4298 = vld [vmem:[%s5 + $0x78] sm:$0xff]
    %v4299 = vld [vmem:[%s5 + $0x80] sm:$0xff]
    %v4300 = vld [vmem:[%s5 + $0x88] sm:$0xff]
    %v4301 = vld [vmem:[%s5 + $0x90] sm:$0xff]
    %v4302 = vld [vmem:[%s5 + $0x98] sm:$0xff]
    %v4303 = vld [vmem:[%s5 + $0xa0] sm:$0xff]
    %v4304 = vld [vmem:[%s5 + $0xa8] sm:$0xff]
    %v4305 = vld [vmem:[%s5 + $0xb0] sm:$0xff]
    %v4306 = vld [vmem:[%s5 + $0xb8] sm:$0xff]
    %v4307 = vld [vmem:[%s5 + $0xc0] sm:$0xff]
    %v4308 = vld [vmem:[%s5 + $0xc8] sm:$0xff]
    %v4309 = vld [vmem:[%s5 + $0xd0] sm:$0xff]
    %v4310 = vld [vmem:[%s5 + $0xd8] sm:$0xff]
    %v4311 = vld [vmem:[%s5 + $0xe0] sm:$0xff]
    %v4312 = vld [vmem:[%s5 + $0xe8] sm:$0xff]
    %v4313 = vld [vmem:[%s5 + $0xf0] sm:$0xff]
    %v4314 = vld [vmem:[%s5 + $0xf8] sm:$0xff]
    %v4315 = vld [vmem:[%s6] sm:$0xff]
    %v4316 = vld [vmem:[%s6 + $0x8] sm:$0xff]
    %v4317 = vld [vmem:[%s6 + $0x10] sm:$0xff]
    %v4318 = vld [vmem:[%s6 + $0x18] sm:$0xff]
    %v4319 = vld [vmem:[%s6 + $0x20] sm:$0xff]
    %v4320 = vld [vmem:[%s6 + $0x28] sm:$0xff]
    %v4321 = vld [vmem:[%s6 + $0x30] sm:$0xff]
    %v4322 = vld [vmem:[%s6 + $0x38] sm:$0xff]
    %v4323 = vld [vmem:[%s6 + $0x40] sm:$0xff]
    %v4324 = vld [vmem:[%s6 + $0x48] sm:$0xff]
    %v4325 = vld [vmem:[%s6 + $0x50] sm:$0xff]
    %v4326 = vld [vmem:[%s6 + $0x58] sm:$0xff]
    %v4327 = vld [vmem:[%s6 + $0x60] sm:$0xff]
    %v4328 = vld [vmem:[%s6 + $0x68] sm:$0xff]
    %v4329 = vld [vmem:[%s6 + $0x70] sm:$0xff]
    %v4330 = vld [vmem:[%s6 + $0x78] sm:$0xff]
    %v4331 = vld [vmem:[#allocation2] sm:$0xff]
    %v4332 = vld [vmem:[#allocation2 + $0x8] sm:$0xff]
    %v4333 = vld [vmem:[#allocation2 + $0x10] sm:$0xff]
    %v4334 = vld [vmem:[#allocation2 + $0x18] sm:$0xff]
    %v4335 = vld [vmem:[#allocation2 + $0x20] sm:$0xff]
    %v4336 = vld [vmem:[#allocation2 + $0x28] sm:$0xff]
    %v4337 = vld [vmem:[#allocation2 + $0x30] sm:$0xff]
    %v4338 = vld [vmem:[#allocation2 + $0x38] sm:$0xff]
    %v4339 = vld [vmem:[#allocation2 + $0x40] sm:$0xff]
    %v4340 = vld [vmem:[#allocation2 + $0x48] sm:$0xff]
    %v4341 = vld [vmem:[#allocation2 + $0x50] sm:$0xff]
    %v4342 = vld [vmem:[#allocation2 + $0x58] sm:$0xff]
    %v4343 = vld [vmem:[#allocation2 + $0x60] sm:$0xff]
    %v4344 = vld [vmem:[#allocation2 + $0x68] sm:$0xff]
    %v4345 = vld [vmem:[#allocation2 + $0x70] sm:$0xff]
    %v4346 = vld [vmem:[#allocation2 + $0x78] sm:$0xff]
    %v4347 = vld [vmem:[#allocation2 + $0x80] sm:$0xff]
    %v4348 = vld [vmem:[#allocation2 + $0x88] sm:$0xff]
    %v4349 = vld [vmem:[#allocation2 + $0x90] sm:$0xff]
    %v4350 = vld [vmem:[#allocation2 + $0x98] sm:$0xff]
    %4352 = vset.pattern.permute.xlu0 0
    %4353 = vperm.xlu0 %4352, %v4315
    %v4354 = vpop.permute.xlu0 %4353
    %4357 = vset.pattern.permute.xlu0 0
    %4358 = vperm.xlu0 %4357, %v4316
    %v4359 = vpop.permute.xlu0 %4358
    %4362 = vset.pattern.permute.xlu0 0
    %4363 = vperm.xlu0 %4362, %v4317
    %v4364 = vpop.permute.xlu0 %4363
    %4367 = vset.pattern.permute.xlu0 0
    %4368 = vperm.xlu0 %4367, %v4318
    %v4369 = vpop.permute.xlu0 %4368
    %4372 = vset.pattern.permute.xlu0 0
    %4373 = vperm.xlu0 %4372, %v4319
    %v4374 = vpop.permute.xlu0 %4373
    %4377 = vset.pattern.permute.xlu0 0
    %4378 = vperm.xlu0 %4377, %v4320
    %v4379 = vpop.permute.xlu0 %4378
    %4382 = vset.pattern.permute.xlu0 0
    %4383 = vperm.xlu0 %4382, %v4321
    %v4384 = vpop.permute.xlu0 %4383
    %4387 = vset.pattern.permute.xlu0 0
    %4388 = vperm.xlu0 %4387, %v4322
    %v4389 = vpop.permute.xlu0 %4388
    %4392 = vset.pattern.permute.xlu0 0
    %4393 = vperm.xlu0 %4392, %v4323
    %v4394 = vpop.permute.xlu0 %4393
    %4397 = vset.pattern.permute.xlu0 0
    %4398 = vperm.xlu0 %4397, %v4324
    %v4399 = vpop.permute.xlu0 %4398
    %4402 = vset.pattern.permute.xlu0 0
    %4403 = vperm.xlu0 %4402, %v4325
    %v4404 = vpop.permute.xlu0 %4403
    %4407 = vset.pattern.permute.xlu0 0
    %4408 = vperm.xlu0 %4407, %v4326
    %v4409 = vpop.permute.xlu0 %4408
    %4412 = vset.pattern.permute.xlu0 0
    %4413 = vperm.xlu0 %4412, %v4327
    %v4414 = vpop.permute.xlu0 %4413
    %4417 = vset.pattern.permute.xlu0 0
    %4418 = vperm.xlu0 %4417, %v4328
    %v4419 = vpop.permute.xlu0 %4418
    %4422 = vset.pattern.permute.xlu0 0
    %4423 = vperm.xlu0 %4422, %v4329
    %v4424 = vpop.permute.xlu0 %4423
    %4427 = vset.pattern.permute.xlu0 0
    %4428 = vperm.xlu0 %4427, %v4330
    %v4429 = vpop.permute.xlu0 %4428
    %v4432 = vsel %vm211, %v4284, 0
    %v4435 = vsel %vm211, %v4286, 0
    %v4438 = vsel %vm211, %v4288, 0
    %v4441 = vsel %vm211, %v4290, 0
    %v4444 = vsel %vm211, %v4292, 0
    %v4447 = vsel %vm211, %v4294, 0
    %v4450 = vsel %vm211, %v4296, 0
    %v4453 = vsel %vm211, %v4298, 0
    %v4456 = vsel %vm211, %v4300, 0
    %v4459 = vsel %vm211, %v4302, 0
    %v4462 = vsel %vm211, %v4304, 0
    %v4465 = vsel %vm211, %v4306, 0
    %v4468 = vsel %vm211, %v4308, 0
    %v4471 = vsel %vm211, %v4310, 0
    %v4474 = vsel %vm211, %v4312, 0
    %v4477 = vsel %vm211, %v4314, 0
    %4479 = vmatprep.subr.mxu0 0.0
    %4480 = vmatpush1.msra.mxu0 %v4331
    %4481 = vmatprep.subr.mxu0 0.0
    %4482 = vmatpush1.msra.mxu0 %v4332
    %4483 = vmatprep.subr.mxu0 0.0
    %4484 = vmatpush1.msra.mxu0 %v4333
    %4485 = vmatprep.subr.mxu0 0.0
    %4486 = vmatpush1.msra.mxu0 %v4334
    %4487 = vmatprep.subr.mxu0 0.0
    %4488 = vmatpush1.msra.mxu0 %v4335
    %4489 = vmatprep.subr.mxu0 0.0
    %4490 = vmatpush1.msra.mxu0 %v4336
    %4491 = vmatprep.subr.mxu0 0.0
    %4492 = vmatpush1.msra.mxu0 %v4337
    %4493 = vmatprep.subr.mxu0 0.0
    %4494 = vmatpush1.msra.mxu0 %v4338
    %4495 = vmatprep.subr.mxu0 0.0
    %4496 = vmatpush1.msra.mxu0 %v4339
    %4497 = vmatprep.subr.mxu0 0.0
    %4498 = vmatpush1.msra.mxu0 %v4340
    %4499 = vmatprep.subr.mxu0 0.0
    %4500 = vmatpush1.msra.mxu0 %v4341
    %4501 = vmatprep.subr.mxu0 0.0
    %4502 = vmatpush1.msra.mxu0 %v4342
    %4503 = vmatprep.subr.mxu0 0.0
    %4504 = vmatpush1.msra.mxu0 %v4343
    %4505 = vmatprep.subr.mxu0 0.0
    %4506 = vmatpush1.msra.mxu0 %v4344
    %4507 = vmatprep.subr.mxu0 0.0
    %4508 = vmatpush1.msra.mxu0 %v4345
    %4509 = vmatprep.subr.mxu0 0.0
    %4510 = vmatpush1.msra.mxu0 %v4346
    %4511 = vmatprep.subr.mxu0 0.0
    %4512 = vmatpush1.msra.mxu0 %v4347
    %4513 = vmatprep.subr.mxu0 0.0
    %4514 = vmatpush1.msra.mxu0 %v4348
    %4515 = vmatprep.subr.mxu0 0.0
    %4516 = vmatpush1.msra.mxu0 %v4349
    %4517 = vmatprep.subr.mxu0 0.0
    %4518 = vmatpush1.msra.mxu0 %v4350
    %4519 = vmatprep.subr.mxu0 0.0
    %4520 = vmatpush1.msra.mxu0 0.0
    %4521 = vmatprep.subr.mxu0 0.0
    %4522 = vmatpush1.msra.mxu0 0.0
    %4523 = vmatprep.subr.mxu0 0.0
    %4524 = vmatpush1.msra.mxu0 0.0
    %4525 = vmatprep.subr.mxu0 0.0
    %4526 = vmatpush1.msra.mxu0 0.0
    %4527 = vmatprep.subr.mxu0 0.0
    %4528 = vmatpush1.msra.mxu0 0.0
    %4529 = vmatprep.subr.mxu0 0.0
    %4530 = vmatpush1.msra.mxu0 0.0
    %4531 = vmatprep.subr.mxu0 0.0
    %4532 = vmatpush1.msra.mxu0 0.0
    %4533 = vmatprep.subr.mxu0 0.0
    %4534 = vmatpush1.msra.mxu0 0.0
    %4535 = vmatprep.subr.mxu0 0.0
    %4536 = vmatpush1.msra.mxu0 0.0
    %4537 = vmatprep.subr.mxu0 0.0
    %4538 = vmatpush1.msra.mxu0 0.0
    %4539 = vmatprep.subr.mxu0 0.0
    %4540 = vmatpush1.msra.mxu0 0.0
    %4541 = vmatprep.subr.mxu0 0.0
    %4542 = vmatpush1.msra.mxu0 0.0
    %4543 = vmatprep.mubr.f32.mxu0 %v4432
    %4544 = vmatmul.mubr.f32.gmra.mrb[0].mxu0 %v4283
    %v4545 = vpop.f32.mrb[0].mxu0
    %v4546 = vadd.f32 %v4354, %v4545
    %v4547 = vpop.f32.mrb[0].mxu0
    %4548 = vmatprep.mubr.f32.mxu0 %v4435
    %4549 = vmatmul.mubr.f32.gmra.mrb[0].mxu0 %v4285
    %v4550 = vpop.f32.mrb[0].mxu0
    %v4551 = vadd.f32 %v4359, %v4550
    %v4552 = vpop.f32.mrb[0].mxu0
    %4553 = vmatprep.mubr.f32.mxu0 %v4438
    %4554 = vmatmul.mubr.f32.gmra.mrb[0].mxu0 %v4287
    %v4555 = vpop.f32.mrb[0].mxu0
    %v4556 = vadd.f32 %v4364, %v4555
    %v4557 = vpop.f32.mrb[0].mxu0
    %4558 = vmatprep.mubr.f32.mxu0 %v4441
    %4559 = vmatmul.mubr.f32.gmra.mrb[0].mxu0 %v4289
    %v4560 = vpop.f32.mrb[0].mxu0
    %v4561 = vadd.f32 %v4369, %v4560
    %v4562 = vpop.f32.mrb[0].mxu0
    %4563 = vmatprep.mubr.f32.mxu0 %v4444
    %4564 = vmatmul.mubr.f32.gmra.mrb[0].mxu0 %v4291
    %v4565 = vpop.f32.mrb[0].mxu0
    %v4566 = vadd.f32 %v4374, %v4565
    %v4567 = vpop.f32.mrb[0].mxu0
    %4568 = vmatprep.mubr.f32.mxu0 %v4447
    %4569 = vmatmul.mubr.f32.gmra.mrb[0].mxu0 %v4293
    %v4570 = vpop.f32.mrb[0].mxu0
    %v4571 = vadd.f32 %v4379, %v4570
    %v4572 = vpop.f32.mrb[0].mxu0
    %4573 = vmatprep.mubr.f32.mxu0 %v4450
    %4574 = vmatmul.mubr.f32.gmra.mrb[0].mxu0 %v4295
    %v4575 = vpop.f32.mrb[0].mxu0
    %v4576 = vadd.f32 %v4384, %v4575
    %v4577 = vpop.f32.mrb[0].mxu0
    %4578 = vmatprep.mubr.f32.mxu0 %v4453
    %4579 = vmatmul.mubr.f32.gmra.mrb[0].mxu0 %v4297
    %v4580 = vpop.f32.mrb[0].mxu0
    %v4581 = vadd.f32 %v4389, %v4580
    %v4582 = vpop.f32.mrb[0].mxu0
    %4583 = vmatprep.mubr.f32.mxu0 %v4456
    %4584 = vmatmul.mubr.f32.gmra.mrb[0].mxu0 %v4299
    %v4585 = vpop.f32.mrb[0].mxu0
    %v4586 = vadd.f32 %v4394, %v4585
    %v4587 = vpop.f32.mrb[0].mxu0
    %4588 = vmatprep.mubr.f32.mxu0 %v4459
    %4589 = vmatmul.mubr.f32.gmra.mrb[0].mxu0 %v4301
    %v4590 = vpop.f32.mrb[0].mxu0
    %v4591 = vadd.f32 %v4399, %v4590
    %v4592 = vpop.f32.mrb[0].mxu0
    %4593 = vmatprep.mubr.f32.mxu0 %v4462
    %4594 = vmatmul.mubr.f32.gmra.mrb[0].mxu0 %v4303
    %v4595 = vpop.f32.mrb[0].mxu0
    %v4596 = vadd.f32 %v4404, %v4595
    %v4597 = vpop.f32.mrb[0].mxu0
    %4598 = vmatprep.mubr.f32.mxu0 %v4465
    %4599 = vmatmul.mubr.f32.gmra.mrb[0].mxu0 %v4305
    %v4600 = vpop.f32.mrb[0].mxu0
    %v4601 = vadd.f32 %v4409, %v4600
    %v4602 = vpop.f32.mrb[0].mxu0
    %4603 = vmatprep.mubr.f32.mxu0 %v4468
    %4604 = vmatmul.mubr.f32.gmra.mrb[0].mxu0 %v4307
    %v4605 = vpop.f32.mrb[0].mxu0
    %v4606 = vadd.f32 %v4414, %v4605
    %v4607 = vpop.f32.mrb[0].mxu0
    %4608 = vmatprep.mubr.f32.mxu0 %v4471
    %4609 = vmatmul.mubr.f32.gmra.mrb[0].mxu0 %v4309
    %v4610 = vpop.f32.mrb[0].mxu0
    %v4611 = vadd.f32 %v4419, %v4610
    %v4612 = vpop.f32.mrb[0].mxu0
    %4613 = vmatprep.mubr.f32.mxu0 %v4474
    %4614 = vmatmul.mubr.f32.gmra.mrb[0].mxu0 %v4311
    %v4615 = vpop.f32.mrb[0].mxu0
    %v4616 = vadd.f32 %v4424, %v4615
    %v4617 = vpop.f32.mrb[0].mxu0
    %4618 = vmatprep.mubr.f32.mxu0 %v4477
    %4619 = vmatmul.mubr.f32.gmra.mrb[0].mxu0 %v4313
    %v4620 = vpop.f32.mrb[0].mxu0
    %v4621 = vadd.f32 %v4429, %v4620
    %v4622 = vpop.f32.mrb[0].mxu0
    %4623 = vdwg.mxu0
    %v4624 = vmax.f32 %v4546, 0.0
    %v4625 = vmax.f32 %v4551, 0.0
    %v4626 = vmax.f32 %v4556, 0.0
    %v4627 = vmax.f32 %v4561, 0.0
    %v4628 = vmax.f32 %v4566, 0.0
    %v4629 = vmax.f32 %v4571, 0.0
    %v4630 = vmax.f32 %v4576, 0.0
    %v4631 = vmax.f32 %v4581, 0.0
    %v4632 = vmax.f32 %v4586, 0.0
    %v4633 = vmax.f32 %v4591, 0.0
    %v4634 = vmax.f32 %v4596, 0.0
    %v4635 = vmax.f32 %v4601, 0.0
    %v4636 = vmax.f32 %v4606, 0.0
    %v4637 = vmax.f32 %v4611, 0.0
    %v4638 = vmax.f32 %v4616, 0.0
    %v4639 = vmax.f32 %v4621, 0.0
    %4640 = vst [vmem:[%s2392] sm:$0xff] %v4624
    %4641 = vst [vmem:[%s2392 + $0x8] sm:$0xff] %v4625
    %4642 = vst [vmem:[%s2392 + $0x10] sm:$0xff] %v4626
    %4643 = vst [vmem:[%s2392 + $0x18] sm:$0xff] %v4627
    %4644 = vst [vmem:[%s2392 + $0x20] sm:$0xff] %v4628
    %4645 = vst [vmem:[%s2392 + $0x28] sm:$0xff] %v4629
    %4646 = vst [vmem:[%s2392 + $0x30] sm:$0xff] %v4630
    %4647 = vst [vmem:[%s2392 + $0x38] sm:$0xff] %v4631
    %4648 = vst [vmem:[%s2392 + $0x40] sm:$0xff] %v4632
    %4649 = vst [vmem:[%s2392 + $0x48] sm:$0xff] %v4633
    %4650 = vst [vmem:[%s2392 + $0x50] sm:$0xff] %v4634
    %4651 = vst [vmem:[%s2392 + $0x58] sm:$0xff] %v4635
    %4652 = vst [vmem:[%s2392 + $0x60] sm:$0xff] %v4636
    %4653 = vst [vmem:[%s2392 + $0x68] sm:$0xff] %v4637
    %4654 = vst [vmem:[%s2392 + $0x70] sm:$0xff] %v4638
    %4655 = vst [vmem:[%s2392 + $0x78] sm:$0xff] %v4639
    %v4656 = vld [vmem:[%s2409] sm:$0xff]
    %v4657 = vld [vmem:[%s2409 + $0x8] sm:$0xff]
    %v4658 = vld [vmem:[%s2409 + $0x10] sm:$0xff]
    %v4659 = vld [vmem:[%s2409 + $0x18] sm:$0xff]
    %v4660 = vld [vmem:[%s2409 + $0x20] sm:$0xff]
    %v4661 = vld [vmem:[%s2409 + $0x28] sm:$0xff]
    %v4662 = vld [vmem:[%s2409 + $0x30] sm:$0xff]
    %v4663 = vld [vmem:[%s2409 + $0x38] sm:$0xff]
    %v4664 = vld [vmem:[%s2409 + $0x40] sm:$0xff]
    %v4665 = vld [vmem:[%s2409 + $0x48] sm:$0xff]
    %v4666 = vld [vmem:[%s2409 + $0x50] sm:$0xff]
    %v4667 = vld [vmem:[%s2409 + $0x58] sm:$0xff]
    %v4668 = vld [vmem:[%s2409 + $0x60] sm:$0xff]
    %v4669 = vld [vmem:[%s2409 + $0x68] sm:$0xff]
    %v4670 = vld [vmem:[%s2409 + $0x70] sm:$0xff]
    %v4671 = vld [vmem:[%s2409 + $0x78] sm:$0xff]
    %v4672 = vld [vmem:[%s2409 + $0x80] sm:$0xff]
    %v4673 = vld [vmem:[%s2409 + $0x88] sm:$0xff]
    %v4674 = vld [vmem:[%s2409 + $0x90] sm:$0xff]
    %v4675 = vld [vmem:[%s2409 + $0x98] sm:$0xff]
    %4676 = vmatprep.subr.mxu0 0.0
    %4677 = vmatpush1.msra.mxu0 %v4656
    %4678 = vmatprep.subr.mxu0 0.0
    %4679 = vmatpush1.msra.mxu0 %v4657
    %4680 = vmatprep.subr.mxu0 0.0
    %4681 = vmatpush1.msra.mxu0 %v4658
    %4682 = vmatprep.subr.mxu0 0.0
    %4683 = vmatpush1.msra.mxu0 %v4659
    %4684 = vmatprep.subr.mxu0 0.0
    %4685 = vmatpush1.msra.mxu0 %v4660
    %4686 = vmatprep.subr.mxu0 0.0
    %4687 = vmatpush1.msra.mxu0 %v4661
    %4688 = vmatprep.subr.mxu0 0.0
    %4689 = vmatpush1.msra.mxu0 %v4662
    %4690 = vmatprep.subr.mxu0 0.0
    %4691 = vmatpush1.msra.mxu0 %v4663
    %4692 = vmatprep.subr.mxu0 0.0
    %4693 = vmatpush1.msra.mxu0 %v4664
    %4694 = vmatprep.subr.mxu0 0.0
    %4695 = vmatpush1.msra.mxu0 %v4665
    %4696 = vmatprep.subr.mxu0 0.0
    %4697 = vmatpush1.msra.mxu0 %v4666
    %4698 = vmatprep.subr.mxu0 0.0
    %4699 = vmatpush1.msra.mxu0 %v4667
    %4700 = vmatprep.subr.mxu0 0.0
    %4701 = vmatpush1.msra.mxu0 %v4668
    %4702 = vmatprep.subr.mxu0 0.0
    %4703 = vmatpush1.msra.mxu0 %v4669
    %4704 = vmatprep.subr.mxu0 0.0
    %4705 = vmatpush1.msra.mxu0 %v4670
    %4706 = vmatprep.subr.mxu0 0.0
    %4707 = vmatpush1.msra.mxu0 %v4671
    %4708 = vmatprep.subr.mxu0 0.0
    %4709 = vmatpush1.msra.mxu0 %v4672
    %4710 = vmatprep.subr.mxu0 0.0
    %4711 = vmatpush1.msra.mxu0 %v4673
    %4712 = vmatprep.subr.mxu0 0.0
    %4713 = vmatpush1.msra.mxu0 %v4674
    %4714 = vmatprep.subr.mxu0 0.0
    %4715 = vmatpush1.msra.mxu0 %v4675
    %4716 = vmatprep.subr.mxu0 0.0
    %4717 = vmatpush1.msra.mxu0 0.0
    %4718 = vmatprep.subr.mxu0 0.0
    %4719 = vmatpush1.msra.mxu0 0.0
    %4720 = vmatprep.subr.mxu0 0.0
    %4721 = vmatpush1.msra.mxu0 0.0
    %4722 = vmatprep.subr.mxu0 0.0
    %4723 = vmatpush1.msra.mxu0 0.0
    %4724 = vmatprep.subr.mxu0 0.0
    %4725 = vmatpush1.msra.mxu0 0.0
    %4726 = vmatprep.subr.mxu0 0.0
    %4727 = vmatpush1.msra.mxu0 0.0
    %4728 = vmatprep.subr.mxu0 0.0
    %4729 = vmatpush1.msra.mxu0 0.0
    %4730 = vmatprep.subr.mxu0 0.0
    %4731 = vmatpush1.msra.mxu0 0.0
    %4732 = vmatprep.subr.mxu0 0.0
    %4733 = vmatpush1.msra.mxu0 0.0
    %4734 = vmatprep.subr.mxu0 0.0
    %4735 = vmatpush1.msra.mxu0 0.0
    %4736 = vmatprep.subr.mxu0 0.0
    %4737 = vmatpush1.msra.mxu0 0.0
    %4738 = vmatprep.subr.mxu0 0.0
    %4739 = vmatpush1.msra.mxu0 0.0
    %4740 = vmatprep.mubr.f32.mxu0 %v4432
    %4741 = vmatmul.mubr.f32.gmra.mrb[0].mxu0 %v4283
    %v4742 = vpop.f32.mrb[0].mxu0
    %v4743 = vadd.f32 %v4354, %v4742
    %v4744 = vpop.f32.mrb[0].mxu0
    %4745 = vmatprep.mubr.f32.mxu0 %v4435
    %4746 = vmatmul.mubr.f32.gmra.mrb[0].mxu0 %v4285
    %v4747 = vpop.f32.mrb[0].mxu0
    %v4748 = vadd.f32 %v4359, %v4747
    %v4749 = vpop.f32.mrb[0].mxu0
    %4750 = vmatprep.mubr.f32.mxu0 %v4438
    %4751 = vmatmul.mubr.f32.gmra.mrb[0].mxu0 %v4287
    %v4752 = vpop.f32.mrb[0].mxu0
    %v4753 = vadd.f32 %v4364, %v4752
    %v4754 = vpop.f32.mrb[0].mxu0
    %4755 = vmatprep.mubr.f32.mxu0 %v4441
    %4756 = vmatmul.mubr.f32.gmra.mrb[0].mxu0 %v4289
    %v4757 = vpop.f32.mrb[0].mxu0
    %v4758 = vadd.f32 %v4369, %v4757
    %v4759 = vpop.f32.mrb[0].mxu0
    %4760 = vmatprep.mubr.f32.mxu0 %v4444
    %4761 = vmatmul.mubr.f32.gmra.mrb[0].mxu0 %v4291
    %v4762 = vpop.f32.mrb[0].mxu0
    %v4763 = vadd.f32 %v4374, %v4762
    %v4764 = vpop.f32.mrb[0].mxu0
    %4765 = vmatprep.mubr.f32.mxu0 %v4447
    %4766 = vmatmul.mubr.f32.gmra.mrb[0].mxu0 %v4293
    %v4767 = vpop.f32.mrb[0].mxu0
    %v4768 = vadd.f32 %v4379, %v4767
    %v4769 = vpop.f32.mrb[0].mxu0
    %4770 = vmatprep.mubr.f32.mxu0 %v4450
    %4771 = vmatmul.mubr.f32.gmra.mrb[0].mxu0 %v4295
    %v4772 = vpop.f32.mrb[0].mxu0
    %v4773 = vadd.f32 %v4384, %v4772
    %v4774 = vpop.f32.mrb[0].mxu0
    %4775 = vmatprep.mubr.f32.mxu0 %v4453
    %4776 = vmatmul.mubr.f32.gmra.mrb[0].mxu0 %v4297
    %v4777 = vpop.f32.mrb[0].mxu0
    %v4778 = vadd.f32 %v4389, %v4777
    %v4779 = vpop.f32.mrb[0].mxu0
    %4780 = vmatprep.mubr.f32.mxu0 %v4456
    %4781 = vmatmul.mubr.f32.gmra.mrb[0].mxu0 %v4299
    %v4782 = vpop.f32.mrb[0].mxu0
    %v4783 = vadd.f32 %v4394, %v4782
    %v4784 = vpop.f32.mrb[0].mxu0
    %4785 = vmatprep.mubr.f32.mxu0 %v4459
    %4786 = vmatmul.mubr.f32.gmra.mrb[0].mxu0 %v4301
    %v4787 = vpop.f32.mrb[0].mxu0
    %v4788 = vadd.f32 %v4399, %v4787
    %v4789 = vpop.f32.mrb[0].mxu0
    %4790 = vmatprep.mubr.f32.mxu0 %v4462
    %4791 = vmatmul.mubr.f32.gmra.mrb[0].mxu0 %v4303
    %v4792 = vpop.f32.mrb[0].mxu0
    %v4793 = vadd.f32 %v4404, %v4792
    %v4794 = vpop.f32.mrb[0].mxu0
    %4795 = vmatprep.mubr.f32.mxu0 %v4465
    %4796 = vmatmul.mubr.f32.gmra.mrb[0].mxu0 %v4305
    %v4797 = vpop.f32.mrb[0].mxu0
    %v4798 = vadd.f32 %v4409, %v4797
    %v4799 = vpop.f32.mrb[0].mxu0
    %4800 = vmatprep.mubr.f32.mxu0 %v4468
    %4801 = vmatmul.mubr.f32.gmra.mrb[0].mxu0 %v4307
    %v4802 = vpop.f32.mrb[0].mxu0
    %v4803 = vadd.f32 %v4414, %v4802
    %v4804 = vpop.f32.mrb[0].mxu0
    %4805 = vmatprep.mubr.f32.mxu0 %v4471
    %4806 = vmatmul.mubr.f32.gmra.mrb[0].mxu0 %v4309
    %v4807 = vpop.f32.mrb[0].mxu0
    %v4808 = vadd.f32 %v4419, %v4807
    %v4809 = vpop.f32.mrb[0].mxu0
    %4810 = vmatprep.mubr.f32.mxu0 %v4474
    %4811 = vmatmul.mubr.f32.gmra.mrb[0].mxu0 %v4311
    %v4812 = vpop.f32.mrb[0].mxu0
    %v4813 = vadd.f32 %v4424, %v4812
    %v4814 = vpop.f32.mrb[0].mxu0
    %4815 = vmatprep.mubr.f32.mxu0 %v4477
    %4816 = vmatmul.mubr.f32.gmra.mrb[0].mxu0 %v4313
    %v4817 = vpop.f32.mrb[0].mxu0
    %v4818 = vadd.f32 %v4429, %v4817
    %v4819 = vpop.f32.mrb[0].mxu0
    %4820 = vdwg.mxu0
    %v4821 = vmax.f32 %v4743, 0.0
    %v4822 = vmax.f32 %v4748, 0.0
    %v4823 = vmax.f32 %v4753, 0.0
    %v4824 = vmax.f32 %v4758, 0.0
    %v4825 = vmax.f32 %v4763, 0.0
    %v4826 = vmax.f32 %v4768, 0.0
    %v4827 = vmax.f32 %v4773, 0.0
    %v4828 = vmax.f32 %v4778, 0.0
    %v4829 = vmax.f32 %v4783, 0.0
    %v4830 = vmax.f32 %v4788, 0.0
    %v4831 = vmax.f32 %v4793, 0.0
    %v4832 = vmax.f32 %v4798, 0.0
    %v4833 = vmax.f32 %v4803, 0.0
    %v4834 = vmax.f32 %v4808, 0.0
    %v4835 = vmax.f32 %v4813, 0.0
    %v4836 = vmax.f32 %v4818, 0.0
    %4837 = vst [vmem:[%s2591] sm:$0xff] %v4821
    %4838 = vst [vmem:[%s2591 + $0x8] sm:$0xff] %v4822
    %4839 = vst [vmem:[%s2591 + $0x10] sm:$0xff] %v4823
    %4840 = vst [vmem:[%s2591 + $0x18] sm:$0xff] %v4824
    %4841 = vst [vmem:[%s2591 + $0x20] sm:$0xff] %v4825
    %4842 = vst [vmem:[%s2591 + $0x28] sm:$0xff] %v4826
    %4843 = vst [vmem:[%s2591 + $0x30] sm:$0xff] %v4827
    %4844 = vst [vmem:[%s2591 + $0x38] sm:$0xff] %v4828
    %4845 = vst [vmem:[%s2591 + $0x40] sm:$0xff] %v4829
    %4846 = vst [vmem:[%s2591 + $0x48] sm:$0xff] %v4830
    %4847 = vst [vmem:[%s2591 + $0x50] sm:$0xff] %v4831
    %4848 = vst [vmem:[%s2591 + $0x58] sm:$0xff] %v4832
    %4849 = vst [vmem:[%s2591 + $0x60] sm:$0xff] %v4833
    %4850 = vst [vmem:[%s2591 + $0x68] sm:$0xff] %v4834
    %4851 = vst [vmem:[%s2591 + $0x70] sm:$0xff] %v4835
    %4852 = vst [vmem:[%s2591 + $0x78] sm:$0xff] %v4836
    %v4853 = vld [vmem:[%s2608] sm:$0xff]
    %v4854 = vld [vmem:[%s2608 + $0x8] sm:$0xff]
    %v4855 = vld [vmem:[%s2608 + $0x10] sm:$0xff]
    %v4856 = vld [vmem:[%s2608 + $0x18] sm:$0xff]
    %v4857 = vld [vmem:[%s2608 + $0x20] sm:$0xff]
    %v4858 = vld [vmem:[%s2608 + $0x28] sm:$0xff]
    %v4859 = vld [vmem:[%s2608 + $0x30] sm:$0xff]
    %v4860 = vld [vmem:[%s2608 + $0x38] sm:$0xff]
    %v4861 = vld [vmem:[%s2608 + $0x40] sm:$0xff]
    %v4862 = vld [vmem:[%s2608 + $0x48] sm:$0xff]
    %v4863 = vld [vmem:[%s2608 + $0x50] sm:$0xff]
    %v4864 = vld [vmem:[%s2608 + $0x58] sm:$0xff]
    %v4865 = vld [vmem:[%s2608 + $0x60] sm:$0xff]
    %v4866 = vld [vmem:[%s2608 + $0x68] sm:$0xff]
    %v4867 = vld [vmem:[%s2608 + $0x70] sm:$0xff]
    %v4868 = vld [vmem:[%s2608 + $0x78] sm:$0xff]
    %v4869 = vld [vmem:[%s2608 + $0x80] sm:$0xff]
    %v4870 = vld [vmem:[%s2608 + $0x88] sm:$0xff]
    %v4871 = vld [vmem:[%s2608 + $0x90] sm:$0xff]
    %v4872 = vld [vmem:[%s2608 + $0x98] sm:$0xff]
    %4873 = vmatprep.subr.mxu0 0.0
    %4874 = vmatpush1.msra.mxu0 %v4853
    %4875 = vmatprep.subr.mxu0 0.0
    %4876 = vmatpush1.msra.mxu0 %v4854
    %4877 = vmatprep.subr.mxu0 0.0
    %4878 = vmatpush1.msra.mxu0 %v4855
    %4879 = vmatprep.subr.mxu0 0.0
    %4880 = vmatpush1.msra.mxu0 %v4856
    %4881 = vmatprep.subr.mxu0 0.0
    %4882 = vmatpush1.msra.mxu0 %v4857
    %4883 = vmatprep.subr.mxu0 0.0
    %4884 = vmatpush1.msra.mxu0 %v4858
    %4885 = vmatprep.subr.mxu0 0.0
    %4886 = vmatpush1.msra.mxu0 %v4859
    %4887 = vmatprep.subr.mxu0 0.0
    %4888 = vmatpush1.msra.mxu0 %v4860
    %4889 = vmatprep.subr.mxu0 0.0
    %4890 = vmatpush1.msra.mxu0 %v4861
    %4891 = vmatprep.subr.mxu0 0.0
    %4892 = vmatpush1.msra.mxu0 %v4862
    %4893 = vmatprep.subr.mxu0 0.0
    %4894 = vmatpush1.msra.mxu0 %v4863
    %4895 = vmatprep.subr.mxu0 0.0
    %4896 = vmatpush1.msra.mxu0 %v4864
    %4897 = vmatprep.subr.mxu0 0.0
    %4898 = vmatpush1.msra.mxu0 %v4865
    %4899 = vmatprep.subr.mxu0 0.0
    %4900 = vmatpush1.msra.mxu0 %v4866
    %4901 = vmatprep.subr.mxu0 0.0
    %4902 = vmatpush1.msra.mxu0 %v4867
    %4903 = vmatprep.subr.mxu0 0.0
    %4904 = vmatpush1.msra.mxu0 %v4868
    %4905 = vmatprep.subr.mxu0 0.0
    %4906 = vmatpush1.msra.mxu0 %v4869
    %4907 = vmatprep.subr.mxu0 0.0
    %4908 = vmatpush1.msra.mxu0 %v4870
    %4909 = vmatprep.subr.mxu0 0.0
    %4910 = vmatpush1.msra.mxu0 %v4871
    %4911 = vmatprep.subr.mxu0 0.0
    %4912 = vmatpush1.msra.mxu0 %v4872
    %4913 = vmatprep.subr.mxu0 0.0
    %4914 = vmatpush1.msra.mxu0 0.0
    %4915 = vmatprep.subr.mxu0 0.0
    %4916 = vmatpush1.msra.mxu0 0.0
    %4917 = vmatprep.subr.mxu0 0.0
    %4918 = vmatpush1.msra.mxu0 0.0
    %4919 = vmatprep.subr.mxu0 0.0
    %4920 = vmatpush1.msra.mxu0 0.0
    %4921 = vmatprep.subr.mxu0 0.0
    %4922 = vmatpush1.msra.mxu0 0.0
    %4923 = vmatprep.subr.mxu0 0.0
    %4924 = vmatpush1.msra.mxu0 0.0
    %4925 = vmatprep.subr.mxu0 0.0
    %4926 = vmatpush1.msra.mxu0 0.0
    %4927 = vmatprep.subr.mxu0 0.0
    %4928 = vmatpush1.msra.mxu0 0.0
    %4929 = vmatprep.subr.mxu0 0.0
    %4930 = vmatpush1.msra.mxu0 0.0
    %4931 = vmatprep.subr.mxu0 0.0
    %4932 = vmatpush1.msra.mxu0 0.0
    %4933 = vmatprep.subr.mxu0 0.0
    %4934 = vmatpush1.msra.mxu0 0.0
    %4935 = vmatprep.subr.mxu0 0.0
    %4936 = vmatpush1.msra.mxu0 0.0
    %4937 = vmatprep.mubr.f32.mxu0 %v4432
    %4938 = vmatmul.mubr.f32.gmra.mrb[0].mxu0 %v4283
    %v4939 = vpop.f32.mrb[0].mxu0
    %v4940 = vadd.f32 %v4354, %v4939
    %v4941 = vpop.f32.mrb[0].mxu0
    %4942 = vmatprep.mubr.f32.mxu0 %v4435
    %4943 = vmatmul.mubr.f32.gmra.mrb[0].mxu0 %v4285
    %v4944 = vpop.f32.mrb[0].mxu0
    %v4945 = vadd.f32 %v4359, %v4944
    %v4946 = vpop.f32.mrb[0].mxu0
    %4947 = vmatprep.mubr.f32.mxu0 %v4438
    %4948 = vmatmul.mubr.f32.gmra.mrb[0].mxu0 %v4287
    %v4949 = vpop.f32.mrb[0].mxu0
    %v4950 = vadd.f32 %v4364, %v4949
    %v4951 = vpop.f32.mrb[0].mxu0
    %4952 = vmatprep.mubr.f32.mxu0 %v4441
    %4953 = vmatmul.mubr.f32.gmra.mrb[0].mxu0 %v4289
    %v4954 = vpop.f32.mrb[0].mxu0
    %v4955 = vadd.f32 %v4369, %v4954
    %v4956 = vpop.f32.mrb[0].mxu0
    %4957 = vmatprep.mubr.f32.mxu0 %v4444
    %4958 = vmatmul.mubr.f32.gmra.mrb[0].mxu0 %v4291
    %v4959 = vpop.f32.mrb[0].mxu0
    %v4960 = vadd.f32 %v4374, %v4959
    %v4961 = vpop.f32.mrb[0].mxu0
    %4962 = vmatprep.mubr.f32.mxu0 %v4447
    %4963 = vmatmul.mubr.f32.gmra.mrb[0].mxu0 %v4293
    %v4964 = vpop.f32.mrb[0].mxu0
    %v4965 = vadd.f32 %v4379, %v4964
    %v4966 = vpop.f32.mrb[0].mxu0
    %4967 = vmatprep.mubr.f32.mxu0 %v4450
    %4968 = vmatmul.mubr.f32.gmra.mrb[0].mxu0 %v4295
    %v4969 = vpop.f32.mrb[0].mxu0
    %v4970 = vadd.f32 %v4384, %v4969
    %v4971 = vpop.f32.mrb[0].mxu0
    %4972 = vmatprep.mubr.f32.mxu0 %v4453
    %4973 = vmatmul.mubr.f32.gmra.mrb[0].mxu0 %v4297
    %v4974 = vpop.f32.mrb[0].mxu0
    %v4975 = vadd.f32 %v4389, %v4974
    %v4976 = vpop.f32.mrb[0].mxu0
    %4977 = vmatprep.mubr.f32.mxu0 %v4456
    %4978 = vmatmul.mubr.f32.gmra.mrb[0].mxu0 %v4299
    %v4979 = vpop.f32.mrb[0].mxu0
    %v4980 = vadd.f32 %v4394, %v4979
    %v4981 = vpop.f32.mrb[0].mxu0
    %4982 = vmatprep.mubr.f32.mxu0 %v4459
    %4983 = vmatmul.mubr.f32.gmra.mrb[0].mxu0 %v4301
    %v4984 = vpop.f32.mrb[0].mxu0
    %v4985 = vadd.f32 %v4399, %v4984
    %v4986 = vpop.f32.mrb[0].mxu0
    %4987 = vmatprep.mubr.f32.mxu0 %v4462
    %4988 = vmatmul.mubr.f32.gmra.mrb[0].mxu0 %v4303
    %v4989 = vpop.f32.mrb[0].mxu0
    %v4990 = vadd.f32 %v4404, %v4989
    %v4991 = vpop.f32.mrb[0].mxu0
    %4992 = vmatprep.mubr.f32.mxu0 %v4465
    %4993 = vmatmul.mubr.f32.gmra.mrb[0].mxu0 %v4305
    %v4994 = vpop.f32.mrb[0].mxu0
    %v4995 = vadd.f32 %v4409, %v4994
    %v4996 = vpop.f32.mrb[0].mxu0
    %4997 = vmatprep.mubr.f32.mxu0 %v4468
    %4998 = vmatmul.mubr.f32.gmra.mrb[0].mxu0 %v4307
    %v4999 = vpop.f32.mrb[0].mxu0
    %v5000 = vadd.f32 %v4414, %v4999
    %v5001 = vpop.f32.mrb[0].mxu0
    %5002 = vmatprep.mubr.f32.mxu0 %v4471
    %5003 = vmatmul.mubr.f32.gmra.mrb[0].mxu0 %v4309
    %v5004 = vpop.f32.mrb[0].mxu0
    %v5005 = vadd.f32 %v4419, %v5004
    %v5006 = vpop.f32.mrb[0].mxu0
    %5007 = vmatprep.mubr.f32.mxu0 %v4474
    %5008 = vmatmul.mubr.f32.gmra.mrb[0].mxu0 %v4311
    %v5009 = vpop.f32.mrb[0].mxu0
    %v5010 = vadd.f32 %v4424, %v5009
    %v5011 = vpop.f32.mrb[0].mxu0
    %5012 = vmatprep.mubr.f32.mxu0 %v4477
    %5013 = vmatmul.mubr.f32.gmra.mrb[0].mxu0 %v4313
    %v5014 = vpop.f32.mrb[0].mxu0
    %v5015 = vadd.f32 %v4429, %v5014
    %v5016 = vpop.f32.mrb[0].mxu0
    %5017 = vdwg.mxu0
    %v5018 = vmax.f32 %v4940, 0.0
    %v5019 = vmax.f32 %v4945, 0.0
    %v5020 = vmax.f32 %v4950, 0.0
    %v5021 = vmax.f32 %v4955, 0.0
    %v5022 = vmax.f32 %v4960, 0.0
    %v5023 = vmax.f32 %v4965, 0.0
    %v5024 = vmax.f32 %v4970, 0.0
    %v5025 = vmax.f32 %v4975, 0.0
    %v5026 = vmax.f32 %v4980, 0.0
    %v5027 = vmax.f32 %v4985, 0.0
    %v5028 = vmax.f32 %v4990, 0.0
    %v5029 = vmax.f32 %v4995, 0.0
    %v5030 = vmax.f32 %v5000, 0.0
    %v5031 = vmax.f32 %v5005, 0.0
    %v5032 = vmax.f32 %v5010, 0.0
    %v5033 = vmax.f32 %v5015, 0.0
    %5034 = vst [vmem:[%s2790] sm:$0xff] %v5018
    %5035 = vst [vmem:[%s2790 + $0x8] sm:$0xff] %v5019
    %5036 = vst [vmem:[%s2790 + $0x10] sm:$0xff] %v5020
    %5037 = vst [vmem:[%s2790 + $0x18] sm:$0xff] %v5021
    %5038 = vst [vmem:[%s2790 + $0x20] sm:$0xff] %v5022
    %5039 = vst [vmem:[%s2790 + $0x28] sm:$0xff] %v5023
    %5040 = vst [vmem:[%s2790 + $0x30] sm:$0xff] %v5024
    %5041 = vst [vmem:[%s2790 + $0x38] sm:$0xff] %v5025
    %5042 = vst [vmem:[%s2790 + $0x40] sm:$0xff] %v5026
    %5043 = vst [vmem:[%s2790 + $0x48] sm:$0xff] %v5027
    %5044 = vst [vmem:[%s2790 + $0x50] sm:$0xff] %v5028
    %5045 = vst [vmem:[%s2790 + $0x58] sm:$0xff] %v5029
    %5046 = vst [vmem:[%s2790 + $0x60] sm:$0xff] %v5030
    %5047 = vst [vmem:[%s2790 + $0x68] sm:$0xff] %v5031
    %5048 = vst [vmem:[%s2790 + $0x70] sm:$0xff] %v5032
    %5049 = vst [vmem:[%s2790 + $0x78] sm:$0xff] %v5033
    %v5050 = vld [vmem:[%s2807] sm:$0xff]
    %v5051 = vld [vmem:[%s2807 + $0x8] sm:$0xff]
    %v5052 = vld [vmem:[%s2807 + $0x10] sm:$0xff]
    %v5053 = vld [vmem:[%s2807 + $0x18] sm:$0xff]
    %v5054 = vld [vmem:[%s2807 + $0x20] sm:$0xff]
    %v5055 = vld [vmem:[%s2807 + $0x28] sm:$0xff]
    %v5056 = vld [vmem:[%s2807 + $0x30] sm:$0xff]
    %v5057 = vld [vmem:[%s2807 + $0x38] sm:$0xff]
    %v5058 = vld [vmem:[%s2807 + $0x40] sm:$0xff]
    %v5059 = vld [vmem:[%s2807 + $0x48] sm:$0xff]
    %v5060 = vld [vmem:[%s2807 + $0x50] sm:$0xff]
    %v5061 = vld [vmem:[%s2807 + $0x58] sm:$0xff]
    %v5062 = vld [vmem:[%s2807 + $0x60] sm:$0xff]
    %v5063 = vld [vmem:[%s2807 + $0x68] sm:$0xff]
    %v5064 = vld [vmem:[%s2807 + $0x70] sm:$0xff]
    %v5065 = vld [vmem:[%s2807 + $0x78] sm:$0xff]
    %v5066 = vld [vmem:[%s2807 + $0x80] sm:$0xff]
    %v5067 = vld [vmem:[%s2807 + $0x88] sm:$0xff]
    %v5068 = vld [vmem:[%s2807 + $0x90] sm:$0xff]
    %v5069 = vld [vmem:[%s2807 + $0x98] sm:$0xff]
    %5070 = vmatprep.subr.mxu0 0.0
    %5071 = vmatpush1.msra.mxu0 %v5050
    %5072 = vmatprep.subr.mxu0 0.0
    %5073 = vmatpush1.msra.mxu0 %v5051
    %5074 = vmatprep.subr.mxu0 0.0
    %5075 = vmatpush1.msra.mxu0 %v5052
    %5076 = vmatprep.subr.mxu0 0.0
    %5077 = vmatpush1.msra.mxu0 %v5053
    %5078 = vmatprep.subr.mxu0 0.0
    %5079 = vmatpush1.msra.mxu0 %v5054
    %5080 = vmatprep.subr.mxu0 0.0
    %5081 = vmatpush1.msra.mxu0 %v5055
    %5082 = vmatprep.subr.mxu0 0.0
    %5083 = vmatpush1.msra.mxu0 %v5056
    %5084 = vmatprep.subr.mxu0 0.0
    %5085 = vmatpush1.msra.mxu0 %v5057
    %5086 = vmatprep.subr.mxu0 0.0
    %5087 = vmatpush1.msra.mxu0 %v5058
    %5088 = vmatprep.subr.mxu0 0.0
    %5089 = vmatpush1.msra.mxu0 %v5059
    %5090 = vmatprep.subr.mxu0 0.0
    %5091 = vmatpush1.msra.mxu0 %v5060
    %5092 = vmatprep.subr.mxu0 0.0
    %5093 = vmatpush1.msra.mxu0 %v5061
    %5094 = vmatprep.subr.mxu0 0.0
    %5095 = vmatpush1.msra.mxu0 %v5062
    %5096 = vmatprep.subr.mxu0 0.0
    %5097 = vmatpush1.msra.mxu0 %v5063
    %5098 = vmatprep.subr.mxu0 0.0
    %5099 = vmatpush1.msra.mxu0 %v5064
    %5100 = vmatprep.subr.mxu0 0.0
    %5101 = vmatpush1.msra.mxu0 %v5065
    %5102 = vmatprep.subr.mxu0 0.0
    %5103 = vmatpush1.msra.mxu0 %v5066
    %5104 = vmatprep.subr.mxu0 0.0
    %5105 = vmatpush1.msra.mxu0 %v5067
    %5106 = vmatprep.subr.mxu0 0.0
    %5107 = vmatpush1.msra.mxu0 %v5068
    %5108 = vmatprep.subr.mxu0 0.0
    %5109 = vmatpush1.msra.mxu0 %v5069
    %5110 = vmatprep.subr.mxu0 0.0
    %5111 = vmatpush1.msra.mxu0 0.0
    %5112 = vmatprep.subr.mxu0 0.0
    %5113 = vmatpush1.msra.mxu0 0.0
    %5114 = vmatprep.subr.mxu0 0.0
    %5115 = vmatpush1.msra.mxu0 0.0
    %5116 = vmatprep.subr.mxu0 0.0
    %5117 = vmatpush1.msra.mxu0 0.0
    %5118 = vmatprep.subr.mxu0 0.0
    %5119 = vmatpush1.msra.mxu0 0.0
    %5120 = vmatprep.subr.mxu0 0.0
    %5121 = vmatpush1.msra.mxu0 0.0
    %5122 = vmatprep.subr.mxu0 0.0
    %5123 = vmatpush1.msra.mxu0 0.0
    %5124 = vmatprep.subr.mxu0 0.0
    %5125 = vmatpush1.msra.mxu0 0.0
    %5126 = vmatprep.subr.mxu0 0.0
    %5127 = vmatpush1.msra.mxu0 0.0
    %5128 = vmatprep.subr.mxu0 0.0
    %5129 = vmatpush1.msra.mxu0 0.0
    %5130 = vmatprep.subr.mxu0 0.0
    %5131 = vmatpush1.msra.mxu0 0.0
    %5132 = vmatprep.subr.mxu0 0.0
    %5133 = vmatpush1.msra.mxu0 0.0
    %5134 = vmatprep.mubr.f32.mxu0 %v4432
    %5135 = vmatmul.mubr.f32.gmra.mrb[0].mxu0 %v4283
    %v5136 = vpop.f32.mrb[0].mxu0
    %v5137 = vadd.f32 %v4354, %v5136
    %v5138 = vpop.f32.mrb[0].mxu0
    %5139 = vmatprep.mubr.f32.mxu0 %v4435
    %5140 = vmatmul.mubr.f32.gmra.mrb[0].mxu0 %v4285
    %v5141 = vpop.f32.mrb[0].mxu0
    %v5142 = vadd.f32 %v4359, %v5141
    %v5143 = vpop.f32.mrb[0].mxu0
    %5144 = vmatprep.mubr.f32.mxu0 %v4438
    %5145 = vmatmul.mubr.f32.gmra.mrb[0].mxu0 %v4287
    %v5146 = vpop.f32.mrb[0].mxu0
    %v5147 = vadd.f32 %v4364, %v5146
    %v5148 = vpop.f32.mrb[0].mxu0
    %5149 = vmatprep.mubr.f32.mxu0 %v4441
    %5150 = vmatmul.mubr.f32.gmra.mrb[0].mxu0 %v4289
    %v5151 = vpop.f32.mrb[0].mxu0
    %v5152 = vadd.f32 %v4369, %v5151
    %v5153 = vpop.f32.mrb[0].mxu0
    %5154 = vmatprep.mubr.f32.mxu0 %v4444
    %5155 = vmatmul.mubr.f32.gmra.mrb[0].mxu0 %v4291
    %v5156 = vpop.f32.mrb[0].mxu0
    %v5157 = vadd.f32 %v4374, %v5156
    %v5158 = vpop.f32.mrb[0].mxu0
    %5159 = vmatprep.mubr.f32.mxu0 %v4447
    %5160 = vmatmul.mubr.f32.gmra.mrb[0].mxu0 %v4293
    %v5161 = vpop.f32.mrb[0].mxu0
    %v5162 = vadd.f32 %v4379, %v5161
    %v5163 = vpop.f32.mrb[0].mxu0
    %5164 = vmatprep.mubr.f32.mxu0 %v4450
    %5165 = vmatmul.mubr.f32.gmra.mrb[0].mxu0 %v4295
    %v5166 = vpop.f32.mrb[0].mxu0
    %v5167 = vadd.f32 %v4384, %v5166
    %v5168 = vpop.f32.mrb[0].mxu0
    %5169 = vmatprep.mubr.f32.mxu0 %v4453
    %5170 = vmatmul.mubr.f32.gmra.mrb[0].mxu0 %v4297
    %v5171 = vpop.f32.mrb[0].mxu0
    %v5172 = vadd.f32 %v4389, %v5171
    %v5173 = vpop.f32.mrb[0].mxu0
    %5174 = vmatprep.mubr.f32.mxu0 %v4456
    %5175 = vmatmul.mubr.f32.gmra.mrb[0].mxu0 %v4299
    %v5176 = vpop.f32.mrb[0].mxu0
    %v5177 = vadd.f32 %v4394, %v5176
    %v5178 = vpop.f32.mrb[0].mxu0
    %5179 = vmatprep.mubr.f32.mxu0 %v4459
    %5180 = vmatmul.mubr.f32.gmra.mrb[0].mxu0 %v4301
    %v5181 = vpop.f32.mrb[0].mxu0
    %v5182 = vadd.f32 %v4399, %v5181
    %v5183 = vpop.f32.mrb[0].mxu0
    %5184 = vmatprep.mubr.f32.mxu0 %v4462
    %5185 = vmatmul.mubr.f32.gmra.mrb[0].mxu0 %v4303
    %v5186 = vpop.f32.mrb[0].mxu0
    %v5187 = vadd.f32 %v4404, %v5186
    %v5188 = vpop.f32.mrb[0].mxu0
    %5189 = vmatprep.mubr.f32.mxu0 %v4465
    %5190 = vmatmul.mubr.f32.gmra.mrb[0].mxu0 %v4305
    %v5191 = vpop.f32.mrb[0].mxu0
    %v5192 = vadd.f32 %v4409, %v5191
    %v5193 = vpop.f32.mrb[0].mxu0
    %5194 = vmatprep.mubr.f32.mxu0 %v4468
    %5195 = vmatmul.mubr.f32.gmra.mrb[0].mxu0 %v4307
    %v5196 = vpop.f32.mrb[0].mxu0
    %v5197 = vadd.f32 %v4414, %v5196
    %v5198 = vpop.f32.mrb[0].mxu0
    %5199 = vmatprep.mubr.f32.mxu0 %v4471
    %5200 = vmatmul.mubr.f32.gmra.mrb[0].mxu0 %v4309
    %v5201 = vpop.f32.mrb[0].mxu0
    %v5202 = vadd.f32 %v4419, %v5201
    %v5203 = vpop.f32.mrb[0].mxu0
    %5204 = vmatprep.mubr.f32.mxu0 %v4474
    %5205 = vmatmul.mubr.f32.gmra.mrb[0].mxu0 %v4311
    %v5206 = vpop.f32.mrb[0].mxu0
    %v5207 = vadd.f32 %v4424, %v5206
    %v5208 = vpop.f32.mrb[0].mxu0
    %5209 = vmatprep.mubr.f32.mxu0 %v4477
    %5210 = vmatmul.mubr.f32.gmra.mrb[0].mxu0 %v4313
    %v5211 = vpop.f32.mrb[0].mxu0
    %v5212 = vadd.f32 %v4429, %v5211
    %v5213 = vpop.f32.mrb[0].mxu0
    %5214 = vdwg.mxu0
    %v5215 = vmax.f32 %v5137, 0.0
    %v5216 = vmax.f32 %v5142, 0.0
    %v5217 = vmax.f32 %v5147, 0.0
    %v5218 = vmax.f32 %v5152, 0.0
    %v5219 = vmax.f32 %v5157, 0.0
    %v5220 = vmax.f32 %v5162, 0.0
    %v5221 = vmax.f32 %v5167, 0.0
    %v5222 = vmax.f32 %v5172, 0.0
    %v5223 = vmax.f32 %v5177, 0.0
    %v5224 = vmax.f32 %v5182, 0.0
    %v5225 = vmax.f32 %v5187, 0.0
    %v5226 = vmax.f32 %v5192, 0.0
    %v5227 = vmax.f32 %v5197, 0.0
    %v5228 = vmax.f32 %v5202, 0.0
    %v5229 = vmax.f32 %v5207, 0.0
    %v5230 = vmax.f32 %v5212, 0.0
    %5231 = vst [vmem:[%s2989] sm:$0xff] %v5215
    %5232 = vst [vmem:[%s2989 + $0x8] sm:$0xff] %v5216
    %5233 = vst [vmem:[%s2989 + $0x10] sm:$0xff] %v5217
    %5234 = vst [vmem:[%s2989 + $0x18] sm:$0xff] %v5218
    %5235 = vst [vmem:[%s2989 + $0x20] sm:$0xff] %v5219
    %5236 = vst [vmem:[%s2989 + $0x28] sm:$0xff] %v5220
    %5237 = vst [vmem:[%s2989 + $0x30] sm:$0xff] %v5221
    %5238 = vst [vmem:[%s2989 + $0x38] sm:$0xff] %v5222
    %5239 = vst [vmem:[%s2989 + $0x40] sm:$0xff] %v5223
    %5240 = vst [vmem:[%s2989 + $0x48] sm:$0xff] %v5224
    %5241 = vst [vmem:[%s2989 + $0x50] sm:$0xff] %v5225
    %5242 = vst [vmem:[%s2989 + $0x58] sm:$0xff] %v5226
    %5243 = vst [vmem:[%s2989 + $0x60] sm:$0xff] %v5227
    %5244 = vst [vmem:[%s2989 + $0x68] sm:$0xff] %v5228
    %5245 = vst [vmem:[%s2989 + $0x70] sm:$0xff] %v5229
    %5246 = vst [vmem:[%s2989 + $0x78] sm:$0xff] %v5230
    %s5247 = scalar_lea.vmem [#allocation2], 416
    %v5248 = vld [vmem:[%s5247] sm:$0xff]
    %v5249 = vld [vmem:[%s5247 + $0x8] sm:$0xff]
    %v5250 = vld [vmem:[%s5247 + $0x10] sm:$0xff]
    %v5251 = vld [vmem:[%s5247 + $0x18] sm:$0xff]
    %v5252 = vld [vmem:[%s5247 + $0x20] sm:$0xff]
    %v5253 = vld [vmem:[%s5247 + $0x28] sm:$0xff]
    %v5254 = vld [vmem:[%s5247 + $0x30] sm:$0xff]
    %v5255 = vld [vmem:[%s5247 + $0x38] sm:$0xff]
    %v5256 = vld [vmem:[%s5247 + $0x40] sm:$0xff]
    %v5257 = vld [vmem:[%s5247 + $0x48] sm:$0xff]
    %v5258 = vld [vmem:[%s5247 + $0x50] sm:$0xff]
    %v5259 = vld [vmem:[%s5247 + $0x58] sm:$0xff]
    %v5260 = vld [vmem:[%s5247 + $0x60] sm:$0xff]
    %v5261 = vld [vmem:[%s5247 + $0x68] sm:$0xff]
    %v5262 = vld [vmem:[%s5247 + $0x70] sm:$0xff]
    %v5263 = vld [vmem:[%s5247 + $0x78] sm:$0xff]
    %v5264 = vld [vmem:[%s5247 + $0x80] sm:$0xff]
    %v5265 = vld [vmem:[%s5247 + $0x88] sm:$0xff]
    %v5266 = vld [vmem:[%s5247 + $0x90] sm:$0xff]
    %v5267 = vld [vmem:[%s5247 + $0x98] sm:$0xff]
    %5268 = vmatprep.subr.mxu0 0.0
    %5269 = vmatpush1.msra.mxu0 %v5248
    %5270 = vmatprep.subr.mxu0 0.0
    %5271 = vmatpush1.msra.mxu0 %v5249
    %5272 = vmatprep.subr.mxu0 0.0
    %5273 = vmatpush1.msra.mxu0 %v5250
    %5274 = vmatprep.subr.mxu0 0.0
    %5275 = vmatpush1.msra.mxu0 %v5251
    %5276 = vmatprep.subr.mxu0 0.0
    %5277 = vmatpush1.msra.mxu0 %v5252
    %5278 = vmatprep.subr.mxu0 0.0
    %5279 = vmatpush1.msra.mxu0 %v5253
    %5280 = vmatprep.subr.mxu0 0.0
    %5281 = vmatpush1.msra.mxu0 %v5254
    %5282 = vmatprep.subr.mxu0 0.0
    %5283 = vmatpush1.msra.mxu0 %v5255
    %5284 = vmatprep.subr.mxu0 0.0
    %5285 = vmatpush1.msra.mxu0 %v5256
    %5286 = vmatprep.subr.mxu0 0.0
    %5287 = vmatpush1.msra.mxu0 %v5257
    %5288 = vmatprep.subr.mxu0 0.0
    %5289 = vmatpush1.msra.mxu0 %v5258
    %5290 = vmatprep.subr.mxu0 0.0
    %5291 = vmatpush1.msra.mxu0 %v5259
    %5292 = vmatprep.subr.mxu0 0.0
    %5293 = vmatpush1.msra.mxu0 %v5260
    %5294 = vmatprep.subr.mxu0 0.0
    %5295 = vmatpush1.msra.mxu0 %v5261
    %5296 = vmatprep.subr.mxu0 0.0
    %5297 = vmatpush1.msra.mxu0 %v5262
    %5298 = vmatprep.subr.mxu0 0.0
    %5299 = vmatpush1.msra.mxu0 %v5263
    %5300 = vmatprep.subr.mxu0 0.0
    %5301 = vmatpush1.msra.mxu0 %v5264
    %5302 = vmatprep.subr.mxu0 0.0
    %5303 = vmatpush1.msra.mxu0 %v5265
    %5304 = vmatprep.subr.mxu0 0.0
    %5305 = vmatpush1.msra.mxu0 %v5266
    %5306 = vmatprep.subr.mxu0 0.0
    %5307 = vmatpush1.msra.mxu0 %v5267
    %5308 = vmatprep.subr.mxu0 0.0
    %5309 = vmatpush1.msra.mxu0 0.0
    %5310 = vmatprep.subr.mxu0 0.0
    %5311 = vmatpush1.msra.mxu0 0.0
    %5312 = vmatprep.subr.mxu0 0.0
    %5313 = vmatpush1.msra.mxu0 0.0
    %5314 = vmatprep.subr.mxu0 0.0
    %5315 = vmatpush1.msra.mxu0 0.0
    %5316 = vmatprep.subr.mxu0 0.0
    %5317 = vmatpush1.msra.mxu0 0.0
    %5318 = vmatprep.subr.mxu0 0.0
    %5319 = vmatpush1.msra.mxu0 0.0
    %5320 = vmatprep.subr.mxu0 0.0
    %5321 = vmatpush1.msra.mxu0 0.0
    %5322 = vmatprep.subr.mxu0 0.0
    %5323 = vmatpush1.msra.mxu0 0.0
    %5324 = vmatprep.subr.mxu0 0.0
    %5325 = vmatpush1.msra.mxu0 0.0
    %5326 = vmatprep.subr.mxu0 0.0
    %5327 = vmatpush1.msra.mxu0 0.0
    %5328 = vmatprep.subr.mxu0 0.0
    %5329 = vmatpush1.msra.mxu0 0.0
    %5330 = vmatprep.subr.mxu0 0.0
    %5331 = vmatpush1.msra.mxu0 0.0
    %5332 = vmatprep.mubr.f32.mxu0 %v4432
    %5333 = vmatmul.mubr.f32.gmra.mrb[0].mxu0 %v4283
    %v5334 = vpop.f32.mrb[0].mxu0
    %v5335 = vadd.f32 %v4354, %v5334
    %v5336 = vpop.f32.mrb[0].mxu0
    %5337 = vmatprep.mubr.f32.mxu0 %v4435
    %5338 = vmatmul.mubr.f32.gmra.mrb[0].mxu0 %v4285
    %v5339 = vpop.f32.mrb[0].mxu0
    %v5340 = vadd.f32 %v4359, %v5339
    %v5341 = vpop.f32.mrb[0].mxu0
    %5342 = vmatprep.mubr.f32.mxu0 %v4438
    %5343 = vmatmul.mubr.f32.gmra.mrb[0].mxu0 %v4287
    %v5344 = vpop.f32.mrb[0].mxu0
    %v5345 = vadd.f32 %v4364, %v5344
    %v5346 = vpop.f32.mrb[0].mxu0
    %5347 = vmatprep.mubr.f32.mxu0 %v4441
    %5348 = vmatmul.mubr.f32.gmra.mrb[0].mxu0 %v4289
    %v5349 = vpop.f32.mrb[0].mxu0
    %v5350 = vadd.f32 %v4369, %v5349
    %v5351 = vpop.f32.mrb[0].mxu0
    %5352 = vmatprep.mubr.f32.mxu0 %v4444
    %5353 = vmatmul.mubr.f32.gmra.mrb[0].mxu0 %v4291
    %v5354 = vpop.f32.mrb[0].mxu0
    %v5355 = vadd.f32 %v4374, %v5354
    %v5356 = vpop.f32.mrb[0].mxu0
    %5357 = vmatprep.mubr.f32.mxu0 %v4447
    %5358 = vmatmul.mubr.f32.gmra.mrb[0].mxu0 %v4293
    %v5359 = vpop.f32.mrb[0].mxu0
    %v5360 = vadd.f32 %v4379, %v5359
    %v5361 = vpop.f32.mrb[0].mxu0
    %5362 = vmatprep.mubr.f32.mxu0 %v4450
    %5363 = vmatmul.mubr.f32.gmra.mrb[0].mxu0 %v4295
    %v5364 = vpop.f32.mrb[0].mxu0
    %v5365 = vadd.f32 %v4384, %v5364
    %v5366 = vpop.f32.mrb[0].mxu0
    %5367 = vmatprep.mubr.f32.mxu0 %v4453
    %5368 = vmatmul.mubr.f32.gmra.mrb[0].mxu0 %v4297
    %v5369 = vpop.f32.mrb[0].mxu0
    %v5370 = vadd.f32 %v4389, %v5369
    %v5371 = vpop.f32.mrb[0].mxu0
    %5372 = vmatprep.mubr.f32.mxu0 %v4456
    %5373 = vmatmul.mubr.f32.gmra.mrb[0].mxu0 %v4299
    %v5374 = vpop.f32.mrb[0].mxu0
    %v5375 = vadd.f32 %v4394, %v5374
    %v5376 = vpop.f32.mrb[0].mxu0
    %5377 = vmatprep.mubr.f32.mxu0 %v4459
    %5378 = vmatmul.mubr.f32.gmra.mrb[0].mxu0 %v4301
    %v5379 = vpop.f32.mrb[0].mxu0
    %v5380 = vadd.f32 %v4399, %v5379
    %v5381 = vpop.f32.mrb[0].mxu0
    %5382 = vmatprep.mubr.f32.mxu0 %v4462
    %5383 = vmatmul.mubr.f32.gmra.mrb[0].mxu0 %v4303
    %v5384 = vpop.f32.mrb[0].mxu0
    %v5385 = vadd.f32 %v4404, %v5384
    %v5386 = vpop.f32.mrb[0].mxu0
    %5387 = vmatprep.mubr.f32.mxu0 %v4465
    %5388 = vmatmul.mubr.f32.gmra.mrb[0].mxu0 %v4305
    %v5389 = vpop.f32.mrb[0].mxu0
    %v5390 = vadd.f32 %v4409, %v5389
    %v5391 = vpop.f32.mrb[0].mxu0
    %5392 = vmatprep.mubr.f32.mxu0 %v4468
    %5393 = vmatmul.mubr.f32.gmra.mrb[0].mxu0 %v4307
    %v5394 = vpop.f32.mrb[0].mxu0
    %v5395 = vadd.f32 %v4414, %v5394
    %v5396 = vpop.f32.mrb[0].mxu0
    %5397 = vmatprep.mubr.f32.mxu0 %v4471
    %5398 = vmatmul.mubr.f32.gmra.mrb[0].mxu0 %v4309
    %v5399 = vpop.f32.mrb[0].mxu0
    %v5400 = vadd.f32 %v4419, %v5399
    %v5401 = vpop.f32.mrb[0].mxu0
    %5402 = vmatprep.mubr.f32.mxu0 %v4474
    %5403 = vmatmul.mubr.f32.gmra.mrb[0].mxu0 %v4311
    %v5404 = vpop.f32.mrb[0].mxu0
    %v5405 = vadd.f32 %v4424, %v5404
    %v5406 = vpop.f32.mrb[0].mxu0
    %5407 = vmatprep.mubr.f32.mxu0 %v4477
    %5408 = vmatmul.mubr.f32.gmra.mrb[0].mxu0 %v4313
    %v5409 = vpop.f32.mrb[0].mxu0
    %v5410 = vadd.f32 %v4429, %v5409
    %v5411 = vpop.f32.mrb[0].mxu0
    %5412 = vdwg.mxu0
    %v5413 = vmax.f32 %v5335, 0.0
    %v5414 = vmax.f32 %v5340, 0.0
    %v5415 = vmax.f32 %v5345, 0.0
    %v5416 = vmax.f32 %v5350, 0.0
    %v5417 = vmax.f32 %v5355, 0.0
    %v5418 = vmax.f32 %v5360, 0.0
    %v5419 = vmax.f32 %v5365, 0.0
    %v5420 = vmax.f32 %v5370, 0.0
    %v5421 = vmax.f32 %v5375, 0.0
    %v5422 = vmax.f32 %v5380, 0.0
    %v5423 = vmax.f32 %v5385, 0.0
    %v5424 = vmax.f32 %v5390, 0.0
    %v5425 = vmax.f32 %v5395, 0.0
    %v5426 = vmax.f32 %v5400, 0.0
    %v5427 = vmax.f32 %v5405, 0.0
    %v5428 = vmax.f32 %v5410, 0.0
    %s5429 = scalar_lea.vmem [#allocation3], 432
    %5430 = vst [vmem:[%s5429] sm:$0xff] %v5413
    %5431 = vst [vmem:[%s5429 + $0x8] sm:$0xff] %v5414
    %5432 = vst [vmem:[%s5429 + $0x10] sm:$0xff] %v5415
    %5433 = vst [vmem:[%s5429 + $0x18] sm:$0xff] %v5416
    %5434 = vst [vmem:[%s5429 + $0x20] sm:$0xff] %v5417
    %5435 = vst [vmem:[%s5429 + $0x28] sm:$0xff] %v5418
    %5436 = vst [vmem:[%s5429 + $0x30] sm:$0xff] %v5419
    %5437 = vst [vmem:[%s5429 + $0x38] sm:$0xff] %v5420
    %5438 = vst [vmem:[%s5429 + $0x40] sm:$0xff] %v5421
    %5439 = vst [vmem:[%s5429 + $0x48] sm:$0xff] %v5422
    %5440 = vst [vmem:[%s5429 + $0x50] sm:$0xff] %v5423
    %5441 = vst [vmem:[%s5429 + $0x58] sm:$0xff] %v5424
    %5442 = vst [vmem:[%s5429 + $0x60] sm:$0xff] %v5425
    %5443 = vst [vmem:[%s5429 + $0x68] sm:$0xff] %v5426
    %5444 = vst [vmem:[%s5429 + $0x70] sm:$0xff] %v5427
    %5445 = vst [vmem:[%s5429 + $0x78] sm:$0xff] %v5428
    %5446 = vst [vmem:[#allocation3] sm:$0xff] 0.0
    %5447 = vst [vmem:[#allocation3 + $0x8] sm:$0xff] 0.0
    %s5448 = scalar_lea.vmem [#allocation3], 560
    %5449 = vst [vmem:[%s5448] sm:$0xff] 0.0
    %5450 = vst [vmem:[%s5448 + $0x8] sm:$0xff] 0.0
    %v5451 = vld [vmem:[%s7] sm:$0xff]
    %v5452 = vld [vmem:[%s7 + $0x8] sm:$0xff]
    %v5453 = vld [vmem:[%s7 + $0x10] sm:$0xff]
    %v5454 = vld [vmem:[%s7 + $0x18] sm:$0xff]
    %v5455 = vld [vmem:[%s7 + $0x20] sm:$0xff]
    %v5456 = vld [vmem:[%s7 + $0x28] sm:$0xff]
    %v5457 = vld [vmem:[%s7 + $0x30] sm:$0xff]
    %v5458 = vld [vmem:[%s7 + $0x38] sm:$0xff]
    %v5459 = vld [vmem:[%s7 + $0x40] sm:$0xff]
    %v5460 = vld [vmem:[%s7 + $0x48] sm:$0xff]
    %v5461 = vld [vmem:[%s7 + $0x50] sm:$0xff]
    %v5462 = vld [vmem:[%s7 + $0x58] sm:$0xff]
    %v5463 = vld [vmem:[%s7 + $0x60] sm:$0xff]
    %v5464 = vld [vmem:[%s7 + $0x68] sm:$0xff]
    %v5465 = vld [vmem:[%s7 + $0x70] sm:$0xff]
    %v5466 = vld [vmem:[%s7 + $0x78] sm:$0xff]
    %v5467 = vld [vmem:[%s7 + $0x80] sm:$0xff]
    %v5468 = vld [vmem:[%s7 + $0x88] sm:$0xff]
    %v5469 = vld [vmem:[%s7 + $0x90] sm:$0xff]
    %v5470 = vld [vmem:[%s7 + $0x98] sm:$0xff]
    %v5471 = vld [vmem:[%s7 + $0xa0] sm:$0xff]
    %v5472 = vld [vmem:[%s7 + $0xa8] sm:$0xff]
    %v5473 = vld [vmem:[%s7 + $0xb0] sm:$0xff]
    %v5474 = vld [vmem:[%s7 + $0xb8] sm:$0xff]
    %v5475 = vld [vmem:[%s7 + $0xc0] sm:$0xff]
    %v5476 = vld [vmem:[%s7 + $0xc8] sm:$0xff]
    %v5477 = vld [vmem:[%s7 + $0xd0] sm:$0xff]
    %v5478 = vld [vmem:[%s7 + $0xd8] sm:$0xff]
    %v5479 = vld [vmem:[%s7 + $0xe0] sm:$0xff]
    %v5480 = vld [vmem:[%s7 + $0xe8] sm:$0xff]
    %v5481 = vld [vmem:[%s7 + $0xf0] sm:$0xff]
    %v5482 = vld [vmem:[%s7 + $0xf8] sm:$0xff]
    %v5483 = vld [vmem:[%s8] sm:$0xff]
    %v5484 = vld [vmem:[%s8 + $0x8] sm:$0xff]
    %v5485 = vld [vmem:[%s8 + $0x10] sm:$0xff]
    %v5486 = vld [vmem:[%s8 + $0x18] sm:$0xff]
    %v5487 = vld [vmem:[%s8 + $0x20] sm:$0xff]
    %v5488 = vld [vmem:[%s8 + $0x28] sm:$0xff]
    %v5489 = vld [vmem:[%s8 + $0x30] sm:$0xff]
    %v5490 = vld [vmem:[%s8 + $0x38] sm:$0xff]
    %v5491 = vld [vmem:[%s8 + $0x40] sm:$0xff]
    %v5492 = vld [vmem:[%s8 + $0x48] sm:$0xff]
    %v5493 = vld [vmem:[%s8 + $0x50] sm:$0xff]
    %v5494 = vld [vmem:[%s8 + $0x58] sm:$0xff]
    %v5495 = vld [vmem:[%s8 + $0x60] sm:$0xff]
    %v5496 = vld [vmem:[%s8 + $0x68] sm:$0xff]
    %v5497 = vld [vmem:[%s8 + $0x70] sm:$0xff]
    %v5498 = vld [vmem:[%s8 + $0x78] sm:$0xff]
    %v5499 = vld [vmem:[#allocation3] sm:$0xff]
    %v5500 = vld [vmem:[#allocation3 + $0x8] sm:$0xff]
    %v5501 = vld [vmem:[#allocation3 + $0x10] sm:$0xff]
    %v5502 = vld [vmem:[#allocation3 + $0x18] sm:$0xff]
    %v5503 = vld [vmem:[#allocation3 + $0x20] sm:$0xff]
    %v5504 = vld [vmem:[#allocation3 + $0x28] sm:$0xff]
    %v5505 = vld [vmem:[#allocation3 + $0x30] sm:$0xff]
    %v5506 = vld [vmem:[#allocation3 + $0x38] sm:$0xff]
    %v5507 = vld [vmem:[#allocation3 + $0x40] sm:$0xff]
    %v5508 = vld [vmem:[#allocation3 + $0x48] sm:$0xff]
    %v5509 = vld [vmem:[#allocation3 + $0x50] sm:$0xff]
    %v5510 = vld [vmem:[#allocation3 + $0x58] sm:$0xff]
    %v5511 = vld [vmem:[#allocation3 + $0x60] sm:$0xff]
    %v5512 = vld [vmem:[#allocation3 + $0x68] sm:$0xff]
    %v5513 = vld [vmem:[#allocation3 + $0x70] sm:$0xff]
    %v5514 = vld [vmem:[#allocation3 + $0x78] sm:$0xff]
    %v5515 = vld [vmem:[#allocation3 + $0x80] sm:$0xff]
    %v5516 = vld [vmem:[#allocation3 + $0x88] sm:$0xff]
    %v5517 = vld [vmem:[#allocation3 + $0x90] sm:$0xff]
    %v5518 = vld [vmem:[#allocation3 + $0x98] sm:$0xff]
    %5520 = vset.pattern.permute.xlu0 0
    %5521 = vperm.xlu0 %5520, %v5483
    %v5522 = vpop.permute.xlu0 %5521
    %5525 = vset.pattern.permute.xlu0 0
    %5526 = vperm.xlu0 %5525, %v5484
    %v5527 = vpop.permute.xlu0 %5526
    %5530 = vset.pattern.permute.xlu0 0
    %5531 = vperm.xlu0 %5530, %v5485
    %v5532 = vpop.permute.xlu0 %5531
    %5535 = vset.pattern.permute.xlu0 0
    %5536 = vperm.xlu0 %5535, %v5486
    %v5537 = vpop.permute.xlu0 %5536
    %5540 = vset.pattern.permute.xlu0 0
    %5541 = vperm.xlu0 %5540, %v5487
    %v5542 = vpop.permute.xlu0 %5541
    %5545 = vset.pattern.permute.xlu0 0
    %5546 = vperm.xlu0 %5545, %v5488
    %v5547 = vpop.permute.xlu0 %5546
    %5550 = vset.pattern.permute.xlu0 0
    %5551 = vperm.xlu0 %5550, %v5489
    %v5552 = vpop.permute.xlu0 %5551
    %5555 = vset.pattern.permute.xlu0 0
    %5556 = vperm.xlu0 %5555, %v5490
    %v5557 = vpop.permute.xlu0 %5556
    %5560 = vset.pattern.permute.xlu0 0
    %5561 = vperm.xlu0 %5560, %v5491
    %v5562 = vpop.permute.xlu0 %5561
    %5565 = vset.pattern.permute.xlu0 0
    %5566 = vperm.xlu0 %5565, %v5492
    %v5567 = vpop.permute.xlu0 %5566
    %5570 = vset.pattern.permute.xlu0 0
    %5571 = vperm.xlu0 %5570, %v5493
    %v5572 = vpop.permute.xlu0 %5571
    %5575 = vset.pattern.permute.xlu0 0
    %5576 = vperm.xlu0 %5575, %v5494
    %v5577 = vpop.permute.xlu0 %5576
    %5580 = vset.pattern.permute.xlu0 0
    %5581 = vperm.xlu0 %5580, %v5495
    %v5582 = vpop.permute.xlu0 %5581
    %5585 = vset.pattern.permute.xlu0 0
    %5586 = vperm.xlu0 %5585, %v5496
    %v5587 = vpop.permute.xlu0 %5586
    %5590 = vset.pattern.permute.xlu0 0
    %5591 = vperm.xlu0 %5590, %v5497
    %v5592 = vpop.permute.xlu0 %5591
    %5595 = vset.pattern.permute.xlu0 0
    %5596 = vperm.xlu0 %5595, %v5498
    %v5597 = vpop.permute.xlu0 %5596
    %v5600 = vsel %vm211, %v5452, 0
    %v5603 = vsel %vm211, %v5454, 0
    %v5606 = vsel %vm211, %v5456, 0
    %v5609 = vsel %vm211, %v5458, 0
    %v5612 = vsel %vm211, %v5460, 0
    %v5615 = vsel %vm211, %v5462, 0
    %v5618 = vsel %vm211, %v5464, 0
    %v5621 = vsel %vm211, %v5466, 0
    %v5624 = vsel %vm211, %v5468, 0
    %v5627 = vsel %vm211, %v5470, 0
    %v5630 = vsel %vm211, %v5472, 0
    %v5633 = vsel %vm211, %v5474, 0
    %v5636 = vsel %vm211, %v5476, 0
    %v5639 = vsel %vm211, %v5478, 0
    %v5642 = vsel %vm211, %v5480, 0
    %v5645 = vsel %vm211, %v5482, 0
    %5647 = vmatprep.subr.mxu0 0.0
    %5648 = vmatpush1.msra.mxu0 %v5499
    %5649 = vmatprep.subr.mxu0 0.0
    %5650 = vmatpush1.msra.mxu0 %v5500
    %5651 = vmatprep.subr.mxu0 0.0
    %5652 = vmatpush1.msra.mxu0 %v5501
    %5653 = vmatprep.subr.mxu0 0.0
    %5654 = vmatpush1.msra.mxu0 %v5502
    %5655 = vmatprep.subr.mxu0 0.0
    %5656 = vmatpush1.msra.mxu0 %v5503
    %5657 = vmatprep.subr.mxu0 0.0
    %5658 = vmatpush1.msra.mxu0 %v5504
    %5659 = vmatprep.subr.mxu0 0.0
    %5660 = vmatpush1.msra.mxu0 %v5505
    %5661 = vmatprep.subr.mxu0 0.0
    %5662 = vmatpush1.msra.mxu0 %v5506
    %5663 = vmatprep.subr.mxu0 0.0
    %5664 = vmatpush1.msra.mxu0 %v5507
    %5665 = vmatprep.subr.mxu0 0.0
    %5666 = vmatpush1.msra.mxu0 %v5508
    %5667 = vmatprep.subr.mxu0 0.0
    %5668 = vmatpush1.msra.mxu0 %v5509
    %5669 = vmatprep.subr.mxu0 0.0
    %5670 = vmatpush1.msra.mxu0 %v5510
    %5671 = vmatprep.subr.mxu0 0.0
    %5672 = vmatpush1.msra.mxu0 %v5511
    %5673 = vmatprep.subr.mxu0 0.0
    %5674 = vmatpush1.msra.mxu0 %v5512
    %5675 = vmatprep.subr.mxu0 0.0
    %5676 = vmatpush1.msra.mxu0 %v5513
    %5677 = vmatprep.subr.mxu0 0.0
    %5678 = vmatpush1.msra.mxu0 %v5514
    %5679 = vmatprep.subr.mxu0 0.0
    %5680 = vmatpush1.msra.mxu0 %v5515
    %5681 = vmatprep.subr.mxu0 0.0
    %5682 = vmatpush1.msra.mxu0 %v5516
    %5683 = vmatprep.subr.mxu0 0.0
    %5684 = vmatpush1.msra.mxu0 %v5517
    %5685 = vmatprep.subr.mxu0 0.0
    %5686 = vmatpush1.msra.mxu0 %v5518
    %5687 = vmatprep.subr.mxu0 0.0
    %5688 = vmatpush1.msra.mxu0 0.0
    %5689 = vmatprep.subr.mxu0 0.0
    %5690 = vmatpush1.msra.mxu0 0.0
    %5691 = vmatprep.subr.mxu0 0.0
    %5692 = vmatpush1.msra.mxu0 0.0
    %5693 = vmatprep.subr.mxu0 0.0
    %5694 = vmatpush1.msra.mxu0 0.0
    %5695 = vmatprep.subr.mxu0 0.0
    %5696 = vmatpush1.msra.mxu0 0.0
    %5697 = vmatprep.subr.mxu0 0.0
    %5698 = vmatpush1.msra.mxu0 0.0
    %5699 = vmatprep.subr.mxu0 0.0
    %5700 = vmatpush1.msra.mxu0 0.0
    %5701 = vmatprep.subr.mxu0 0.0
    %5702 = vmatpush1.msra.mxu0 0.0
    %5703 = vmatprep.subr.mxu0 0.0
    %5704 = vmatpush1.msra.mxu0 0.0
    %5705 = vmatprep.subr.mxu0 0.0
    %5706 = vmatpush1.msra.mxu0 0.0
    %5707 = vmatprep.subr.mxu0 0.0
    %5708 = vmatpush1.msra.mxu0 0.0
    %5709 = vmatprep.subr.mxu0 0.0
    %5710 = vmatpush1.msra.mxu0 0.0
    %5711 = vmatprep.mubr.f32.mxu0 %v5600
    %5712 = vmatmul.mubr.f32.gmra.mrb[0].mxu0 %v5451
    %v5713 = vpop.f32.mrb[0].mxu0
    %v5714 = vadd.f32 %v5522, %v5713
    %v5715 = vpop.f32.mrb[0].mxu0
    %5716 = vmatprep.mubr.f32.mxu0 %v5603
    %5717 = vmatmul.mubr.f32.gmra.mrb[0].mxu0 %v5453
    %v5718 = vpop.f32.mrb[0].mxu0
    %v5719 = vadd.f32 %v5527, %v5718
    %v5720 = vpop.f32.mrb[0].mxu0
    %5721 = vmatprep.mubr.f32.mxu0 %v5606
    %5722 = vmatmul.mubr.f32.gmra.mrb[0].mxu0 %v5455
    %v5723 = vpop.f32.mrb[0].mxu0
    %v5724 = vadd.f32 %v5532, %v5723
    %v5725 = vpop.f32.mrb[0].mxu0
    %5726 = vmatprep.mubr.f32.mxu0 %v5609
    %5727 = vmatmul.mubr.f32.gmra.mrb[0].mxu0 %v5457
    %v5728 = vpop.f32.mrb[0].mxu0
    %v5729 = vadd.f32 %v5537, %v5728
    %v5730 = vpop.f32.mrb[0].mxu0
    %5731 = vmatprep.mubr.f32.mxu0 %v5612
    %5732 = vmatmul.mubr.f32.gmra.mrb[0].mxu0 %v5459
    %v5733 = vpop.f32.mrb[0].mxu0
    %v5734 = vadd.f32 %v5542, %v5733
    %v5735 = vpop.f32.mrb[0].mxu0
    %5736 = vmatprep.mubr.f32.mxu0 %v5615
    %5737 = vmatmul.mubr.f32.gmra.mrb[0].mxu0 %v5461
    %v5738 = vpop.f32.mrb[0].mxu0
    %v5739 = vadd.f32 %v5547, %v5738
    %v5740 = vpop.f32.mrb[0].mxu0
    %5741 = vmatprep.mubr.f32.mxu0 %v5618
    %5742 = vmatmul.mubr.f32.gmra.mrb[0].mxu0 %v5463
    %v5743 = vpop.f32.mrb[0].mxu0
    %v5744 = vadd.f32 %v5552, %v5743
    %v5745 = vpop.f32.mrb[0].mxu0
    %5746 = vmatprep.mubr.f32.mxu0 %v5621
    %5747 = vmatmul.mubr.f32.gmra.mrb[0].mxu0 %v5465
    %v5748 = vpop.f32.mrb[0].mxu0
    %v5749 = vadd.f32 %v5557, %v5748
    %v5750 = vpop.f32.mrb[0].mxu0
    %5751 = vmatprep.mubr.f32.mxu0 %v5624
    %5752 = vmatmul.mubr.f32.gmra.mrb[0].mxu0 %v5467
    %v5753 = vpop.f32.mrb[0].mxu0
    %v5754 = vadd.f32 %v5562, %v5753
    %v5755 = vpop.f32.mrb[0].mxu0
    %5756 = vmatprep.mubr.f32.mxu0 %v5627
    %5757 = vmatmul.mubr.f32.gmra.mrb[0].mxu0 %v5469
    %v5758 = vpop.f32.mrb[0].mxu0
    %v5759 = vadd.f32 %v5567, %v5758
    %v5760 = vpop.f32.mrb[0].mxu0
    %5761 = vmatprep.mubr.f32.mxu0 %v5630
    %5762 = vmatmul.mubr.f32.gmra.mrb[0].mxu0 %v5471
    %v5763 = vpop.f32.mrb[0].mxu0
    %v5764 = vadd.f32 %v5572, %v5763
    %v5765 = vpop.f32.mrb[0].mxu0
    %5766 = vmatprep.mubr.f32.mxu0 %v5633
    %5767 = vmatmul.mubr.f32.gmra.mrb[0].mxu0 %v5473
    %v5768 = vpop.f32.mrb[0].mxu0
    %v5769 = vadd.f32 %v5577, %v5768
    %v5770 = vpop.f32.mrb[0].mxu0
    %5771 = vmatprep.mubr.f32.mxu0 %v5636
    %5772 = vmatmul.mubr.f32.gmra.mrb[0].mxu0 %v5475
    %v5773 = vpop.f32.mrb[0].mxu0
    %v5774 = vadd.f32 %v5582, %v5773
    %v5775 = vpop.f32.mrb[0].mxu0
    %5776 = vmatprep.mubr.f32.mxu0 %v5639
    %5777 = vmatmul.mubr.f32.gmra.mrb[0].mxu0 %v5477
    %v5778 = vpop.f32.mrb[0].mxu0
    %v5779 = vadd.f32 %v5587, %v5778
    %v5780 = vpop.f32.mrb[0].mxu0
    %5781 = vmatprep.mubr.f32.mxu0 %v5642
    %5782 = vmatmul.mubr.f32.gmra.mrb[0].mxu0 %v5479
    %v5783 = vpop.f32.mrb[0].mxu0
    %v5784 = vadd.f32 %v5592, %v5783
    %v5785 = vpop.f32.mrb[0].mxu0
    %5786 = vmatprep.mubr.f32.mxu0 %v5645
    %5787 = vmatmul.mubr.f32.gmra.mrb[0].mxu0 %v5481
    %v5788 = vpop.f32.mrb[0].mxu0
    %v5789 = vadd.f32 %v5597, %v5788
    %v5790 = vpop.f32.mrb[0].mxu0
    %5791 = vdwg.mxu0
    %v5792 = vmax.f32 %v5714, 0.0
    %v5793 = vmax.f32 %v5719, 0.0
    %v5794 = vmax.f32 %v5724, 0.0
    %v5795 = vmax.f32 %v5729, 0.0
    %v5796 = vmax.f32 %v5734, 0.0
    %v5797 = vmax.f32 %v5739, 0.0
    %v5798 = vmax.f32 %v5744, 0.0
    %v5799 = vmax.f32 %v5749, 0.0
    %v5800 = vmax.f32 %v5754, 0.0
    %v5801 = vmax.f32 %v5759, 0.0
    %v5802 = vmax.f32 %v5764, 0.0
    %v5803 = vmax.f32 %v5769, 0.0
    %v5804 = vmax.f32 %v5774, 0.0
    %v5805 = vmax.f32 %v5779, 0.0
    %v5806 = vmax.f32 %v5784, 0.0
    %v5807 = vmax.f32 %v5789, 0.0
    %5808 = vst [vmem:[%s421] sm:$0xff] %v5792
    %5809 = vst [vmem:[%s421 + $0x8] sm:$0xff] %v5793
    %5810 = vst [vmem:[%s421 + $0x10] sm:$0xff] %v5794
    %5811 = vst [vmem:[%s421 + $0x18] sm:$0xff] %v5795
    %5812 = vst [vmem:[%s421 + $0x20] sm:$0xff] %v5796
    %5813 = vst [vmem:[%s421 + $0x28] sm:$0xff] %v5797
    %5814 = vst [vmem:[%s421 + $0x30] sm:$0xff] %v5798
    %5815 = vst [vmem:[%s421 + $0x38] sm:$0xff] %v5799
    %5816 = vst [vmem:[%s421 + $0x40] sm:$0xff] %v5800
    %5817 = vst [vmem:[%s421 + $0x48] sm:$0xff] %v5801
    %5818 = vst [vmem:[%s421 + $0x50] sm:$0xff] %v5802
    %5819 = vst [vmem:[%s421 + $0x58] sm:$0xff] %v5803
    %5820 = vst [vmem:[%s421 + $0x60] sm:$0xff] %v5804
    %5821 = vst [vmem:[%s421 + $0x68] sm:$0xff] %v5805
    %5822 = vst [vmem:[%s421 + $0x70] sm:$0xff] %v5806
    %5823 = vst [vmem:[%s421 + $0x78] sm:$0xff] %v5807
    %s5824 = scalar_lea.vmem [#allocation3], 128
    %v5825 = vld [vmem:[%s5824] sm:$0xff]
    %v5826 = vld [vmem:[%s5824 + $0x8] sm:$0xff]
    %v5827 = vld [vmem:[%s5824 + $0x10] sm:$0xff]
    %v5828 = vld [vmem:[%s5824 + $0x18] sm:$0xff]
    %v5829 = vld [vmem:[%s5824 + $0x20] sm:$0xff]
    %v5830 = vld [vmem:[%s5824 + $0x28] sm:$0xff]
    %v5831 = vld [vmem:[%s5824 + $0x30] sm:$0xff]
    %v5832 = vld [vmem:[%s5824 + $0x38] sm:$0xff]
    %v5833 = vld [vmem:[%s5824 + $0x40] sm:$0xff]
    %v5834 = vld [vmem:[%s5824 + $0x48] sm:$0xff]
    %v5835 = vld [vmem:[%s5824 + $0x50] sm:$0xff]
    %v5836 = vld [vmem:[%s5824 + $0x58] sm:$0xff]
    %v5837 = vld [vmem:[%s5824 + $0x60] sm:$0xff]
    %v5838 = vld [vmem:[%s5824 + $0x68] sm:$0xff]
    %v5839 = vld [vmem:[%s5824 + $0x70] sm:$0xff]
    %v5840 = vld [vmem:[%s5824 + $0x78] sm:$0xff]
    %v5841 = vld [vmem:[%s5824 + $0x80] sm:$0xff]
    %v5842 = vld [vmem:[%s5824 + $0x88] sm:$0xff]
    %v5843 = vld [vmem:[%s5824 + $0x90] sm:$0xff]
    %v5844 = vld [vmem:[%s5824 + $0x98] sm:$0xff]
    %5845 = vmatprep.subr.mxu0 0.0
    %5846 = vmatpush1.msra.mxu0 %v5825
    %5847 = vmatprep.subr.mxu0 0.0
    %5848 = vmatpush1.msra.mxu0 %v5826
    %5849 = vmatprep.subr.mxu0 0.0
    %5850 = vmatpush1.msra.mxu0 %v5827
    %5851 = vmatprep.subr.mxu0 0.0
    %5852 = vmatpush1.msra.mxu0 %v5828
    %5853 = vmatprep.subr.mxu0 0.0
    %5854 = vmatpush1.msra.mxu0 %v5829
    %5855 = vmatprep.subr.mxu0 0.0
    %5856 = vmatpush1.msra.mxu0 %v5830
    %5857 = vmatprep.subr.mxu0 0.0
    %5858 = vmatpush1.msra.mxu0 %v5831
    %5859 = vmatprep.subr.mxu0 0.0
    %5860 = vmatpush1.msra.mxu0 %v5832
    %5861 = vmatprep.subr.mxu0 0.0
    %5862 = vmatpush1.msra.mxu0 %v5833
    %5863 = vmatprep.subr.mxu0 0.0
    %5864 = vmatpush1.msra.mxu0 %v5834
    %5865 = vmatprep.subr.mxu0 0.0
    %5866 = vmatpush1.msra.mxu0 %v5835
    %5867 = vmatprep.subr.mxu0 0.0
    %5868 = vmatpush1.msra.mxu0 %v5836
    %5869 = vmatprep.subr.mxu0 0.0
    %5870 = vmatpush1.msra.mxu0 %v5837
    %5871 = vmatprep.subr.mxu0 0.0
    %5872 = vmatpush1.msra.mxu0 %v5838
    %5873 = vmatprep.subr.mxu0 0.0
    %5874 = vmatpush1.msra.mxu0 %v5839
    %5875 = vmatprep.subr.mxu0 0.0
    %5876 = vmatpush1.msra.mxu0 %v5840
    %5877 = vmatprep.subr.mxu0 0.0
    %5878 = vmatpush1.msra.mxu0 %v5841
    %5879 = vmatprep.subr.mxu0 0.0
    %5880 = vmatpush1.msra.mxu0 %v5842
    %5881 = vmatprep.subr.mxu0 0.0
    %5882 = vmatpush1.msra.mxu0 %v5843
    %5883 = vmatprep.subr.mxu0 0.0
    %5884 = vmatpush1.msra.mxu0 %v5844
    %5885 = vmatprep.subr.mxu0 0.0
    %5886 = vmatpush1.msra.mxu0 0.0
    %5887 = vmatprep.subr.mxu0 0.0
    %5888 = vmatpush1.msra.mxu0 0.0
    %5889 = vmatprep.subr.mxu0 0.0
    %5890 = vmatpush1.msra.mxu0 0.0
    %5891 = vmatprep.subr.mxu0 0.0
    %5892 = vmatpush1.msra.mxu0 0.0
    %5893 = vmatprep.subr.mxu0 0.0
    %5894 = vmatpush1.msra.mxu0 0.0
    %5895 = vmatprep.subr.mxu0 0.0
    %5896 = vmatpush1.msra.mxu0 0.0
    %5897 = vmatprep.subr.mxu0 0.0
    %5898 = vmatpush1.msra.mxu0 0.0
    %5899 = vmatprep.subr.mxu0 0.0
    %5900 = vmatpush1.msra.mxu0 0.0
    %5901 = vmatprep.subr.mxu0 0.0
    %5902 = vmatpush1.msra.mxu0 0.0
    %5903 = vmatprep.subr.mxu0 0.0
    %5904 = vmatpush1.msra.mxu0 0.0
    %5905 = vmatprep.subr.mxu0 0.0
    %5906 = vmatpush1.msra.mxu0 0.0
    %5907 = vmatprep.subr.mxu0 0.0
    %5908 = vmatpush1.msra.mxu0 0.0
    %5909 = vmatprep.mubr.f32.mxu0 %v5600
    %5910 = vmatmul.mubr.f32.gmra.mrb[0].mxu0 %v5451
    %v5911 = vpop.f32.mrb[0].mxu0
    %v5912 = vadd.f32 %v5522, %v5911
    %v5913 = vpop.f32.mrb[0].mxu0
    %5914 = vmatprep.mubr.f32.mxu0 %v5603
    %5915 = vmatmul.mubr.f32.gmra.mrb[0].mxu0 %v5453
    %v5916 = vpop.f32.mrb[0].mxu0
    %v5917 = vadd.f32 %v5527, %v5916
    %v5918 = vpop.f32.mrb[0].mxu0
    %5919 = vmatprep.mubr.f32.mxu0 %v5606
    %5920 = vmatmul.mubr.f32.gmra.mrb[0].mxu0 %v5455
    %v5921 = vpop.f32.mrb[0].mxu0
    %v5922 = vadd.f32 %v5532, %v5921
    %v5923 = vpop.f32.mrb[0].mxu0
    %5924 = vmatprep.mubr.f32.mxu0 %v5609
    %5925 = vmatmul.mubr.f32.gmra.mrb[0].mxu0 %v5457
    %v5926 = vpop.f32.mrb[0].mxu0
    %v5927 = vadd.f32 %v5537, %v5926
    %v5928 = vpop.f32.mrb[0].mxu0
    %5929 = vmatprep.mubr.f32.mxu0 %v5612
    %5930 = vmatmul.mubr.f32.gmra.mrb[0].mxu0 %v5459
    %v5931 = vpop.f32.mrb[0].mxu0
    %v5932 = vadd.f32 %v5542, %v5931
    %v5933 = vpop.f32.mrb[0].mxu0
    %5934 = vmatprep.mubr.f32.mxu0 %v5615
    %5935 = vmatmul.mubr.f32.gmra.mrb[0].mxu0 %v5461
    %v5936 = vpop.f32.mrb[0].mxu0
    %v5937 = vadd.f32 %v5547, %v5936
    %v5938 = vpop.f32.mrb[0].mxu0
    %5939 = vmatprep.mubr.f32.mxu0 %v5618
    %5940 = vmatmul.mubr.f32.gmra.mrb[0].mxu0 %v5463
    %v5941 = vpop.f32.mrb[0].mxu0
    %v5942 = vadd.f32 %v5552, %v5941
    %v5943 = vpop.f32.mrb[0].mxu0
    %5944 = vmatprep.mubr.f32.mxu0 %v5621
    %5945 = vmatmul.mubr.f32.gmra.mrb[0].mxu0 %v5465
    %v5946 = vpop.f32.mrb[0].mxu0
    %v5947 = vadd.f32 %v5557, %v5946
    %v5948 = vpop.f32.mrb[0].mxu0
    %5949 = vmatprep.mubr.f32.mxu0 %v5624
    %5950 = vmatmul.mubr.f32.gmra.mrb[0].mxu0 %v5467
    %v5951 = vpop.f32.mrb[0].mxu0
    %v5952 = vadd.f32 %v5562, %v5951
    %v5953 = vpop.f32.mrb[0].mxu0
    %5954 = vmatprep.mubr.f32.mxu0 %v5627
    %5955 = vmatmul.mubr.f32.gmra.mrb[0].mxu0 %v5469
    %v5956 = vpop.f32.mrb[0].mxu0
    %v5957 = vadd.f32 %v5567, %v5956
    %v5958 = vpop.f32.mrb[0].mxu0
    %5959 = vmatprep.mubr.f32.mxu0 %v5630
    %5960 = vmatmul.mubr.f32.gmra.mrb[0].mxu0 %v5471
    %v5961 = vpop.f32.mrb[0].mxu0
    %v5962 = vadd.f32 %v5572, %v5961
    %v5963 = vpop.f32.mrb[0].mxu0
    %5964 = vmatprep.mubr.f32.mxu0 %v5633
    %5965 = vmatmul.mubr.f32.gmra.mrb[0].mxu0 %v5473
    %v5966 = vpop.f32.mrb[0].mxu0
    %v5967 = vadd.f32 %v5577, %v5966
    %v5968 = vpop.f32.mrb[0].mxu0
    %5969 = vmatprep.mubr.f32.mxu0 %v5636
    %5970 = vmatmul.mubr.f32.gmra.mrb[0].mxu0 %v5475
    %v5971 = vpop.f32.mrb[0].mxu0
    %v5972 = vadd.f32 %v5582, %v5971
    %v5973 = vpop.f32.mrb[0].mxu0
    %5974 = vmatprep.mubr.f32.mxu0 %v5639
    %5975 = vmatmul.mubr.f32.gmra.mrb[0].mxu0 %v5477
    %v5976 = vpop.f32.mrb[0].mxu0
    %v5977 = vadd.f32 %v5587, %v5976
    %v5978 = vpop.f32.mrb[0].mxu0
    %5979 = vmatprep.mubr.f32.mxu0 %v5642
    %5980 = vmatmul.mubr.f32.gmra.mrb[0].mxu0 %v5479
    %v5981 = vpop.f32.mrb[0].mxu0
    %v5982 = vadd.f32 %v5592, %v5981
    %v5983 = vpop.f32.mrb[0].mxu0
    %5984 = vmatprep.mubr.f32.mxu0 %v5645
    %5985 = vmatmul.mubr.f32.gmra.mrb[0].mxu0 %v5481
    %v5986 = vpop.f32.mrb[0].mxu0
    %v5987 = vadd.f32 %v5597, %v5986
    %v5988 = vpop.f32.mrb[0].mxu0
    %5989 = vdwg.mxu0
    %v5990 = vmax.f32 %v5912, 0.0
    %v5991 = vmax.f32 %v5917, 0.0
    %v5992 = vmax.f32 %v5922, 0.0
    %v5993 = vmax.f32 %v5927, 0.0
    %v5994 = vmax.f32 %v5932, 0.0
    %v5995 = vmax.f32 %v5937, 0.0
    %v5996 = vmax.f32 %v5942, 0.0
    %v5997 = vmax.f32 %v5947, 0.0
    %v5998 = vmax.f32 %v5952, 0.0
    %v5999 = vmax.f32 %v5957, 0.0
    %v6000 = vmax.f32 %v5962, 0.0
    %v6001 = vmax.f32 %v5967, 0.0
    %v6002 = vmax.f32 %v5972, 0.0
    %v6003 = vmax.f32 %v5977, 0.0
    %v6004 = vmax.f32 %v5982, 0.0
    %v6005 = vmax.f32 %v5987, 0.0
    %6006 = vst [vmem:[%s620] sm:$0xff] %v5990
    %6007 = vst [vmem:[%s620 + $0x8] sm:$0xff] %v5991
    %6008 = vst [vmem:[%s620 + $0x10] sm:$0xff] %v5992
    %6009 = vst [vmem:[%s620 + $0x18] sm:$0xff] %v5993
    %6010 = vst [vmem:[%s620 + $0x20] sm:$0xff] %v5994
    %6011 = vst [vmem:[%s620 + $0x28] sm:$0xff] %v5995
    %6012 = vst [vmem:[%s620 + $0x30] sm:$0xff] %v5996
    %6013 = vst [vmem:[%s620 + $0x38] sm:$0xff] %v5997
    %6014 = vst [vmem:[%s620 + $0x40] sm:$0xff] %v5998
    %6015 = vst [vmem:[%s620 + $0x48] sm:$0xff] %v5999
    %6016 = vst [vmem:[%s620 + $0x50] sm:$0xff] %v6000
    %6017 = vst [vmem:[%s620 + $0x58] sm:$0xff] %v6001
    %6018 = vst [vmem:[%s620 + $0x60] sm:$0xff] %v6002
    %6019 = vst [vmem:[%s620 + $0x68] sm:$0xff] %v6003
    %6020 = vst [vmem:[%s620 + $0x70] sm:$0xff] %v6004
    %6021 = vst [vmem:[%s620 + $0x78] sm:$0xff] %v6005
    %s6022 = scalar_lea.vmem [#allocation3], 256
    %v6023 = vld [vmem:[%s6022] sm:$0xff]
    %v6024 = vld [vmem:[%s6022 + $0x8] sm:$0xff]
    %v6025 = vld [vmem:[%s6022 + $0x10] sm:$0xff]
    %v6026 = vld [vmem:[%s6022 + $0x18] sm:$0xff]
    %v6027 = vld [vmem:[%s6022 + $0x20] sm:$0xff]
    %v6028 = vld [vmem:[%s6022 + $0x28] sm:$0xff]
    %v6029 = vld [vmem:[%s6022 + $0x30] sm:$0xff]
    %v6030 = vld [vmem:[%s6022 + $0x38] sm:$0xff]
    %v6031 = vld [vmem:[%s6022 + $0x40] sm:$0xff]
    %v6032 = vld [vmem:[%s6022 + $0x48] sm:$0xff]
    %v6033 = vld [vmem:[%s6022 + $0x50] sm:$0xff]
    %v6034 = vld [vmem:[%s6022 + $0x58] sm:$0xff]
    %v6035 = vld [vmem:[%s6022 + $0x60] sm:$0xff]
    %v6036 = vld [vmem:[%s6022 + $0x68] sm:$0xff]
    %v6037 = vld [vmem:[%s6022 + $0x70] sm:$0xff]
    %v6038 = vld [vmem:[%s6022 + $0x78] sm:$0xff]
    %v6039 = vld [vmem:[%s6022 + $0x80] sm:$0xff]
    %v6040 = vld [vmem:[%s6022 + $0x88] sm:$0xff]
    %v6041 = vld [vmem:[%s6022 + $0x90] sm:$0xff]
    %v6042 = vld [vmem:[%s6022 + $0x98] sm:$0xff]
    %6043 = vmatprep.subr.mxu0 0.0
    %6044 = vmatpush1.msra.mxu0 %v6023
    %6045 = vmatprep.subr.mxu0 0.0
    %6046 = vmatpush1.msra.mxu0 %v6024
    %6047 = vmatprep.subr.mxu0 0.0
    %6048 = vmatpush1.msra.mxu0 %v6025
    %6049 = vmatprep.subr.mxu0 0.0
    %6050 = vmatpush1.msra.mxu0 %v6026
    %6051 = vmatprep.subr.mxu0 0.0
    %6052 = vmatpush1.msra.mxu0 %v6027
    %6053 = vmatprep.subr.mxu0 0.0
    %6054 = vmatpush1.msra.mxu0 %v6028
    %6055 = vmatprep.subr.mxu0 0.0
    %6056 = vmatpush1.msra.mxu0 %v6029
    %6057 = vmatprep.subr.mxu0 0.0
    %6058 = vmatpush1.msra.mxu0 %v6030
    %6059 = vmatprep.subr.mxu0 0.0
    %6060 = vmatpush1.msra.mxu0 %v6031
    %6061 = vmatprep.subr.mxu0 0.0
    %6062 = vmatpush1.msra.mxu0 %v6032
    %6063 = vmatprep.subr.mxu0 0.0
    %6064 = vmatpush1.msra.mxu0 %v6033
    %6065 = vmatprep.subr.mxu0 0.0
    %6066 = vmatpush1.msra.mxu0 %v6034
    %6067 = vmatprep.subr.mxu0 0.0
    %6068 = vmatpush1.msra.mxu0 %v6035
    %6069 = vmatprep.subr.mxu0 0.0
    %6070 = vmatpush1.msra.mxu0 %v6036
    %6071 = vmatprep.subr.mxu0 0.0
    %6072 = vmatpush1.msra.mxu0 %v6037
    %6073 = vmatprep.subr.mxu0 0.0
    %6074 = vmatpush1.msra.mxu0 %v6038
    %6075 = vmatprep.subr.mxu0 0.0
    %6076 = vmatpush1.msra.mxu0 %v6039
    %6077 = vmatprep.subr.mxu0 0.0
    %6078 = vmatpush1.msra.mxu0 %v6040
    %6079 = vmatprep.subr.mxu0 0.0
    %6080 = vmatpush1.msra.mxu0 %v6041
    %6081 = vmatprep.subr.mxu0 0.0
    %6082 = vmatpush1.msra.mxu0 %v6042
    %6083 = vmatprep.subr.mxu0 0.0
    %6084 = vmatpush1.msra.mxu0 0.0
    %6085 = vmatprep.subr.mxu0 0.0
    %6086 = vmatpush1.msra.mxu0 0.0
    %6087 = vmatprep.subr.mxu0 0.0
    %6088 = vmatpush1.msra.mxu0 0.0
    %6089 = vmatprep.subr.mxu0 0.0
    %6090 = vmatpush1.msra.mxu0 0.0
    %6091 = vmatprep.subr.mxu0 0.0
    %6092 = vmatpush1.msra.mxu0 0.0
    %6093 = vmatprep.subr.mxu0 0.0
    %6094 = vmatpush1.msra.mxu0 0.0
    %6095 = vmatprep.subr.mxu0 0.0
    %6096 = vmatpush1.msra.mxu0 0.0
    %6097 = vmatprep.subr.mxu0 0.0
    %6098 = vmatpush1.msra.mxu0 0.0
    %6099 = vmatprep.subr.mxu0 0.0
    %6100 = vmatpush1.msra.mxu0 0.0
    %6101 = vmatprep.subr.mxu0 0.0
    %6102 = vmatpush1.msra.mxu0 0.0
    %6103 = vmatprep.subr.mxu0 0.0
    %6104 = vmatpush1.msra.mxu0 0.0
    %6105 = vmatprep.subr.mxu0 0.0
    %6106 = vmatpush1.msra.mxu0 0.0
    %6107 = vmatprep.mubr.f32.mxu0 %v5600
    %6108 = vmatmul.mubr.f32.gmra.mrb[0].mxu0 %v5451
    %v6109 = vpop.f32.mrb[0].mxu0
    %v6110 = vadd.f32 %v5522, %v6109
    %v6111 = vpop.f32.mrb[0].mxu0
    %6112 = vmatprep.mubr.f32.mxu0 %v5603
    %6113 = vmatmul.mubr.f32.gmra.mrb[0].mxu0 %v5453
    %v6114 = vpop.f32.mrb[0].mxu0
    %v6115 = vadd.f32 %v5527, %v6114
    %v6116 = vpop.f32.mrb[0].mxu0
    %6117 = vmatprep.mubr.f32.mxu0 %v5606
    %6118 = vmatmul.mubr.f32.gmra.mrb[0].mxu0 %v5455
    %v6119 = vpop.f32.mrb[0].mxu0
    %v6120 = vadd.f32 %v5532, %v6119
    %v6121 = vpop.f32.mrb[0].mxu0
    %6122 = vmatprep.mubr.f32.mxu0 %v5609
    %6123 = vmatmul.mubr.f32.gmra.mrb[0].mxu0 %v5457
    %v6124 = vpop.f32.mrb[0].mxu0
    %v6125 = vadd.f32 %v5537, %v6124
    %v6126 = vpop.f32.mrb[0].mxu0
    %6127 = vmatprep.mubr.f32.mxu0 %v5612
    %6128 = vmatmul.mubr.f32.gmra.mrb[0].mxu0 %v5459
    %v6129 = vpop.f32.mrb[0].mxu0
    %v6130 = vadd.f32 %v5542, %v6129
    %v6131 = vpop.f32.mrb[0].mxu0
    %6132 = vmatprep.mubr.f32.mxu0 %v5615
    %6133 = vmatmul.mubr.f32.gmra.mrb[0].mxu0 %v5461
    %v6134 = vpop.f32.mrb[0].mxu0
    %v6135 = vadd.f32 %v5547, %v6134
    %v6136 = vpop.f32.mrb[0].mxu0
    %6137 = vmatprep.mubr.f32.mxu0 %v5618
    %6138 = vmatmul.mubr.f32.gmra.mrb[0].mxu0 %v5463
    %v6139 = vpop.f32.mrb[0].mxu0
    %v6140 = vadd.f32 %v5552, %v6139
    %v6141 = vpop.f32.mrb[0].mxu0
    %6142 = vmatprep.mubr.f32.mxu0 %v5621
    %6143 = vmatmul.mubr.f32.gmra.mrb[0].mxu0 %v5465
    %v6144 = vpop.f32.mrb[0].mxu0
    %v6145 = vadd.f32 %v5557, %v6144
    %v6146 = vpop.f32.mrb[0].mxu0
    %6147 = vmatprep.mubr.f32.mxu0 %v5624
    %6148 = vmatmul.mubr.f32.gmra.mrb[0].mxu0 %v5467
    %v6149 = vpop.f32.mrb[0].mxu0
    %v6150 = vadd.f32 %v5562, %v6149
    %v6151 = vpop.f32.mrb[0].mxu0
    %6152 = vmatprep.mubr.f32.mxu0 %v5627
    %6153 = vmatmul.mubr.f32.gmra.mrb[0].mxu0 %v5469
    %v6154 = vpop.f32.mrb[0].mxu0
    %v6155 = vadd.f32 %v5567, %v6154
    %v6156 = vpop.f32.mrb[0].mxu0
    %6157 = vmatprep.mubr.f32.mxu0 %v5630
    %6158 = vmatmul.mubr.f32.gmra.mrb[0].mxu0 %v5471
    %v6159 = vpop.f32.mrb[0].mxu0
    %v6160 = vadd.f32 %v5572, %v6159
    %v6161 = vpop.f32.mrb[0].mxu0
    %6162 = vmatprep.mubr.f32.mxu0 %v5633
    %6163 = vmatmul.mubr.f32.gmra.mrb[0].mxu0 %v5473
    %v6164 = vpop.f32.mrb[0].mxu0
    %v6165 = vadd.f32 %v5577, %v6164
    %v6166 = vpop.f32.mrb[0].mxu0
    %6167 = vmatprep.mubr.f32.mxu0 %v5636
    %6168 = vmatmul.mubr.f32.gmra.mrb[0].mxu0 %v5475
    %v6169 = vpop.f32.mrb[0].mxu0
    %v6170 = vadd.f32 %v5582, %v6169
    %v6171 = vpop.f32.mrb[0].mxu0
    %6172 = vmatprep.mubr.f32.mxu0 %v5639
    %6173 = vmatmul.mubr.f32.gmra.mrb[0].mxu0 %v5477
    %v6174 = vpop.f32.mrb[0].mxu0
    %v6175 = vadd.f32 %v5587, %v6174
    %v6176 = vpop.f32.mrb[0].mxu0
    %6177 = vmatprep.mubr.f32.mxu0 %v5642
    %6178 = vmatmul.mubr.f32.gmra.mrb[0].mxu0 %v5479
    %v6179 = vpop.f32.mrb[0].mxu0
    %v6180 = vadd.f32 %v5592, %v6179
    %v6181 = vpop.f32.mrb[0].mxu0
    %6182 = vmatprep.mubr.f32.mxu0 %v5645
    %6183 = vmatmul.mubr.f32.gmra.mrb[0].mxu0 %v5481
    %v6184 = vpop.f32.mrb[0].mxu0
    %v6185 = vadd.f32 %v5597, %v6184
    %v6186 = vpop.f32.mrb[0].mxu0
    %6187 = vdwg.mxu0
    %v6188 = vmax.f32 %v6110, 0.0
    %v6189 = vmax.f32 %v6115, 0.0
    %v6190 = vmax.f32 %v6120, 0.0
    %v6191 = vmax.f32 %v6125, 0.0
    %v6192 = vmax.f32 %v6130, 0.0
    %v6193 = vmax.f32 %v6135, 0.0
    %v6194 = vmax.f32 %v6140, 0.0
    %v6195 = vmax.f32 %v6145, 0.0
    %v6196 = vmax.f32 %v6150, 0.0
    %v6197 = vmax.f32 %v6155, 0.0
    %v6198 = vmax.f32 %v6160, 0.0
    %v6199 = vmax.f32 %v6165, 0.0
    %v6200 = vmax.f32 %v6170, 0.0
    %v6201 = vmax.f32 %v6175, 0.0
    %v6202 = vmax.f32 %v6180, 0.0
    %v6203 = vmax.f32 %v6185, 0.0
    %6204 = vst [vmem:[%s819] sm:$0xff] %v6188
    %6205 = vst [vmem:[%s819 + $0x8] sm:$0xff] %v6189
    %6206 = vst [vmem:[%s819 + $0x10] sm:$0xff] %v6190
    %6207 = vst [vmem:[%s819 + $0x18] sm:$0xff] %v6191
    %6208 = vst [vmem:[%s819 + $0x20] sm:$0xff] %v6192
    %6209 = vst [vmem:[%s819 + $0x28] sm:$0xff] %v6193
    %6210 = vst [vmem:[%s819 + $0x30] sm:$0xff] %v6194
    %6211 = vst [vmem:[%s819 + $0x38] sm:$0xff] %v6195
    %6212 = vst [vmem:[%s819 + $0x40] sm:$0xff] %v6196
    %6213 = vst [vmem:[%s819 + $0x48] sm:$0xff] %v6197
    %6214 = vst [vmem:[%s819 + $0x50] sm:$0xff] %v6198
    %6215 = vst [vmem:[%s819 + $0x58] sm:$0xff] %v6199
    %6216 = vst [vmem:[%s819 + $0x60] sm:$0xff] %v6200
    %6217 = vst [vmem:[%s819 + $0x68] sm:$0xff] %v6201
    %6218 = vst [vmem:[%s819 + $0x70] sm:$0xff] %v6202
    %6219 = vst [vmem:[%s819 + $0x78] sm:$0xff] %v6203
    %s6220 = scalar_lea.vmem [#allocation3], 384
    %v6221 = vld [vmem:[%s6220] sm:$0xff]
    %v6222 = vld [vmem:[%s6220 + $0x8] sm:$0xff]
    %v6223 = vld [vmem:[%s6220 + $0x10] sm:$0xff]
    %v6224 = vld [vmem:[%s6220 + $0x18] sm:$0xff]
    %v6225 = vld [vmem:[%s6220 + $0x20] sm:$0xff]
    %v6226 = vld [vmem:[%s6220 + $0x28] sm:$0xff]
    %v6227 = vld [vmem:[%s6220 + $0x30] sm:$0xff]
    %v6228 = vld [vmem:[%s6220 + $0x38] sm:$0xff]
    %v6229 = vld [vmem:[%s6220 + $0x40] sm:$0xff]
    %v6230 = vld [vmem:[%s6220 + $0x48] sm:$0xff]
    %v6231 = vld [vmem:[%s6220 + $0x50] sm:$0xff]
    %v6232 = vld [vmem:[%s6220 + $0x58] sm:$0xff]
    %v6233 = vld [vmem:[%s6220 + $0x60] sm:$0xff]
    %v6234 = vld [vmem:[%s6220 + $0x68] sm:$0xff]
    %v6235 = vld [vmem:[%s6220 + $0x70] sm:$0xff]
    %v6236 = vld [vmem:[%s6220 + $0x78] sm:$0xff]
    %v6237 = vld [vmem:[%s6220 + $0x80] sm:$0xff]
    %v6238 = vld [vmem:[%s6220 + $0x88] sm:$0xff]
    %v6239 = vld [vmem:[%s6220 + $0x90] sm:$0xff]
    %v6240 = vld [vmem:[%s6220 + $0x98] sm:$0xff]
    %6241 = vmatprep.subr.mxu0 0.0
    %6242 = vmatpush1.msra.mxu0 %v6221
    %6243 = vmatprep.subr.mxu0 0.0
    %6244 = vmatpush1.msra.mxu0 %v6222
    %6245 = vmatprep.subr.mxu0 0.0
    %6246 = vmatpush1.msra.mxu0 %v6223
    %6247 = vmatprep.subr.mxu0 0.0
    %6248 = vmatpush1.msra.mxu0 %v6224
    %6249 = vmatprep.subr.mxu0 0.0
    %6250 = vmatpush1.msra.mxu0 %v6225
    %6251 = vmatprep.subr.mxu0 0.0
    %6252 = vmatpush1.msra.mxu0 %v6226
    %6253 = vmatprep.subr.mxu0 0.0
    %6254 = vmatpush1.msra.mxu0 %v6227
    %6255 = vmatprep.subr.mxu0 0.0
    %6256 = vmatpush1.msra.mxu0 %v6228
    %6257 = vmatprep.subr.mxu0 0.0
    %6258 = vmatpush1.msra.mxu0 %v6229
    %6259 = vmatprep.subr.mxu0 0.0
    %6260 = vmatpush1.msra.mxu0 %v6230
    %6261 = vmatprep.subr.mxu0 0.0
    %6262 = vmatpush1.msra.mxu0 %v6231
    %6263 = vmatprep.subr.mxu0 0.0
    %6264 = vmatpush1.msra.mxu0 %v6232
    %6265 = vmatprep.subr.mxu0 0.0
    %6266 = vmatpush1.msra.mxu0 %v6233
    %6267 = vmatprep.subr.mxu0 0.0
    %6268 = vmatpush1.msra.mxu0 %v6234
    %6269 = vmatprep.subr.mxu0 0.0
    %6270 = vmatpush1.msra.mxu0 %v6235
    %6271 = vmatprep.subr.mxu0 0.0
    %6272 = vmatpush1.msra.mxu0 %v6236
    %6273 = vmatprep.subr.mxu0 0.0
    %6274 = vmatpush1.msra.mxu0 %v6237
    %6275 = vmatprep.subr.mxu0 0.0
    %6276 = vmatpush1.msra.mxu0 %v6238
    %6277 = vmatprep.subr.mxu0 0.0
    %6278 = vmatpush1.msra.mxu0 %v6239
    %6279 = vmatprep.subr.mxu0 0.0
    %6280 = vmatpush1.msra.mxu0 %v6240
    %6281 = vmatprep.subr.mxu0 0.0
    %6282 = vmatpush1.msra.mxu0 0.0
    %6283 = vmatprep.subr.mxu0 0.0
    %6284 = vmatpush1.msra.mxu0 0.0
    %6285 = vmatprep.subr.mxu0 0.0
    %6286 = vmatpush1.msra.mxu0 0.0
    %6287 = vmatprep.subr.mxu0 0.0
    %6288 = vmatpush1.msra.mxu0 0.0
    %6289 = vmatprep.subr.mxu0 0.0
    %6290 = vmatpush1.msra.mxu0 0.0
    %6291 = vmatprep.subr.mxu0 0.0
    %6292 = vmatpush1.msra.mxu0 0.0
    %6293 = vmatprep.subr.mxu0 0.0
    %6294 = vmatpush1.msra.mxu0 0.0
    %6295 = vmatprep.subr.mxu0 0.0
    %6296 = vmatpush1.msra.mxu0 0.0
    %6297 = vmatprep.subr.mxu0 0.0
    %6298 = vmatpush1.msra.mxu0 0.0
    %6299 = vmatprep.subr.mxu0 0.0
    %6300 = vmatpush1.msra.mxu0 0.0
    %6301 = vmatprep.subr.mxu0 0.0
    %6302 = vmatpush1.msra.mxu0 0.0
    %6303 = vmatprep.subr.mxu0 0.0
    %6304 = vmatpush1.msra.mxu0 0.0
    %6305 = vmatprep.mubr.f32.mxu0 %v5600
    %6306 = vmatmul.mubr.f32.gmra.mrb[0].mxu0 %v5451
    %v6307 = vpop.f32.mrb[0].mxu0
    %v6308 = vadd.f32 %v5522, %v6307
    %v6309 = vpop.f32.mrb[0].mxu0
    %6310 = vmatprep.mubr.f32.mxu0 %v5603
    %6311 = vmatmul.mubr.f32.gmra.mrb[0].mxu0 %v5453
    %v6312 = vpop.f32.mrb[0].mxu0
    %v6313 = vadd.f32 %v5527, %v6312
    %v6314 = vpop.f32.mrb[0].mxu0
    %6315 = vmatprep.mubr.f32.mxu0 %v5606
    %6316 = vmatmul.mubr.f32.gmra.mrb[0].mxu0 %v5455
    %v6317 = vpop.f32.mrb[0].mxu0
    %v6318 = vadd.f32 %v5532, %v6317
    %v6319 = vpop.f32.mrb[0].mxu0
    %6320 = vmatprep.mubr.f32.mxu0 %v5609
    %6321 = vmatmul.mubr.f32.gmra.mrb[0].mxu0 %v5457
    %v6322 = vpop.f32.mrb[0].mxu0
    %v6323 = vadd.f32 %v5537, %v6322
    %v6324 = vpop.f32.mrb[0].mxu0
    %6325 = vmatprep.mubr.f32.mxu0 %v5612
    %6326 = vmatmul.mubr.f32.gmra.mrb[0].mxu0 %v5459
    %v6327 = vpop.f32.mrb[0].mxu0
    %v6328 = vadd.f32 %v5542, %v6327
    %v6329 = vpop.f32.mrb[0].mxu0
    %6330 = vmatprep.mubr.f32.mxu0 %v5615
    %6331 = vmatmul.mubr.f32.gmra.mrb[0].mxu0 %v5461
    %v6332 = vpop.f32.mrb[0].mxu0
    %v6333 = vadd.f32 %v5547, %v6332
    %v6334 = vpop.f32.mrb[0].mxu0
    %6335 = vmatprep.mubr.f32.mxu0 %v5618
    %6336 = vmatmul.mubr.f32.gmra.mrb[0].mxu0 %v5463
    %v6337 = vpop.f32.mrb[0].mxu0
    %v6338 = vadd.f32 %v5552, %v6337
    %v6339 = vpop.f32.mrb[0].mxu0
    %6340 = vmatprep.mubr.f32.mxu0 %v5621
    %6341 = vmatmul.mubr.f32.gmra.mrb[0].mxu0 %v5465
    %v6342 = vpop.f32.mrb[0].mxu0
    %v6343 = vadd.f32 %v5557, %v6342
    %v6344 = vpop.f32.mrb[0].mxu0
    %6345 = vmatprep.mubr.f32.mxu0 %v5624
    %6346 = vmatmul.mubr.f32.gmra.mrb[0].mxu0 %v5467
    %v6347 = vpop.f32.mrb[0].mxu0
    %v6348 = vadd.f32 %v5562, %v6347
    %v6349 = vpop.f32.mrb[0].mxu0
    %6350 = vmatprep.mubr.f32.mxu0 %v5627
    %6351 = vmatmul.mubr.f32.gmra.mrb[0].mxu0 %v5469
    %v6352 = vpop.f32.mrb[0].mxu0
    %v6353 = vadd.f32 %v5567, %v6352
    %v6354 = vpop.f32.mrb[0].mxu0
    %6355 = vmatprep.mubr.f32.mxu0 %v5630
    %6356 = vmatmul.mubr.f32.gmra.mrb[0].mxu0 %v5471
    %v6357 = vpop.f32.mrb[0].mxu0
    %v6358 = vadd.f32 %v5572, %v6357
    %v6359 = vpop.f32.mrb[0].mxu0
    %6360 = vmatprep.mubr.f32.mxu0 %v5633
    %6361 = vmatmul.mubr.f32.gmra.mrb[0].mxu0 %v5473
    %v6362 = vpop.f32.mrb[0].mxu0
    %v6363 = vadd.f32 %v5577, %v6362
    %v6364 = vpop.f32.mrb[0].mxu0
    %6365 = vmatprep.mubr.f32.mxu0 %v5636
    %6366 = vmatmul.mubr.f32.gmra.mrb[0].mxu0 %v5475
    %v6367 = vpop.f32.mrb[0].mxu0
    %v6368 = vadd.f32 %v5582, %v6367
    %v6369 = vpop.f32.mrb[0].mxu0
    %6370 = vmatprep.mubr.f32.mxu0 %v5639
    %6371 = vmatmul.mubr.f32.gmra.mrb[0].mxu0 %v5477
    %v6372 = vpop.f32.mrb[0].mxu0
    %v6373 = vadd.f32 %v5587, %v6372
    %v6374 = vpop.f32.mrb[0].mxu0
    %6375 = vmatprep.mubr.f32.mxu0 %v5642
    %6376 = vmatmul.mubr.f32.gmra.mrb[0].mxu0 %v5479
    %v6377 = vpop.f32.mrb[0].mxu0
    %v6378 = vadd.f32 %v5592, %v6377
    %v6379 = vpop.f32.mrb[0].mxu0
    %6380 = vmatprep.mubr.f32.mxu0 %v5645
    %6381 = vmatmul.mubr.f32.gmra.mrb[0].mxu0 %v5481
    %v6382 = vpop.f32.mrb[0].mxu0
    %v6383 = vadd.f32 %v5597, %v6382
    %v6384 = vpop.f32.mrb[0].mxu0
    %6385 = vdwg.mxu0
    %v6386 = vmax.f32 %v6308, 0.0
    %v6387 = vmax.f32 %v6313, 0.0
    %v6388 = vmax.f32 %v6318, 0.0
    %v6389 = vmax.f32 %v6323, 0.0
    %v6390 = vmax.f32 %v6328, 0.0
    %v6391 = vmax.f32 %v6333, 0.0
    %v6392 = vmax.f32 %v6338, 0.0
    %v6393 = vmax.f32 %v6343, 0.0
    %v6394 = vmax.f32 %v6348, 0.0
    %v6395 = vmax.f32 %v6353, 0.0
    %v6396 = vmax.f32 %v6358, 0.0
    %v6397 = vmax.f32 %v6363, 0.0
    %v6398 = vmax.f32 %v6368, 0.0
    %v6399 = vmax.f32 %v6373, 0.0
    %v6400 = vmax.f32 %v6378, 0.0
    %v6401 = vmax.f32 %v6383, 0.0
    %6402 = vst [vmem:[%s1018] sm:$0xff] %v6386
    %6403 = vst [vmem:[%s1018 + $0x8] sm:$0xff] %v6387
    %6404 = vst [vmem:[%s1018 + $0x10] sm:$0xff] %v6388
    %6405 = vst [vmem:[%s1018 + $0x18] sm:$0xff] %v6389
    %6406 = vst [vmem:[%s1018 + $0x20] sm:$0xff] %v6390
    %6407 = vst [vmem:[%s1018 + $0x28] sm:$0xff] %v6391
    %6408 = vst [vmem:[%s1018 + $0x30] sm:$0xff] %v6392
    %6409 = vst [vmem:[%s1018 + $0x38] sm:$0xff] %v6393
    %6410 = vst [vmem:[%s1018 + $0x40] sm:$0xff] %v6394
    %6411 = vst [vmem:[%s1018 + $0x48] sm:$0xff] %v6395
    %6412 = vst [vmem:[%s1018 + $0x50] sm:$0xff] %v6396
    %6413 = vst [vmem:[%s1018 + $0x58] sm:$0xff] %v6397
    %6414 = vst [vmem:[%s1018 + $0x60] sm:$0xff] %v6398
    %6415 = vst [vmem:[%s1018 + $0x68] sm:$0xff] %v6399
    %6416 = vst [vmem:[%s1018 + $0x70] sm:$0xff] %v6400
    %6417 = vst [vmem:[%s1018 + $0x78] sm:$0xff] %v6401
    %s6418 = scalar_lea.vmem [#allocation3], 416
    %v6419 = vld [vmem:[%s6418] sm:$0xff]
    %v6420 = vld [vmem:[%s6418 + $0x8] sm:$0xff]
    %v6421 = vld [vmem:[%s6418 + $0x10] sm:$0xff]
    %v6422 = vld [vmem:[%s6418 + $0x18] sm:$0xff]
    %v6423 = vld [vmem:[%s6418 + $0x20] sm:$0xff]
    %v6424 = vld [vmem:[%s6418 + $0x28] sm:$0xff]
    %v6425 = vld [vmem:[%s6418 + $0x30] sm:$0xff]
    %v6426 = vld [vmem:[%s6418 + $0x38] sm:$0xff]
    %v6427 = vld [vmem:[%s6418 + $0x40] sm:$0xff]
    %v6428 = vld [vmem:[%s6418 + $0x48] sm:$0xff]
    %v6429 = vld [vmem:[%s6418 + $0x50] sm:$0xff]
    %v6430 = vld [vmem:[%s6418 + $0x58] sm:$0xff]
    %v6431 = vld [vmem:[%s6418 + $0x60] sm:$0xff]
    %v6432 = vld [vmem:[%s6418 + $0x68] sm:$0xff]
    %v6433 = vld [vmem:[%s6418 + $0x70] sm:$0xff]
    %v6434 = vld [vmem:[%s6418 + $0x78] sm:$0xff]
    %v6435 = vld [vmem:[%s6418 + $0x80] sm:$0xff]
    %v6436 = vld [vmem:[%s6418 + $0x88] sm:$0xff]
    %v6437 = vld [vmem:[%s6418 + $0x90] sm:$0xff]
    %v6438 = vld [vmem:[%s6418 + $0x98] sm:$0xff]
    %6439 = vmatprep.subr.mxu0 0.0
    %6440 = vmatpush1.msra.mxu0 %v6419
    %6441 = vmatprep.subr.mxu0 0.0
    %6442 = vmatpush1.msra.mxu0 %v6420
    %6443 = vmatprep.subr.mxu0 0.0
    %6444 = vmatpush1.msra.mxu0 %v6421
    %6445 = vmatprep.subr.mxu0 0.0
    %6446 = vmatpush1.msra.mxu0 %v6422
    %6447 = vmatprep.subr.mxu0 0.0
    %6448 = vmatpush1.msra.mxu0 %v6423
    %6449 = vmatprep.subr.mxu0 0.0
    %6450 = vmatpush1.msra.mxu0 %v6424
    %6451 = vmatprep.subr.mxu0 0.0
    %6452 = vmatpush1.msra.mxu0 %v6425
    %6453 = vmatprep.subr.mxu0 0.0
    %6454 = vmatpush1.msra.mxu0 %v6426
    %6455 = vmatprep.subr.mxu0 0.0
    %6456 = vmatpush1.msra.mxu0 %v6427
    %6457 = vmatprep.subr.mxu0 0.0
    %6458 = vmatpush1.msra.mxu0 %v6428
    %6459 = vmatprep.subr.mxu0 0.0
    %6460 = vmatpush1.msra.mxu0 %v6429
    %6461 = vmatprep.subr.mxu0 0.0
    %6462 = vmatpush1.msra.mxu0 %v6430
    %6463 = vmatprep.subr.mxu0 0.0
    %6464 = vmatpush1.msra.mxu0 %v6431
    %6465 = vmatprep.subr.mxu0 0.0
    %6466 = vmatpush1.msra.mxu0 %v6432
    %6467 = vmatprep.subr.mxu0 0.0
    %6468 = vmatpush1.msra.mxu0 %v6433
    %6469 = vmatprep.subr.mxu0 0.0
    %6470 = vmatpush1.msra.mxu0 %v6434
    %6471 = vmatprep.subr.mxu0 0.0
    %6472 = vmatpush1.msra.mxu0 %v6435
    %6473 = vmatprep.subr.mxu0 0.0
    %6474 = vmatpush1.msra.mxu0 %v6436
    %6475 = vmatprep.subr.mxu0 0.0
    %6476 = vmatpush1.msra.mxu0 %v6437
    %6477 = vmatprep.subr.mxu0 0.0
    %6478 = vmatpush1.msra.mxu0 %v6438
    %6479 = vmatprep.subr.mxu0 0.0
    %6480 = vmatpush1.msra.mxu0 0.0
    %6481 = vmatprep.subr.mxu0 0.0
    %6482 = vmatpush1.msra.mxu0 0.0
    %6483 = vmatprep.subr.mxu0 0.0
    %6484 = vmatpush1.msra.mxu0 0.0
    %6485 = vmatprep.subr.mxu0 0.0
    %6486 = vmatpush1.msra.mxu0 0.0
    %6487 = vmatprep.subr.mxu0 0.0
    %6488 = vmatpush1.msra.mxu0 0.0
    %6489 = vmatprep.subr.mxu0 0.0
    %6490 = vmatpush1.msra.mxu0 0.0
    %6491 = vmatprep.subr.mxu0 0.0
    %6492 = vmatpush1.msra.mxu0 0.0
    %6493 = vmatprep.subr.mxu0 0.0
    %6494 = vmatpush1.msra.mxu0 0.0
    %6495 = vmatprep.subr.mxu0 0.0
    %6496 = vmatpush1.msra.mxu0 0.0
    %6497 = vmatprep.subr.mxu0 0.0
    %6498 = vmatpush1.msra.mxu0 0.0
    %6499 = vmatprep.subr.mxu0 0.0
    %6500 = vmatpush1.msra.mxu0 0.0
    %6501 = vmatprep.subr.mxu0 0.0
    %6502 = vmatpush1.msra.mxu0 0.0
    %6503 = vmatprep.mubr.f32.mxu0 %v5600
    %6504 = vmatmul.mubr.f32.gmra.mrb[0].mxu0 %v5451
    %v6505 = vpop.f32.mrb[0].mxu0
    %v6506 = vadd.f32 %v5522, %v6505
    %v6507 = vpop.f32.mrb[0].mxu0
    %6508 = vmatprep.mubr.f32.mxu0 %v5603
    %6509 = vmatmul.mubr.f32.gmra.mrb[0].mxu0 %v5453
    %v6510 = vpop.f32.mrb[0].mxu0
    %v6511 = vadd.f32 %v5527, %v6510
    %v6512 = vpop.f32.mrb[0].mxu0
    %6513 = vmatprep.mubr.f32.mxu0 %v5606
    %6514 = vmatmul.mubr.f32.gmra.mrb[0].mxu0 %v5455
    %v6515 = vpop.f32.mrb[0].mxu0
    %v6516 = vadd.f32 %v5532, %v6515
    %v6517 = vpop.f32.mrb[0].mxu0
    %6518 = vmatprep.mubr.f32.mxu0 %v5609
    %6519 = vmatmul.mubr.f32.gmra.mrb[0].mxu0 %v5457
    %v6520 = vpop.f32.mrb[0].mxu0
    %v6521 = vadd.f32 %v5537, %v6520
    %v6522 = vpop.f32.mrb[0].mxu0
    %6523 = vmatprep.mubr.f32.mxu0 %v5612
    %6524 = vmatmul.mubr.f32.gmra.mrb[0].mxu0 %v5459
    %v6525 = vpop.f32.mrb[0].mxu0
    %v6526 = vadd.f32 %v5542, %v6525
    %v6527 = vpop.f32.mrb[0].mxu0
    %6528 = vmatprep.mubr.f32.mxu0 %v5615
    %6529 = vmatmul.mubr.f32.gmra.mrb[0].mxu0 %v5461
    %v6530 = vpop.f32.mrb[0].mxu0
    %v6531 = vadd.f32 %v5547, %v6530
    %v6532 = vpop.f32.mrb[0].mxu0
    %6533 = vmatprep.mubr.f32.mxu0 %v5618
    %6534 = vmatmul.mubr.f32.gmra.mrb[0].mxu0 %v5463
    %v6535 = vpop.f32.mrb[0].mxu0
    %v6536 = vadd.f32 %v5552, %v6535
    %v6537 = vpop.f32.mrb[0].mxu0
    %6538 = vmatprep.mubr.f32.mxu0 %v5621
    %6539 = vmatmul.mubr.f32.gmra.mrb[0].mxu0 %v5465
    %v6540 = vpop.f32.mrb[0].mxu0
    %v6541 = vadd.f32 %v5557, %v6540
    %v6542 = vpop.f32.mrb[0].mxu0
    %6543 = vmatprep.mubr.f32.mxu0 %v5624
    %6544 = vmatmul.mubr.f32.gmra.mrb[0].mxu0 %v5467
    %v6545 = vpop.f32.mrb[0].mxu0
    %v6546 = vadd.f32 %v5562, %v6545
    %v6547 = vpop.f32.mrb[0].mxu0
    %6548 = vmatprep.mubr.f32.mxu0 %v5627
    %6549 = vmatmul.mubr.f32.gmra.mrb[0].mxu0 %v5469
    %v6550 = vpop.f32.mrb[0].mxu0
    %v6551 = vadd.f32 %v5567, %v6550
    %v6552 = vpop.f32.mrb[0].mxu0
    %6553 = vmatprep.mubr.f32.mxu0 %v5630
    %6554 = vmatmul.mubr.f32.gmra.mrb[0].mxu0 %v5471
    %v6555 = vpop.f32.mrb[0].mxu0
    %v6556 = vadd.f32 %v5572, %v6555
    %v6557 = vpop.f32.mrb[0].mxu0
    %6558 = vmatprep.mubr.f32.mxu0 %v5633
    %6559 = vmatmul.mubr.f32.gmra.mrb[0].mxu0 %v5473
    %v6560 = vpop.f32.mrb[0].mxu0
    %v6561 = vadd.f32 %v5577, %v6560
    %v6562 = vpop.f32.mrb[0].mxu0
    %6563 = vmatprep.mubr.f32.mxu0 %v5636
    %6564 = vmatmul.mubr.f32.gmra.mrb[0].mxu0 %v5475
    %v6565 = vpop.f32.mrb[0].mxu0
    %v6566 = vadd.f32 %v5582, %v6565
    %v6567 = vpop.f32.mrb[0].mxu0
    %6568 = vmatprep.mubr.f32.mxu0 %v5639
    %6569 = vmatmul.mubr.f32.gmra.mrb[0].mxu0 %v5477
    %v6570 = vpop.f32.mrb[0].mxu0
    %v6571 = vadd.f32 %v5587, %v6570
    %v6572 = vpop.f32.mrb[0].mxu0
    %6573 = vmatprep.mubr.f32.mxu0 %v5642
    %6574 = vmatmul.mubr.f32.gmra.mrb[0].mxu0 %v5479
    %v6575 = vpop.f32.mrb[0].mxu0
    %v6576 = vadd.f32 %v5592, %v6575
    %v6577 = vpop.f32.mrb[0].mxu0
    %6578 = vmatprep.mubr.f32.mxu0 %v5645
    %6579 = vmatmul.mubr.f32.gmra.mrb[0].mxu0 %v5481
    %v6580 = vpop.f32.mrb[0].mxu0
    %v6581 = vadd.f32 %v5597, %v6580
    %v6582 = vpop.f32.mrb[0].mxu0
    %6583 = vdwg.mxu0
    %v6584 = vmax.f32 %v6506, 0.0
    %v6585 = vmax.f32 %v6511, 0.0
    %v6586 = vmax.f32 %v6516, 0.0
    %v6587 = vmax.f32 %v6521, 0.0
    %v6588 = vmax.f32 %v6526, 0.0
    %v6589 = vmax.f32 %v6531, 0.0
    %v6590 = vmax.f32 %v6536, 0.0
    %v6591 = vmax.f32 %v6541, 0.0
    %v6592 = vmax.f32 %v6546, 0.0
    %v6593 = vmax.f32 %v6551, 0.0
    %v6594 = vmax.f32 %v6556, 0.0
    %v6595 = vmax.f32 %v6561, 0.0
    %v6596 = vmax.f32 %v6566, 0.0
    %v6597 = vmax.f32 %v6571, 0.0
    %v6598 = vmax.f32 %v6576, 0.0
    %v6599 = vmax.f32 %v6581, 0.0
    %s6600 = scalar_lea.vmem [#allocation2], 432
    %6601 = vst [vmem:[%s6600] sm:$0xff] %v6584
    %6602 = vst [vmem:[%s6600 + $0x8] sm:$0xff] %v6585
    %6603 = vst [vmem:[%s6600 + $0x10] sm:$0xff] %v6586
    %6604 = vst [vmem:[%s6600 + $0x18] sm:$0xff] %v6587
    %6605 = vst [vmem:[%s6600 + $0x20] sm:$0xff] %v6588
    %6606 = vst [vmem:[%s6600 + $0x28] sm:$0xff] %v6589
    %6607 = vst [vmem:[%s6600 + $0x30] sm:$0xff] %v6590
    %6608 = vst [vmem:[%s6600 + $0x38] sm:$0xff] %v6591
    %6609 = vst [vmem:[%s6600 + $0x40] sm:$0xff] %v6592
    %6610 = vst [vmem:[%s6600 + $0x48] sm:$0xff] %v6593
    %6611 = vst [vmem:[%s6600 + $0x50] sm:$0xff] %v6594
    %6612 = vst [vmem:[%s6600 + $0x58] sm:$0xff] %v6595
    %6613 = vst [vmem:[%s6600 + $0x60] sm:$0xff] %v6596
    %6614 = vst [vmem:[%s6600 + $0x68] sm:$0xff] %v6597
    %6615 = vst [vmem:[%s6600 + $0x70] sm:$0xff] %v6598
    %6616 = vst [vmem:[%s6600 + $0x78] sm:$0xff] %v6599
    %6617 = vst [vmem:[#allocation2] sm:$0xff] 0.0
    %6618 = vst [vmem:[#allocation2 + $0x8] sm:$0xff] 0.0
    %6619 = vst [vmem:[%s4280] sm:$0xff] 0.0
    %6620 = vst [vmem:[%s4280 + $0x8] sm:$0xff] 0.0
    %v6621 = vld [vmem:[#allocation2] sm:$0xff]
    %v6622 = vld [vmem:[#allocation2 + $0x8] sm:$0xff]
    %v6623 = vld [vmem:[#allocation2 + $0x10] sm:$0xff]
    %v6624 = vld [vmem:[#allocation2 + $0x18] sm:$0xff]
    %v6625 = vld [vmem:[#allocation2 + $0x20] sm:$0xff]
    %v6626 = vld [vmem:[#allocation2 + $0x28] sm:$0xff]
    %v6627 = vld [vmem:[#allocation2 + $0x30] sm:$0xff]
    %v6628 = vld [vmem:[#allocation2 + $0x38] sm:$0xff]
    %v6629 = vld [vmem:[#allocation2 + $0x40] sm:$0xff]
    %v6630 = vld [vmem:[#allocation2 + $0x48] sm:$0xff]
    %v6631 = vld [vmem:[#allocation2 + $0x50] sm:$0xff]
    %v6632 = vld [vmem:[#allocation2 + $0x58] sm:$0xff]
    %v6633 = vld [vmem:[#allocation2 + $0x60] sm:$0xff]
    %v6634 = vld [vmem:[#allocation2 + $0x68] sm:$0xff]
    %v6635 = vld [vmem:[#allocation2 + $0x70] sm:$0xff]
    %v6636 = vld [vmem:[#allocation2 + $0x78] sm:$0xff]
    %v6637 = vld [vmem:[#allocation2 + $0x80] sm:$0xff]
    %v6638 = vld [vmem:[#allocation2 + $0x88] sm:$0xff]
    %v6639 = vld [vmem:[#allocation2 + $0x90] sm:$0xff]
    %v6640 = vld [vmem:[#allocation2 + $0x98] sm:$0xff]
    %v6641 = vld [vmem:[#allocation2 + $0xa0] sm:$0xff]
    %v6642 = vld [vmem:[#allocation2 + $0xa8] sm:$0xff]
    %v6643 = vld [vmem:[#allocation2 + $0xb0] sm:$0xff]
    %v6644 = vld [vmem:[#allocation2 + $0xb8] sm:$0xff]
    %v6645 = vld [vmem:[#allocation2 + $0xc0] sm:$0xff]
    %v6646 = vld [vmem:[#allocation2 + $0xc8] sm:$0xff]
    %v6647 = vld [vmem:[#allocation2 + $0xd0] sm:$0xff]
    %v6648 = vld [vmem:[#allocation2 + $0xd8] sm:$0xff]
    %v6649 = vld [vmem:[#allocation2 + $0xe0] sm:$0xff]
    %v6650 = vld [vmem:[#allocation2 + $0xe8] sm:$0xff]
    %v6651 = vld [vmem:[#allocation2 + $0xf0] sm:$0xff]
    %v6652 = vld [vmem:[#allocation2 + $0xf8] sm:$0xff]
    %v6653 = vld [vmem:[#allocation2 + $0x100] sm:$0xff]
    %v6654 = vld [vmem:[#allocation2 + $0x108] sm:$0xff]
    %v6655 = vld [vmem:[#allocation2 + $0x110] sm:$0xff]
    %v6656 = vld [vmem:[#allocation2 + $0x118] sm:$0xff]
    %v6657 = vld [vmem:[#allocation2 + $0x120] sm:$0xff]
    %v6658 = vld [vmem:[#allocation2 + $0x128] sm:$0xff]
    %v6659 = vld [vmem:[#allocation2 + $0x130] sm:$0xff]
    %v6660 = vld [vmem:[#allocation2 + $0x138] sm:$0xff]
    %v6661 = vld [vmem:[#allocation2 + $0x140] sm:$0xff]
    %v6662 = vld [vmem:[#allocation2 + $0x148] sm:$0xff]
    %v6663 = vld [vmem:[#allocation2 + $0x150] sm:$0xff]
    %v6664 = vld [vmem:[#allocation2 + $0x158] sm:$0xff]
    %v6665 = vld [vmem:[#allocation2 + $0x160] sm:$0xff]
    %v6666 = vld [vmem:[#allocation2 + $0x168] sm:$0xff]
    %v6667 = vld [vmem:[#allocation2 + $0x170] sm:$0xff]
    %v6668 = vld [vmem:[#allocation2 + $0x178] sm:$0xff]
    %v6669 = vld [vmem:[#allocation2 + $0x180] sm:$0xff]
    %v6670 = vld [vmem:[#allocation2 + $0x188] sm:$0xff]
    %v6671 = vld [vmem:[#allocation2 + $0x190] sm:$0xff]
    %v6672 = vld [vmem:[#allocation2 + $0x198] sm:$0xff]
    %v6673 = vld [vmem:[#allocation2 + $0x1a0] sm:$0xff]
    %v6674 = vld [vmem:[#allocation2 + $0x1a8] sm:$0xff]
    %v6675 = vld [vmem:[#allocation2 + $0x1b0] sm:$0xff]
    %v6676 = vld [vmem:[#allocation2 + $0x1b8] sm:$0xff]
    %v6677 = vld [vmem:[#allocation2 + $0x1c0] sm:$0xff]
    %v6678 = vld [vmem:[#allocation2 + $0x1c8] sm:$0xff]
    %v6679 = vld [vmem:[#allocation2 + $0x1d0] sm:$0xff]
    %v6680 = vld [vmem:[#allocation2 + $0x1d8] sm:$0xff]
    %v6681 = vld [vmem:[#allocation2 + $0x1e0] sm:$0xff]
    %v6682 = vld [vmem:[#allocation2 + $0x1e8] sm:$0xff]
    %v6683 = vld [vmem:[#allocation2 + $0x1f0] sm:$0xff]
    %v6684 = vld [vmem:[#allocation2 + $0x1f8] sm:$0xff]
    %v6685 = vld [vmem:[#allocation2 + $0x200] sm:$0xff]
    %v6686 = vld [vmem:[#allocation2 + $0x208] sm:$0xff]
    %v6687 = vld [vmem:[#allocation2 + $0x210] sm:$0xff]
    %v6688 = vld [vmem:[#allocation2 + $0x218] sm:$0xff]
    %v6689 = vld [vmem:[#allocation2 + $0x220] sm:$0xff]
    %v6690 = vld [vmem:[#allocation2 + $0x228] sm:$0xff]
    %v6691 = vld [vmem:[#allocation2 + $0x230] sm:$0xff]
    %v6692 = vld [vmem:[#allocation2 + $0x238] sm:$0xff]
    %v6693 = vmax.f32 %v6621, %v6623
    %v6694 = vmax.f32 %v6622, %v6624
    %v6695 = vmax.f32 %v6625, %v6627
    %v6696 = vmax.f32 %v6626, %v6628
    %v6697 = vmax.f32 %v6629, %v6631
    %v6698 = vmax.f32 %v6630, %v6632
    %v6699 = vmax.f32 %v6633, %v6635
    %v6700 = vmax.f32 %v6634, %v6636
    %v6701 = vmax.f32 %v6637, %v6639
    %v6702 = vmax.f32 %v6638, %v6640
    %v6703 = vmax.f32 %v6641, %v6643
    %v6704 = vmax.f32 %v6642, %v6644
    %v6705 = vmax.f32 %v6645, %v6647
    %v6706 = vmax.f32 %v6646, %v6648
    %v6707 = vmax.f32 %v6649, %v6651
    %v6708 = vmax.f32 %v6650, %v6652
    %v6709 = vmax.f32 %v6653, %v6655
    %v6710 = vmax.f32 %v6654, %v6656
    %v6711 = vmax.f32 %v6657, %v6659
    %v6712 = vmax.f32 %v6658, %v6660
    %v6713 = vmax.f32 %v6661, %v6663
    %v6714 = vmax.f32 %v6662, %v6664
    %v6715 = vmax.f32 %v6665, %v6667
    %v6716 = vmax.f32 %v6666, %v6668
    %v6717 = vmax.f32 %v6669, %v6671
    %v6718 = vmax.f32 %v6670, %v6672
    %v6719 = vmax.f32 %v6673, %v6675
    %v6720 = vmax.f32 %v6674, %v6676
    %v6721 = vmax.f32 %v6677, %v6679
    %v6722 = vmax.f32 %v6678, %v6680
    %v6723 = vmax.f32 %v6681, %v6683
    %v6724 = vmax.f32 %v6682, %v6684
    %v6725 = vmax.f32 %v6685, %v6687
    %v6726 = vmax.f32 %v6686, %v6688
    %v6727 = vmax.f32 %v6689, %v6691
    %v6728 = vmax.f32 %v6690, %v6692
    %6729 = vst [vmem:[%s2392] sm:$0xff] %v6693
    %6730 = vst [vmem:[%s2392 + $0x8] sm:$0xff] %v6694
    %6731 = vst [vmem:[%s2392 + $0x10] sm:$0xff] %v6695
    %6732 = vst [vmem:[%s2392 + $0x18] sm:$0xff] %v6696
    %6733 = vst [vmem:[%s2392 + $0x20] sm:$0xff] %v6697
    %6734 = vst [vmem:[%s2392 + $0x28] sm:$0xff] %v6698
    %6735 = vst [vmem:[%s2392 + $0x30] sm:$0xff] %v6699
    %6736 = vst [vmem:[%s2392 + $0x38] sm:$0xff] %v6700
    %6737 = vst [vmem:[%s2392 + $0x40] sm:$0xff] %v6701
    %6738 = vst [vmem:[%s2392 + $0x48] sm:$0xff] %v6702
    %6739 = vst [vmem:[%s2392 + $0x50] sm:$0xff] %v6703
    %6740 = vst [vmem:[%s2392 + $0x58] sm:$0xff] %v6704
    %6741 = vst [vmem:[%s2392 + $0x60] sm:$0xff] %v6705
    %6742 = vst [vmem:[%s2392 + $0x68] sm:$0xff] %v6706
    %6743 = vst [vmem:[%s2392 + $0x70] sm:$0xff] %v6707
    %6744 = vst [vmem:[%s2392 + $0x78] sm:$0xff] %v6708
    %6745 = vst [vmem:[%s2392 + $0x80] sm:$0xff] %v6709
    %6746 = vst [vmem:[%s2392 + $0x88] sm:$0xff] %v6710
    %6747 = vst [vmem:[%s2392 + $0x90] sm:$0xff] %v6711
    %6748 = vst [vmem:[%s2392 + $0x98] sm:$0xff] %v6712
    %6749 = vst [vmem:[%s2392 + $0xa0] sm:$0xff] %v6713
    %6750 = vst [vmem:[%s2392 + $0xa8] sm:$0xff] %v6714
    %6751 = vst [vmem:[%s2392 + $0xb0] sm:$0xff] %v6715
    %6752 = vst [vmem:[%s2392 + $0xb8] sm:$0xff] %v6716
    %6753 = vst [vmem:[%s2392 + $0xc0] sm:$0xff] %v6717
    %6754 = vst [vmem:[%s2392 + $0xc8] sm:$0xff] %v6718
    %6755 = vst [vmem:[%s2392 + $0xd0] sm:$0xff] %v6719
    %6756 = vst [vmem:[%s2392 + $0xd8] sm:$0xff] %v6720
    %6757 = vst [vmem:[%s2392 + $0xe0] sm:$0xff] %v6721
    %6758 = vst [vmem:[%s2392 + $0xe8] sm:$0xff] %v6722
    %6759 = vst [vmem:[%s2392 + $0xf0] sm:$0xff] %v6723
    %6760 = vst [vmem:[%s2392 + $0xf8] sm:$0xff] %v6724
    %6761 = vst [vmem:[%s2392 + $0x100] sm:$0xff] %v6725
    %6762 = vst [vmem:[%s2392 + $0x108] sm:$0xff] %v6726
    %6763 = vst [vmem:[%s2392 + $0x110] sm:$0xff] %v6727
    %6764 = vst [vmem:[%s2392 + $0x118] sm:$0xff] %v6728
    %6765 = vst [vmem:[#allocation3] sm:$0xff] 0.0
    %6766 = vst [vmem:[#allocation3 + $0x8] sm:$0xff] 0.0
    %s6767 = scalar_lea.vmem [#allocation3], 304
    %6768 = vst [vmem:[%s6767] sm:$0xff] 0.0
    %6769 = vst [vmem:[%s6767 + $0x8] sm:$0xff] 0.0
    %v6770 = vld [vmem:[%s9] sm:$0xff]
    %v6771 = vld [vmem:[%s9 + $0x8] sm:$0xff]
    %v6772 = vld [vmem:[%s9 + $0x10] sm:$0xff]
    %v6773 = vld [vmem:[%s9 + $0x18] sm:$0xff]
    %v6774 = vld [vmem:[%s9 + $0x20] sm:$0xff]
    %v6775 = vld [vmem:[%s9 + $0x28] sm:$0xff]
    %v6776 = vld [vmem:[%s9 + $0x30] sm:$0xff]
    %v6777 = vld [vmem:[%s9 + $0x38] sm:$0xff]
    %v6778 = vld [vmem:[%s9 + $0x40] sm:$0xff]
    %v6779 = vld [vmem:[%s9 + $0x48] sm:$0xff]
    %v6780 = vld [vmem:[%s9 + $0x50] sm:$0xff]
    %v6781 = vld [vmem:[%s9 + $0x58] sm:$0xff]
    %v6782 = vld [vmem:[%s9 + $0x60] sm:$0xff]
    %v6783 = vld [vmem:[%s9 + $0x68] sm:$0xff]
    %v6784 = vld [vmem:[%s9 + $0x70] sm:$0xff]
    %v6785 = vld [vmem:[%s9 + $0x78] sm:$0xff]
    %v6786 = vld [vmem:[%s9 + $0x80] sm:$0xff]
    %v6787 = vld [vmem:[%s9 + $0x88] sm:$0xff]
    %v6788 = vld [vmem:[%s9 + $0x90] sm:$0xff]
    %v6789 = vld [vmem:[%s9 + $0x98] sm:$0xff]
    %v6790 = vld [vmem:[%s9 + $0xa0] sm:$0xff]
    %v6791 = vld [vmem:[%s9 + $0xa8] sm:$0xff]
    %v6792 = vld [vmem:[%s9 + $0xb0] sm:$0xff]
    %v6793 = vld [vmem:[%s9 + $0xb8] sm:$0xff]
    %v6794 = vld [vmem:[%s9 + $0xc0] sm:$0xff]
    %v6795 = vld [vmem:[%s9 + $0xc8] sm:$0xff]
    %v6796 = vld [vmem:[%s9 + $0xd0] sm:$0xff]
    %v6797 = vld [vmem:[%s9 + $0xd8] sm:$0xff]
    %v6798 = vld [vmem:[%s9 + $0xe0] sm:$0xff]
    %v6799 = vld [vmem:[%s9 + $0xe8] sm:$0xff]
    %v6800 = vld [vmem:[%s9 + $0xf0] sm:$0xff]
    %v6801 = vld [vmem:[%s9 + $0xf8] sm:$0xff]
    %v6802 = vld [vmem:[%s10] sm:$0xff]
    %v6803 = vld [vmem:[%s10 + $0x8] sm:$0xff]
    %v6804 = vld [vmem:[%s10 + $0x10] sm:$0xff]
    %v6805 = vld [vmem:[%s10 + $0x18] sm:$0xff]
    %v6806 = vld [vmem:[%s10 + $0x20] sm:$0xff]
    %v6807 = vld [vmem:[%s10 + $0x28] sm:$0xff]
    %v6808 = vld [vmem:[%s10 + $0x30] sm:$0xff]
    %v6809 = vld [vmem:[%s10 + $0x38] sm:$0xff]
    %v6810 = vld [vmem:[%s10 + $0x40] sm:$0xff]
    %v6811 = vld [vmem:[%s10 + $0x48] sm:$0xff]
    %v6812 = vld [vmem:[%s10 + $0x50] sm:$0xff]
    %v6813 = vld [vmem:[%s10 + $0x58] sm:$0xff]
    %v6814 = vld [vmem:[%s10 + $0x60] sm:$0xff]
    %v6815 = vld [vmem:[%s10 + $0x68] sm:$0xff]
    %v6816 = vld [vmem:[%s10 + $0x70] sm:$0xff]
    %v6817 = vld [vmem:[%s10 + $0x78] sm:$0xff]
    %v6818 = vld [vmem:[#allocation3] sm:$0xff]
    %v6819 = vld [vmem:[#allocation3 + $0x8] sm:$0xff]
    %v6820 = vld [vmem:[#allocation3 + $0x10] sm:$0xff]
    %v6821 = vld [vmem:[#allocation3 + $0x18] sm:$0xff]
    %v6822 = vld [vmem:[#allocation3 + $0x20] sm:$0xff]
    %v6823 = vld [vmem:[#allocation3 + $0x28] sm:$0xff]
    %v6824 = vld [vmem:[#allocation3 + $0x30] sm:$0xff]
    %v6825 = vld [vmem:[#allocation3 + $0x38] sm:$0xff]
    %v6826 = vld [vmem:[#allocation3 + $0x40] sm:$0xff]
    %v6827 = vld [vmem:[#allocation3 + $0x48] sm:$0xff]
    %v6828 = vld [vmem:[#allocation3 + $0x50] sm:$0xff]
    %v6829 = vld [vmem:[#allocation3 + $0x58] sm:$0xff]
    %v6830 = vld [vmem:[#allocation3 + $0x60] sm:$0xff]
    %v6831 = vld [vmem:[#allocation3 + $0x68] sm:$0xff]
    %v6832 = vld [vmem:[#allocation3 + $0x70] sm:$0xff]
    %v6833 = vld [vmem:[#allocation3 + $0x78] sm:$0xff]
    %v6834 = vld [vmem:[#allocation3 + $0x80] sm:$0xff]
    %v6835 = vld [vmem:[#allocation3 + $0x88] sm:$0xff]
    %v6836 = vld [vmem:[#allocation3 + $0x90] sm:$0xff]
    %v6837 = vld [vmem:[#allocation3 + $0x98] sm:$0xff]
    %6839 = vset.pattern.permute.xlu0 0
    %6840 = vperm.xlu0 %6839, %v6802
    %v6841 = vpop.permute.xlu0 %6840
    %6844 = vset.pattern.permute.xlu0 0
    %6845 = vperm.xlu0 %6844, %v6803
    %v6846 = vpop.permute.xlu0 %6845
    %6849 = vset.pattern.permute.xlu0 0
    %6850 = vperm.xlu0 %6849, %v6804
    %v6851 = vpop.permute.xlu0 %6850
    %6854 = vset.pattern.permute.xlu0 0
    %6855 = vperm.xlu0 %6854, %v6805
    %v6856 = vpop.permute.xlu0 %6855
    %6859 = vset.pattern.permute.xlu0 0
    %6860 = vperm.xlu0 %6859, %v6806
    %v6861 = vpop.permute.xlu0 %6860
    %6864 = vset.pattern.permute.xlu0 0
    %6865 = vperm.xlu0 %6864, %v6807
    %v6866 = vpop.permute.xlu0 %6865
    %6869 = vset.pattern.permute.xlu0 0
    %6870 = vperm.xlu0 %6869, %v6808
    %v6871 = vpop.permute.xlu0 %6870
    %6874 = vset.pattern.permute.xlu0 0
    %6875 = vperm.xlu0 %6874, %v6809
    %v6876 = vpop.permute.xlu0 %6875
    %6879 = vset.pattern.permute.xlu0 0
    %6880 = vperm.xlu0 %6879, %v6810
    %v6881 = vpop.permute.xlu0 %6880
    %6884 = vset.pattern.permute.xlu0 0
    %6885 = vperm.xlu0 %6884, %v6811
    %v6886 = vpop.permute.xlu0 %6885
    %6889 = vset.pattern.permute.xlu0 0
    %6890 = vperm.xlu0 %6889, %v6812
    %v6891 = vpop.permute.xlu0 %6890
    %6894 = vset.pattern.permute.xlu0 0
    %6895 = vperm.xlu0 %6894, %v6813
    %v6896 = vpop.permute.xlu0 %6895
    %6899 = vset.pattern.permute.xlu0 0
    %6900 = vperm.xlu0 %6899, %v6814
    %v6901 = vpop.permute.xlu0 %6900
    %6904 = vset.pattern.permute.xlu0 0
    %6905 = vperm.xlu0 %6904, %v6815
    %v6906 = vpop.permute.xlu0 %6905
    %6909 = vset.pattern.permute.xlu0 0
    %6910 = vperm.xlu0 %6909, %v6816
    %v6911 = vpop.permute.xlu0 %6910
    %6914 = vset.pattern.permute.xlu0 0
    %6915 = vperm.xlu0 %6914, %v6817
    %v6916 = vpop.permute.xlu0 %6915
    %v6919 = vsel %vm211, %v6771, 0
    %v6922 = vsel %vm211, %v6773, 0
    %v6925 = vsel %vm211, %v6775, 0
    %v6928 = vsel %vm211, %v6777, 0
    %v6931 = vsel %vm211, %v6779, 0
    %v6934 = vsel %vm211, %v6781, 0
    %v6937 = vsel %vm211, %v6783, 0
    %v6940 = vsel %vm211, %v6785, 0
    %v6943 = vsel %vm211, %v6787, 0
    %v6946 = vsel %vm211, %v6789, 0
    %v6949 = vsel %vm211, %v6791, 0
    %v6952 = vsel %vm211, %v6793, 0
    %v6955 = vsel %vm211, %v6795, 0
    %v6958 = vsel %vm211, %v6797, 0
    %v6961 = vsel %vm211, %v6799, 0
    %v6964 = vsel %vm211, %v6801, 0
    %6966 = vmatprep.subr.mxu0 0.0
    %6967 = vmatpush1.msra.mxu0 %v6818
    %6968 = vmatprep.subr.mxu0 0.0
    %6969 = vmatpush1.msra.mxu0 %v6819
    %6970 = vmatprep.subr.mxu0 0.0
    %6971 = vmatpush1.msra.mxu0 %v6820
    %6972 = vmatprep.subr.mxu0 0.0
    %6973 = vmatpush1.msra.mxu0 %v6821
    %6974 = vmatprep.subr.mxu0 0.0
    %6975 = vmatpush1.msra.mxu0 %v6822
    %6976 = vmatprep.subr.mxu0 0.0
    %6977 = vmatpush1.msra.mxu0 %v6823
    %6978 = vmatprep.subr.mxu0 0.0
    %6979 = vmatpush1.msra.mxu0 %v6824
    %6980 = vmatprep.subr.mxu0 0.0
    %6981 = vmatpush1.msra.mxu0 %v6825
    %6982 = vmatprep.subr.mxu0 0.0
    %6983 = vmatpush1.msra.mxu0 %v6826
    %6984 = vmatprep.subr.mxu0 0.0
    %6985 = vmatpush1.msra.mxu0 %v6827
    %6986 = vmatprep.subr.mxu0 0.0
    %6987 = vmatpush1.msra.mxu0 %v6828
    %6988 = vmatprep.subr.mxu0 0.0
    %6989 = vmatpush1.msra.mxu0 %v6829
    %6990 = vmatprep.subr.mxu0 0.0
    %6991 = vmatpush1.msra.mxu0 %v6830
    %6992 = vmatprep.subr.mxu0 0.0
    %6993 = vmatpush1.msra.mxu0 %v6831
    %6994 = vmatprep.subr.mxu0 0.0
    %6995 = vmatpush1.msra.mxu0 %v6832
    %6996 = vmatprep.subr.mxu0 0.0
    %6997 = vmatpush1.msra.mxu0 %v6833
    %6998 = vmatprep.subr.mxu0 0.0
    %6999 = vmatpush1.msra.mxu0 %v6834
    %7000 = vmatprep.subr.mxu0 0.0
    %7001 = vmatpush1.msra.mxu0 %v6835
    %7002 = vmatprep.subr.mxu0 0.0
    %7003 = vmatpush1.msra.mxu0 %v6836
    %7004 = vmatprep.subr.mxu0 0.0
    %7005 = vmatpush1.msra.mxu0 %v6837
    %7006 = vmatprep.subr.mxu0 0.0
    %7007 = vmatpush1.msra.mxu0 0.0
    %7008 = vmatprep.subr.mxu0 0.0
    %7009 = vmatpush1.msra.mxu0 0.0
    %7010 = vmatprep.subr.mxu0 0.0
    %7011 = vmatpush1.msra.mxu0 0.0
    %7012 = vmatprep.subr.mxu0 0.0
    %7013 = vmatpush1.msra.mxu0 0.0
    %7014 = vmatprep.subr.mxu0 0.0
    %7015 = vmatpush1.msra.mxu0 0.0
    %7016 = vmatprep.subr.mxu0 0.0
    %7017 = vmatpush1.msra.mxu0 0.0
    %7018 = vmatprep.subr.mxu0 0.0
    %7019 = vmatpush1.msra.mxu0 0.0
    %7020 = vmatprep.subr.mxu0 0.0
    %7021 = vmatpush1.msra.mxu0 0.0
    %7022 = vmatprep.subr.mxu0 0.0
    %7023 = vmatpush1.msra.mxu0 0.0
    %7024 = vmatprep.subr.mxu0 0.0
    %7025 = vmatpush1.msra.mxu0 0.0
    %7026 = vmatprep.subr.mxu0 0.0
    %7027 = vmatpush1.msra.mxu0 0.0
    %7028 = vmatprep.subr.mxu0 0.0
    %7029 = vmatpush1.msra.mxu0 0.0
    %7030 = vmatprep.mubr.f32.mxu0 %v6919
    %7031 = vmatmul.mubr.f32.gmra.mrb[0].mxu0 %v6770
    %v7032 = vpop.f32.mrb[0].mxu0
    %v7033 = vadd.f32 %v6841, %v7032
    %v7034 = vpop.f32.mrb[0].mxu0
    %7035 = vmatprep.mubr.f32.mxu0 %v6922
    %7036 = vmatmul.mubr.f32.gmra.mrb[0].mxu0 %v6772
    %v7037 = vpop.f32.mrb[0].mxu0
    %v7038 = vadd.f32 %v6846, %v7037
    %v7039 = vpop.f32.mrb[0].mxu0
    %7040 = vmatprep.mubr.f32.mxu0 %v6925
    %7041 = vmatmul.mubr.f32.gmra.mrb[0].mxu0 %v6774
    %v7042 = vpop.f32.mrb[0].mxu0
    %v7043 = vadd.f32 %v6851, %v7042
    %v7044 = vpop.f32.mrb[0].mxu0
    %7045 = vmatprep.mubr.f32.mxu0 %v6928
    %7046 = vmatmul.mubr.f32.gmra.mrb[0].mxu0 %v6776
    %v7047 = vpop.f32.mrb[0].mxu0
    %v7048 = vadd.f32 %v6856, %v7047
    %v7049 = vpop.f32.mrb[0].mxu0
    %7050 = vmatprep.mubr.f32.mxu0 %v6931
    %7051 = vmatmul.mubr.f32.gmra.mrb[0].mxu0 %v6778
    %v7052 = vpop.f32.mrb[0].mxu0
    %v7053 = vadd.f32 %v6861, %v7052
    %v7054 = vpop.f32.mrb[0].mxu0
    %7055 = vmatprep.mubr.f32.mxu0 %v6934
    %7056 = vmatmul.mubr.f32.gmra.mrb[0].mxu0 %v6780
    %v7057 = vpop.f32.mrb[0].mxu0
    %v7058 = vadd.f32 %v6866, %v7057
    %v7059 = vpop.f32.mrb[0].mxu0
    %7060 = vmatprep.mubr.f32.mxu0 %v6937
    %7061 = vmatmul.mubr.f32.gmra.mrb[0].mxu0 %v6782
    %v7062 = vpop.f32.mrb[0].mxu0
    %v7063 = vadd.f32 %v6871, %v7062
    %v7064 = vpop.f32.mrb[0].mxu0
    %7065 = vmatprep.mubr.f32.mxu0 %v6940
    %7066 = vmatmul.mubr.f32.gmra.mrb[0].mxu0 %v6784
    %v7067 = vpop.f32.mrb[0].mxu0
    %v7068 = vadd.f32 %v6876, %v7067
    %v7069 = vpop.f32.mrb[0].mxu0
    %7070 = vmatprep.mubr.f32.mxu0 %v6943
    %7071 = vmatmul.mubr.f32.gmra.mrb[0].mxu0 %v6786
    %v7072 = vpop.f32.mrb[0].mxu0
    %v7073 = vadd.f32 %v6881, %v7072
    %v7074 = vpop.f32.mrb[0].mxu0
    %7075 = vmatprep.mubr.f32.mxu0 %v6946
    %7076 = vmatmul.mubr.f32.gmra.mrb[0].mxu0 %v6788
    %v7077 = vpop.f32.mrb[0].mxu0
    %v7078 = vadd.f32 %v6886, %v7077
    %v7079 = vpop.f32.mrb[0].mxu0
    %7080 = vmatprep.mubr.f32.mxu0 %v6949
    %7081 = vmatmul.mubr.f32.gmra.mrb[0].mxu0 %v6790
    %v7082 = vpop.f32.mrb[0].mxu0
    %v7083 = vadd.f32 %v6891, %v7082
    %v7084 = vpop.f32.mrb[0].mxu0
    %7085 = vmatprep.mubr.f32.mxu0 %v6952
    %7086 = vmatmul.mubr.f32.gmra.mrb[0].mxu0 %v6792
    %v7087 = vpop.f32.mrb[0].mxu0
    %v7088 = vadd.f32 %v6896, %v7087
    %v7089 = vpop.f32.mrb[0].mxu0
    %7090 = vmatprep.mubr.f32.mxu0 %v6955
    %7091 = vmatmul.mubr.f32.gmra.mrb[0].mxu0 %v6794
    %v7092 = vpop.f32.mrb[0].mxu0
    %v7093 = vadd.f32 %v6901, %v7092
    %v7094 = vpop.f32.mrb[0].mxu0
    %7095 = vmatprep.mubr.f32.mxu0 %v6958
    %7096 = vmatmul.mubr.f32.gmra.mrb[0].mxu0 %v6796
    %v7097 = vpop.f32.mrb[0].mxu0
    %v7098 = vadd.f32 %v6906, %v7097
    %v7099 = vpop.f32.mrb[0].mxu0
    %7100 = vmatprep.mubr.f32.mxu0 %v6961
    %7101 = vmatmul.mubr.f32.gmra.mrb[0].mxu0 %v6798
    %v7102 = vpop.f32.mrb[0].mxu0
    %v7103 = vadd.f32 %v6911, %v7102
    %v7104 = vpop.f32.mrb[0].mxu0
    %7105 = vmatprep.mubr.f32.mxu0 %v6964
    %7106 = vmatmul.mubr.f32.gmra.mrb[0].mxu0 %v6800
    %v7107 = vpop.f32.mrb[0].mxu0
    %v7108 = vadd.f32 %v6916, %v7107
    %v7109 = vpop.f32.mrb[0].mxu0
    %7110 = vdwg.mxu0
    %v7111 = vmax.f32 %v7033, 0.0
    %v7112 = vmax.f32 %v7038, 0.0
    %v7113 = vmax.f32 %v7043, 0.0
    %v7114 = vmax.f32 %v7048, 0.0
    %v7115 = vmax.f32 %v7053, 0.0
    %v7116 = vmax.f32 %v7058, 0.0
    %v7117 = vmax.f32 %v7063, 0.0
    %v7118 = vmax.f32 %v7068, 0.0
    %v7119 = vmax.f32 %v7073, 0.0
    %v7120 = vmax.f32 %v7078, 0.0
    %v7121 = vmax.f32 %v7083, 0.0
    %v7122 = vmax.f32 %v7088, 0.0
    %v7123 = vmax.f32 %v7093, 0.0
    %v7124 = vmax.f32 %v7098, 0.0
    %v7125 = vmax.f32 %v7103, 0.0
    %v7126 = vmax.f32 %v7108, 0.0
    %7127 = vst [vmem:[%s421] sm:$0xff] %v7111
    %7128 = vst [vmem:[%s421 + $0x8] sm:$0xff] %v7112
    %7129 = vst [vmem:[%s421 + $0x10] sm:$0xff] %v7113
    %7130 = vst [vmem:[%s421 + $0x18] sm:$0xff] %v7114
    %7131 = vst [vmem:[%s421 + $0x20] sm:$0xff] %v7115
    %7132 = vst [vmem:[%s421 + $0x28] sm:$0xff] %v7116
    %7133 = vst [vmem:[%s421 + $0x30] sm:$0xff] %v7117
    %7134 = vst [vmem:[%s421 + $0x38] sm:$0xff] %v7118
    %7135 = vst [vmem:[%s421 + $0x40] sm:$0xff] %v7119
    %7136 = vst [vmem:[%s421 + $0x48] sm:$0xff] %v7120
    %7137 = vst [vmem:[%s421 + $0x50] sm:$0xff] %v7121
    %7138 = vst [vmem:[%s421 + $0x58] sm:$0xff] %v7122
    %7139 = vst [vmem:[%s421 + $0x60] sm:$0xff] %v7123
    %7140 = vst [vmem:[%s421 + $0x68] sm:$0xff] %v7124
    %7141 = vst [vmem:[%s421 + $0x70] sm:$0xff] %v7125
    %7142 = vst [vmem:[%s421 + $0x78] sm:$0xff] %v7126
    %v7143 = vld [vmem:[%s5824] sm:$0xff]
    %v7144 = vld [vmem:[%s5824 + $0x8] sm:$0xff]
    %v7145 = vld [vmem:[%s5824 + $0x10] sm:$0xff]
    %v7146 = vld [vmem:[%s5824 + $0x18] sm:$0xff]
    %v7147 = vld [vmem:[%s5824 + $0x20] sm:$0xff]
    %v7148 = vld [vmem:[%s5824 + $0x28] sm:$0xff]
    %v7149 = vld [vmem:[%s5824 + $0x30] sm:$0xff]
    %v7150 = vld [vmem:[%s5824 + $0x38] sm:$0xff]
    %v7151 = vld [vmem:[%s5824 + $0x40] sm:$0xff]
    %v7152 = vld [vmem:[%s5824 + $0x48] sm:$0xff]
    %v7153 = vld [vmem:[%s5824 + $0x50] sm:$0xff]
    %v7154 = vld [vmem:[%s5824 + $0x58] sm:$0xff]
    %v7155 = vld [vmem:[%s5824 + $0x60] sm:$0xff]
    %v7156 = vld [vmem:[%s5824 + $0x68] sm:$0xff]
    %v7157 = vld [vmem:[%s5824 + $0x70] sm:$0xff]
    %v7158 = vld [vmem:[%s5824 + $0x78] sm:$0xff]
    %v7159 = vld [vmem:[%s5824 + $0x80] sm:$0xff]
    %v7160 = vld [vmem:[%s5824 + $0x88] sm:$0xff]
    %v7161 = vld [vmem:[%s5824 + $0x90] sm:$0xff]
    %v7162 = vld [vmem:[%s5824 + $0x98] sm:$0xff]
    %7163 = vmatprep.subr.mxu0 0.0
    %7164 = vmatpush1.msra.mxu0 %v7143
    %7165 = vmatprep.subr.mxu0 0.0
    %7166 = vmatpush1.msra.mxu0 %v7144
    %7167 = vmatprep.subr.mxu0 0.0
    %7168 = vmatpush1.msra.mxu0 %v7145
    %7169 = vmatprep.subr.mxu0 0.0
    %7170 = vmatpush1.msra.mxu0 %v7146
    %7171 = vmatprep.subr.mxu0 0.0
    %7172 = vmatpush1.msra.mxu0 %v7147
    %7173 = vmatprep.subr.mxu0 0.0
    %7174 = vmatpush1.msra.mxu0 %v7148
    %7175 = vmatprep.subr.mxu0 0.0
    %7176 = vmatpush1.msra.mxu0 %v7149
    %7177 = vmatprep.subr.mxu0 0.0
    %7178 = vmatpush1.msra.mxu0 %v7150
    %7179 = vmatprep.subr.mxu0 0.0
    %7180 = vmatpush1.msra.mxu0 %v7151
    %7181 = vmatprep.subr.mxu0 0.0
    %7182 = vmatpush1.msra.mxu0 %v7152
    %7183 = vmatprep.subr.mxu0 0.0
    %7184 = vmatpush1.msra.mxu0 %v7153
    %7185 = vmatprep.subr.mxu0 0.0
    %7186 = vmatpush1.msra.mxu0 %v7154
    %7187 = vmatprep.subr.mxu0 0.0
    %7188 = vmatpush1.msra.mxu0 %v7155
    %7189 = vmatprep.subr.mxu0 0.0
    %7190 = vmatpush1.msra.mxu0 %v7156
    %7191 = vmatprep.subr.mxu0 0.0
    %7192 = vmatpush1.msra.mxu0 %v7157
    %7193 = vmatprep.subr.mxu0 0.0
    %7194 = vmatpush1.msra.mxu0 %v7158
    %7195 = vmatprep.subr.mxu0 0.0
    %7196 = vmatpush1.msra.mxu0 %v7159
    %7197 = vmatprep.subr.mxu0 0.0
    %7198 = vmatpush1.msra.mxu0 %v7160
    %7199 = vmatprep.subr.mxu0 0.0
    %7200 = vmatpush1.msra.mxu0 %v7161
    %7201 = vmatprep.subr.mxu0 0.0
    %7202 = vmatpush1.msra.mxu0 %v7162
    %7203 = vmatprep.subr.mxu0 0.0
    %7204 = vmatpush1.msra.mxu0 0.0
    %7205 = vmatprep.subr.mxu0 0.0
    %7206 = vmatpush1.msra.mxu0 0.0
    %7207 = vmatprep.subr.mxu0 0.0
    %7208 = vmatpush1.msra.mxu0 0.0
    %7209 = vmatprep.subr.mxu0 0.0
    %7210 = vmatpush1.msra.mxu0 0.0
    %7211 = vmatprep.subr.mxu0 0.0
    %7212 = vmatpush1.msra.mxu0 0.0
    %7213 = vmatprep.subr.mxu0 0.0
    %7214 = vmatpush1.msra.mxu0 0.0
    %7215 = vmatprep.subr.mxu0 0.0
    %7216 = vmatpush1.msra.mxu0 0.0
    %7217 = vmatprep.subr.mxu0 0.0
    %7218 = vmatpush1.msra.mxu0 0.0
    %7219 = vmatprep.subr.mxu0 0.0
    %7220 = vmatpush1.msra.mxu0 0.0
    %7221 = vmatprep.subr.mxu0 0.0
    %7222 = vmatpush1.msra.mxu0 0.0
    %7223 = vmatprep.subr.mxu0 0.0
    %7224 = vmatpush1.msra.mxu0 0.0
    %7225 = vmatprep.subr.mxu0 0.0
    %7226 = vmatpush1.msra.mxu0 0.0
    %7227 = vmatprep.mubr.f32.mxu0 %v6919
    %7228 = vmatmul.mubr.f32.gmra.mrb[0].mxu0 %v6770
    %v7229 = vpop.f32.mrb[0].mxu0
    %v7230 = vadd.f32 %v6841, %v7229
    %v7231 = vpop.f32.mrb[0].mxu0
    %7232 = vmatprep.mubr.f32.mxu0 %v6922
    %7233 = vmatmul.mubr.f32.gmra.mrb[0].mxu0 %v6772
    %v7234 = vpop.f32.mrb[0].mxu0
    %v7235 = vadd.f32 %v6846, %v7234
    %v7236 = vpop.f32.mrb[0].mxu0
    %7237 = vmatprep.mubr.f32.mxu0 %v6925
    %7238 = vmatmul.mubr.f32.gmra.mrb[0].mxu0 %v6774
    %v7239 = vpop.f32.mrb[0].mxu0
    %v7240 = vadd.f32 %v6851, %v7239
    %v7241 = vpop.f32.mrb[0].mxu0
    %7242 = vmatprep.mubr.f32.mxu0 %v6928
    %7243 = vmatmul.mubr.f32.gmra.mrb[0].mxu0 %v6776
    %v7244 = vpop.f32.mrb[0].mxu0
    %v7245 = vadd.f32 %v6856, %v7244
    %v7246 = vpop.f32.mrb[0].mxu0
    %7247 = vmatprep.mubr.f32.mxu0 %v6931
    %7248 = vmatmul.mubr.f32.gmra.mrb[0].mxu0 %v6778
    %v7249 = vpop.f32.mrb[0].mxu0
    %v7250 = vadd.f32 %v6861, %v7249
    %v7251 = vpop.f32.mrb[0].mxu0
    %7252 = vmatprep.mubr.f32.mxu0 %v6934
    %7253 = vmatmul.mubr.f32.gmra.mrb[0].mxu0 %v6780
    %v7254 = vpop.f32.mrb[0].mxu0
    %v7255 = vadd.f32 %v6866, %v7254
    %v7256 = vpop.f32.mrb[0].mxu0
    %7257 = vmatprep.mubr.f32.mxu0 %v6937
    %7258 = vmatmul.mubr.f32.gmra.mrb[0].mxu0 %v6782
    %v7259 = vpop.f32.mrb[0].mxu0
    %v7260 = vadd.f32 %v6871, %v7259
    %v7261 = vpop.f32.mrb[0].mxu0
    %7262 = vmatprep.mubr.f32.mxu0 %v6940
    %7263 = vmatmul.mubr.f32.gmra.mrb[0].mxu0 %v6784
    %v7264 = vpop.f32.mrb[0].mxu0
    %v7265 = vadd.f32 %v6876, %v7264
    %v7266 = vpop.f32.mrb[0].mxu0
    %7267 = vmatprep.mubr.f32.mxu0 %v6943
    %7268 = vmatmul.mubr.f32.gmra.mrb[0].mxu0 %v6786
    %v7269 = vpop.f32.mrb[0].mxu0
    %v7270 = vadd.f32 %v6881, %v7269
    %v7271 = vpop.f32.mrb[0].mxu0
    %7272 = vmatprep.mubr.f32.mxu0 %v6946
    %7273 = vmatmul.mubr.f32.gmra.mrb[0].mxu0 %v6788
    %v7274 = vpop.f32.mrb[0].mxu0
    %v7275 = vadd.f32 %v6886, %v7274
    %v7276 = vpop.f32.mrb[0].mxu0
    %7277 = vmatprep.mubr.f32.mxu0 %v6949
    %7278 = vmatmul.mubr.f32.gmra.mrb[0].mxu0 %v6790
    %v7279 = vpop.f32.mrb[0].mxu0
    %v7280 = vadd.f32 %v6891, %v7279
    %v7281 = vpop.f32.mrb[0].mxu0
    %7282 = vmatprep.mubr.f32.mxu0 %v6952
    %7283 = vmatmul.mubr.f32.gmra.mrb[0].mxu0 %v6792
    %v7284 = vpop.f32.mrb[0].mxu0
    %v7285 = vadd.f32 %v6896, %v7284
    %v7286 = vpop.f32.mrb[0].mxu0
    %7287 = vmatprep.mubr.f32.mxu0 %v6955
    %7288 = vmatmul.mubr.f32.gmra.mrb[0].mxu0 %v6794
    %v7289 = vpop.f32.mrb[0].mxu0
    %v7290 = vadd.f32 %v6901, %v7289
    %v7291 = vpop.f32.mrb[0].mxu0
    %7292 = vmatprep.mubr.f32.mxu0 %v6958
    %7293 = vmatmul.mubr.f32.gmra.mrb[0].mxu0 %v6796
    %v7294 = vpop.f32.mrb[0].mxu0
    %v7295 = vadd.f32 %v6906, %v7294
    %v7296 = vpop.f32.mrb[0].mxu0
    %7297 = vmatprep.mubr.f32.mxu0 %v6961
    %7298 = vmatmul.mubr.f32.gmra.mrb[0].mxu0 %v6798
    %v7299 = vpop.f32.mrb[0].mxu0
    %v7300 = vadd.f32 %v6911, %v7299
    %v7301 = vpop.f32.mrb[0].mxu0
    %7302 = vmatprep.mubr.f32.mxu0 %v6964
    %7303 = vmatmul.mubr.f32.gmra.mrb[0].mxu0 %v6800
    %v7304 = vpop.f32.mrb[0].mxu0
    %v7305 = vadd.f32 %v6916, %v7304
    %v7306 = vpop.f32.mrb[0].mxu0
    %7307 = vdwg.mxu0
    %v7308 = vmax.f32 %v7230, 0.0
    %v7309 = vmax.f32 %v7235, 0.0
    %v7310 = vmax.f32 %v7240, 0.0
    %v7311 = vmax.f32 %v7245, 0.0
    %v7312 = vmax.f32 %v7250, 0.0
    %v7313 = vmax.f32 %v7255, 0.0
    %v7314 = vmax.f32 %v7260, 0.0
    %v7315 = vmax.f32 %v7265, 0.0
    %v7316 = vmax.f32 %v7270, 0.0
    %v7317 = vmax.f32 %v7275, 0.0
    %v7318 = vmax.f32 %v7280, 0.0
    %v7319 = vmax.f32 %v7285, 0.0
    %v7320 = vmax.f32 %v7290, 0.0
    %v7321 = vmax.f32 %v7295, 0.0
    %v7322 = vmax.f32 %v7300, 0.0
    %v7323 = vmax.f32 %v7305, 0.0
    %7324 = vst [vmem:[%s620] sm:$0xff] %v7308
    %7325 = vst [vmem:[%s620 + $0x8] sm:$0xff] %v7309
    %7326 = vst [vmem:[%s620 + $0x10] sm:$0xff] %v7310
    %7327 = vst [vmem:[%s620 + $0x18] sm:$0xff] %v7311
    %7328 = vst [vmem:[%s620 + $0x20] sm:$0xff] %v7312
    %7329 = vst [vmem:[%s620 + $0x28] sm:$0xff] %v7313
    %7330 = vst [vmem:[%s620 + $0x30] sm:$0xff] %v7314
    %7331 = vst [vmem:[%s620 + $0x38] sm:$0xff] %v7315
    %7332 = vst [vmem:[%s620 + $0x40] sm:$0xff] %v7316
    %7333 = vst [vmem:[%s620 + $0x48] sm:$0xff] %v7317
    %7334 = vst [vmem:[%s620 + $0x50] sm:$0xff] %v7318
    %7335 = vst [vmem:[%s620 + $0x58] sm:$0xff] %v7319
    %7336 = vst [vmem:[%s620 + $0x60] sm:$0xff] %v7320
    %7337 = vst [vmem:[%s620 + $0x68] sm:$0xff] %v7321
    %7338 = vst [vmem:[%s620 + $0x70] sm:$0xff] %v7322
    %7339 = vst [vmem:[%s620 + $0x78] sm:$0xff] %v7323
    %s7340 = scalar_lea.vmem [#allocation3], 160
    %v7341 = vld [vmem:[%s7340] sm:$0xff]
    %v7342 = vld [vmem:[%s7340 + $0x8] sm:$0xff]
    %v7343 = vld [vmem:[%s7340 + $0x10] sm:$0xff]
    %v7344 = vld [vmem:[%s7340 + $0x18] sm:$0xff]
    %v7345 = vld [vmem:[%s7340 + $0x20] sm:$0xff]
    %v7346 = vld [vmem:[%s7340 + $0x28] sm:$0xff]
    %v7347 = vld [vmem:[%s7340 + $0x30] sm:$0xff]
    %v7348 = vld [vmem:[%s7340 + $0x38] sm:$0xff]
    %v7349 = vld [vmem:[%s7340 + $0x40] sm:$0xff]
    %v7350 = vld [vmem:[%s7340 + $0x48] sm:$0xff]
    %v7351 = vld [vmem:[%s7340 + $0x50] sm:$0xff]
    %v7352 = vld [vmem:[%s7340 + $0x58] sm:$0xff]
    %v7353 = vld [vmem:[%s7340 + $0x60] sm:$0xff]
    %v7354 = vld [vmem:[%s7340 + $0x68] sm:$0xff]
    %v7355 = vld [vmem:[%s7340 + $0x70] sm:$0xff]
    %v7356 = vld [vmem:[%s7340 + $0x78] sm:$0xff]
    %v7357 = vld [vmem:[%s7340 + $0x80] sm:$0xff]
    %v7358 = vld [vmem:[%s7340 + $0x88] sm:$0xff]
    %v7359 = vld [vmem:[%s7340 + $0x90] sm:$0xff]
    %v7360 = vld [vmem:[%s7340 + $0x98] sm:$0xff]
    %7361 = vmatprep.subr.mxu0 0.0
    %7362 = vmatpush1.msra.mxu0 %v7341
    %7363 = vmatprep.subr.mxu0 0.0
    %7364 = vmatpush1.msra.mxu0 %v7342
    %7365 = vmatprep.subr.mxu0 0.0
    %7366 = vmatpush1.msra.mxu0 %v7343
    %7367 = vmatprep.subr.mxu0 0.0
    %7368 = vmatpush1.msra.mxu0 %v7344
    %7369 = vmatprep.subr.mxu0 0.0
    %7370 = vmatpush1.msra.mxu0 %v7345
    %7371 = vmatprep.subr.mxu0 0.0
    %7372 = vmatpush1.msra.mxu0 %v7346
    %7373 = vmatprep.subr.mxu0 0.0
    %7374 = vmatpush1.msra.mxu0 %v7347
    %7375 = vmatprep.subr.mxu0 0.0
    %7376 = vmatpush1.msra.mxu0 %v7348
    %7377 = vmatprep.subr.mxu0 0.0
    %7378 = vmatpush1.msra.mxu0 %v7349
    %7379 = vmatprep.subr.mxu0 0.0
    %7380 = vmatpush1.msra.mxu0 %v7350
    %7381 = vmatprep.subr.mxu0 0.0
    %7382 = vmatpush1.msra.mxu0 %v7351
    %7383 = vmatprep.subr.mxu0 0.0
    %7384 = vmatpush1.msra.mxu0 %v7352
    %7385 = vmatprep.subr.mxu0 0.0
    %7386 = vmatpush1.msra.mxu0 %v7353
    %7387 = vmatprep.subr.mxu0 0.0
    %7388 = vmatpush1.msra.mxu0 %v7354
    %7389 = vmatprep.subr.mxu0 0.0
    %7390 = vmatpush1.msra.mxu0 %v7355
    %7391 = vmatprep.subr.mxu0 0.0
    %7392 = vmatpush1.msra.mxu0 %v7356
    %7393 = vmatprep.subr.mxu0 0.0
    %7394 = vmatpush1.msra.mxu0 %v7357
    %7395 = vmatprep.subr.mxu0 0.0
    %7396 = vmatpush1.msra.mxu0 %v7358
    %7397 = vmatprep.subr.mxu0 0.0
    %7398 = vmatpush1.msra.mxu0 %v7359
    %7399 = vmatprep.subr.mxu0 0.0
    %7400 = vmatpush1.msra.mxu0 %v7360
    %7401 = vmatprep.subr.mxu0 0.0
    %7402 = vmatpush1.msra.mxu0 0.0
    %7403 = vmatprep.subr.mxu0 0.0
    %7404 = vmatpush1.msra.mxu0 0.0
    %7405 = vmatprep.subr.mxu0 0.0
    %7406 = vmatpush1.msra.mxu0 0.0
    %7407 = vmatprep.subr.mxu0 0.0
    %7408 = vmatpush1.msra.mxu0 0.0
    %7409 = vmatprep.subr.mxu0 0.0
    %7410 = vmatpush1.msra.mxu0 0.0
    %7411 = vmatprep.subr.mxu0 0.0
    %7412 = vmatpush1.msra.mxu0 0.0
    %7413 = vmatprep.subr.mxu0 0.0
    %7414 = vmatpush1.msra.mxu0 0.0
    %7415 = vmatprep.subr.mxu0 0.0
    %7416 = vmatpush1.msra.mxu0 0.0
    %7417 = vmatprep.subr.mxu0 0.0
    %7418 = vmatpush1.msra.mxu0 0.0
    %7419 = vmatprep.subr.mxu0 0.0
    %7420 = vmatpush1.msra.mxu0 0.0
    %7421 = vmatprep.subr.mxu0 0.0
    %7422 = vmatpush1.msra.mxu0 0.0
    %7423 = vmatprep.subr.mxu0 0.0
    %7424 = vmatpush1.msra.mxu0 0.0
    %7425 = vmatprep.mubr.f32.mxu0 %v6919
    %7426 = vmatmul.mubr.f32.gmra.mrb[0].mxu0 %v6770
    %v7427 = vpop.f32.mrb[0].mxu0
    %v7428 = vadd.f32 %v6841, %v7427
    %v7429 = vpop.f32.mrb[0].mxu0
    %7430 = vmatprep.mubr.f32.mxu0 %v6922
    %7431 = vmatmul.mubr.f32.gmra.mrb[0].mxu0 %v6772
    %v7432 = vpop.f32.mrb[0].mxu0
    %v7433 = vadd.f32 %v6846, %v7432
    %v7434 = vpop.f32.mrb[0].mxu0
    %7435 = vmatprep.mubr.f32.mxu0 %v6925
    %7436 = vmatmul.mubr.f32.gmra.mrb[0].mxu0 %v6774
    %v7437 = vpop.f32.mrb[0].mxu0
    %v7438 = vadd.f32 %v6851, %v7437
    %v7439 = vpop.f32.mrb[0].mxu0
    %7440 = vmatprep.mubr.f32.mxu0 %v6928
    %7441 = vmatmul.mubr.f32.gmra.mrb[0].mxu0 %v6776
    %v7442 = vpop.f32.mrb[0].mxu0
    %v7443 = vadd.f32 %v6856, %v7442
    %v7444 = vpop.f32.mrb[0].mxu0
    %7445 = vmatprep.mubr.f32.mxu0 %v6931
    %7446 = vmatmul.mubr.f32.gmra.mrb[0].mxu0 %v6778
    %v7447 = vpop.f32.mrb[0].mxu0
    %v7448 = vadd.f32 %v6861, %v7447
    %v7449 = vpop.f32.mrb[0].mxu0
    %7450 = vmatprep.mubr.f32.mxu0 %v6934
    %7451 = vmatmul.mubr.f32.gmra.mrb[0].mxu0 %v6780
    %v7452 = vpop.f32.mrb[0].mxu0
    %v7453 = vadd.f32 %v6866, %v7452
    %v7454 = vpop.f32.mrb[0].mxu0
    %7455 = vmatprep.mubr.f32.mxu0 %v6937
    %7456 = vmatmul.mubr.f32.gmra.mrb[0].mxu0 %v6782
    %v7457 = vpop.f32.mrb[0].mxu0
    %v7458 = vadd.f32 %v6871, %v7457
    %v7459 = vpop.f32.mrb[0].mxu0
    %7460 = vmatprep.mubr.f32.mxu0 %v6940
    %7461 = vmatmul.mubr.f32.gmra.mrb[0].mxu0 %v6784
    %v7462 = vpop.f32.mrb[0].mxu0
    %v7463 = vadd.f32 %v6876, %v7462
    %v7464 = vpop.f32.mrb[0].mxu0
    %7465 = vmatprep.mubr.f32.mxu0 %v6943
    %7466 = vmatmul.mubr.f32.gmra.mrb[0].mxu0 %v6786
    %v7467 = vpop.f32.mrb[0].mxu0
    %v7468 = vadd.f32 %v6881, %v7467
    %v7469 = vpop.f32.mrb[0].mxu0
    %7470 = vmatprep.mubr.f32.mxu0 %v6946
    %7471 = vmatmul.mubr.f32.gmra.mrb[0].mxu0 %v6788
    %v7472 = vpop.f32.mrb[0].mxu0
    %v7473 = vadd.f32 %v6886, %v7472
    %v7474 = vpop.f32.mrb[0].mxu0
    %7475 = vmatprep.mubr.f32.mxu0 %v6949
    %7476 = vmatmul.mubr.f32.gmra.mrb[0].mxu0 %v6790
    %v7477 = vpop.f32.mrb[0].mxu0
    %v7478 = vadd.f32 %v6891, %v7477
    %v7479 = vpop.f32.mrb[0].mxu0
    %7480 = vmatprep.mubr.f32.mxu0 %v6952
    %7481 = vmatmul.mubr.f32.gmra.mrb[0].mxu0 %v6792
    %v7482 = vpop.f32.mrb[0].mxu0
    %v7483 = vadd.f32 %v6896, %v7482
    %v7484 = vpop.f32.mrb[0].mxu0
    %7485 = vmatprep.mubr.f32.mxu0 %v6955
    %7486 = vmatmul.mubr.f32.gmra.mrb[0].mxu0 %v6794
    %v7487 = vpop.f32.mrb[0].mxu0
    %v7488 = vadd.f32 %v6901, %v7487
    %v7489 = vpop.f32.mrb[0].mxu0
    %7490 = vmatprep.mubr.f32.mxu0 %v6958
    %7491 = vmatmul.mubr.f32.gmra.mrb[0].mxu0 %v6796
    %v7492 = vpop.f32.mrb[0].mxu0
    %v7493 = vadd.f32 %v6906, %v7492
    %v7494 = vpop.f32.mrb[0].mxu0
    %7495 = vmatprep.mubr.f32.mxu0 %v6961
    %7496 = vmatmul.mubr.f32.gmra.mrb[0].mxu0 %v6798
    %v7497 = vpop.f32.mrb[0].mxu0
    %v7498 = vadd.f32 %v6911, %v7497
    %v7499 = vpop.f32.mrb[0].mxu0
    %7500 = vmatprep.mubr.f32.mxu0 %v6964
    %7501 = vmatmul.mubr.f32.gmra.mrb[0].mxu0 %v6800
    %v7502 = vpop.f32.mrb[0].mxu0
    %v7503 = vadd.f32 %v6916, %v7502
    %v7504 = vpop.f32.mrb[0].mxu0
    %7505 = vdwg.mxu0
    %v7506 = vmax.f32 %v7428, 0.0
    %v7507 = vmax.f32 %v7433, 0.0
    %v7508 = vmax.f32 %v7438, 0.0
    %v7509 = vmax.f32 %v7443, 0.0
    %v7510 = vmax.f32 %v7448, 0.0
    %v7511 = vmax.f32 %v7453, 0.0
    %v7512 = vmax.f32 %v7458, 0.0
    %v7513 = vmax.f32 %v7463, 0.0
    %v7514 = vmax.f32 %v7468, 0.0
    %v7515 = vmax.f32 %v7473, 0.0
    %v7516 = vmax.f32 %v7478, 0.0
    %v7517 = vmax.f32 %v7483, 0.0
    %v7518 = vmax.f32 %v7488, 0.0
    %v7519 = vmax.f32 %v7493, 0.0
    %v7520 = vmax.f32 %v7498, 0.0
    %v7521 = vmax.f32 %v7503, 0.0
    %s7522 = scalar_lea.vmem [#allocation2], 176
    %7523 = vst [vmem:[%s7522] sm:$0xff] %v7506
    %7524 = vst [vmem:[%s7522 + $0x8] sm:$0xff] %v7507
    %7525 = vst [vmem:[%s7522 + $0x10] sm:$0xff] %v7508
    %7526 = vst [vmem:[%s7522 + $0x18] sm:$0xff] %v7509
    %7527 = vst [vmem:[%s7522 + $0x20] sm:$0xff] %v7510
    %7528 = vst [vmem:[%s7522 + $0x28] sm:$0xff] %v7511
    %7529 = vst [vmem:[%s7522 + $0x30] sm:$0xff] %v7512
    %7530 = vst [vmem:[%s7522 + $0x38] sm:$0xff] %v7513
    %7531 = vst [vmem:[%s7522 + $0x40] sm:$0xff] %v7514
    %7532 = vst [vmem:[%s7522 + $0x48] sm:$0xff] %v7515
    %7533 = vst [vmem:[%s7522 + $0x50] sm:$0xff] %v7516
    %7534 = vst [vmem:[%s7522 + $0x58] sm:$0xff] %v7517
    %7535 = vst [vmem:[%s7522 + $0x60] sm:$0xff] %v7518
    %7536 = vst [vmem:[%s7522 + $0x68] sm:$0xff] %v7519
    %7537 = vst [vmem:[%s7522 + $0x70] sm:$0xff] %v7520
    %7538 = vst [vmem:[%s7522 + $0x78] sm:$0xff] %v7521
    %7539 = vst [vmem:[#allocation2] sm:$0xff] 0.0
    %7540 = vst [vmem:[#allocation2 + $0x8] sm:$0xff] 0.0
    %s7541 = scalar_lea.vmem [#allocation2], 304
    %7542 = vst [vmem:[%s7541] sm:$0xff] 0.0
    %7543 = vst [vmem:[%s7541 + $0x8] sm:$0xff] 0.0
    %v7544 = vld [vmem:[%s11] sm:$0xff]
    %v7545 = vld [vmem:[%s11 + $0x8] sm:$0xff]
    %v7546 = vld [vmem:[%s11 + $0x10] sm:$0xff]
    %v7547 = vld [vmem:[%s11 + $0x18] sm:$0xff]
    %v7548 = vld [vmem:[%s11 + $0x20] sm:$0xff]
    %v7549 = vld [vmem:[%s11 + $0x28] sm:$0xff]
    %v7550 = vld [vmem:[%s11 + $0x30] sm:$0xff]
    %v7551 = vld [vmem:[%s11 + $0x38] sm:$0xff]
    %v7552 = vld [vmem:[%s11 + $0x40] sm:$0xff]
    %v7553 = vld [vmem:[%s11 + $0x48] sm:$0xff]
    %v7554 = vld [vmem:[%s11 + $0x50] sm:$0xff]
    %v7555 = vld [vmem:[%s11 + $0x58] sm:$0xff]
    %v7556 = vld [vmem:[%s11 + $0x60] sm:$0xff]
    %v7557 = vld [vmem:[%s11 + $0x68] sm:$0xff]
    %v7558 = vld [vmem:[%s11 + $0x70] sm:$0xff]
    %v7559 = vld [vmem:[%s11 + $0x78] sm:$0xff]
    %v7560 = vld [vmem:[%s11 + $0x80] sm:$0xff]
    %v7561 = vld [vmem:[%s11 + $0x88] sm:$0xff]
    %v7562 = vld [vmem:[%s11 + $0x90] sm:$0xff]
    %v7563 = vld [vmem:[%s11 + $0x98] sm:$0xff]
    %v7564 = vld [vmem:[%s11 + $0xa0] sm:$0xff]
    %v7565 = vld [vmem:[%s11 + $0xa8] sm:$0xff]
    %v7566 = vld [vmem:[%s11 + $0xb0] sm:$0xff]
    %v7567 = vld [vmem:[%s11 + $0xb8] sm:$0xff]
    %v7568 = vld [vmem:[%s11 + $0xc0] sm:$0xff]
    %v7569 = vld [vmem:[%s11 + $0xc8] sm:$0xff]
    %v7570 = vld [vmem:[%s11 + $0xd0] sm:$0xff]
    %v7571 = vld [vmem:[%s11 + $0xd8] sm:$0xff]
    %v7572 = vld [vmem:[%s11 + $0xe0] sm:$0xff]
    %v7573 = vld [vmem:[%s11 + $0xe8] sm:$0xff]
    %v7574 = vld [vmem:[%s11 + $0xf0] sm:$0xff]
    %v7575 = vld [vmem:[%s11 + $0xf8] sm:$0xff]
    %v7576 = vld [vmem:[%s12] sm:$0xff]
    %v7577 = vld [vmem:[%s12 + $0x8] sm:$0xff]
    %v7578 = vld [vmem:[%s12 + $0x10] sm:$0xff]
    %v7579 = vld [vmem:[%s12 + $0x18] sm:$0xff]
    %v7580 = vld [vmem:[%s12 + $0x20] sm:$0xff]
    %v7581 = vld [vmem:[%s12 + $0x28] sm:$0xff]
    %v7582 = vld [vmem:[%s12 + $0x30] sm:$0xff]
    %v7583 = vld [vmem:[%s12 + $0x38] sm:$0xff]
    %v7584 = vld [vmem:[%s12 + $0x40] sm:$0xff]
    %v7585 = vld [vmem:[%s12 + $0x48] sm:$0xff]
    %v7586 = vld [vmem:[%s12 + $0x50] sm:$0xff]
    %v7587 = vld [vmem:[%s12 + $0x58] sm:$0xff]
    %v7588 = vld [vmem:[%s12 + $0x60] sm:$0xff]
    %v7589 = vld [vmem:[%s12 + $0x68] sm:$0xff]
    %v7590 = vld [vmem:[%s12 + $0x70] sm:$0xff]
    %v7591 = vld [vmem:[%s12 + $0x78] sm:$0xff]
    %v7592 = vld [vmem:[#allocation2] sm:$0xff]
    %v7593 = vld [vmem:[#allocation2 + $0x8] sm:$0xff]
    %v7594 = vld [vmem:[#allocation2 + $0x10] sm:$0xff]
    %v7595 = vld [vmem:[#allocation2 + $0x18] sm:$0xff]
    %v7596 = vld [vmem:[#allocation2 + $0x20] sm:$0xff]
    %v7597 = vld [vmem:[#allocation2 + $0x28] sm:$0xff]
    %v7598 = vld [vmem:[#allocation2 + $0x30] sm:$0xff]
    %v7599 = vld [vmem:[#allocation2 + $0x38] sm:$0xff]
    %v7600 = vld [vmem:[#allocation2 + $0x40] sm:$0xff]
    %v7601 = vld [vmem:[#allocation2 + $0x48] sm:$0xff]
    %v7602 = vld [vmem:[#allocation2 + $0x50] sm:$0xff]
    %v7603 = vld [vmem:[#allocation2 + $0x58] sm:$0xff]
    %v7604 = vld [vmem:[#allocation2 + $0x60] sm:$0xff]
    %v7605 = vld [vmem:[#allocation2 + $0x68] sm:$0xff]
    %v7606 = vld [vmem:[#allocation2 + $0x70] sm:$0xff]
    %v7607 = vld [vmem:[#allocation2 + $0x78] sm:$0xff]
    %v7608 = vld [vmem:[#allocation2 + $0x80] sm:$0xff]
    %v7609 = vld [vmem:[#allocation2 + $0x88] sm:$0xff]
    %v7610 = vld [vmem:[#allocation2 + $0x90] sm:$0xff]
    %v7611 = vld [vmem:[#allocation2 + $0x98] sm:$0xff]
    %7613 = vset.pattern.permute.xlu0 0
    %7614 = vperm.xlu0 %7613, %v7576
    %v7615 = vpop.permute.xlu0 %7614
    %7618 = vset.pattern.permute.xlu0 0
    %7619 = vperm.xlu0 %7618, %v7577
    %v7620 = vpop.permute.xlu0 %7619
    %7623 = vset.pattern.permute.xlu0 0
    %7624 = vperm.xlu0 %7623, %v7578
    %v7625 = vpop.permute.xlu0 %7624
    %7628 = vset.pattern.permute.xlu0 0
    %7629 = vperm.xlu0 %7628, %v7579
    %v7630 = vpop.permute.xlu0 %7629
    %7633 = vset.pattern.permute.xlu0 0
    %7634 = vperm.xlu0 %7633, %v7580
    %v7635 = vpop.permute.xlu0 %7634
    %7638 = vset.pattern.permute.xlu0 0
    %7639 = vperm.xlu0 %7638, %v7581
    %v7640 = vpop.permute.xlu0 %7639
    %7643 = vset.pattern.permute.xlu0 0
    %7644 = vperm.xlu0 %7643, %v7582
    %v7645 = vpop.permute.xlu0 %7644
    %7648 = vset.pattern.permute.xlu0 0
    %7649 = vperm.xlu0 %7648, %v7583
    %v7650 = vpop.permute.xlu0 %7649
    %7653 = vset.pattern.permute.xlu0 0
    %7654 = vperm.xlu0 %7653, %v7584
    %v7655 = vpop.permute.xlu0 %7654
    %7658 = vset.pattern.permute.xlu0 0
    %7659 = vperm.xlu0 %7658, %v7585
    %v7660 = vpop.permute.xlu0 %7659
    %7663 = vset.pattern.permute.xlu0 0
    %7664 = vperm.xlu0 %7663, %v7586
    %v7665 = vpop.permute.xlu0 %7664
    %7668 = vset.pattern.permute.xlu0 0
    %7669 = vperm.xlu0 %7668, %v7587
    %v7670 = vpop.permute.xlu0 %7669
    %7673 = vset.pattern.permute.xlu0 0
    %7674 = vperm.xlu0 %7673, %v7588
    %v7675 = vpop.permute.xlu0 %7674
    %7678 = vset.pattern.permute.xlu0 0
    %7679 = vperm.xlu0 %7678, %v7589
    %v7680 = vpop.permute.xlu0 %7679
    %7683 = vset.pattern.permute.xlu0 0
    %7684 = vperm.xlu0 %7683, %v7590
    %v7685 = vpop.permute.xlu0 %7684
    %7688 = vset.pattern.permute.xlu0 0
    %7689 = vperm.xlu0 %7688, %v7591
    %v7690 = vpop.permute.xlu0 %7689
    %v7693 = vsel %vm211, %v7545, 0
    %v7696 = vsel %vm211, %v7547, 0
    %v7699 = vsel %vm211, %v7549, 0
    %v7702 = vsel %vm211, %v7551, 0
    %v7705 = vsel %vm211, %v7553, 0
    %v7708 = vsel %vm211, %v7555, 0
    %v7711 = vsel %vm211, %v7557, 0
    %v7714 = vsel %vm211, %v7559, 0
    %v7717 = vsel %vm211, %v7561, 0
    %v7720 = vsel %vm211, %v7563, 0
    %v7723 = vsel %vm211, %v7565, 0
    %v7726 = vsel %vm211, %v7567, 0
    %v7729 = vsel %vm211, %v7569, 0
    %v7732 = vsel %vm211, %v7571, 0
    %v7735 = vsel %vm211, %v7573, 0
    %v7738 = vsel %vm211, %v7575, 0
    %7740 = vmatprep.subr.mxu0 0.0
    %7741 = vmatpush1.msra.mxu0 %v7592
    %7742 = vmatprep.subr.mxu0 0.0
    %7743 = vmatpush1.msra.mxu0 %v7593
    %7744 = vmatprep.subr.mxu0 0.0
    %7745 = vmatpush1.msra.mxu0 %v7594
    %7746 = vmatprep.subr.mxu0 0.0
    %7747 = vmatpush1.msra.mxu0 %v7595
    %7748 = vmatprep.subr.mxu0 0.0
    %7749 = vmatpush1.msra.mxu0 %v7596
    %7750 = vmatprep.subr.mxu0 0.0
    %7751 = vmatpush1.msra.mxu0 %v7597
    %7752 = vmatprep.subr.mxu0 0.0
    %7753 = vmatpush1.msra.mxu0 %v7598
    %7754 = vmatprep.subr.mxu0 0.0
    %7755 = vmatpush1.msra.mxu0 %v7599
    %7756 = vmatprep.subr.mxu0 0.0
    %7757 = vmatpush1.msra.mxu0 %v7600
    %7758 = vmatprep.subr.mxu0 0.0
    %7759 = vmatpush1.msra.mxu0 %v7601
    %7760 = vmatprep.subr.mxu0 0.0
    %7761 = vmatpush1.msra.mxu0 %v7602
    %7762 = vmatprep.subr.mxu0 0.0
    %7763 = vmatpush1.msra.mxu0 %v7603
    %7764 = vmatprep.subr.mxu0 0.0
    %7765 = vmatpush1.msra.mxu0 %v7604
    %7766 = vmatprep.subr.mxu0 0.0
    %7767 = vmatpush1.msra.mxu0 %v7605
    %7768 = vmatprep.subr.mxu0 0.0
    %7769 = vmatpush1.msra.mxu0 %v7606
    %7770 = vmatprep.subr.mxu0 0.0
    %7771 = vmatpush1.msra.mxu0 %v7607
    %7772 = vmatprep.subr.mxu0 0.0
    %7773 = vmatpush1.msra.mxu0 %v7608
    %7774 = vmatprep.subr.mxu0 0.0
    %7775 = vmatpush1.msra.mxu0 %v7609
    %7776 = vmatprep.subr.mxu0 0.0
    %7777 = vmatpush1.msra.mxu0 %v7610
    %7778 = vmatprep.subr.mxu0 0.0
    %7779 = vmatpush1.msra.mxu0 %v7611
    %7780 = vmatprep.subr.mxu0 0.0
    %7781 = vmatpush1.msra.mxu0 0.0
    %7782 = vmatprep.subr.mxu0 0.0
    %7783 = vmatpush1.msra.mxu0 0.0
    %7784 = vmatprep.subr.mxu0 0.0
    %7785 = vmatpush1.msra.mxu0 0.0
    %7786 = vmatprep.subr.mxu0 0.0
    %7787 = vmatpush1.msra.mxu0 0.0
    %7788 = vmatprep.subr.mxu0 0.0
    %7789 = vmatpush1.msra.mxu0 0.0
    %7790 = vmatprep.subr.mxu0 0.0
    %7791 = vmatpush1.msra.mxu0 0.0
    %7792 = vmatprep.subr.mxu0 0.0
    %7793 = vmatpush1.msra.mxu0 0.0
    %7794 = vmatprep.subr.mxu0 0.0
    %7795 = vmatpush1.msra.mxu0 0.0
    %7796 = vmatprep.subr.mxu0 0.0
    %7797 = vmatpush1.msra.mxu0 0.0
    %7798 = vmatprep.subr.mxu0 0.0
    %7799 = vmatpush1.msra.mxu0 0.0
    %7800 = vmatprep.subr.mxu0 0.0
    %7801 = vmatpush1.msra.mxu0 0.0
    %7802 = vmatprep.subr.mxu0 0.0
    %7803 = vmatpush1.msra.mxu0 0.0
    %7804 = vmatprep.mubr.f32.mxu0 %v7693
    %7805 = vmatmul.mubr.f32.gmra.mrb[0].mxu0 %v7544
    %v7806 = vpop.f32.mrb[0].mxu0
    %v7807 = vadd.f32 %v7615, %v7806
    %v7808 = vpop.f32.mrb[0].mxu0
    %7809 = vmatprep.mubr.f32.mxu0 %v7696
    %7810 = vmatmul.mubr.f32.gmra.mrb[0].mxu0 %v7546
    %v7811 = vpop.f32.mrb[0].mxu0
    %v7812 = vadd.f32 %v7620, %v7811
    %v7813 = vpop.f32.mrb[0].mxu0
    %7814 = vmatprep.mubr.f32.mxu0 %v7699
    %7815 = vmatmul.mubr.f32.gmra.mrb[0].mxu0 %v7548
    %v7816 = vpop.f32.mrb[0].mxu0
    %v7817 = vadd.f32 %v7625, %v7816
    %v7818 = vpop.f32.mrb[0].mxu0
    %7819 = vmatprep.mubr.f32.mxu0 %v7702
    %7820 = vmatmul.mubr.f32.gmra.mrb[0].mxu0 %v7550
    %v7821 = vpop.f32.mrb[0].mxu0
    %v7822 = vadd.f32 %v7630, %v7821
    %v7823 = vpop.f32.mrb[0].mxu0
    %7824 = vmatprep.mubr.f32.mxu0 %v7705
    %7825 = vmatmul.mubr.f32.gmra.mrb[0].mxu0 %v7552
    %v7826 = vpop.f32.mrb[0].mxu0
    %v7827 = vadd.f32 %v7635, %v7826
    %v7828 = vpop.f32.mrb[0].mxu0
    %7829 = vmatprep.mubr.f32.mxu0 %v7708
    %7830 = vmatmul.mubr.f32.gmra.mrb[0].mxu0 %v7554
    %v7831 = vpop.f32.mrb[0].mxu0
    %v7832 = vadd.f32 %v7640, %v7831
    %v7833 = vpop.f32.mrb[0].mxu0
    %7834 = vmatprep.mubr.f32.mxu0 %v7711
    %7835 = vmatmul.mubr.f32.gmra.mrb[0].mxu0 %v7556
    %v7836 = vpop.f32.mrb[0].mxu0
    %v7837 = vadd.f32 %v7645, %v7836
    %v7838 = vpop.f32.mrb[0].mxu0
    %7839 = vmatprep.mubr.f32.mxu0 %v7714
    %7840 = vmatmul.mubr.f32.gmra.mrb[0].mxu0 %v7558
    %v7841 = vpop.f32.mrb[0].mxu0
    %v7842 = vadd.f32 %v7650, %v7841
    %v7843 = vpop.f32.mrb[0].mxu0
    %7844 = vmatprep.mubr.f32.mxu0 %v7717
    %7845 = vmatmul.mubr.f32.gmra.mrb[0].mxu0 %v7560
    %v7846 = vpop.f32.mrb[0].mxu0
    %v7847 = vadd.f32 %v7655, %v7846
    %v7848 = vpop.f32.mrb[0].mxu0
    %7849 = vmatprep.mubr.f32.mxu0 %v7720
    %7850 = vmatmul.mubr.f32.gmra.mrb[0].mxu0 %v7562
    %v7851 = vpop.f32.mrb[0].mxu0
    %v7852 = vadd.f32 %v7660, %v7851
    %v7853 = vpop.f32.mrb[0].mxu0
    %7854 = vmatprep.mubr.f32.mxu0 %v7723
    %7855 = vmatmul.mubr.f32.gmra.mrb[0].mxu0 %v7564
    %v7856 = vpop.f32.mrb[0].mxu0
    %v7857 = vadd.f32 %v7665, %v7856
    %v7858 = vpop.f32.mrb[0].mxu0
    %7859 = vmatprep.mubr.f32.mxu0 %v7726
    %7860 = vmatmul.mubr.f32.gmra.mrb[0].mxu0 %v7566
    %v7861 = vpop.f32.mrb[0].mxu0
    %v7862 = vadd.f32 %v7670, %v7861
    %v7863 = vpop.f32.mrb[0].mxu0
    %7864 = vmatprep.mubr.f32.mxu0 %v7729
    %7865 = vmatmul.mubr.f32.gmra.mrb[0].mxu0 %v7568
    %v7866 = vpop.f32.mrb[0].mxu0
    %v7867 = vadd.f32 %v7675, %v7866
    %v7868 = vpop.f32.mrb[0].mxu0
    %7869 = vmatprep.mubr.f32.mxu0 %v7732
    %7870 = vmatmul.mubr.f32.gmra.mrb[0].mxu0 %v7570
    %v7871 = vpop.f32.mrb[0].mxu0
    %v7872 = vadd.f32 %v7680, %v7871
    %v7873 = vpop.f32.mrb[0].mxu0
    %7874 = vmatprep.mubr.f32.mxu0 %v7735
    %7875 = vmatmul.mubr.f32.gmra.mrb[0].mxu0 %v7572
    %v7876 = vpop.f32.mrb[0].mxu0
    %v7877 = vadd.f32 %v7685, %v7876
    %v7878 = vpop.f32.mrb[0].mxu0
    %7879 = vmatprep.mubr.f32.mxu0 %v7738
    %7880 = vmatmul.mubr.f32.gmra.mrb[0].mxu0 %v7574
    %v7881 = vpop.f32.mrb[0].mxu0
    %v7882 = vadd.f32 %v7690, %v7881
    %v7883 = vpop.f32.mrb[0].mxu0
    %7884 = vdwg.mxu0
    %v7885 = vmax.f32 %v7807, 0.0
    %v7886 = vmax.f32 %v7812, 0.0
    %v7887 = vmax.f32 %v7817, 0.0
    %v7888 = vmax.f32 %v7822, 0.0
    %v7889 = vmax.f32 %v7827, 0.0
    %v7890 = vmax.f32 %v7832, 0.0
    %v7891 = vmax.f32 %v7837, 0.0
    %v7892 = vmax.f32 %v7842, 0.0
    %v7893 = vmax.f32 %v7847, 0.0
    %v7894 = vmax.f32 %v7852, 0.0
    %v7895 = vmax.f32 %v7857, 0.0
    %v7896 = vmax.f32 %v7862, 0.0
    %v7897 = vmax.f32 %v7867, 0.0
    %v7898 = vmax.f32 %v7872, 0.0
    %v7899 = vmax.f32 %v7877, 0.0
    %v7900 = vmax.f32 %v7882, 0.0
    %7901 = vst [vmem:[%s2392] sm:$0xff] %v7885
    %7902 = vst [vmem:[%s2392 + $0x8] sm:$0xff] %v7886
    %7903 = vst [vmem:[%s2392 + $0x10] sm:$0xff] %v7887
    %7904 = vst [vmem:[%s2392 + $0x18] sm:$0xff] %v7888
    %7905 = vst [vmem:[%s2392 + $0x20] sm:$0xff] %v7889
    %7906 = vst [vmem:[%s2392 + $0x28] sm:$0xff] %v7890
    %7907 = vst [vmem:[%s2392 + $0x30] sm:$0xff] %v7891
    %7908 = vst [vmem:[%s2392 + $0x38] sm:$0xff] %v7892
    %7909 = vst [vmem:[%s2392 + $0x40] sm:$0xff] %v7893
    %7910 = vst [vmem:[%s2392 + $0x48] sm:$0xff] %v7894
    %7911 = vst [vmem:[%s2392 + $0x50] sm:$0xff] %v7895
    %7912 = vst [vmem:[%s2392 + $0x58] sm:$0xff] %v7896
    %7913 = vst [vmem:[%s2392 + $0x60] sm:$0xff] %v7897
    %7914 = vst [vmem:[%s2392 + $0x68] sm:$0xff] %v7898
    %7915 = vst [vmem:[%s2392 + $0x70] sm:$0xff] %v7899
    %7916 = vst [vmem:[%s2392 + $0x78] sm:$0xff] %v7900
    %v7917 = vld [vmem:[%s2409] sm:$0xff]
    %v7918 = vld [vmem:[%s2409 + $0x8] sm:$0xff]
    %v7919 = vld [vmem:[%s2409 + $0x10] sm:$0xff]
    %v7920 = vld [vmem:[%s2409 + $0x18] sm:$0xff]
    %v7921 = vld [vmem:[%s2409 + $0x20] sm:$0xff]
    %v7922 = vld [vmem:[%s2409 + $0x28] sm:$0xff]
    %v7923 = vld [vmem:[%s2409 + $0x30] sm:$0xff]
    %v7924 = vld [vmem:[%s2409 + $0x38] sm:$0xff]
    %v7925 = vld [vmem:[%s2409 + $0x40] sm:$0xff]
    %v7926 = vld [vmem:[%s2409 + $0x48] sm:$0xff]
    %v7927 = vld [vmem:[%s2409 + $0x50] sm:$0xff]
    %v7928 = vld [vmem:[%s2409 + $0x58] sm:$0xff]
    %v7929 = vld [vmem:[%s2409 + $0x60] sm:$0xff]
    %v7930 = vld [vmem:[%s2409 + $0x68] sm:$0xff]
    %v7931 = vld [vmem:[%s2409 + $0x70] sm:$0xff]
    %v7932 = vld [vmem:[%s2409 + $0x78] sm:$0xff]
    %v7933 = vld [vmem:[%s2409 + $0x80] sm:$0xff]
    %v7934 = vld [vmem:[%s2409 + $0x88] sm:$0xff]
    %v7935 = vld [vmem:[%s2409 + $0x90] sm:$0xff]
    %v7936 = vld [vmem:[%s2409 + $0x98] sm:$0xff]
    %7937 = vmatprep.subr.mxu0 0.0
    %7938 = vmatpush1.msra.mxu0 %v7917
    %7939 = vmatprep.subr.mxu0 0.0
    %7940 = vmatpush1.msra.mxu0 %v7918
    %7941 = vmatprep.subr.mxu0 0.0
    %7942 = vmatpush1.msra.mxu0 %v7919
    %7943 = vmatprep.subr.mxu0 0.0
    %7944 = vmatpush1.msra.mxu0 %v7920
    %7945 = vmatprep.subr.mxu0 0.0
    %7946 = vmatpush1.msra.mxu0 %v7921
    %7947 = vmatprep.subr.mxu0 0.0
    %7948 = vmatpush1.msra.mxu0 %v7922
    %7949 = vmatprep.subr.mxu0 0.0
    %7950 = vmatpush1.msra.mxu0 %v7923
    %7951 = vmatprep.subr.mxu0 0.0
    %7952 = vmatpush1.msra.mxu0 %v7924
    %7953 = vmatprep.subr.mxu0 0.0
    %7954 = vmatpush1.msra.mxu0 %v7925
    %7955 = vmatprep.subr.mxu0 0.0
    %7956 = vmatpush1.msra.mxu0 %v7926
    %7957 = vmatprep.subr.mxu0 0.0
    %7958 = vmatpush1.msra.mxu0 %v7927
    %7959 = vmatprep.subr.mxu0 0.0
    %7960 = vmatpush1.msra.mxu0 %v7928
    %7961 = vmatprep.subr.mxu0 0.0
    %7962 = vmatpush1.msra.mxu0 %v7929
    %7963 = vmatprep.subr.mxu0 0.0
    %7964 = vmatpush1.msra.mxu0 %v7930
    %7965 = vmatprep.subr.mxu0 0.0
    %7966 = vmatpush1.msra.mxu0 %v7931
    %7967 = vmatprep.subr.mxu0 0.0
    %7968 = vmatpush1.msra.mxu0 %v7932
    %7969 = vmatprep.subr.mxu0 0.0
    %7970 = vmatpush1.msra.mxu0 %v7933
    %7971 = vmatprep.subr.mxu0 0.0
    %7972 = vmatpush1.msra.mxu0 %v7934
    %7973 = vmatprep.subr.mxu0 0.0
    %7974 = vmatpush1.msra.mxu0 %v7935
    %7975 = vmatprep.subr.mxu0 0.0
    %7976 = vmatpush1.msra.mxu0 %v7936
    %7977 = vmatprep.subr.mxu0 0.0
    %7978 = vmatpush1.msra.mxu0 0.0
    %7979 = vmatprep.subr.mxu0 0.0
    %7980 = vmatpush1.msra.mxu0 0.0
    %7981 = vmatprep.subr.mxu0 0.0
    %7982 = vmatpush1.msra.mxu0 0.0
    %7983 = vmatprep.subr.mxu0 0.0
    %7984 = vmatpush1.msra.mxu0 0.0
    %7985 = vmatprep.subr.mxu0 0.0
    %7986 = vmatpush1.msra.mxu0 0.0
    %7987 = vmatprep.subr.mxu0 0.0
    %7988 = vmatpush1.msra.mxu0 0.0
    %7989 = vmatprep.subr.mxu0 0.0
    %7990 = vmatpush1.msra.mxu0 0.0
    %7991 = vmatprep.subr.mxu0 0.0
    %7992 = vmatpush1.msra.mxu0 0.0
    %7993 = vmatprep.subr.mxu0 0.0
    %7994 = vmatpush1.msra.mxu0 0.0
    %7995 = vmatprep.subr.mxu0 0.0
    %7996 = vmatpush1.msra.mxu0 0.0
    %7997 = vmatprep.subr.mxu0 0.0
    %7998 = vmatpush1.msra.mxu0 0.0
    %7999 = vmatprep.subr.mxu0 0.0
    %8000 = vmatpush1.msra.mxu0 0.0
    %8001 = vmatprep.mubr.f32.mxu0 %v7693
    %8002 = vmatmul.mubr.f32.gmra.mrb[0].mxu0 %v7544
    %v8003 = vpop.f32.mrb[0].mxu0
    %v8004 = vadd.f32 %v7615, %v8003
    %v8005 = vpop.f32.mrb[0].mxu0
    %8006 = vmatprep.mubr.f32.mxu0 %v7696
    %8007 = vmatmul.mubr.f32.gmra.mrb[0].mxu0 %v7546
    %v8008 = vpop.f32.mrb[0].mxu0
    %v8009 = vadd.f32 %v7620, %v8008
    %v8010 = vpop.f32.mrb[0].mxu0
    %8011 = vmatprep.mubr.f32.mxu0 %v7699
    %8012 = vmatmul.mubr.f32.gmra.mrb[0].mxu0 %v7548
    %v8013 = vpop.f32.mrb[0].mxu0
    %v8014 = vadd.f32 %v7625, %v8013
    %v8015 = vpop.f32.mrb[0].mxu0
    %8016 = vmatprep.mubr.f32.mxu0 %v7702
    %8017 = vmatmul.mubr.f32.gmra.mrb[0].mxu0 %v7550
    %v8018 = vpop.f32.mrb[0].mxu0
    %v8019 = vadd.f32 %v7630, %v8018
    %v8020 = vpop.f32.mrb[0].mxu0
    %8021 = vmatprep.mubr.f32.mxu0 %v7705
    %8022 = vmatmul.mubr.f32.gmra.mrb[0].mxu0 %v7552
    %v8023 = vpop.f32.mrb[0].mxu0
    %v8024 = vadd.f32 %v7635, %v8023
    %v8025 = vpop.f32.mrb[0].mxu0
    %8026 = vmatprep.mubr.f32.mxu0 %v7708
    %8027 = vmatmul.mubr.f32.gmra.mrb[0].mxu0 %v7554
    %v8028 = vpop.f32.mrb[0].mxu0
    %v8029 = vadd.f32 %v7640, %v8028
    %v8030 = vpop.f32.mrb[0].mxu0
    %8031 = vmatprep.mubr.f32.mxu0 %v7711
    %8032 = vmatmul.mubr.f32.gmra.mrb[0].mxu0 %v7556
    %v8033 = vpop.f32.mrb[0].mxu0
    %v8034 = vadd.f32 %v7645, %v8033
    %v8035 = vpop.f32.mrb[0].mxu0
    %8036 = vmatprep.mubr.f32.mxu0 %v7714
    %8037 = vmatmul.mubr.f32.gmra.mrb[0].mxu0 %v7558
    %v8038 = vpop.f32.mrb[0].mxu0
    %v8039 = vadd.f32 %v7650, %v8038
    %v8040 = vpop.f32.mrb[0].mxu0
    %8041 = vmatprep.mubr.f32.mxu0 %v7717
    %8042 = vmatmul.mubr.f32.gmra.mrb[0].mxu0 %v7560
    %v8043 = vpop.f32.mrb[0].mxu0
    %v8044 = vadd.f32 %v7655, %v8043
    %v8045 = vpop.f32.mrb[0].mxu0
    %8046 = vmatprep.mubr.f32.mxu0 %v7720
    %8047 = vmatmul.mubr.f32.gmra.mrb[0].mxu0 %v7562
    %v8048 = vpop.f32.mrb[0].mxu0
    %v8049 = vadd.f32 %v7660, %v8048
    %v8050 = vpop.f32.mrb[0].mxu0
    %8051 = vmatprep.mubr.f32.mxu0 %v7723
    %8052 = vmatmul.mubr.f32.gmra.mrb[0].mxu0 %v7564
    %v8053 = vpop.f32.mrb[0].mxu0
    %v8054 = vadd.f32 %v7665, %v8053
    %v8055 = vpop.f32.mrb[0].mxu0
    %8056 = vmatprep.mubr.f32.mxu0 %v7726
    %8057 = vmatmul.mubr.f32.gmra.mrb[0].mxu0 %v7566
    %v8058 = vpop.f32.mrb[0].mxu0
    %v8059 = vadd.f32 %v7670, %v8058
    %v8060 = vpop.f32.mrb[0].mxu0
    %8061 = vmatprep.mubr.f32.mxu0 %v7729
    %8062 = vmatmul.mubr.f32.gmra.mrb[0].mxu0 %v7568
    %v8063 = vpop.f32.mrb[0].mxu0
    %v8064 = vadd.f32 %v7675, %v8063
    %v8065 = vpop.f32.mrb[0].mxu0
    %8066 = vmatprep.mubr.f32.mxu0 %v7732
    %8067 = vmatmul.mubr.f32.gmra.mrb[0].mxu0 %v7570
    %v8068 = vpop.f32.mrb[0].mxu0
    %v8069 = vadd.f32 %v7680, %v8068
    %v8070 = vpop.f32.mrb[0].mxu0
    %8071 = vmatprep.mubr.f32.mxu0 %v7735
    %8072 = vmatmul.mubr.f32.gmra.mrb[0].mxu0 %v7572
    %v8073 = vpop.f32.mrb[0].mxu0
    %v8074 = vadd.f32 %v7685, %v8073
    %v8075 = vpop.f32.mrb[0].mxu0
    %8076 = vmatprep.mubr.f32.mxu0 %v7738
    %8077 = vmatmul.mubr.f32.gmra.mrb[0].mxu0 %v7574
    %v8078 = vpop.f32.mrb[0].mxu0
    %v8079 = vadd.f32 %v7690, %v8078
    %v8080 = vpop.f32.mrb[0].mxu0
    %8081 = vdwg.mxu0
    %v8082 = vmax.f32 %v8004, 0.0
    %v8083 = vmax.f32 %v8009, 0.0
    %v8084 = vmax.f32 %v8014, 0.0
    %v8085 = vmax.f32 %v8019, 0.0
    %v8086 = vmax.f32 %v8024, 0.0
    %v8087 = vmax.f32 %v8029, 0.0
    %v8088 = vmax.f32 %v8034, 0.0
    %v8089 = vmax.f32 %v8039, 0.0
    %v8090 = vmax.f32 %v8044, 0.0
    %v8091 = vmax.f32 %v8049, 0.0
    %v8092 = vmax.f32 %v8054, 0.0
    %v8093 = vmax.f32 %v8059, 0.0
    %v8094 = vmax.f32 %v8064, 0.0
    %v8095 = vmax.f32 %v8069, 0.0
    %v8096 = vmax.f32 %v8074, 0.0
    %v8097 = vmax.f32 %v8079, 0.0
    %8098 = vst [vmem:[%s2591] sm:$0xff] %v8082
    %8099 = vst [vmem:[%s2591 + $0x8] sm:$0xff] %v8083
    %8100 = vst [vmem:[%s2591 + $0x10] sm:$0xff] %v8084
    %8101 = vst [vmem:[%s2591 + $0x18] sm:$0xff] %v8085
    %8102 = vst [vmem:[%s2591 + $0x20] sm:$0xff] %v8086
    %8103 = vst [vmem:[%s2591 + $0x28] sm:$0xff] %v8087
    %8104 = vst [vmem:[%s2591 + $0x30] sm:$0xff] %v8088
    %8105 = vst [vmem:[%s2591 + $0x38] sm:$0xff] %v8089
    %8106 = vst [vmem:[%s2591 + $0x40] sm:$0xff] %v8090
    %8107 = vst [vmem:[%s2591 + $0x48] sm:$0xff] %v8091
    %8108 = vst [vmem:[%s2591 + $0x50] sm:$0xff] %v8092
    %8109 = vst [vmem:[%s2591 + $0x58] sm:$0xff] %v8093
    %8110 = vst [vmem:[%s2591 + $0x60] sm:$0xff] %v8094
    %8111 = vst [vmem:[%s2591 + $0x68] sm:$0xff] %v8095
    %8112 = vst [vmem:[%s2591 + $0x70] sm:$0xff] %v8096
    %8113 = vst [vmem:[%s2591 + $0x78] sm:$0xff] %v8097
    %s8114 = scalar_lea.vmem [#allocation2], 160
    %v8115 = vld [vmem:[%s8114] sm:$0xff]
    %v8116 = vld [vmem:[%s8114 + $0x8] sm:$0xff]
    %v8117 = vld [vmem:[%s8114 + $0x10] sm:$0xff]
    %v8118 = vld [vmem:[%s8114 + $0x18] sm:$0xff]
    %v8119 = vld [vmem:[%s8114 + $0x20] sm:$0xff]
    %v8120 = vld [vmem:[%s8114 + $0x28] sm:$0xff]
    %v8121 = vld [vmem:[%s8114 + $0x30] sm:$0xff]
    %v8122 = vld [vmem:[%s8114 + $0x38] sm:$0xff]
    %v8123 = vld [vmem:[%s8114 + $0x40] sm:$0xff]
    %v8124 = vld [vmem:[%s8114 + $0x48] sm:$0xff]
    %v8125 = vld [vmem:[%s8114 + $0x50] sm:$0xff]
    %v8126 = vld [vmem:[%s8114 + $0x58] sm:$0xff]
    %v8127 = vld [vmem:[%s8114 + $0x60] sm:$0xff]
    %v8128 = vld [vmem:[%s8114 + $0x68] sm:$0xff]
    %v8129 = vld [vmem:[%s8114 + $0x70] sm:$0xff]
    %v8130 = vld [vmem:[%s8114 + $0x78] sm:$0xff]
    %v8131 = vld [vmem:[%s8114 + $0x80] sm:$0xff]
    %v8132 = vld [vmem:[%s8114 + $0x88] sm:$0xff]
    %v8133 = vld [vmem:[%s8114 + $0x90] sm:$0xff]
    %v8134 = vld [vmem:[%s8114 + $0x98] sm:$0xff]
    %8135 = vmatprep.subr.mxu0 0.0
    %8136 = vmatpush1.msra.mxu0 %v8115
    %8137 = vmatprep.subr.mxu0 0.0
    %8138 = vmatpush1.msra.mxu0 %v8116
    %8139 = vmatprep.subr.mxu0 0.0
    %8140 = vmatpush1.msra.mxu0 %v8117
    %8141 = vmatprep.subr.mxu0 0.0
    %8142 = vmatpush1.msra.mxu0 %v8118
    %8143 = vmatprep.subr.mxu0 0.0
    %8144 = vmatpush1.msra.mxu0 %v8119
    %8145 = vmatprep.subr.mxu0 0.0
    %8146 = vmatpush1.msra.mxu0 %v8120
    %8147 = vmatprep.subr.mxu0 0.0
    %8148 = vmatpush1.msra.mxu0 %v8121
    %8149 = vmatprep.subr.mxu0 0.0
    %8150 = vmatpush1.msra.mxu0 %v8122
    %8151 = vmatprep.subr.mxu0 0.0
    %8152 = vmatpush1.msra.mxu0 %v8123
    %8153 = vmatprep.subr.mxu0 0.0
    %8154 = vmatpush1.msra.mxu0 %v8124
    %8155 = vmatprep.subr.mxu0 0.0
    %8156 = vmatpush1.msra.mxu0 %v8125
    %8157 = vmatprep.subr.mxu0 0.0
    %8158 = vmatpush1.msra.mxu0 %v8126
    %8159 = vmatprep.subr.mxu0 0.0
    %8160 = vmatpush1.msra.mxu0 %v8127
    %8161 = vmatprep.subr.mxu0 0.0
    %8162 = vmatpush1.msra.mxu0 %v8128
    %8163 = vmatprep.subr.mxu0 0.0
    %8164 = vmatpush1.msra.mxu0 %v8129
    %8165 = vmatprep.subr.mxu0 0.0
    %8166 = vmatpush1.msra.mxu0 %v8130
    %8167 = vmatprep.subr.mxu0 0.0
    %8168 = vmatpush1.msra.mxu0 %v8131
    %8169 = vmatprep.subr.mxu0 0.0
    %8170 = vmatpush1.msra.mxu0 %v8132
    %8171 = vmatprep.subr.mxu0 0.0
    %8172 = vmatpush1.msra.mxu0 %v8133
    %8173 = vmatprep.subr.mxu0 0.0
    %8174 = vmatpush1.msra.mxu0 %v8134
    %8175 = vmatprep.subr.mxu0 0.0
    %8176 = vmatpush1.msra.mxu0 0.0
    %8177 = vmatprep.subr.mxu0 0.0
    %8178 = vmatpush1.msra.mxu0 0.0
    %8179 = vmatprep.subr.mxu0 0.0
    %8180 = vmatpush1.msra.mxu0 0.0
    %8181 = vmatprep.subr.mxu0 0.0
    %8182 = vmatpush1.msra.mxu0 0.0
    %8183 = vmatprep.subr.mxu0 0.0
    %8184 = vmatpush1.msra.mxu0 0.0
    %8185 = vmatprep.subr.mxu0 0.0
    %8186 = vmatpush1.msra.mxu0 0.0
    %8187 = vmatprep.subr.mxu0 0.0
    %8188 = vmatpush1.msra.mxu0 0.0
    %8189 = vmatprep.subr.mxu0 0.0
    %8190 = vmatpush1.msra.mxu0 0.0
    %8191 = vmatprep.subr.mxu0 0.0
    %8192 = vmatpush1.msra.mxu0 0.0
    %8193 = vmatprep.subr.mxu0 0.0
    %8194 = vmatpush1.msra.mxu0 0.0
    %8195 = vmatprep.subr.mxu0 0.0
    %8196 = vmatpush1.msra.mxu0 0.0
    %8197 = vmatprep.subr.mxu0 0.0
    %8198 = vmatpush1.msra.mxu0 0.0
    %8199 = vmatprep.mubr.f32.mxu0 %v7693
    %8200 = vmatmul.mubr.f32.gmra.mrb[0].mxu0 %v7544
    %v8201 = vpop.f32.mrb[0].mxu0
    %v8202 = vadd.f32 %v7615, %v8201
    %v8203 = vpop.f32.mrb[0].mxu0
    %8204 = vmatprep.mubr.f32.mxu0 %v7696
    %8205 = vmatmul.mubr.f32.gmra.mrb[0].mxu0 %v7546
    %v8206 = vpop.f32.mrb[0].mxu0
    %v8207 = vadd.f32 %v7620, %v8206
    %v8208 = vpop.f32.mrb[0].mxu0
    %8209 = vmatprep.mubr.f32.mxu0 %v7699
    %8210 = vmatmul.mubr.f32.gmra.mrb[0].mxu0 %v7548
    %v8211 = vpop.f32.mrb[0].mxu0
    %v8212 = vadd.f32 %v7625, %v8211
    %v8213 = vpop.f32.mrb[0].mxu0
    %8214 = vmatprep.mubr.f32.mxu0 %v7702
    %8215 = vmatmul.mubr.f32.gmra.mrb[0].mxu0 %v7550
    %v8216 = vpop.f32.mrb[0].mxu0
    %v8217 = vadd.f32 %v7630, %v8216
    %v8218 = vpop.f32.mrb[0].mxu0
    %8219 = vmatprep.mubr.f32.mxu0 %v7705
    %8220 = vmatmul.mubr.f32.gmra.mrb[0].mxu0 %v7552
    %v8221 = vpop.f32.mrb[0].mxu0
    %v8222 = vadd.f32 %v7635, %v8221
    %v8223 = vpop.f32.mrb[0].mxu0
    %8224 = vmatprep.mubr.f32.mxu0 %v7708
    %8225 = vmatmul.mubr.f32.gmra.mrb[0].mxu0 %v7554
    %v8226 = vpop.f32.mrb[0].mxu0
    %v8227 = vadd.f32 %v7640, %v8226
    %v8228 = vpop.f32.mrb[0].mxu0
    %8229 = vmatprep.mubr.f32.mxu0 %v7711
    %8230 = vmatmul.mubr.f32.gmra.mrb[0].mxu0 %v7556
    %v8231 = vpop.f32.mrb[0].mxu0
    %v8232 = vadd.f32 %v7645, %v8231
    %v8233 = vpop.f32.mrb[0].mxu0
    %8234 = vmatprep.mubr.f32.mxu0 %v7714
    %8235 = vmatmul.mubr.f32.gmra.mrb[0].mxu0 %v7558
    %v8236 = vpop.f32.mrb[0].mxu0
    %v8237 = vadd.f32 %v7650, %v8236
    %v8238 = vpop.f32.mrb[0].mxu0
    %8239 = vmatprep.mubr.f32.mxu0 %v7717
    %8240 = vmatmul.mubr.f32.gmra.mrb[0].mxu0 %v7560
    %v8241 = vpop.f32.mrb[0].mxu0
    %v8242 = vadd.f32 %v7655, %v8241
    %v8243 = vpop.f32.mrb[0].mxu0
    %8244 = vmatprep.mubr.f32.mxu0 %v7720
    %8245 = vmatmul.mubr.f32.gmra.mrb[0].mxu0 %v7562
    %v8246 = vpop.f32.mrb[0].mxu0
    %v8247 = vadd.f32 %v7660, %v8246
    %v8248 = vpop.f32.mrb[0].mxu0
    %8249 = vmatprep.mubr.f32.mxu0 %v7723
    %8250 = vmatmul.mubr.f32.gmra.mrb[0].mxu0 %v7564
    %v8251 = vpop.f32.mrb[0].mxu0
    %v8252 = vadd.f32 %v7665, %v8251
    %v8253 = vpop.f32.mrb[0].mxu0
    %8254 = vmatprep.mubr.f32.mxu0 %v7726
    %8255 = vmatmul.mubr.f32.gmra.mrb[0].mxu0 %v7566
    %v8256 = vpop.f32.mrb[0].mxu0
    %v8257 = vadd.f32 %v7670, %v8256
    %v8258 = vpop.f32.mrb[0].mxu0
    %8259 = vmatprep.mubr.f32.mxu0 %v7729
    %8260 = vmatmul.mubr.f32.gmra.mrb[0].mxu0 %v7568
    %v8261 = vpop.f32.mrb[0].mxu0
    %v8262 = vadd.f32 %v7675, %v8261
    %v8263 = vpop.f32.mrb[0].mxu0
    %8264 = vmatprep.mubr.f32.mxu0 %v7732
    %8265 = vmatmul.mubr.f32.gmra.mrb[0].mxu0 %v7570
    %v8266 = vpop.f32.mrb[0].mxu0
    %v8267 = vadd.f32 %v7680, %v8266
    %v8268 = vpop.f32.mrb[0].mxu0
    %8269 = vmatprep.mubr.f32.mxu0 %v7735
    %8270 = vmatmul.mubr.f32.gmra.mrb[0].mxu0 %v7572
    %v8271 = vpop.f32.mrb[0].mxu0
    %v8272 = vadd.f32 %v7685, %v8271
    %v8273 = vpop.f32.mrb[0].mxu0
    %8274 = vmatprep.mubr.f32.mxu0 %v7738
    %8275 = vmatmul.mubr.f32.gmra.mrb[0].mxu0 %v7574
    %v8276 = vpop.f32.mrb[0].mxu0
    %v8277 = vadd.f32 %v7690, %v8276
    %v8278 = vpop.f32.mrb[0].mxu0
    %8279 = vdwg.mxu0
    %v8280 = vmax.f32 %v8202, 0.0
    %v8281 = vmax.f32 %v8207, 0.0
    %v8282 = vmax.f32 %v8212, 0.0
    %v8283 = vmax.f32 %v8217, 0.0
    %v8284 = vmax.f32 %v8222, 0.0
    %v8285 = vmax.f32 %v8227, 0.0
    %v8286 = vmax.f32 %v8232, 0.0
    %v8287 = vmax.f32 %v8237, 0.0
    %v8288 = vmax.f32 %v8242, 0.0
    %v8289 = vmax.f32 %v8247, 0.0
    %v8290 = vmax.f32 %v8252, 0.0
    %v8291 = vmax.f32 %v8257, 0.0
    %v8292 = vmax.f32 %v8262, 0.0
    %v8293 = vmax.f32 %v8267, 0.0
    %v8294 = vmax.f32 %v8272, 0.0
    %v8295 = vmax.f32 %v8277, 0.0
    %s8296 = scalar_lea.vmem [#allocation3], 176
    %8297 = vst [vmem:[%s8296] sm:$0xff] %v8280
    %8298 = vst [vmem:[%s8296 + $0x8] sm:$0xff] %v8281
    %8299 = vst [vmem:[%s8296 + $0x10] sm:$0xff] %v8282
    %8300 = vst [vmem:[%s8296 + $0x18] sm:$0xff] %v8283
    %8301 = vst [vmem:[%s8296 + $0x20] sm:$0xff] %v8284
    %8302 = vst [vmem:[%s8296 + $0x28] sm:$0xff] %v8285
    %8303 = vst [vmem:[%s8296 + $0x30] sm:$0xff] %v8286
    %8304 = vst [vmem:[%s8296 + $0x38] sm:$0xff] %v8287
    %8305 = vst [vmem:[%s8296 + $0x40] sm:$0xff] %v8288
    %8306 = vst [vmem:[%s8296 + $0x48] sm:$0xff] %v8289
    %8307 = vst [vmem:[%s8296 + $0x50] sm:$0xff] %v8290
    %8308 = vst [vmem:[%s8296 + $0x58] sm:$0xff] %v8291
    %8309 = vst [vmem:[%s8296 + $0x60] sm:$0xff] %v8292
    %8310 = vst [vmem:[%s8296 + $0x68] sm:$0xff] %v8293
    %8311 = vst [vmem:[%s8296 + $0x70] sm:$0xff] %v8294
    %8312 = vst [vmem:[%s8296 + $0x78] sm:$0xff] %v8295
    %8313 = vst [vmem:[#allocation3] sm:$0xff] 0.0
    %8314 = vst [vmem:[#allocation3 + $0x8] sm:$0xff] 0.0
    %8315 = vst [vmem:[%s6767] sm:$0xff] 0.0
    %8316 = vst [vmem:[%s6767 + $0x8] sm:$0xff] 0.0
    %v8317 = vld [vmem:[#allocation3] sm:$0xff]
    %v8318 = vld [vmem:[#allocation3 + $0x8] sm:$0xff]
    %v8319 = vld [vmem:[#allocation3 + $0x10] sm:$0xff]
    %v8320 = vld [vmem:[#allocation3 + $0x18] sm:$0xff]
    %v8321 = vld [vmem:[#allocation3 + $0x20] sm:$0xff]
    %v8322 = vld [vmem:[#allocation3 + $0x28] sm:$0xff]
    %v8323 = vld [vmem:[#allocation3 + $0x30] sm:$0xff]
    %v8324 = vld [vmem:[#allocation3 + $0x38] sm:$0xff]
    %v8325 = vld [vmem:[#allocation3 + $0x40] sm:$0xff]
    %v8326 = vld [vmem:[#allocation3 + $0x48] sm:$0xff]
    %v8327 = vld [vmem:[#allocation3 + $0x50] sm:$0xff]
    %v8328 = vld [vmem:[#allocation3 + $0x58] sm:$0xff]
    %v8329 = vld [vmem:[#allocation3 + $0x60] sm:$0xff]
    %v8330 = vld [vmem:[#allocation3 + $0x68] sm:$0xff]
    %v8331 = vld [vmem:[#allocation3 + $0x70] sm:$0xff]
    %v8332 = vld [vmem:[#allocation3 + $0x78] sm:$0xff]
    %v8333 = vld [vmem:[#allocation3 + $0x80] sm:$0xff]
    %v8334 = vld [vmem:[#allocation3 + $0x88] sm:$0xff]
    %v8335 = vld [vmem:[#allocation3 + $0x90] sm:$0xff]
    %v8336 = vld [vmem:[#allocation3 + $0x98] sm:$0xff]
    %v8337 = vld [vmem:[#allocation3 + $0xa0] sm:$0xff]
    %v8338 = vld [vmem:[#allocation3 + $0xa8] sm:$0xff]
    %v8339 = vld [vmem:[#allocation3 + $0xb0] sm:$0xff]
    %v8340 = vld [vmem:[#allocation3 + $0xb8] sm:$0xff]
    %v8341 = vld [vmem:[#allocation3 + $0xc0] sm:$0xff]
    %v8342 = vld [vmem:[#allocation3 + $0xc8] sm:$0xff]
    %v8343 = vld [vmem:[#allocation3 + $0xd0] sm:$0xff]
    %v8344 = vld [vmem:[#allocation3 + $0xd8] sm:$0xff]
    %v8345 = vld [vmem:[#allocation3 + $0xe0] sm:$0xff]
    %v8346 = vld [vmem:[#allocation3 + $0xe8] sm:$0xff]
    %v8347 = vld [vmem:[#allocation3 + $0xf0] sm:$0xff]
    %v8348 = vld [vmem:[#allocation3 + $0xf8] sm:$0xff]
    %v8349 = vld [vmem:[#allocation3 + $0x100] sm:$0xff]
    %v8350 = vld [vmem:[#allocation3 + $0x108] sm:$0xff]
    %v8351 = vld [vmem:[#allocation3 + $0x110] sm:$0xff]
    %v8352 = vld [vmem:[#allocation3 + $0x118] sm:$0xff]
    %v8353 = vld [vmem:[#allocation3 + $0x120] sm:$0xff]
    %v8354 = vld [vmem:[#allocation3 + $0x128] sm:$0xff]
    %v8355 = vld [vmem:[#allocation3 + $0x130] sm:$0xff]
    %v8356 = vld [vmem:[#allocation3 + $0x138] sm:$0xff]
    %v8357 = vmax.f32 %v8317, %v8319
    %v8358 = vmax.f32 %v8318, %v8320
    %v8359 = vmax.f32 %v8321, %v8323
    %v8360 = vmax.f32 %v8322, %v8324
    %v8361 = vmax.f32 %v8325, %v8327
    %v8362 = vmax.f32 %v8326, %v8328
    %v8363 = vmax.f32 %v8329, %v8331
    %v8364 = vmax.f32 %v8330, %v8332
    %v8365 = vmax.f32 %v8333, %v8335
    %v8366 = vmax.f32 %v8334, %v8336
    %v8367 = vmax.f32 %v8337, %v8339
    %v8368 = vmax.f32 %v8338, %v8340
    %v8369 = vmax.f32 %v8341, %v8343
    %v8370 = vmax.f32 %v8342, %v8344
    %v8371 = vmax.f32 %v8345, %v8347
    %v8372 = vmax.f32 %v8346, %v8348
    %v8373 = vmax.f32 %v8349, %v8351
    %v8374 = vmax.f32 %v8350, %v8352
    %v8375 = vmax.f32 %v8353, %v8355
    %v8376 = vmax.f32 %v8354, %v8356
    %8377 = vst [vmem:[%s421] sm:$0xff] %v8357
    %8378 = vst [vmem:[%s421 + $0x8] sm:$0xff] %v8358
    %8379 = vst [vmem:[%s421 + $0x10] sm:$0xff] %v8359
    %8380 = vst [vmem:[%s421 + $0x18] sm:$0xff] %v8360
    %8381 = vst [vmem:[%s421 + $0x20] sm:$0xff] %v8361
    %8382 = vst [vmem:[%s421 + $0x28] sm:$0xff] %v8362
    %8383 = vst [vmem:[%s421 + $0x30] sm:$0xff] %v8363
    %8384 = vst [vmem:[%s421 + $0x38] sm:$0xff] %v8364
    %8385 = vst [vmem:[%s421 + $0x40] sm:$0xff] %v8365
    %8386 = vst [vmem:[%s421 + $0x48] sm:$0xff] %v8366
    %8387 = vst [vmem:[%s421 + $0x50] sm:$0xff] %v8367
    %8388 = vst [vmem:[%s421 + $0x58] sm:$0xff] %v8368
    %8389 = vst [vmem:[%s421 + $0x60] sm:$0xff] %v8369
    %8390 = vst [vmem:[%s421 + $0x68] sm:$0xff] %v8370
    %8391 = vst [vmem:[%s421 + $0x70] sm:$0xff] %v8371
    %8392 = vst [vmem:[%s421 + $0x78] sm:$0xff] %v8372
    %8393 = vst [vmem:[%s421 + $0x80] sm:$0xff] %v8373
    %8394 = vst [vmem:[%s421 + $0x88] sm:$0xff] %v8374
    %8395 = vst [vmem:[%s421 + $0x90] sm:$0xff] %v8375
    %8396 = vst [vmem:[%s421 + $0x98] sm:$0xff] %v8376
    %8397 = vst [vmem:[#allocation2] sm:$0xff] 0.0
    %8398 = vst [vmem:[#allocation2 + $0x8] sm:$0xff] 0.0
    %8399 = vst [vmem:[%s7522] sm:$0xff] 0.0
    %8400 = vst [vmem:[%s7522 + $0x8] sm:$0xff] 0.0
    %v8401 = vld [vmem:[%s421] sm:$0xff]
    %v8402 = vld [vmem:[%s421 + $0x8] sm:$0xff]
    %v8403 = vld [vmem:[%s421 + $0x10] sm:$0xff]
    %v8404 = vld [vmem:[%s421 + $0x18] sm:$0xff]
    %v8405 = vld [vmem:[%s421 + $0x20] sm:$0xff]
    %v8406 = vld [vmem:[%s421 + $0x28] sm:$0xff]
    %v8407 = vld [vmem:[%s421 + $0x30] sm:$0xff]
    %v8408 = vld [vmem:[%s421 + $0x38] sm:$0xff]
    %v8409 = vld [vmem:[%s421 + $0x40] sm:$0xff]
    %v8410 = vld [vmem:[%s421 + $0x48] sm:$0xff]
    %v8411 = vld [vmem:[%s421 + $0x50] sm:$0xff]
    %v8412 = vld [vmem:[%s421 + $0x58] sm:$0xff]
    %v8413 = vld [vmem:[%s421 + $0x60] sm:$0xff]
    %v8414 = vld [vmem:[%s421 + $0x68] sm:$0xff]
    %v8415 = vld [vmem:[%s421 + $0x70] sm:$0xff]
    %v8416 = vld [vmem:[%s421 + $0x78] sm:$0xff]
    %v8417 = vld [vmem:[%s421 + $0x80] sm:$0xff]
    %v8418 = vld [vmem:[%s421 + $0x88] sm:$0xff]
    %v8419 = vld [vmem:[%s421 + $0x90] sm:$0xff]
    %v8420 = vld [vmem:[%s421 + $0x98] sm:$0xff]
    %v8421 = vld [vmem:[%s13] sm:$0xff]
    %v8422 = vld [vmem:[%s13 + $0x8] sm:$0xff]
    %v8423 = vld [vmem:[%s13 + $0x10] sm:$0xff]
    %v8424 = vld [vmem:[%s13 + $0x18] sm:$0xff]
    %v8425 = vld [vmem:[%s13 + $0x20] sm:$0xff]
    %v8426 = vld [vmem:[%s13 + $0x28] sm:$0xff]
    %v8427 = vld [vmem:[%s13 + $0x30] sm:$0xff]
    %v8428 = vld [vmem:[%s13 + $0x38] sm:$0xff]
    %v8429 = vld [vmem:[%s13 + $0x40] sm:$0xff]
    %v8430 = vld [vmem:[%s13 + $0x48] sm:$0xff]
    %v8431 = vld [vmem:[%s13 + $0x50] sm:$0xff]
    %v8432 = vld [vmem:[%s13 + $0x58] sm:$0xff]
    %v8433 = vld [vmem:[%s13 + $0x60] sm:$0xff]
    %v8434 = vld [vmem:[%s13 + $0x68] sm:$0xff]
    %v8435 = vld [vmem:[%s13 + $0x70] sm:$0xff]
    %v8436 = vld [vmem:[%s13 + $0x78] sm:$0xff]
    %v8437 = vld [vmem:[%s13 + $0x80] sm:$0xff]
    %v8438 = vld [vmem:[%s13 + $0x88] sm:$0xff]
    %v8439 = vld [vmem:[%s13 + $0x90] sm:$0xff]
    %v8440 = vld [vmem:[%s13 + $0x98] sm:$0xff]
    %v8441 = vld [vmem:[%s13 + $0xa0] sm:$0xff]
    %v8442 = vld [vmem:[%s13 + $0xa8] sm:$0xff]
    %v8443 = vld [vmem:[%s13 + $0xb0] sm:$0xff]
    %v8444 = vld [vmem:[%s13 + $0xb8] sm:$0xff]
    %v8445 = vld [vmem:[%s13 + $0xc0] sm:$0xff]
    %v8446 = vld [vmem:[%s13 + $0xc8] sm:$0xff]
    %v8447 = vld [vmem:[%s13 + $0xd0] sm:$0xff]
    %v8448 = vld [vmem:[%s13 + $0xd8] sm:$0xff]
    %v8449 = vld [vmem:[%s13 + $0xe0] sm:$0xff]
    %v8450 = vld [vmem:[%s13 + $0xe8] sm:$0xff]
    %v8451 = vld [vmem:[%s13 + $0xf0] sm:$0xff]
    %v8452 = vld [vmem:[%s13 + $0xf8] sm:$0xff]
    %v8453 = vld [vmem:[%s14] sm:$0xff]
    %v8454 = vld [vmem:[%s14 + $0x8] sm:$0xff]
    %v8455 = vld [vmem:[%s14 + $0x10] sm:$0xff]
    %v8456 = vld [vmem:[%s14 + $0x18] sm:$0xff]
    %v8457 = vld [vmem:[%s14 + $0x20] sm:$0xff]
    %v8458 = vld [vmem:[%s14 + $0x28] sm:$0xff]
    %v8459 = vld [vmem:[%s14 + $0x30] sm:$0xff]
    %v8460 = vld [vmem:[%s14 + $0x38] sm:$0xff]
    %v8461 = vld [vmem:[%s14 + $0x40] sm:$0xff]
    %v8462 = vld [vmem:[%s14 + $0x48] sm:$0xff]
    %v8463 = vld [vmem:[%s14 + $0x50] sm:$0xff]
    %v8464 = vld [vmem:[%s14 + $0x58] sm:$0xff]
    %v8465 = vld [vmem:[%s14 + $0x60] sm:$0xff]
    %v8466 = vld [vmem:[%s14 + $0x68] sm:$0xff]
    %v8467 = vld [vmem:[%s14 + $0x70] sm:$0xff]
    %v8468 = vld [vmem:[%s14 + $0x78] sm:$0xff]
    %8470 = vset.pattern.permute.xlu0 0
    %8471 = vperm.xlu0 %8470, %v8453
    %v8472 = vpop.permute.xlu0 %8471
    %8475 = vset.pattern.permute.xlu0 0
    %8476 = vperm.xlu0 %8475, %v8454
    %v8477 = vpop.permute.xlu0 %8476
    %8480 = vset.pattern.permute.xlu0 0
    %8481 = vperm.xlu0 %8480, %v8455
    %v8482 = vpop.permute.xlu0 %8481
    %8485 = vset.pattern.permute.xlu0 0
    %8486 = vperm.xlu0 %8485, %v8456
    %v8487 = vpop.permute.xlu0 %8486
    %8490 = vset.pattern.permute.xlu0 0
    %8491 = vperm.xlu0 %8490, %v8457
    %v8492 = vpop.permute.xlu0 %8491
    %8495 = vset.pattern.permute.xlu0 0
    %8496 = vperm.xlu0 %8495, %v8458
    %v8497 = vpop.permute.xlu0 %8496
    %8500 = vset.pattern.permute.xlu0 0
    %8501 = vperm.xlu0 %8500, %v8459
    %v8502 = vpop.permute.xlu0 %8501
    %8505 = vset.pattern.permute.xlu0 0
    %8506 = vperm.xlu0 %8505, %v8460
    %v8507 = vpop.permute.xlu0 %8506
    %8510 = vset.pattern.permute.xlu0 0
    %8511 = vperm.xlu0 %8510, %v8461
    %v8512 = vpop.permute.xlu0 %8511
    %8515 = vset.pattern.permute.xlu0 0
    %8516 = vperm.xlu0 %8515, %v8462
    %v8517 = vpop.permute.xlu0 %8516
    %8520 = vset.pattern.permute.xlu0 0
    %8521 = vperm.xlu0 %8520, %v8463
    %v8522 = vpop.permute.xlu0 %8521
    %8525 = vset.pattern.permute.xlu0 0
    %8526 = vperm.xlu0 %8525, %v8464
    %v8527 = vpop.permute.xlu0 %8526
    %8530 = vset.pattern.permute.xlu0 0
    %8531 = vperm.xlu0 %8530, %v8465
    %v8532 = vpop.permute.xlu0 %8531
    %8535 = vset.pattern.permute.xlu0 0
    %8536 = vperm.xlu0 %8535, %v8466
    %v8537 = vpop.permute.xlu0 %8536
    %8540 = vset.pattern.permute.xlu0 0
    %8541 = vperm.xlu0 %8540, %v8467
    %v8542 = vpop.permute.xlu0 %8541
    %8545 = vset.pattern.permute.xlu0 0
    %8546 = vperm.xlu0 %8545, %v8468
    %v8547 = vpop.permute.xlu0 %8546
    %v8550 = vsel %vm211, %v8422, 0
    %v8553 = vsel %vm211, %v8424, 0
    %v8556 = vsel %vm211, %v8426, 0
    %v8559 = vsel %vm211, %v8428, 0
    %v8562 = vsel %vm211, %v8430, 0
    %v8565 = vsel %vm211, %v8432, 0
    %v8568 = vsel %vm211, %v8434, 0
    %v8571 = vsel %vm211, %v8436, 0
    %v8574 = vsel %vm211, %v8438, 0
    %v8577 = vsel %vm211, %v8440, 0
    %v8580 = vsel %vm211, %v8442, 0
    %v8583 = vsel %vm211, %v8444, 0
    %v8586 = vsel %vm211, %v8446, 0
    %v8589 = vsel %vm211, %v8448, 0
    %v8592 = vsel %vm211, %v8450, 0
    %v8595 = vsel %vm211, %v8452, 0
    %8597 = vmatprep.subr.mxu0 0.0
    %8598 = vmatpush1.msra.mxu0 %v8401
    %8599 = vmatprep.subr.mxu0 0.0
    %8600 = vmatpush1.msra.mxu0 %v8402
    %8601 = vmatprep.subr.mxu0 0.0
    %8602 = vmatpush1.msra.mxu0 %v8403
    %8603 = vmatprep.subr.mxu0 0.0
    %8604 = vmatpush1.msra.mxu0 %v8404
    %8605 = vmatprep.subr.mxu0 0.0
    %8606 = vmatpush1.msra.mxu0 %v8405
    %8607 = vmatprep.subr.mxu0 0.0
    %8608 = vmatpush1.msra.mxu0 %v8406
    %8609 = vmatprep.subr.mxu0 0.0
    %8610 = vmatpush1.msra.mxu0 %v8407
    %8611 = vmatprep.subr.mxu0 0.0
    %8612 = vmatpush1.msra.mxu0 %v8408
    %8613 = vmatprep.subr.mxu0 0.0
    %8614 = vmatpush1.msra.mxu0 %v8409
    %8615 = vmatprep.subr.mxu0 0.0
    %8616 = vmatpush1.msra.mxu0 %v8410
    %8617 = vmatprep.subr.mxu0 0.0
    %8618 = vmatpush1.msra.mxu0 %v8411
    %8619 = vmatprep.subr.mxu0 0.0
    %8620 = vmatpush1.msra.mxu0 %v8412
    %8621 = vmatprep.subr.mxu0 0.0
    %8622 = vmatpush1.msra.mxu0 %v8413
    %8623 = vmatprep.subr.mxu0 0.0
    %8624 = vmatpush1.msra.mxu0 %v8414
    %8625 = vmatprep.subr.mxu0 0.0
    %8626 = vmatpush1.msra.mxu0 %v8415
    %8627 = vmatprep.subr.mxu0 0.0
    %8628 = vmatpush1.msra.mxu0 %v8416
    %8629 = vmatprep.subr.mxu0 0.0
    %8630 = vmatpush1.msra.mxu0 %v8417
    %8631 = vmatprep.subr.mxu0 0.0
    %8632 = vmatpush1.msra.mxu0 %v8418
    %8633 = vmatprep.subr.mxu0 0.0
    %8634 = vmatpush1.msra.mxu0 %v8419
    %8635 = vmatprep.subr.mxu0 0.0
    %8636 = vmatpush1.msra.mxu0 %v8420
    %8637 = vmatprep.subr.mxu0 0.0
    %8638 = vmatpush1.msra.mxu0 0.0
    %8639 = vmatprep.subr.mxu0 0.0
    %8640 = vmatpush1.msra.mxu0 0.0
    %8641 = vmatprep.subr.mxu0 0.0
    %8642 = vmatpush1.msra.mxu0 0.0
    %8643 = vmatprep.subr.mxu0 0.0
    %8644 = vmatpush1.msra.mxu0 0.0
    %8645 = vmatprep.subr.mxu0 0.0
    %8646 = vmatpush1.msra.mxu0 0.0
    %8647 = vmatprep.subr.mxu0 0.0
    %8648 = vmatpush1.msra.mxu0 0.0
    %8649 = vmatprep.subr.mxu0 0.0
    %8650 = vmatpush1.msra.mxu0 0.0
    %8651 = vmatprep.subr.mxu0 0.0
    %8652 = vmatpush1.msra.mxu0 0.0
    %8653 = vmatprep.subr.mxu0 0.0
    %8654 = vmatpush1.msra.mxu0 0.0
    %8655 = vmatprep.subr.mxu0 0.0
    %8656 = vmatpush1.msra.mxu0 0.0
    %8657 = vmatprep.subr.mxu0 0.0
    %8658 = vmatpush1.msra.mxu0 0.0
    %8659 = vmatprep.subr.mxu0 0.0
    %8660 = vmatpush1.msra.mxu0 0.0
    %8661 = vmatprep.mubr.f32.mxu0 %v8550
    %8662 = vmatmul.mubr.f32.gmra.mrb[0].mxu0 %v8421
    %v8663 = vpop.f32.mrb[0].mxu0
    %v8664 = vadd.f32 %v8472, %v8663
    %v8665 = vpop.f32.mrb[0].mxu0
    %8666 = vmatprep.mubr.f32.mxu0 %v8553
    %8667 = vmatmul.mubr.f32.gmra.mrb[0].mxu0 %v8423
    %v8668 = vpop.f32.mrb[0].mxu0
    %v8669 = vadd.f32 %v8477, %v8668
    %v8670 = vpop.f32.mrb[0].mxu0
    %8671 = vmatprep.mubr.f32.mxu0 %v8556
    %8672 = vmatmul.mubr.f32.gmra.mrb[0].mxu0 %v8425
    %v8673 = vpop.f32.mrb[0].mxu0
    %v8674 = vadd.f32 %v8482, %v8673
    %v8675 = vpop.f32.mrb[0].mxu0
    %8676 = vmatprep.mubr.f32.mxu0 %v8559
    %8677 = vmatmul.mubr.f32.gmra.mrb[0].mxu0 %v8427
    %v8678 = vpop.f32.mrb[0].mxu0
    %v8679 = vadd.f32 %v8487, %v8678
    %v8680 = vpop.f32.mrb[0].mxu0
    %8681 = vmatprep.mubr.f32.mxu0 %v8562
    %8682 = vmatmul.mubr.f32.gmra.mrb[0].mxu0 %v8429
    %v8683 = vpop.f32.mrb[0].mxu0
    %v8684 = vadd.f32 %v8492, %v8683
    %v8685 = vpop.f32.mrb[0].mxu0
    %8686 = vmatprep.mubr.f32.mxu0 %v8565
    %8687 = vmatmul.mubr.f32.gmra.mrb[0].mxu0 %v8431
    %v8688 = vpop.f32.mrb[0].mxu0
    %v8689 = vadd.f32 %v8497, %v8688
    %v8690 = vpop.f32.mrb[0].mxu0
    %8691 = vmatprep.mubr.f32.mxu0 %v8568
    %8692 = vmatmul.mubr.f32.gmra.mrb[0].mxu0 %v8433
    %v8693 = vpop.f32.mrb[0].mxu0
    %v8694 = vadd.f32 %v8502, %v8693
    %v8695 = vpop.f32.mrb[0].mxu0
    %8696 = vmatprep.mubr.f32.mxu0 %v8571
    %8697 = vmatmul.mubr.f32.gmra.mrb[0].mxu0 %v8435
    %v8698 = vpop.f32.mrb[0].mxu0
    %v8699 = vadd.f32 %v8507, %v8698
    %v8700 = vpop.f32.mrb[0].mxu0
    %8701 = vmatprep.mubr.f32.mxu0 %v8574
    %8702 = vmatmul.mubr.f32.gmra.mrb[0].mxu0 %v8437
    %v8703 = vpop.f32.mrb[0].mxu0
    %v8704 = vadd.f32 %v8512, %v8703
    %v8705 = vpop.f32.mrb[0].mxu0
    %8706 = vmatprep.mubr.f32.mxu0 %v8577
    %8707 = vmatmul.mubr.f32.gmra.mrb[0].mxu0 %v8439
    %v8708 = vpop.f32.mrb[0].mxu0
    %v8709 = vadd.f32 %v8517, %v8708
    %v8710 = vpop.f32.mrb[0].mxu0
    %8711 = vmatprep.mubr.f32.mxu0 %v8580
    %8712 = vmatmul.mubr.f32.gmra.mrb[0].mxu0 %v8441
    %v8713 = vpop.f32.mrb[0].mxu0
    %v8714 = vadd.f32 %v8522, %v8713
    %v8715 = vpop.f32.mrb[0].mxu0
    %8716 = vmatprep.mubr.f32.mxu0 %v8583
    %8717 = vmatmul.mubr.f32.gmra.mrb[0].mxu0 %v8443
    %v8718 = vpop.f32.mrb[0].mxu0
    %v8719 = vadd.f32 %v8527, %v8718
    %v8720 = vpop.f32.mrb[0].mxu0
    %8721 = vmatprep.mubr.f32.mxu0 %v8586
    %8722 = vmatmul.mubr.f32.gmra.mrb[0].mxu0 %v8445
    %v8723 = vpop.f32.mrb[0].mxu0
    %v8724 = vadd.f32 %v8532, %v8723
    %v8725 = vpop.f32.mrb[0].mxu0
    %8726 = vmatprep.mubr.f32.mxu0 %v8589
    %8727 = vmatmul.mubr.f32.gmra.mrb[0].mxu0 %v8447
    %v8728 = vpop.f32.mrb[0].mxu0
    %v8729 = vadd.f32 %v8537, %v8728
    %v8730 = vpop.f32.mrb[0].mxu0
    %8731 = vmatprep.mubr.f32.mxu0 %v8592
    %8732 = vmatmul.mubr.f32.gmra.mrb[0].mxu0 %v8449
    %v8733 = vpop.f32.mrb[0].mxu0
    %v8734 = vadd.f32 %v8542, %v8733
    %v8735 = vpop.f32.mrb[0].mxu0
    %8736 = vmatprep.mubr.f32.mxu0 %v8595
    %8737 = vmatmul.mubr.f32.gmra.mrb[0].mxu0 %v8451
    %v8738 = vpop.f32.mrb[0].mxu0
    %v8739 = vadd.f32 %v8547, %v8738
    %v8740 = vpop.f32.mrb[0].mxu0
    %8741 = vdwg.mxu0
    %v8742 = vmax.f32 %v8664, 0.0
    %v8743 = vmax.f32 %v8669, 0.0
    %v8744 = vmax.f32 %v8674, 0.0
    %v8745 = vmax.f32 %v8679, 0.0
    %v8746 = vmax.f32 %v8684, 0.0
    %v8747 = vmax.f32 %v8689, 0.0
    %v8748 = vmax.f32 %v8694, 0.0
    %v8749 = vmax.f32 %v8699, 0.0
    %v8750 = vmax.f32 %v8704, 0.0
    %v8751 = vmax.f32 %v8709, 0.0
    %v8752 = vmax.f32 %v8714, 0.0
    %v8753 = vmax.f32 %v8719, 0.0
    %v8754 = vmax.f32 %v8724, 0.0
    %v8755 = vmax.f32 %v8729, 0.0
    %v8756 = vmax.f32 %v8734, 0.0
    %v8757 = vmax.f32 %v8739, 0.0
    %v8758 = vld [vmem:[%s15] sm:$0xff]
    %v8759 = vld [vmem:[%s15 + $0x8] sm:$0xff]
    %v8760 = vld [vmem:[%s15 + $0x10] sm:$0xff]
    %v8761 = vld [vmem:[%s15 + $0x18] sm:$0xff]
    %v8762 = vld [vmem:[%s15 + $0x20] sm:$0xff]
    %v8763 = vld [vmem:[%s15 + $0x28] sm:$0xff]
    %v8764 = vld [vmem:[%s15 + $0x30] sm:$0xff]
    %v8765 = vld [vmem:[%s15 + $0x38] sm:$0xff]
    %v8766 = vld [vmem:[%s16] sm:$0xff]
    %v8767 = vld [vmem:[%s16 + $0x8] sm:$0xff]
    %v8768 = vld [vmem:[%s16 + $0x10] sm:$0xff]
    %v8769 = vld [vmem:[%s16 + $0x18] sm:$0xff]
    %v8770 = vld [vmem:[%s16 + $0x20] sm:$0xff]
    %v8771 = vld [vmem:[%s16 + $0x28] sm:$0xff]
    %v8772 = vld [vmem:[%s16 + $0x30] sm:$0xff]
    %v8773 = vld [vmem:[%s16 + $0x38] sm:$0xff]
    %8775 = vset.pattern.permute.xlu0 0
    %8776 = vperm.xlu0 %8775, %v8766
    %v8777 = vpop.permute.xlu0 %8776
    %8780 = vset.pattern.permute.xlu0 0
    %8781 = vperm.xlu0 %8780, %v8767
    %v8782 = vpop.permute.xlu0 %8781
    %8785 = vset.pattern.permute.xlu0 0
    %8786 = vperm.xlu0 %8785, %v8768
    %v8787 = vpop.permute.xlu0 %8786
    %8790 = vset.pattern.permute.xlu0 0
    %8791 = vperm.xlu0 %8790, %v8769
    %v8792 = vpop.permute.xlu0 %8791
    %8795 = vset.pattern.permute.xlu0 0
    %8796 = vperm.xlu0 %8795, %v8770
    %v8797 = vpop.permute.xlu0 %8796
    %8800 = vset.pattern.permute.xlu0 0
    %8801 = vperm.xlu0 %8800, %v8771
    %v8802 = vpop.permute.xlu0 %8801
    %8805 = vset.pattern.permute.xlu0 0
    %8806 = vperm.xlu0 %8805, %v8772
    %v8807 = vpop.permute.xlu0 %8806
    %8810 = vset.pattern.permute.xlu0 0
    %8811 = vperm.xlu0 %8810, %v8773
    %v8812 = vpop.permute.xlu0 %8811
    %8814 = vmatprep.subr.mxu0 0.0
    %8815 = vmatpush1.msra.mxu0 %v8742
    %8816 = vmatprep.subr.mxu0 0.0
    %8817 = vmatpush1.msra.mxu0 %v8743
    %8818 = vmatprep.subr.mxu0 0.0
    %8819 = vmatpush1.msra.mxu0 %v8744
    %8820 = vmatprep.subr.mxu0 0.0
    %8821 = vmatpush1.msra.mxu0 %v8745
    %8822 = vmatprep.subr.mxu0 0.0
    %8823 = vmatpush1.msra.mxu0 %v8746
    %8824 = vmatprep.subr.mxu0 0.0
    %8825 = vmatpush1.msra.mxu0 %v8747
    %8826 = vmatprep.subr.mxu0 0.0
    %8827 = vmatpush1.msra.mxu0 %v8748
    %8828 = vmatprep.subr.mxu0 0.0
    %8829 = vmatpush1.msra.mxu0 %v8749
    %8830 = vmatprep.subr.mxu0 0.0
    %8831 = vmatpush1.msra.mxu0 %v8750
    %8832 = vmatprep.subr.mxu0 0.0
    %8833 = vmatpush1.msra.mxu0 %v8751
    %8834 = vmatprep.subr.mxu0 0.0
    %8835 = vmatpush1.msra.mxu0 %v8752
    %8836 = vmatprep.subr.mxu0 0.0
    %8837 = vmatpush1.msra.mxu0 %v8753
    %8838 = vmatprep.subr.mxu0 0.0
    %8839 = vmatpush1.msra.mxu0 %v8754
    %8840 = vmatprep.subr.mxu0 0.0
    %8841 = vmatpush1.msra.mxu0 %v8755
    %8842 = vmatprep.subr.mxu0 0.0
    %8843 = vmatpush1.msra.mxu0 %v8756
    %8844 = vmatprep.subr.mxu0 0.0
    %8845 = vmatpush1.msra.mxu0 %v8757
    %8846 = vmatprep.subr.mxu0 0.0
    %8847 = vmatpush1.msra.mxu0 0.0
    %8848 = vmatprep.subr.mxu0 0.0
    %8849 = vmatpush1.msra.mxu0 0.0
    %8850 = vmatprep.subr.mxu0 0.0
    %8851 = vmatpush1.msra.mxu0 0.0
    %8852 = vmatprep.subr.mxu0 0.0
    %8853 = vmatpush1.msra.mxu0 0.0
    %8854 = vmatprep.subr.mxu0 0.0
    %8855 = vmatpush1.msra.mxu0 0.0
    %8856 = vmatprep.subr.mxu0 0.0
    %8857 = vmatpush1.msra.mxu0 0.0
    %8858 = vmatprep.subr.mxu0 0.0
    %8859 = vmatpush1.msra.mxu0 0.0
    %8860 = vmatprep.subr.mxu0 0.0
    %8861 = vmatpush1.msra.mxu0 0.0
    %8862 = vmatprep.subr.mxu0 0.0
    %8863 = vmatpush1.msra.mxu0 0.0
    %8864 = vmatprep.subr.mxu0 0.0
    %8865 = vmatpush1.msra.mxu0 0.0
    %8866 = vmatprep.subr.mxu0 0.0
    %8867 = vmatpush1.msra.mxu0 0.0
    %8868 = vmatprep.subr.mxu0 0.0
    %8869 = vmatpush1.msra.mxu0 0.0
    %8870 = vmatprep.subr.mxu0 0.0
    %8871 = vmatpush1.msra.mxu0 0.0
    %8872 = vmatprep.subr.mxu0 0.0
    %8873 = vmatpush1.msra.mxu0 0.0
    %8874 = vmatprep.subr.mxu0 0.0
    %8875 = vmatpush1.msra.mxu0 0.0
    %8876 = vmatprep.subr.mxu0 0.0
    %8877 = vmatpush1.msra.mxu0 0.0
    %8878 = vmatprep.mubr.f32.mxu0 0.0
    %8879 = vmatmul.mubr.f32.gmra.mrb[0].mxu0 %v8758
    %v8880 = vpop.f32.mrb[0].mxu0
    %v8881 = vadd.f32 %v8777, %v8880
    %v8882 = vpop.f32.mrb[0].mxu0
    %8883 = vmatprep.mubr.f32.mxu0 0.0
    %8884 = vmatmul.mubr.f32.gmra.mrb[0].mxu0 %v8759
    %v8885 = vpop.f32.mrb[0].mxu0
    %v8886 = vadd.f32 %v8782, %v8885
    %v8887 = vpop.f32.mrb[0].mxu0
    %8888 = vmatprep.mubr.f32.mxu0 0.0
    %8889 = vmatmul.mubr.f32.gmra.mrb[0].mxu0 %v8760
    %v8890 = vpop.f32.mrb[0].mxu0
    %v8891 = vadd.f32 %v8787, %v8890
    %v8892 = vpop.f32.mrb[0].mxu0
    %8893 = vmatprep.mubr.f32.mxu0 0.0
    %8894 = vmatmul.mubr.f32.gmra.mrb[0].mxu0 %v8761
    %v8895 = vpop.f32.mrb[0].mxu0
    %v8896 = vadd.f32 %v8792, %v8895
    %v8897 = vpop.f32.mrb[0].mxu0
    %8898 = vmatprep.mubr.f32.mxu0 0.0
    %8899 = vmatmul.mubr.f32.gmra.mrb[0].mxu0 %v8762
    %v8900 = vpop.f32.mrb[0].mxu0
    %v8901 = vadd.f32 %v8797, %v8900
    %v8902 = vpop.f32.mrb[0].mxu0
    %8903 = vmatprep.mubr.f32.mxu0 0.0
    %8904 = vmatmul.mubr.f32.gmra.mrb[0].mxu0 %v8763
    %v8905 = vpop.f32.mrb[0].mxu0
    %v8906 = vadd.f32 %v8802, %v8905
    %v8907 = vpop.f32.mrb[0].mxu0
    %8908 = vmatprep.mubr.f32.mxu0 0.0
    %8909 = vmatmul.mubr.f32.gmra.mrb[0].mxu0 %v8764
    %v8910 = vpop.f32.mrb[0].mxu0
    %v8911 = vadd.f32 %v8807, %v8910
    %v8912 = vpop.f32.mrb[0].mxu0
    %8913 = vmatprep.mubr.f32.mxu0 0.0
    %8914 = vmatmul.mubr.f32.gmra.mrb[0].mxu0 %v8765
    %v8915 = vpop.f32.mrb[0].mxu0
    %v8916 = vadd.f32 %v8812, %v8915
    %v8917 = vpop.f32.mrb[0].mxu0
    %8918 = vdwg.mxu0
    %v8919 = vmax.f32 %v8881, 0.0
    %v8920 = vmax.f32 %v8886, 0.0
    %v8921 = vmax.f32 %v8891, 0.0
    %v8922 = vmax.f32 %v8896, 0.0
    %v8923 = vmax.f32 %v8901, 0.0
    %v8924 = vmax.f32 %v8906, 0.0
    %v8925 = vmax.f32 %v8911, 0.0
    %v8926 = vmax.f32 %v8916, 0.0
    %v8927 = vld [vmem:[%s17] sm:$0xff]
    %v8928 = vld [vmem:[%s18] sm:$0xff]
    %8930 = vset.pattern.permute.xlu0 0
    %8931 = vperm.xlu0 %8930, %v8928
    %v8932 = vpop.permute.xlu0 %8931
    %vm8934 = vcmask 523264
    %v8936 = vsel %vm8934, %v8927, 0
    %8938 = vmatprep.subr.mxu0 0.0
    %8939 = vmatpush1.msra.mxu0 %v8919
    %8940 = vmatprep.subr.mxu0 0.0
    %8941 = vmatpush1.msra.mxu0 %v8920
    %8942 = vmatprep.subr.mxu0 0.0
    %8943 = vmatpush1.msra.mxu0 %v8921
    %8944 = vmatprep.subr.mxu0 0.0
    %8945 = vmatpush1.msra.mxu0 %v8922
    %8946 = vmatprep.subr.mxu0 0.0
    %8947 = vmatpush1.msra.mxu0 %v8923
    %8948 = vmatprep.subr.mxu0 0.0
    %8949 = vmatpush1.msra.mxu0 %v8924
    %8950 = vmatprep.subr.mxu0 0.0
    %8951 = vmatpush1.msra.mxu0 %v8925
    %8952 = vmatprep.subr.mxu0 0.0
    %8953 = vmatpush1.msra.mxu0 %v8926
    %8954 = vmatprep.subr.mxu0 0.0
    %8955 = vmatpush1.msra.mxu0 0.0
    %8956 = vmatprep.subr.mxu0 0.0
    %8957 = vmatpush1.msra.mxu0 0.0
    %8958 = vmatprep.subr.mxu0 0.0
    %8959 = vmatpush1.msra.mxu0 0.0
    %8960 = vmatprep.subr.mxu0 0.0
    %8961 = vmatpush1.msra.mxu0 0.0
    %8962 = vmatprep.subr.mxu0 0.0
    %8963 = vmatpush1.msra.mxu0 0.0
    %8964 = vmatprep.subr.mxu0 0.0
    %8965 = vmatpush1.msra.mxu0 0.0
    %8966 = vmatprep.subr.mxu0 0.0
    %8967 = vmatpush1.msra.mxu0 0.0
    %8968 = vmatprep.subr.mxu0 0.0
    %8969 = vmatpush1.msra.mxu0 0.0
    %8970 = vmatprep.subr.mxu0 0.0
    %8971 = vmatpush1.msra.mxu0 0.0
    %8972 = vmatprep.subr.mxu0 0.0
    %8973 = vmatpush1.msra.mxu0 0.0
    %8974 = vmatprep.subr.mxu0 0.0
    %8975 = vmatpush1.msra.mxu0 0.0
    %8976 = vmatprep.subr.mxu0 0.0
    %8977 = vmatpush1.msra.mxu0 0.0
    %8978 = vmatprep.subr.mxu0 0.0
    %8979 = vmatpush1.msra.mxu0 0.0
    %8980 = vmatprep.subr.mxu0 0.0
    %8981 = vmatpush1.msra.mxu0 0.0
    %8982 = vmatprep.subr.mxu0 0.0
    %8983 = vmatpush1.msra.mxu0 0.0
    %8984 = vmatprep.subr.mxu0 0.0
    %8985 = vmatpush1.msra.mxu0 0.0
    %8986 = vmatprep.subr.mxu0 0.0
    %8987 = vmatpush1.msra.mxu0 0.0
    %8988 = vmatprep.subr.mxu0 0.0
    %8989 = vmatpush1.msra.mxu0 0.0
    %8990 = vmatprep.subr.mxu0 0.0
    %8991 = vmatpush1.msra.mxu0 0.0
    %8992 = vmatprep.subr.mxu0 0.0
    %8993 = vmatpush1.msra.mxu0 0.0
    %8994 = vmatprep.subr.mxu0 0.0
    %8995 = vmatpush1.msra.mxu0 0.0
    %8996 = vmatprep.subr.mxu0 0.0
    %8997 = vmatpush1.msra.mxu0 0.0
    %8998 = vmatprep.subr.mxu0 0.0
    %8999 = vmatpush1.msra.mxu0 0.0
    %9000 = vmatprep.subr.mxu0 0.0
    %9001 = vmatpush1.msra.mxu0 0.0
    %9002 = vmatprep.mubr.f32.mxu0 0.0
    %9003 = vmatmul.mubr.f32.gmra.mrb[0].mxu0 %v8936
    %v9004 = vpop.f32.mrb[0].mxu0
    %v9005 = vadd.f32 %v8932, %v9004
    %v9006 = vpop.f32.mrb[0].mxu0
    %9007 = vdwg.mxu0
    %9008 = vst [vmem:[#allocation4] sm:$0xff] %v9005
    // Predicated region
    $region78: #{tpu_custom_call.1} parent=1 // pred_check
      _
    $region79: #{tpu_custom_call.1} parent=1 // pred_check_branch
      %9010 = sbr.rel (0) target = $region81
    $region80: #{tpu_custom_call.1} parent=1 // pred_region
      %s9012 = ssub.s32 128, 128
      %9013 = vsyncadd [#allocation5], %s9012
      %s9015 = sshll.u32 [#allocation4], 4
      %s9016 = int_to_ptr.vmem [resolvable:$true] %s9015
      %9018 = dma.vmem_to_hbm [thread:$0]  %s9016, 128, %s19, [#allocation5]
    $region81: #{tpu_custom_call.1} parent=1 // pred_fallthru
      _
    // Predicated region
    $region82: #{tpu_custom_call.1} parent=1 // pred_check
      _
    $region83: #{tpu_custom_call.1} parent=1 // pred_check_branch
      %9020 = sbr.rel (0) target = $region85
    $region84: #{tpu_custom_call.1} parent=1 // pred_region
      %9021 = dma.done [#allocation5], 128
    $region85: #{tpu_custom_call.1} parent=1 // pred_fallthru
      _
    %9022 = vsyncpa [#allocation5], 1

</llo_original>
